<compile_context>
chip_gen: v7x
topology: tpu7x:2x2x1
jax: 0.10.0
libtpu: 0.0.40
codegen_flags: <defaults>
</compile_context>

<pallas_src>
from functools import partial

import jax
import jax.numpy as jnp
from jax.experimental import pallas as pl
from jax.experimental.pallas import tpu as pltpu


def _layer_norm(x, gamma, beta, eps=1e-5):
    mu = jnp.mean(x, axis=-1, keepdims=True)
    var = jnp.mean((x - mu) ** 2, axis=-1, keepdims=True)
    return (x - mu) * jax.lax.rsqrt(var + eps) * gamma + beta


def transformer_block_kernel(
    x_full_ref, x_tile_ref,
    ln1_g_ref, ln1_b_ref,
    wqkv_ref, bqkv_ref,
    wo_ref, bo_ref,
    ln2_g_ref, ln2_b_ref,
    w13_ref, b13_ref,
    w2_ref, b2_ref,
    o_ref,
    q_scr, k_scr, v_scr,
    *, heads, dim_head, scale,
):
    dh = dim_head
    inner = heads * dh
    hidden = b13_ref.shape[-1] // 2
    tq = x_tile_ref.shape[1]
    qi = pl.program_id(1)

    # ---- once per batch element: PreNorm + fused QKV projection for all rows ----
    @pl.when(qi == 0)
    def _():
        xf = x_full_ref[0].astype(jnp.float32)                               # (N, D)
        xn = _layer_norm(xf, ln1_g_ref[...], ln1_b_ref[...])
        qkv = jnp.dot(xn.astype(jnp.bfloat16), wqkv_ref[...],
                      preferred_element_type=jnp.float32) + bqkv_ref[...]    # (N, 3*inner)
        q_scr[...] = (qkv[:, :inner] * scale).astype(jnp.bfloat16)           # scale folded in
        for h in range(heads):     # one-time head-major re-layout (static slices)
            k_scr[h] = qkv[:, inner + h * dh: inner + (h + 1) * dh].astype(jnp.bfloat16)
            v_scr[h] = qkv[:, 2 * inner + h * dh: 2 * inner + (h + 1) * dh].astype(jnp.bfloat16)

    # ---- per query-row tile: attention + residual + Mlp + residual ----
    i0 = pl.multiple_of(qi * tq, tq)
    q2 = q_scr[pl.ds(i0, tq), :]                                             # (tq, inner)
    qt = jnp.stack([q2[:, h * dh:(h + 1) * dh] for h in range(heads)], axis=0)  # (h, tq, dh)

    s = jnp.einsum('hqd,hkd->hqk', qt, k_scr[...],
                   preferred_element_type=jnp.float32)                       # (h, tq, N)
    s = s - jnp.max(s, axis=-1, keepdims=True)
    e = jnp.exp(s)
    p = e * pl.reciprocal(jnp.sum(e, axis=-1, keepdims=True), approx=True)
    o = jnp.einsum('hqk,hkd->hqd', p.astype(jnp.bfloat16), v_scr[...],
                   preferred_element_type=jnp.float32)                       # (h, tq, dh)
    att = jnp.concatenate([o[h] for h in range(heads)], axis=-1)             # (tq, inner)

    attn_out = jnp.dot(att.astype(jnp.bfloat16), wo_ref[...],
                       preferred_element_type=jnp.float32) + bo_ref[...]
    x1 = attn_out + x_tile_ref[0].astype(jnp.float32)                        # residual 1

    xn2 = _layer_norm(x1, ln2_g_ref[...], ln2_b_ref[...])
    h13 = jnp.dot(xn2.astype(jnp.bfloat16), w13_ref[...],
                  preferred_element_type=jnp.float32) + b13_ref[...]         # (tq, 2*hidden)
    h1 = h13[:, :hidden]
    h3 = h13[:, hidden:]
    hh = (h1 * jax.nn.sigmoid(h1)) * h3                                      # SiLU(fc1)*fc3
    y = jnp.dot(hh.astype(jnp.bfloat16), w2_ref[...],
                preferred_element_type=jnp.float32) + b2_ref[...]
    o_ref[0] = (y + x1).astype(o_ref.dtype)                                  # residual 2


def transformer_block(x, params, *, heads, dim_head, q_tile=128):
    B, N, D = x.shape
    inner = heads * dim_head
    hidden = params["w1"].shape[1]
    tq = N if N <= q_tile else q_tile
    assert N % tq == 0, "sequence length must be divisible by the query tile"
    n_qt = N // tq
    scale = float(dim_head) ** -0.5

    bf16, f32 = jnp.bfloat16, jnp.float32
    # Fuse fc1/fc3 -> one (D, 2*hidden) weight; weights bf16, biases / LN params f32 (1, dim).
    w13 = jnp.concatenate([params["w1"], params["w3"]], axis=1).astype(bf16)
    b13 = jnp.concatenate([params["b1"], params["b3"]]).reshape(1, -1).astype(f32)
    param_list = [
        params["ln1_g"].reshape(1, D).astype(f32),
        params["ln1_b"].reshape(1, D).astype(f32),
        params["wqkv"].astype(bf16),
        params["bqkv"].reshape(1, -1).astype(f32),
        params["wo"].astype(bf16),
        params["bo"].reshape(1, -1).astype(f32),
        params["ln2_g"].reshape(1, D).astype(f32),
        params["ln2_b"].reshape(1, D).astype(f32),
        w13, b13,
        params["w2"].astype(bf16),
        params["b2"].reshape(1, -1).astype(f32),
    ]

    def _const_spec(p):
        zeros = (0,) * p.ndim
        return pl.BlockSpec(p.shape, lambda b, q, z=zeros: z)

    param_specs = [_const_spec(p) for p in param_list]

    kernel = partial(transformer_block_kernel, heads=heads, dim_head=dim_head, scale=scale)

    flops = 2 * B * N * (D * 3 * inner + 2 * heads * N * dim_head
                         + inner * D + D * 2 * hidden + hidden * D)
    transcendentals = B * (heads * N * N + N * hidden)
    bytes_accessed = (2 * B * N * D * x.dtype.itemsize
                      + sum(int(p.size) * p.dtype.itemsize for p in param_list))

    return pl.pallas_call(
        kernel,
        out_shape=jax.ShapeDtypeStruct((B, N, D), x.dtype),
        grid_spec=pltpu.PrefetchScalarGridSpec(
            num_scalar_prefetch=0,
            grid=(B, n_qt),
            in_specs=[pl.BlockSpec((1, N, D), lambda b, q: (b, 0, 0)),    # all rows (for K/V)
                      pl.BlockSpec((1, tq, D), lambda b, q: (b, q, 0))]   # query-row tile
                     + param_specs,
            out_specs=pl.BlockSpec((1, tq, D), lambda b, q: (b, q, 0)),
            scratch_shapes=[
                pltpu.VMEM((N, inner), bf16),             # scaled Q, row-major
                pltpu.VMEM((heads, N, dim_head), bf16),   # K, head-major
                pltpu.VMEM((heads, N, dim_head), bf16),   # V, head-major
            ],
        ),
        compiler_params=pltpu.CompilerParams(
            dimension_semantics=("parallel", "arbitrary"),
            vmem_limit_bytes=64 * 1024 * 1024,
        ),
        cost_estimate=pl.CostEstimate(
            flops=flops, transcendentals=transcendentals, bytes_accessed=bytes_accessed),
    )(x, x, *param_list)


def init_params(key, input_dim, output_dim, hidden_dim, heads, dim_head):
    inner = heads * dim_head
    ks = jax.random.split(key, 12)
    s = 0.05
    return {
        "ln1_g": 1.0 + 0.1 * jax.random.normal(ks[7], (input_dim,), jnp.float32),
        "ln1_b": 0.05 * jax.random.normal(ks[8], (input_dim,), jnp.float32),
        "wqkv": jax.random.normal(ks[0], (input_dim, 3 * inner), jnp.float32) * s,
        "bqkv": jax.random.normal(ks[1], (3 * inner,), jnp.float32) * s,
        "wo": jax.random.normal(ks[2], (inner, output_dim), jnp.float32) * s,
        "bo": jax.random.normal(ks[3], (output_dim,), jnp.float32) * s,
        "ln2_g": 1.0 + 0.1 * jax.random.normal(ks[9], (output_dim,), jnp.float32),
        "ln2_b": 0.05 * jax.random.normal(ks[10], (output_dim,), jnp.float32),
        "w1": jax.random.normal(ks[4], (output_dim, hidden_dim), jnp.float32) * s,
        "b1": jnp.zeros((hidden_dim,), jnp.float32),
        "w3": jax.random.normal(ks[5], (output_dim, hidden_dim), jnp.float32) * s,
        "b3": jnp.zeros((hidden_dim,), jnp.float32),
        "w2": jax.random.normal(ks[6], (hidden_dim, output_dim), jnp.float32) * s,
        "b2": jnp.zeros((output_dim,), jnp.float32),
    }


def reference_block(x, params, *, heads, dim_head):
    """Pure-JAX f32 reference matching the PyTorch module (eval mode)."""
    B, N, D = x.shape
    inner = heads * dim_head
    scale = float(dim_head) ** -0.5

    def ln(v, g, b):
        mu = v.mean(-1, keepdims=True)
        var = ((v - mu) ** 2).mean(-1, keepdims=True)
        return (v - mu) / jnp.sqrt(var + 1e-5) * g + b

    xn = ln(x, params["ln1_g"], params["ln1_b"])
    qkv = xn @ params["wqkv"] + params["bqkv"]
    q, k, v = jnp.split(qkv, 3, axis=-1)
    split = lambda t: t.reshape(B, N, heads, dim_head).transpose(0, 2, 1, 3)
    q, k, v = split(q), split(k), split(v)
    dots = jnp.einsum('bhnd,bhmd->bhnm', q, k) * scale
    attn = jax.nn.softmax(dots, axis=-1)
    o = jnp.einsum('bhnm,bhmd->bhnd', attn, v)
    o = o.transpose(0, 2, 1, 3).reshape(B, N, inner)
    x1 = x + (o @ params["wo"] + params["bo"])
    xn2 = ln(x1, params["ln2_g"], params["ln2_b"])
    h1 = xn2 @ params["w1"] + params["b1"]
    h3 = xn2 @ params["w3"] + params["b3"]
    y = (h1 * jax.nn.sigmoid(h1) * h3) @ params["w2"] + params["b2"]
    return x1 + y


if __name__ == "__main__":
    # Small but TPU-tile-aligned shapes (lane-dense loads/stores, 2 query tiles per batch).
    B, N = 2, 256
    input_dim = output_dim = 128
    hidden_dim = 256
    heads, dim_head = 4, 32

    key = jax.random.PRNGKey(0)
    kx, kp = jax.random.split(key)
    x = jax.random.normal(kx, (B, N, input_dim), jnp.float32)
    params = init_params(kp, input_dim, output_dim, hidden_dim, heads, dim_head)

    out = transformer_block(x, params, heads=heads, dim_head=dim_head, q_tile=128)
    out = jax.block_until_ready(out)
    assert out.shape == (B, N, output_dim)
    assert bool(jnp.all(jnp.isfinite(out)))

    ref = reference_block(x, params, heads=heads, dim_head=dim_head)
    err = float(jnp.max(jnp.abs(out - ref)))
    assert err < 5e-2, f"max abs error vs f32 reference: {err}"
    print("KERNEL_OK")
</pallas_src>

<mosaic_0001>
module attributes {stable_mosaic.version = 11 : i64} {
  func.func @transformer_block_kernel(%arg0: i32, %arg1: i32, %arg2: memref<1x256x128xf32, #tpu.memory_space<vmem>>, %arg3: memref<1x128x128xf32, #tpu.memory_space<vmem>>, %arg4: memref<1x128xf32, #tpu.memory_space<vmem>>, %arg5: memref<1x128xf32, #tpu.memory_space<vmem>>, %arg6: memref<128x384xbf16, #tpu.memory_space<vmem>>, %arg7: memref<1x384xf32, #tpu.memory_space<vmem>>, %arg8: memref<128x128xbf16, #tpu.memory_space<vmem>>, %arg9: memref<1x128xf32, #tpu.memory_space<vmem>>, %arg10: memref<1x128xf32, #tpu.memory_space<vmem>>, %arg11: memref<1x128xf32, #tpu.memory_space<vmem>>, %arg12: memref<128x512xbf16, #tpu.memory_space<vmem>>, %arg13: memref<1x512xf32, #tpu.memory_space<vmem>>, %arg14: memref<256x128xbf16, #tpu.memory_space<vmem>>, %arg15: memref<1x128xf32, #tpu.memory_space<vmem>>, %arg16: memref<1x128x128xf32, #tpu.memory_space<vmem>>, %arg17: memref<256x128xbf16, #tpu.memory_space<vmem>>, %arg18: memref<4x256x32xbf16, #tpu.memory_space<vmem>>, %arg19: memref<4x256x32xbf16, #tpu.memory_space<vmem>>) attributes {dimension_semantics = [#tpu.dimension_semantics<parallel>, #tpu.dimension_semantics<arbitrary>], iteration_bounds = array<i64: 2, 2>, scalar_prefetch = 0 : i64, scratch_operands = 3 : i64, tpu.core_type = #tpu.core_type<tc>, window_params = [{transform_indices = @transform_0, window_bounds = array<i64: 1, 256, 128>}, {transform_indices = @transform_1, window_bounds = array<i64: 1, 128, 128>}, {pipeline_mode = #tpu.pipeline_mode<synchronous>, transform_indices = @transform_2, window_bounds = array<i64: 1, 128>}, {pipeline_mode = #tpu.pipeline_mode<synchronous>, transform_indices = @transform_3, window_bounds = array<i64: 1, 128>}, {pipeline_mode = #tpu.pipeline_mode<synchronous>, transform_indices = @transform_4, window_bounds = array<i64: 128, 384>}, {pipeline_mode = #tpu.pipeline_mode<synchronous>, transform_indices = @transform_5, window_bounds = array<i64: 1, 384>}, {pipeline_mode = #tpu.pipeline_mode<synchronous>, transform_indices = @transform_6, window_bounds = array<i64: 128, 128>}, {pipeline_mode = #tpu.pipeline_mode<synchronous>, transform_indices = @transform_7, window_bounds = array<i64: 1, 128>}, {pipeline_mode = #tpu.pipeline_mode<synchronous>, transform_indices = @transform_8, window_bounds = array<i64: 1, 128>}, {pipeline_mode = #tpu.pipeline_mode<synchronous>, transform_indices = @transform_9, window_bounds = array<i64: 1, 128>}, {pipeline_mode = #tpu.pipeline_mode<synchronous>, transform_indices = @transform_10, window_bounds = array<i64: 128, 512>}, {pipeline_mode = #tpu.pipeline_mode<synchronous>, transform_indices = @transform_11, window_bounds = array<i64: 1, 512>}, {pipeline_mode = #tpu.pipeline_mode<synchronous>, transform_indices = @transform_12, window_bounds = array<i64: 256, 128>}, {pipeline_mode = #tpu.pipeline_mode<synchronous>, transform_indices = @transform_13, window_bounds = array<i64: 1, 128>}, {transform_indices = @transform_14, window_bounds = array<i64: 1, 128, 128>}]} {
    %c0_i32 = arith.constant 0 : i32
    %0 = arith.cmpi eq, %arg1, %c0_i32 : i32
    %1 = arith.extui %0 : i1 to i32
    %c0_i32_0 = arith.constant 0 : i32
    %2 = arith.cmpi ne, %1, %c0_i32_0 : i32
    scf.if %2 {
      %c0_41 = arith.constant 0 : index
      %c0_42 = arith.constant 0 : index
      %c0_43 = arith.constant 0 : index
      %98 = vector.load %arg2[%c0_41, %c0_42, %c0_43] : memref<1x256x128xf32, #tpu.memory_space<vmem>>, vector<1x256x128xf32>
      %99 = vector.shape_cast %98 : vector<1x256x128xf32> to vector<256x128xf32>
      %c0_44 = arith.constant 0 : index
      %c0_45 = arith.constant 0 : index
      %100 = vector.load %arg4[%c0_44, %c0_45] : memref<1x128xf32, #tpu.memory_space<vmem>>, vector<1x128xf32>
      %c0_46 = arith.constant 0 : index
      %c0_47 = arith.constant 0 : index
      %101 = vector.load %arg5[%c0_46, %c0_47] : memref<1x128xf32, #tpu.memory_space<vmem>>, vector<1x128xf32>
      %cst_48 = arith.constant dense<0.000000e+00> : vector<256xf32>
      %102 = vector.multi_reduction <add>, %99, %cst_48 [1] : vector<256x128xf32> to vector<256xf32>
      %103 = vector.shape_cast %102 : vector<256xf32> to vector<256x1xf32>
      %cst_49 = arith.constant 1.280000e+02 : f32
      %104 = vector.broadcast %cst_49 : f32 to vector<256x1xf32>
      %105 = arith.divf %103, %104 : vector<256x1xf32>
      %106 = vector.broadcast %105 : vector<256x1xf32> to vector<256x128xf32>
      %107 = arith.subf %99, %106 : vector<256x128xf32>
      %108 = arith.mulf %107, %107 : vector<256x128xf32>
      %cst_50 = arith.constant dense<0.000000e+00> : vector<256xf32>
      %109 = vector.multi_reduction <add>, %108, %cst_50 [1] : vector<256x128xf32> to vector<256xf32>
      %110 = vector.shape_cast %109 : vector<256xf32> to vector<256x1xf32>
      %cst_51 = arith.constant 1.280000e+02 : f32
      %111 = vector.broadcast %cst_51 : f32 to vector<256x1xf32>
      %112 = arith.divf %110, %111 : vector<256x1xf32>
      %113 = vector.broadcast %105 : vector<256x1xf32> to vector<256x128xf32>
      %114 = arith.subf %99, %113 : vector<256x128xf32>
      %cst_52 = arith.constant 9.99999974E-6 : f32
      %115 = vector.broadcast %cst_52 : f32 to vector<256x1xf32>
      %116 = arith.addf %112, %115 : vector<256x1xf32>
      %117 = math.rsqrt %116 : vector<256x1xf32>
      %118 = vector.broadcast %117 : vector<256x1xf32> to vector<256x128xf32>
      %119 = arith.mulf %114, %118 : vector<256x128xf32>
      %120 = vector.broadcast %100 : vector<1x128xf32> to vector<256x128xf32>
      %121 = arith.mulf %119, %120 : vector<256x128xf32>
      %122 = vector.broadcast %101 : vector<1x128xf32> to vector<256x128xf32>
      %123 = arith.addf %121, %122 : vector<256x128xf32>
      %124 = arith.truncf %123 : vector<256x128xf32> to vector<256x128xbf16>
      %c0_53 = arith.constant 0 : index
      %c0_54 = arith.constant 0 : index
      %125 = vector.load %arg6[%c0_53, %c0_54] : memref<128x384xbf16, #tpu.memory_space<vmem>>, vector<128x384xbf16>
      %cst_55 = arith.constant dense<0.000000e+00> : vector<256x384xf32>
      %126 = tpu.matmul %124, %125, %cst_55 {dimension_numbers = #tpu.dot_dimension_numbers<[1], [0], [0], [1], [0, 0, 1, 1], [], []>} : vector<256x128xbf16>, vector<128x384xbf16>, vector<256x384xf32> -> vector<256x384xf32>
      %c0_56 = arith.constant 0 : index
      %c0_57 = arith.constant 0 : index
      %127 = vector.load %arg7[%c0_56, %c0_57] : memref<1x384xf32, #tpu.memory_space<vmem>>, vector<1x384xf32>
      %128 = vector.broadcast %127 : vector<1x384xf32> to vector<256x384xf32>
      %129 = arith.addf %126, %128 : vector<256x384xf32>
      %130 = vector.extract_strided_slice %129 {offsets = [0, 0], sizes = [256, 128], strides = [1, 1]} : vector<256x384xf32> to vector<256x128xf32>
      %cst_58 = arith.constant 0.176776692 : f32
      %131 = vector.broadcast %cst_58 : f32 to vector<256x128xf32>
      %132 = arith.mulf %130, %131 : vector<256x128xf32>
      %133 = arith.truncf %132 : vector<256x128xf32> to vector<256x128xbf16>
      %c0_59 = arith.constant 0 : index
      %c0_60 = arith.constant 0 : index
      %134 = vector.load %arg17[%c0_59, %c0_60] : memref<256x128xbf16, #tpu.memory_space<vmem>>, vector<256x128xbf16>
      tpu.vector_store %arg17[%c0_59, %c0_60], %133 {strides = array<i32>} : memref<256x128xbf16, #tpu.memory_space<vmem>>, vector<256x128xbf16>,
      %135 = vector.extract_strided_slice %129 {offsets = [0, 128], sizes = [256, 32], strides = [1, 1]} : vector<256x384xf32> to vector<256x32xf32>
      %136 = arith.truncf %135 : vector<256x32xf32> to vector<256x32xbf16>
      %c0_61 = arith.constant 0 : index
      %c0_62 = arith.constant 0 : index
      %c0_63 = arith.constant 0 : index
      %137 = vector.load %arg18[%c0_61, %c0_62, %c0_63] : memref<4x256x32xbf16, #tpu.memory_space<vmem>>, vector<1x256x32xbf16>
      %138 = vector.shape_cast %137 : vector<1x256x32xbf16> to vector<256x32xbf16>
      %139 = vector.shape_cast %136 : vector<256x32xbf16> to vector<1x256x32xbf16>
      tpu.vector_store %arg18[%c0_61, %c0_62, %c0_63], %139 {strides = array<i32>} : memref<4x256x32xbf16, #tpu.memory_space<vmem>>, vector<1x256x32xbf16>,
      %140 = vector.extract_strided_slice %129 {offsets = [0, 256], sizes = [256, 32], strides = [1, 1]} : vector<256x384xf32> to vector<256x32xf32>
      %141 = arith.truncf %140 : vector<256x32xf32> to vector<256x32xbf16>
      %c0_64 = arith.constant 0 : index
      %c0_65 = arith.constant 0 : index
      %c0_66 = arith.constant 0 : index
      %142 = vector.load %arg19[%c0_64, %c0_65, %c0_66] : memref<4x256x32xbf16, #tpu.memory_space<vmem>>, vector<1x256x32xbf16>
      %143 = vector.shape_cast %142 : vector<1x256x32xbf16> to vector<256x32xbf16>
      %144 = vector.shape_cast %141 : vector<256x32xbf16> to vector<1x256x32xbf16>
      tpu.vector_store %arg19[%c0_64, %c0_65, %c0_66], %144 {strides = array<i32>} : memref<4x256x32xbf16, #tpu.memory_space<vmem>>, vector<1x256x32xbf16>,
      %145 = vector.extract_strided_slice %129 {offsets = [0, 160], sizes = [256, 32], strides = [1, 1]} : vector<256x384xf32> to vector<256x32xf32>
      %146 = arith.truncf %145 : vector<256x32xf32> to vector<256x32xbf16>
      %c1 = arith.constant 1 : index
      %c0_67 = arith.constant 0 : index
      %c0_68 = arith.constant 0 : index
      %147 = vector.load %arg18[%c1, %c0_67, %c0_68] : memref<4x256x32xbf16, #tpu.memory_space<vmem>>, vector<1x256x32xbf16>
      %148 = vector.shape_cast %147 : vector<1x256x32xbf16> to vector<256x32xbf16>
      %149 = vector.shape_cast %146 : vector<256x32xbf16> to vector<1x256x32xbf16>
      tpu.vector_store %arg18[%c1, %c0_67, %c0_68], %149 {strides = array<i32>} : memref<4x256x32xbf16, #tpu.memory_space<vmem>>, vector<1x256x32xbf16>,
      %150 = vector.extract_strided_slice %129 {offsets = [0, 288], sizes = [256, 32], strides = [1, 1]} : vector<256x384xf32> to vector<256x32xf32>
      %151 = arith.truncf %150 : vector<256x32xf32> to vector<256x32xbf16>
      %c1_69 = arith.constant 1 : index
      %c0_70 = arith.constant 0 : index
      %c0_71 = arith.constant 0 : index
      %152 = vector.load %arg19[%c1_69, %c0_70, %c0_71] : memref<4x256x32xbf16, #tpu.memory_space<vmem>>, vector<1x256x32xbf16>
      %153 = vector.shape_cast %152 : vector<1x256x32xbf16> to vector<256x32xbf16>
      %154 = vector.shape_cast %151 : vector<256x32xbf16> to vector<1x256x32xbf16>
      tpu.vector_store %arg19[%c1_69, %c0_70, %c0_71], %154 {strides = array<i32>} : memref<4x256x32xbf16, #tpu.memory_space<vmem>>, vector<1x256x32xbf16>,
      %155 = vector.extract_strided_slice %129 {offsets = [0, 192], sizes = [256, 32], strides = [1, 1]} : vector<256x384xf32> to vector<256x32xf32>
      %156 = arith.truncf %155 : vector<256x32xf32> to vector<256x32xbf16>
      %c2 = arith.constant 2 : index
      %c0_72 = arith.constant 0 : index
      %c0_73 = arith.constant 0 : index
      %157 = vector.load %arg18[%c2, %c0_72, %c0_73] : memref<4x256x32xbf16, #tpu.memory_space<vmem>>, vector<1x256x32xbf16>
      %158 = vector.shape_cast %157 : vector<1x256x32xbf16> to vector<256x32xbf16>
      %159 = vector.shape_cast %156 : vector<256x32xbf16> to vector<1x256x32xbf16>
      tpu.vector_store %arg18[%c2, %c0_72, %c0_73], %159 {strides = array<i32>} : memref<4x256x32xbf16, #tpu.memory_space<vmem>>, vector<1x256x32xbf16>,
      %160 = vector.extract_strided_slice %129 {offsets = [0, 320], sizes = [256, 32], strides = [1, 1]} : vector<256x384xf32> to vector<256x32xf32>
      %161 = arith.truncf %160 : vector<256x32xf32> to vector<256x32xbf16>
      %c2_74 = arith.constant 2 : index
      %c0_75 = arith.constant 0 : index
      %c0_76 = arith.constant 0 : index
      %162 = vector.load %arg19[%c2_74, %c0_75, %c0_76] : memref<4x256x32xbf16, #tpu.memory_space<vmem>>, vector<1x256x32xbf16>
      %163 = vector.shape_cast %162 : vector<1x256x32xbf16> to vector<256x32xbf16>
      %164 = vector.shape_cast %161 : vector<256x32xbf16> to vector<1x256x32xbf16>
      tpu.vector_store %arg19[%c2_74, %c0_75, %c0_76], %164 {strides = array<i32>} : memref<4x256x32xbf16, #tpu.memory_space<vmem>>, vector<1x256x32xbf16>,
      %165 = vector.extract_strided_slice %129 {offsets = [0, 224], sizes = [256, 32], strides = [1, 1]} : vector<256x384xf32> to vector<256x32xf32>
      %166 = arith.truncf %165 : vector<256x32xf32> to vector<256x32xbf16>
      %c3 = arith.constant 3 : index
      %c0_77 = arith.constant 0 : index
      %c0_78 = arith.constant 0 : index
      %167 = vector.load %arg18[%c3, %c0_77, %c0_78] : memref<4x256x32xbf16, #tpu.memory_space<vmem>>, vector<1x256x32xbf16>
      %168 = vector.shape_cast %167 : vector<1x256x32xbf16> to vector<256x32xbf16>
      %169 = vector.shape_cast %166 : vector<256x32xbf16> to vector<1x256x32xbf16>
      tpu.vector_store %arg18[%c3, %c0_77, %c0_78], %169 {strides = array<i32>} : memref<4x256x32xbf16, #tpu.memory_space<vmem>>, vector<1x256x32xbf16>,
      %170 = vector.extract_strided_slice %129 {offsets = [0, 352], sizes = [256, 32], strides = [1, 1]} : vector<256x384xf32> to vector<256x32xf32>
      %171 = arith.truncf %170 : vector<256x32xf32> to vector<256x32xbf16>
      %c3_79 = arith.constant 3 : index
      %c0_80 = arith.constant 0 : index
      %c0_81 = arith.constant 0 : index
      %172 = vector.load %arg19[%c3_79, %c0_80, %c0_81] : memref<4x256x32xbf16, #tpu.memory_space<vmem>>, vector<1x256x32xbf16>
      %173 = vector.shape_cast %172 : vector<1x256x32xbf16> to vector<256x32xbf16>
      %174 = vector.shape_cast %171 : vector<256x32xbf16> to vector<1x256x32xbf16>
      tpu.vector_store %arg19[%c3_79, %c0_80, %c0_81], %174 {strides = array<i32>} : memref<4x256x32xbf16, #tpu.memory_space<vmem>>, vector<1x256x32xbf16>,
    } else {
    }
    %c128_i32 = arith.constant 128 : i32
    %3 = arith.muli %arg1, %c128_i32 : i32
    %4 = tpu.assume_multiple %3, 128 : i32
    %5 = arith.index_cast %4 : i32 to index
    %c0 = arith.constant 0 : index
    %6 = vector.load %arg17[%5, %c0] : memref<256x128xbf16, #tpu.memory_space<vmem>>, vector<128x128xbf16>
    %7 = vector.extract_strided_slice %6 {offsets = [0, 0], sizes = [128, 32], strides = [1, 1]} : vector<128x128xbf16> to vector<128x32xbf16>
    %8 = vector.extract_strided_slice %6 {offsets = [0, 32], sizes = [128, 32], strides = [1, 1]} : vector<128x128xbf16> to vector<128x32xbf16>
    %9 = vector.extract_strided_slice %6 {offsets = [0, 64], sizes = [128, 32], strides = [1, 1]} : vector<128x128xbf16> to vector<128x32xbf16>
    %10 = vector.extract_strided_slice %6 {offsets = [0, 96], sizes = [128, 32], strides = [1, 1]} : vector<128x128xbf16> to vector<128x32xbf16>
    %11 = vector.shape_cast %7 : vector<128x32xbf16> to vector<1x128x32xbf16>
    %12 = vector.shape_cast %8 : vector<128x32xbf16> to vector<1x128x32xbf16>
    %13 = vector.shape_cast %9 : vector<128x32xbf16> to vector<1x128x32xbf16>
    %14 = vector.shape_cast %10 : vector<128x32xbf16> to vector<1x128x32xbf16>
    %15 = tpu.concatenate %11, %12, %13, %14 in 0 : vector<1x128x32xbf16>, vector<1x128x32xbf16>, vector<1x128x32xbf16>, vector<1x128x32xbf16> -> vector<4x128x32xbf16>
    %c0_1 = arith.constant 0 : index
    %c0_2 = arith.constant 0 : index
    %c0_3 = arith.constant 0 : index
    %16 = vector.load %arg18[%c0_1, %c0_2, %c0_3] : memref<4x256x32xbf16, #tpu.memory_space<vmem>>, vector<4x256x32xbf16>
    "tpu.trace_start"() <{level = 10 : i32, message = "hqd,hkd->hqk"}> : () -> ()
    %cst = arith.constant dense<0.000000e+00> : vector<4x128x256xf32>
    %17 = tpu.matmul %15, %16, %cst {dimension_numbers = #tpu.dot_dimension_numbers<[2], [2], [1], [1], [0, 0, 0, 1, 1, 1], [0], [0]>} : vector<4x128x32xbf16>, vector<4x256x32xbf16>, vector<4x128x256xf32> -> vector<4x128x256xf32>
    "tpu.trace_stop"() : () -> ()
    %cst_4 = arith.constant dense<0xFF800000> : vector<4x128xf32>
    %18 = vector.multi_reduction <maximumf>, %17, %cst_4 [2] : vector<4x128x256xf32> to vector<4x128xf32>
    %19 = vector.shape_cast %18 : vector<4x128xf32> to vector<4x128x1xf32>
    %20 = vector.broadcast %19 : vector<4x128x1xf32> to vector<4x128x256xf32>
    %21 = arith.subf %17, %20 : vector<4x128x256xf32>
    %22 = math.exp %21 : vector<4x128x256xf32>
    %cst_5 = arith.constant dense<0.000000e+00> : vector<4x128xf32>
    %23 = vector.multi_reduction <add>, %22, %cst_5 [2] : vector<4x128x256xf32> to vector<4x128xf32>
    %24 = vector.shape_cast %23 : vector<4x128xf32> to vector<4x128x1xf32>
    %25 = tpu.reciprocal %24 {approx = true} : vector<4x128x1xf32> -> vector<4x128x1xf32>
    %26 = vector.broadcast %25 : vector<4x128x1xf32> to vector<4x128x256xf32>
    %27 = arith.mulf %22, %26 : vector<4x128x256xf32>
    %28 = arith.truncf %27 : vector<4x128x256xf32> to vector<4x128x256xbf16>
    %c0_6 = arith.constant 0 : index
    %c0_7 = arith.constant 0 : index
    %c0_8 = arith.constant 0 : index
    %29 = vector.load %arg19[%c0_6, %c0_7, %c0_8] : memref<4x256x32xbf16, #tpu.memory_space<vmem>>, vector<4x256x32xbf16>
    "tpu.trace_start"() <{level = 10 : i32, message = "hqk,hkd->hqd"}> : () -> ()
    %cst_9 = arith.constant dense<0.000000e+00> : vector<4x128x32xf32>
    %30 = tpu.matmul %28, %29, %cst_9 {dimension_numbers = #tpu.dot_dimension_numbers<[2], [1], [1], [2], [0, 0, 0, 1, 1, 2], [0], [0]>} : vector<4x128x256xbf16>, vector<4x256x32xbf16>, vector<4x128x32xf32> -> vector<4x128x32xf32>
    "tpu.trace_stop"() : () -> ()
    %31 = vector.extract_strided_slice %30 {offsets = [0, 0, 0], sizes = [1, 128, 32], strides = [1, 1, 1]} : vector<4x128x32xf32> to vector<1x128x32xf32>
    %32 = vector.shape_cast %31 : vector<1x128x32xf32> to vector<128x32xf32>
    %33 = vector.extract_strided_slice %30 {offsets = [1, 0, 0], sizes = [1, 128, 32], strides = [1, 1, 1]} : vector<4x128x32xf32> to vector<1x128x32xf32>
    %34 = vector.shape_cast %33 : vector<1x128x32xf32> to vector<128x32xf32>
    %35 = vector.extract_strided_slice %30 {offsets = [2, 0, 0], sizes = [1, 128, 32], strides = [1, 1, 1]} : vector<4x128x32xf32> to vector<1x128x32xf32>
    %36 = vector.shape_cast %35 : vector<1x128x32xf32> to vector<128x32xf32>
    %37 = vector.extract_strided_slice %30 {offsets = [3, 0, 0], sizes = [1, 128, 32], strides = [1, 1, 1]} : vector<4x128x32xf32> to vector<1x128x32xf32>
    %38 = vector.shape_cast %37 : vector<1x128x32xf32> to vector<128x32xf32>
    %39 = tpu.concatenate %32, %34, %36, %38 in 1 : vector<128x32xf32>, vector<128x32xf32>, vector<128x32xf32>, vector<128x32xf32> -> vector<128x128xf32>
    %40 = arith.truncf %39 : vector<128x128xf32> to vector<128x128xbf16>
    %c0_10 = arith.constant 0 : index
    %c0_11 = arith.constant 0 : index
    %41 = vector.load %arg8[%c0_10, %c0_11] : memref<128x128xbf16, #tpu.memory_space<vmem>>, vector<128x128xbf16>
    %cst_12 = arith.constant dense<0.000000e+00> : vector<128x128xf32>
    %42 = tpu.matmul %40, %41, %cst_12 {dimension_numbers = #tpu.dot_dimension_numbers<[1], [0], [0], [1], [0, 0, 1, 1], [], []>} : vector<128x128xbf16>, vector<128x128xbf16>, vector<128x128xf32> -> vector<128x128xf32>
    %c0_13 = arith.constant 0 : index
    %c0_14 = arith.constant 0 : index
    %43 = vector.load %arg9[%c0_13, %c0_14] : memref<1x128xf32, #tpu.memory_space<vmem>>, vector<1x128xf32>
    %44 = vector.broadcast %43 : vector<1x128xf32> to vector<128x128xf32>
    %45 = arith.addf %42, %44 : vector<128x128xf32>
    %c0_15 = arith.constant 0 : index
    %c0_16 = arith.constant 0 : index
    %c0_17 = arith.constant 0 : index
    %46 = vector.load %arg3[%c0_15, %c0_16, %c0_17] : memref<1x128x128xf32, #tpu.memory_space<vmem>>, vector<1x128x128xf32>
    %47 = vector.shape_cast %46 : vector<1x128x128xf32> to vector<128x128xf32>
    %48 = arith.addf %45, %47 : vector<128x128xf32>
    %c0_18 = arith.constant 0 : index
    %c0_19 = arith.constant 0 : index
    %49 = vector.load %arg10[%c0_18, %c0_19] : memref<1x128xf32, #tpu.memory_space<vmem>>, vector<1x128xf32>
    %c0_20 = arith.constant 0 : index
    %c0_21 = arith.constant 0 : index
    %50 = vector.load %arg11[%c0_20, %c0_21] : memref<1x128xf32, #tpu.memory_space<vmem>>, vector<1x128xf32>
    %cst_22 = arith.constant dense<0.000000e+00> : vector<128xf32>
    %51 = vector.multi_reduction <add>, %48, %cst_22 [1] : vector<128x128xf32> to vector<128xf32>
    %52 = vector.shape_cast %51 : vector<128xf32> to vector<128x1xf32>
    %cst_23 = arith.constant 1.280000e+02 : f32
    %53 = vector.broadcast %cst_23 : f32 to vector<128x1xf32>
    %54 = arith.divf %52, %53 : vector<128x1xf32>
    %55 = vector.broadcast %54 : vector<128x1xf32> to vector<128x128xf32>
    %56 = arith.subf %48, %55 : vector<128x128xf32>
    %57 = arith.mulf %56, %56 : vector<128x128xf32>
    %cst_24 = arith.constant dense<0.000000e+00> : vector<128xf32>
    %58 = vector.multi_reduction <add>, %57, %cst_24 [1] : vector<128x128xf32> to vector<128xf32>
    %59 = vector.shape_cast %58 : vector<128xf32> to vector<128x1xf32>
    %cst_25 = arith.constant 1.280000e+02 : f32
    %60 = vector.broadcast %cst_25 : f32 to vector<128x1xf32>
    %61 = arith.divf %59, %60 : vector<128x1xf32>
    %62 = vector.broadcast %54 : vector<128x1xf32> to vector<128x128xf32>
    %63 = arith.subf %48, %62 : vector<128x128xf32>
    %cst_26 = arith.constant 9.99999974E-6 : f32
    %64 = vector.broadcast %cst_26 : f32 to vector<128x1xf32>
    %65 = arith.addf %61, %64 : vector<128x1xf32>
    %66 = math.rsqrt %65 : vector<128x1xf32>
    %67 = vector.broadcast %66 : vector<128x1xf32> to vector<128x128xf32>
    %68 = arith.mulf %63, %67 : vector<128x128xf32>
    %69 = vector.broadcast %49 : vector<1x128xf32> to vector<128x128xf32>
    %70 = arith.mulf %68, %69 : vector<128x128xf32>
    %71 = vector.broadcast %50 : vector<1x128xf32> to vector<128x128xf32>
    %72 = arith.addf %70, %71 : vector<128x128xf32>
    %73 = arith.truncf %72 : vector<128x128xf32> to vector<128x128xbf16>
    %c0_27 = arith.constant 0 : index
    %c0_28 = arith.constant 0 : index
    %74 = vector.load %arg12[%c0_27, %c0_28] : memref<128x512xbf16, #tpu.memory_space<vmem>>, vector<128x512xbf16>
    %cst_29 = arith.constant dense<0.000000e+00> : vector<128x512xf32>
    %75 = tpu.matmul %73, %74, %cst_29 {dimension_numbers = #tpu.dot_dimension_numbers<[1], [0], [0], [1], [0, 0, 1, 1], [], []>} : vector<128x128xbf16>, vector<128x512xbf16>, vector<128x512xf32> -> vector<128x512xf32>
    %c0_30 = arith.constant 0 : index
    %c0_31 = arith.constant 0 : index
    %76 = vector.load %arg13[%c0_30, %c0_31] : memref<1x512xf32, #tpu.memory_space<vmem>>, vector<1x512xf32>
    %77 = vector.broadcast %76 : vector<1x512xf32> to vector<128x512xf32>
    %78 = arith.addf %75, %77 : vector<128x512xf32>
    %79 = vector.extract_strided_slice %78 {offsets = [0, 0], sizes = [128, 256], strides = [1, 1]} : vector<128x512xf32> to vector<128x256xf32>
    %80 = vector.extract_strided_slice %78 {offsets = [0, 256], sizes = [128, 256], strides = [1, 1]} : vector<128x512xf32> to vector<128x256xf32>
    %81 = arith.negf %79 : vector<128x256xf32>
    %82 = math.exp %81 : vector<128x256xf32>
    %cst_32 = arith.constant 1.000000e+00 : f32
    %83 = vector.broadcast %cst_32 : f32 to vector<128x256xf32>
    %84 = arith.addf %83, %82 : vector<128x256xf32>
    %85 = arith.divf %83, %84 : vector<128x256xf32>
    %86 = arith.mulf %79, %85 : vector<128x256xf32>
    %87 = arith.mulf %86, %80 : vector<128x256xf32>
    %88 = arith.truncf %87 : vector<128x256xf32> to vector<128x256xbf16>
    %c0_33 = arith.constant 0 : index
    %c0_34 = arith.constant 0 : index
    %89 = vector.load %arg14[%c0_33, %c0_34] : memref<256x128xbf16, #tpu.memory_space<vmem>>, vector<256x128xbf16>
    %cst_35 = arith.constant dense<0.000000e+00> : vector<128x128xf32>
    %90 = tpu.matmul %88, %89, %cst_35 {dimension_numbers = #tpu.dot_dimension_numbers<[1], [0], [0], [1], [0, 0, 1, 1], [], []>} : vector<128x256xbf16>, vector<256x128xbf16>, vector<128x128xf32> -> vector<128x128xf32>
    %c0_36 = arith.constant 0 : index
    %c0_37 = arith.constant 0 : index
    %91 = vector.load %arg15[%c0_36, %c0_37] : memref<1x128xf32, #tpu.memory_space<vmem>>, vector<1x128xf32>
    %92 = vector.broadcast %91 : vector<1x128xf32> to vector<128x128xf32>
    %93 = arith.addf %90, %92 : vector<128x128xf32>
    %94 = arith.addf %93, %48 : vector<128x128xf32>
    %c0_38 = arith.constant 0 : index
    %c0_39 = arith.constant 0 : index
    %c0_40 = arith.constant 0 : index
    %95 = vector.load %arg16[%c0_38, %c0_39, %c0_40] : memref<1x128x128xf32, #tpu.memory_space<vmem>>, vector<1x128x128xf32>
    %96 = vector.shape_cast %95 : vector<1x128x128xf32> to vector<128x128xf32>
    %97 = vector.shape_cast %94 : vector<128x128xf32> to vector<1x128x128xf32>
    tpu.vector_store %arg16[%c0_38, %c0_39, %c0_40], %97 {strides = array<i32>} : memref<1x128x128xf32, #tpu.memory_space<vmem>>, vector<1x128x128xf32>,
    return
  }
  func.func @transform_0(%arg0: i32, %arg1: i32) -> (i32, i32, i32) {
    %c0_i32 = arith.constant 0 : i32
    %c0_i32_0 = arith.constant 0 : i32
    %c0_i32_1 = arith.constant 0 : i32
    return %arg0, %c0_i32, %c0_i32_0 : i32, i32, i32
  }
  func.func @transform_1(%arg0: i32, %arg1: i32) -> (i32, i32, i32) {
    %c0_i32 = arith.constant 0 : i32
    %c0_i32_0 = arith.constant 0 : i32
    return %arg0, %arg1, %c0_i32 : i32, i32, i32
  }
  func.func @transform_2(%arg0: i32, %arg1: i32) -> (i32, i32) {
    %c0_i32 = arith.constant 0 : i32
    %c0_i32_0 = arith.constant 0 : i32
    %c0_i32_1 = arith.constant 0 : i32
    return %c0_i32, %c0_i32_0 : i32, i32
  }
  func.func @transform_3(%arg0: i32, %arg1: i32) -> (i32, i32) {
    %c0_i32 = arith.constant 0 : i32
    %c0_i32_0 = arith.constant 0 : i32
    %c0_i32_1 = arith.constant 0 : i32
    return %c0_i32, %c0_i32_0 : i32, i32
  }
  func.func @transform_4(%arg0: i32, %arg1: i32) -> (i32, i32) {
    %c0_i32 = arith.constant 0 : i32
    %c0_i32_0 = arith.constant 0 : i32
    %c0_i32_1 = arith.constant 0 : i32
    return %c0_i32, %c0_i32_0 : i32, i32
  }
  func.func @transform_5(%arg0: i32, %arg1: i32) -> (i32, i32) {
    %c0_i32 = arith.constant 0 : i32
    %c0_i32_0 = arith.constant 0 : i32
    %c0_i32_1 = arith.constant 0 : i32
    return %c0_i32, %c0_i32_0 : i32, i32
  }
  func.func @transform_6(%arg0: i32, %arg1: i32) -> (i32, i32) {
    %c0_i32 = arith.constant 0 : i32
    %c0_i32_0 = arith.constant 0 : i32
    %c0_i32_1 = arith.constant 0 : i32
    return %c0_i32, %c0_i32_0 : i32, i32
  }
  func.func @transform_7(%arg0: i32, %arg1: i32) -> (i32, i32) {
    %c0_i32 = arith.constant 0 : i32
    %c0_i32_0 = arith.constant 0 : i32
    %c0_i32_1 = arith.constant 0 : i32
    return %c0_i32, %c0_i32_0 : i32, i32
  }
  func.func @transform_8(%arg0: i32, %arg1: i32) -> (i32, i32) {
    %c0_i32 = arith.constant 0 : i32
    %c0_i32_0 = arith.constant 0 : i32
    %c0_i32_1 = arith.constant 0 : i32
    return %c0_i32, %c0_i32_0 : i32, i32
  }
  func.func @transform_9(%arg0: i32, %arg1: i32) -> (i32, i32) {
    %c0_i32 = arith.constant 0 : i32
    %c0_i32_0 = arith.constant 0 : i32
    %c0_i32_1 = arith.constant 0 : i32
    return %c0_i32, %c0_i32_0 : i32, i32
  }
  func.func @transform_10(%arg0: i32, %arg1: i32) -> (i32, i32) {
    %c0_i32 = arith.constant 0 : i32
    %c0_i32_0 = arith.constant 0 : i32
    %c0_i32_1 = arith.constant 0 : i32
    return %c0_i32, %c0_i32_0 : i32, i32
  }
  func.func @transform_11(%arg0: i32, %arg1: i32) -> (i32, i32) {
    %c0_i32 = arith.constant 0 : i32
    %c0_i32_0 = arith.constant 0 : i32
    %c0_i32_1 = arith.constant 0 : i32
    return %c0_i32, %c0_i32_0 : i32, i32
  }
  func.func @transform_12(%arg0: i32, %arg1: i32) -> (i32, i32) {
    %c0_i32 = arith.constant 0 : i32
    %c0_i32_0 = arith.constant 0 : i32
    %c0_i32_1 = arith.constant 0 : i32
    return %c0_i32, %c0_i32_0 : i32, i32
  }
  func.func @transform_13(%arg0: i32, %arg1: i32) -> (i32, i32) {
    %c0_i32 = arith.constant 0 : i32
    %c0_i32_0 = arith.constant 0 : i32
    %c0_i32_1 = arith.constant 0 : i32
    return %c0_i32, %c0_i32_0 : i32, i32
  }
  func.func @transform_14(%arg0: i32, %arg1: i32) -> (i32, i32, i32) {
    %c0_i32 = arith.constant 0 : i32
    %c0_i32_0 = arith.constant 0 : i32
    return %arg0, %arg1, %c0_i32 : i32, i32, i32
  }
}

</mosaic_0001>

<llo_original>
// kernel: tpu_custom_call.1
$region0: #{tpu_custom_call.1}
  #allocation0 [shape = 'u32[]', space=smem, size = 0x4, offset = 0x4, fixed_abs, tag = 'smem constant byte address 0x4 - core index']
  #allocation1 [shape = 'u32[144,128]{1,0:T(1,128)}', space=vmem, size = 0x12000, scoped, tag = 'internal scratch']
  #allocation2 [shape = 'bf16[256,128]{1,0:T(16,128)(2,1)}', space=vmem, size = 0x10000, scoped, tag = 'scratch operand']
  #allocation3 [shape = 'bf16[4,256,32]{2,1,0:T(16,128)(2,1)}', space=vmem, size = 0x40000, scoped, tag = 'scratch operand']
  #allocation4 [shape = 'bf16[4,256,32]{2,1,0:T(16,128)(2,1)}', space=vmem, size = 0x40000, scoped, tag = 'scratch operand']
  %s0 = inlined_call_operand.hbm [shape: f32[2,256,128], index: 0, kind: input, shape index: {}]
  %s1 = inlined_call_operand.hbm [shape: f32[2,256,128], index: 1, kind: input, shape index: {}]
  %s2 = inlined_call_operand.hbm [shape: f32[1,128], index: 2, kind: input, shape index: {}]
  %s3 = inlined_call_operand.hbm [shape: f32[1,128], index: 3, kind: input, shape index: {}]
  %s4 = inlined_call_operand.hbm [shape: bf16[128,384], index: 4, kind: input, shape index: {}]
  %s5 = inlined_call_operand.hbm [shape: f32[1,384], index: 5, kind: input, shape index: {}]
  %s6 = inlined_call_operand.hbm [shape: bf16[128,128], index: 6, kind: input, shape index: {}]
  %s7 = inlined_call_operand.hbm [shape: f32[1,128], index: 7, kind: input, shape index: {}]
  %s8 = inlined_call_operand.hbm [shape: f32[1,128], index: 8, kind: input, shape index: {}]
  %s9 = inlined_call_operand.hbm [shape: f32[1,128], index: 9, kind: input, shape index: {}]
  %s10 = inlined_call_operand.hbm [shape: bf16[128,512], index: 10, kind: input, shape index: {}]
  %s11 = inlined_call_operand.hbm [shape: f32[1,512], index: 11, kind: input, shape index: {}]
  %s12 = inlined_call_operand.hbm [shape: bf16[256,128], index: 12, kind: input, shape index: {}]
  %s13 = inlined_call_operand.hbm [shape: f32[1,128], index: 13, kind: input, shape index: {}]
  %s14 = inlined_call_operand.hbm [shape: f32[2,256,128], index: 14, kind: output, shape index: {}]
  %s15 = sld [smem:[#allocation0]]
  $region149: #{tpu_custom_call.1} parent=0
    _
  %s17 = ssub.s32 1, %s15
  %s18 = scalar_select 0, %s17, %s15
  $region1: #{tpu_custom_call.1} parent=0
    #allocation5 [shape = 'u8[262144]{0}', space=vmem, size = 0x40000, scoped, tag = 'input window, operand 0']
    #allocation6 [shape = 's32[2]{0}', space=sflag, size = 0x8, scoped, tag = 'scoped memory for tpu_custom_call.1']
    #allocation7 [shape = 's32[2]{0}', space=sflag, size = 0x8, scoped, tag = 'scoped memory for tpu_custom_call.1']
    #allocation8 [shape = 'u8[131072]{0}', space=vmem, size = 0x20000, scoped, tag = 'input window, operand 1']
    #allocation9 [shape = 's32[2]{0}', space=sflag, size = 0x8, scoped, tag = 'scoped memory for tpu_custom_call.1']
    #allocation10 [shape = 'u8[512]{0}', space=vmem, size = 0x400, scoped, tag = 'input window, operand 2, single buffered']
    #allocation11 [shape = 'u8[512]{0}', space=vmem, size = 0x400, scoped, tag = 'input window, operand 3, single buffered']
    #allocation12 [shape = 's32[1]{0}', space=sflag, size = 0x4, scoped, tag = 'scoped memory for tpu_custom_call.1']
    #allocation13 [shape = 'u8[98304]{0}', space=vmem, size = 0x18000, scoped, tag = 'input window, operand 4, single buffered']
    #allocation14 [shape = 'u8[1536]{0}', space=vmem, size = 0x800, scoped, tag = 'input window, operand 5, single buffered']
    #allocation15 [shape = 's32[1]{0}', space=sflag, size = 0x4, scoped, tag = 'scoped memory for tpu_custom_call.1']
    #allocation16 [shape = 'u8[32768]{0}', space=vmem, size = 0x8000, scoped, tag = 'input window, operand 6, single buffered']
    #allocation17 [shape = 'u8[512]{0}', space=vmem, size = 0x400, scoped, tag = 'input window, operand 7, single buffered']
    #allocation18 [shape = 's32[1]{0}', space=sflag, size = 0x4, scoped, tag = 'scoped memory for tpu_custom_call.1']
    #allocation19 [shape = 'u8[512]{0}', space=vmem, size = 0x400, scoped, tag = 'input window, operand 8, single buffered']
    #allocation20 [shape = 'u8[512]{0}', space=vmem, size = 0x400, scoped, tag = 'input window, operand 9, single buffered']
    #allocation21 [shape = 's32[1]{0}', space=sflag, size = 0x4, scoped, tag = 'scoped memory for tpu_custom_call.1']
    #allocation22 [shape = 'u8[131072]{0}', space=vmem, size = 0x20000, scoped, tag = 'input window, operand 10, single buffered']
    #allocation23 [shape = 'u8[2048]{0}', space=vmem, size = 0x800, scoped, tag = 'input window, operand 11, single buffered']
    #allocation24 [shape = 's32[1]{0}', space=sflag, size = 0x4, scoped, tag = 'scoped memory for tpu_custom_call.1']
    #allocation25 [shape = 'u8[65536]{0}', space=vmem, size = 0x10000, scoped, tag = 'input window, operand 12, single buffered']
    #allocation26 [shape = 'u8[512]{0}', space=vmem, size = 0x400, scoped, tag = 'input window, operand 13, single buffered']
    #allocation27 [shape = 's32[1]{0}', space=sflag, size = 0x4, scoped, tag = 'scoped memory for tpu_custom_call.1']
    #allocation28 [shape = 'u8[131072]{0}', space=vmem, size = 0x20000, scoped, tag = 'output window, operand 0']
    %19 = vsyncpa [#allocation6], 0
    %s20 = scalar_lea.sflag [#allocation6], 1
    %21 = vsyncpa %s20, 0
    %22 = vsyncpa [#allocation9], 0
    %s23 = scalar_lea.sflag [#allocation9], 1
    %24 = vsyncpa %s23, 0
    %25 = vsyncpa [#allocation12], 0
    %26 = vsyncpa [#allocation15], 0
    %27 = vsyncpa [#allocation18], 0
    %28 = vsyncpa [#allocation21], 0
    %29 = vsyncpa [#allocation24], 0
    %30 = vsyncpa [#allocation27], 0
    %31 = vsyncpa [#allocation7], 0
    %s32 = scalar_lea.sflag [#allocation7], 1
    %33 = vsyncpa %s32, 0
    loop: start=0, step=1, limit=6
    $region2: #{tpu_custom_call.1} parent=1 // loop_pre_header
      _
    $region3: #{tpu_custom_call.1} parent=1 // loop_header
      %s35 = sphi 0, %s39
      %p36 = scmp.ge.s32.totalorder %s35, 6
      %s42 = sphi 0, %s54
      %s43 = sphi 0, %s50
      %s44 = sphi 0, %s42
      %s45 = sphi 0, %s43
      %s46 = sphi 0, %s44
      %s47 = sphi 0, %s45
      %s57 = sphi 0, %s59
      %s60 = sphi 0, %s57
      %s61 = sphi 0, %s60
      %s77 = sphi 0, %s61
      %s85 = sphi 0, %s87
      %s88 = sphi 0, %s85
      %s89 = sphi 0, %s88
      %s105 = sphi 0, %s89
      %s109 = sphi 0, %s109
      %s111 = sphi 0, %s109
      %s112 = sphi 0, %s111
      %s126 = sphi 0, %s112
      %s130 = sphi 0, %s130
      %s132 = sphi 0, %s130
      %s133 = sphi 0, %s132
      %s147 = sphi 0, %s133
      %s151 = sphi 0, %s151
      %s153 = sphi 0, %s151
      %s154 = sphi 0, %s153
      %s168 = sphi 0, %s154
      %s172 = sphi 0, %s172
      %s174 = sphi 0, %s172
      %s175 = sphi 0, %s174
      %s189 = sphi 0, %s175
      %s193 = sphi 0, %s193
      %s195 = sphi 0, %s193
      %s196 = sphi 0, %s195
      %s210 = sphi 0, %s196
      %s214 = sphi 0, %s214
      %s216 = sphi 0, %s214
      %s217 = sphi 0, %s216
      %s231 = sphi 0, %s217
      %s235 = sphi 0, %s235
      %s237 = sphi 0, %s235
      %s238 = sphi 0, %s237
      %s252 = sphi 0, %s238
      %s256 = sphi 0, %s256
      %s258 = sphi 0, %s256
      %s259 = sphi 0, %s258
      %s273 = sphi 0, %s259
      %s277 = sphi 0, %s277
      %s279 = sphi 0, %s277
      %s280 = sphi 0, %s279
      %s294 = sphi 0, %s280
      %s298 = sphi 0, %s298
      %s300 = sphi 0, %s298
      %s301 = sphi 0, %s300
      %s315 = sphi 0, %s301
      %s319 = sphi 0, %s319
      %s321 = sphi 0, %s319
      %s322 = sphi 0, %s321
      %s336 = sphi 0, %s322
      %s340 = sphi 0, %s340
      %s342 = sphi 0, %s340
      %s343 = sphi 0, %s342
      %s357 = sphi 0, %s343
      %s365 = sphi 0, %s367
      %s368 = sphi 0, %s365
      %s369 = sphi 0, %s368
      %s385 = sphi 0, %s369
    $region4: #{tpu_custom_call.1} parent=1 // loop_header_branch
      %38 = sbr.rel (%p36) target = $region8
    $region5: #{tpu_custom_call.1} parent=1 // loop_body
      %s40 = ssub.s32 %s35, 1
      %s41 = ssub.s32 %s35, 2
      %s48 = sadd.s32 1, %s43
      %p49 = scmp.ge.s32.totalorder %s48, 2
      %s50 = scalar_select %p49, 0, %s48
      %s51 = sadd.s32 1, %s42
      %s52 = scalar_select %p49, %s51, %s42
      %p53 = scmp.ge.s32.totalorder %s52, 2
      %s54 = scalar_select %p53, 0, %s52
      %s55 = ssub.s32 %s42, %s54
      %p56 = scmp.eq.s32.totalorder %s55, 0
      %s58 = sadd.s32 %s57, 1
      %s59 = scalar_select %p56, %s57, %s58
      %p62 = pneg %p56
      %p63 = scmp.eq.s32.totalorder %s35, 3
      %p64 = por %p62, %p63
      %p65 = scmp.ne.s32.totalorder %s57, %s60
      %p66 = scmp.eq.s32.totalorder %s35, 0
      %p67 = por %p65, %p66
      %p68 = scmp.ne.s32.totalorder %s57, %s60
      %p69 = scmp.eq.s32.totalorder %s40, 3
      %p70 = por %p68, %p69
      %p71 = scmp.ne.s32.totalorder %s60, %s61
      %p72 = scmp.eq.s32.totalorder %s40, 0
      %p73 = por %p71, %p72
      %p74 = scmp.ne.s32.totalorder %s60, %s61
      %p75 = scmp.eq.s32.totalorder %s41, 3
      %p76 = por %p74, %p75
      %p78 = scmp.ne.s32.totalorder %s61, %s77
      %p79 = scmp.eq.s32.totalorder %s41, 0
      %p80 = por %p78, %p79
      %s81 = ssub.s32 %s42, %s54
      %s82 = ssub.s32 %s43, %s50
      %s83 = sor.u32 %s81, %s82
      %p84 = scmp.eq.s32.totalorder %s83, 0
      %s86 = sadd.s32 %s85, 1
      %s87 = scalar_select %p84, %s85, %s86
      %p90 = pneg %p84
      %p91 = scmp.eq.s32.totalorder %s35, 3
      %p92 = por %p90, %p91
      %p93 = scmp.ne.s32.totalorder %s85, %s88
      %p94 = scmp.eq.s32.totalorder %s35, 0
      %p95 = por %p93, %p94
      %p96 = scmp.ne.s32.totalorder %s85, %s88
      %p97 = scmp.eq.s32.totalorder %s40, 3
      %p98 = por %p96, %p97
      %p99 = scmp.ne.s32.totalorder %s88, %s89
      %p100 = scmp.eq.s32.totalorder %s40, 0
      %p101 = por %p99, %p100
      %p102 = scmp.ne.s32.totalorder %s88, %s89
      %p103 = scmp.eq.s32.totalorder %s41, 3
      %p104 = por %p102, %p103
      %p106 = scmp.ne.s32.totalorder %s89, %s105
      %p107 = scmp.eq.s32.totalorder %s41, 0
      %p108 = por %p106, %p107
      %s110 = sadd.s32 %s109, 1
      %p113 = scmp.eq.s32.totalorder %s35, 3
      %p114 = scmp.ne.s32.totalorder %s109, %s111
      %p115 = scmp.eq.s32.totalorder %s35, 0
      %p116 = por %p114, %p115
      %p117 = scmp.ne.s32.totalorder %s109, %s111
      %p118 = scmp.eq.s32.totalorder %s40, 3
      %p119 = por %p117, %p118
      %p120 = scmp.ne.s32.totalorder %s111, %s112
      %p121 = scmp.eq.s32.totalorder %s40, 0
      %p122 = por %p120, %p121
      %p123 = scmp.ne.s32.totalorder %s111, %s112
      %p124 = scmp.eq.s32.totalorder %s41, 3
      %p125 = por %p123, %p124
      %p127 = scmp.ne.s32.totalorder %s112, %s126
      %p128 = scmp.eq.s32.totalorder %s41, 0
      %p129 = por %p127, %p128
      %s131 = sadd.s32 %s130, 1
      %p134 = scmp.eq.s32.totalorder %s35, 3
      %p135 = scmp.ne.s32.totalorder %s130, %s132
      %p136 = scmp.eq.s32.totalorder %s35, 0
      %p137 = por %p135, %p136
      %p138 = scmp.ne.s32.totalorder %s130, %s132
      %p139 = scmp.eq.s32.totalorder %s40, 3
      %p140 = por %p138, %p139
      %p141 = scmp.ne.s32.totalorder %s132, %s133
      %p142 = scmp.eq.s32.totalorder %s40, 0
      %p143 = por %p141, %p142
      %p144 = scmp.ne.s32.totalorder %s132, %s133
      %p145 = scmp.eq.s32.totalorder %s41, 3
      %p146 = por %p144, %p145
      %p148 = scmp.ne.s32.totalorder %s133, %s147
      %p149 = scmp.eq.s32.totalorder %s41, 0
      %p150 = por %p148, %p149
      %s152 = sadd.s32 %s151, 1
      %p155 = scmp.eq.s32.totalorder %s35, 3
      %p156 = scmp.ne.s32.totalorder %s151, %s153
      %p157 = scmp.eq.s32.totalorder %s35, 0
      %p158 = por %p156, %p157
      %p159 = scmp.ne.s32.totalorder %s151, %s153
      %p160 = scmp.eq.s32.totalorder %s40, 3
      %p161 = por %p159, %p160
      %p162 = scmp.ne.s32.totalorder %s153, %s154
      %p163 = scmp.eq.s32.totalorder %s40, 0
      %p164 = por %p162, %p163
      %p165 = scmp.ne.s32.totalorder %s153, %s154
      %p166 = scmp.eq.s32.totalorder %s41, 3
      %p167 = por %p165, %p166
      %p169 = scmp.ne.s32.totalorder %s154, %s168
      %p170 = scmp.eq.s32.totalorder %s41, 0
      %p171 = por %p169, %p170
      %s173 = sadd.s32 %s172, 1
      %p176 = scmp.eq.s32.totalorder %s35, 3
      %p177 = scmp.ne.s32.totalorder %s172, %s174
      %p178 = scmp.eq.s32.totalorder %s35, 0
      %p179 = por %p177, %p178
      %p180 = scmp.ne.s32.totalorder %s172, %s174
      %p181 = scmp.eq.s32.totalorder %s40, 3
      %p182 = por %p180, %p181
      %p183 = scmp.ne.s32.totalorder %s174, %s175
      %p184 = scmp.eq.s32.totalorder %s40, 0
      %p185 = por %p183, %p184
      %p186 = scmp.ne.s32.totalorder %s174, %s175
      %p187 = scmp.eq.s32.totalorder %s41, 3
      %p188 = por %p186, %p187
      %p190 = scmp.ne.s32.totalorder %s175, %s189
      %p191 = scmp.eq.s32.totalorder %s41, 0
      %p192 = por %p190, %p191
      %s194 = sadd.s32 %s193, 1
      %p197 = scmp.eq.s32.totalorder %s35, 3
      %p198 = scmp.ne.s32.totalorder %s193, %s195
      %p199 = scmp.eq.s32.totalorder %s35, 0
      %p200 = por %p198, %p199
      %p201 = scmp.ne.s32.totalorder %s193, %s195
      %p202 = scmp.eq.s32.totalorder %s40, 3
      %p203 = por %p201, %p202
      %p204 = scmp.ne.s32.totalorder %s195, %s196
      %p205 = scmp.eq.s32.totalorder %s40, 0
      %p206 = por %p204, %p205
      %p207 = scmp.ne.s32.totalorder %s195, %s196
      %p208 = scmp.eq.s32.totalorder %s41, 3
      %p209 = por %p207, %p208
      %p211 = scmp.ne.s32.totalorder %s196, %s210
      %p212 = scmp.eq.s32.totalorder %s41, 0
      %p213 = por %p211, %p212
      %s215 = sadd.s32 %s214, 1
      %p218 = scmp.eq.s32.totalorder %s35, 3
      %p219 = scmp.ne.s32.totalorder %s214, %s216
      %p220 = scmp.eq.s32.totalorder %s35, 0
      %p221 = por %p219, %p220
      %p222 = scmp.ne.s32.totalorder %s214, %s216
      %p223 = scmp.eq.s32.totalorder %s40, 3
      %p224 = por %p222, %p223
      %p225 = scmp.ne.s32.totalorder %s216, %s217
      %p226 = scmp.eq.s32.totalorder %s40, 0
      %p227 = por %p225, %p226
      %p228 = scmp.ne.s32.totalorder %s216, %s217
      %p229 = scmp.eq.s32.totalorder %s41, 3
      %p230 = por %p228, %p229
      %p232 = scmp.ne.s32.totalorder %s217, %s231
      %p233 = scmp.eq.s32.totalorder %s41, 0
      %p234 = por %p232, %p233
      %s236 = sadd.s32 %s235, 1
      %p239 = scmp.eq.s32.totalorder %s35, 3
      %p240 = scmp.ne.s32.totalorder %s235, %s237
      %p241 = scmp.eq.s32.totalorder %s35, 0
      %p242 = por %p240, %p241
      %p243 = scmp.ne.s32.totalorder %s235, %s237
      %p244 = scmp.eq.s32.totalorder %s40, 3
      %p245 = por %p243, %p244
      %p246 = scmp.ne.s32.totalorder %s237, %s238
      %p247 = scmp.eq.s32.totalorder %s40, 0
      %p248 = por %p246, %p247
      %p249 = scmp.ne.s32.totalorder %s237, %s238
      %p250 = scmp.eq.s32.totalorder %s41, 3
      %p251 = por %p249, %p250
      %p253 = scmp.ne.s32.totalorder %s238, %s252
      %p254 = scmp.eq.s32.totalorder %s41, 0
      %p255 = por %p253, %p254
      %s257 = sadd.s32 %s256, 1
      %p260 = scmp.eq.s32.totalorder %s35, 3
      %p261 = scmp.ne.s32.totalorder %s256, %s258
      %p262 = scmp.eq.s32.totalorder %s35, 0
      %p263 = por %p261, %p262
      %p264 = scmp.ne.s32.totalorder %s256, %s258
      %p265 = scmp.eq.s32.totalorder %s40, 3
      %p266 = por %p264, %p265
      %p267 = scmp.ne.s32.totalorder %s258, %s259
      %p268 = scmp.eq.s32.totalorder %s40, 0
      %p269 = por %p267, %p268
      %p270 = scmp.ne.s32.totalorder %s258, %s259
      %p271 = scmp.eq.s32.totalorder %s41, 3
      %p272 = por %p270, %p271
      %p274 = scmp.ne.s32.totalorder %s259, %s273
      %p275 = scmp.eq.s32.totalorder %s41, 0
      %p276 = por %p274, %p275
      %s278 = sadd.s32 %s277, 1
      %p281 = scmp.eq.s32.totalorder %s35, 3
      %p282 = scmp.ne.s32.totalorder %s277, %s279
      %p283 = scmp.eq.s32.totalorder %s35, 0
      %p284 = por %p282, %p283
      %p285 = scmp.ne.s32.totalorder %s277, %s279
      %p286 = scmp.eq.s32.totalorder %s40, 3
      %p287 = por %p285, %p286
      %p288 = scmp.ne.s32.totalorder %s279, %s280
      %p289 = scmp.eq.s32.totalorder %s40, 0
      %p290 = por %p288, %p289
      %p291 = scmp.ne.s32.totalorder %s279, %s280
      %p292 = scmp.eq.s32.totalorder %s41, 3
      %p293 = por %p291, %p292
      %p295 = scmp.ne.s32.totalorder %s280, %s294
      %p296 = scmp.eq.s32.totalorder %s41, 0
      %p297 = por %p295, %p296
      %s299 = sadd.s32 %s298, 1
      %p302 = scmp.eq.s32.totalorder %s35, 3
      %p303 = scmp.ne.s32.totalorder %s298, %s300
      %p304 = scmp.eq.s32.totalorder %s35, 0
      %p305 = por %p303, %p304
      %p306 = scmp.ne.s32.totalorder %s298, %s300
      %p307 = scmp.eq.s32.totalorder %s40, 3
      %p308 = por %p306, %p307
      %p309 = scmp.ne.s32.totalorder %s300, %s301
      %p310 = scmp.eq.s32.totalorder %s40, 0
      %p311 = por %p309, %p310
      %p312 = scmp.ne.s32.totalorder %s300, %s301
      %p313 = scmp.eq.s32.totalorder %s41, 3
      %p314 = por %p312, %p313
      %p316 = scmp.ne.s32.totalorder %s301, %s315
      %p317 = scmp.eq.s32.totalorder %s41, 0
      %p318 = por %p316, %p317
      %s320 = sadd.s32 %s319, 1
      %p323 = scmp.eq.s32.totalorder %s35, 3
      %p324 = scmp.ne.s32.totalorder %s319, %s321
      %p325 = scmp.eq.s32.totalorder %s35, 0
      %p326 = por %p324, %p325
      %p327 = scmp.ne.s32.totalorder %s319, %s321
      %p328 = scmp.eq.s32.totalorder %s40, 3
      %p329 = por %p327, %p328
      %p330 = scmp.ne.s32.totalorder %s321, %s322
      %p331 = scmp.eq.s32.totalorder %s40, 0
      %p332 = por %p330, %p331
      %p333 = scmp.ne.s32.totalorder %s321, %s322
      %p334 = scmp.eq.s32.totalorder %s41, 3
      %p335 = por %p333, %p334
      %p337 = scmp.ne.s32.totalorder %s322, %s336
      %p338 = scmp.eq.s32.totalorder %s41, 0
      %p339 = por %p337, %p338
      %s341 = sadd.s32 %s340, 1
      %p344 = scmp.eq.s32.totalorder %s35, 3
      %p345 = scmp.ne.s32.totalorder %s340, %s342
      %p346 = scmp.eq.s32.totalorder %s35, 0
      %p347 = por %p345, %p346
      %p348 = scmp.ne.s32.totalorder %s340, %s342
      %p349 = scmp.eq.s32.totalorder %s40, 3
      %p350 = por %p348, %p349
      %p351 = scmp.ne.s32.totalorder %s342, %s343
      %p352 = scmp.eq.s32.totalorder %s40, 0
      %p353 = por %p351, %p352
      %p354 = scmp.ne.s32.totalorder %s342, %s343
      %p355 = scmp.eq.s32.totalorder %s41, 3
      %p356 = por %p354, %p355
      %p358 = scmp.ne.s32.totalorder %s343, %s357
      %p359 = scmp.eq.s32.totalorder %s41, 0
      %p360 = por %p358, %p359
      %s361 = ssub.s32 %s42, %s54
      %s362 = ssub.s32 %s43, %s50
      %s363 = sor.u32 %s361, %s362
      %p364 = scmp.eq.s32.totalorder %s363, 0
      %s366 = sadd.s32 %s365, 1
      %s367 = scalar_select %p364, %s365, %s366
      %p370 = pneg %p364
      %p371 = scmp.eq.s32.totalorder %s35, 3
      %p372 = por %p370, %p371
      %p373 = scmp.ne.s32.totalorder %s365, %s368
      %p374 = scmp.eq.s32.totalorder %s35, 0
      %p375 = por %p373, %p374
      %p376 = scmp.ne.s32.totalorder %s365, %s368
      %p377 = scmp.eq.s32.totalorder %s40, 3
      %p378 = por %p376, %p377
      %p379 = scmp.ne.s32.totalorder %s368, %s369
      %p380 = scmp.eq.s32.totalorder %s40, 0
      %p381 = por %p379, %p380
      %p382 = scmp.ne.s32.totalorder %s368, %s369
      %p383 = scmp.eq.s32.totalorder %s41, 3
      %p384 = por %p382, %p383
      %p386 = scmp.ne.s32.totalorder %s369, %s385
      %p387 = scmp.eq.s32.totalorder %s41, 0
      %p388 = por %p386, %p387
      %p389 = scmp.le.s32.totalorder 1, %s35
      %p390 = scmp.lt.s32.totalorder %s35, 5
      %p391 = pnand %p389, %p390
      %p392 = pneg %p391
      // Predicated region
      $region9: #{tpu_custom_call.1} parent=5 // pred_check
        _
      $region10: #{tpu_custom_call.1} parent=5 // pred_check_branch
        %394 = sbr.rel (%p391) target = $region12
      $region11: #{tpu_custom_call.1} parent=5 // pred_region
        %s395 = ssub.s32 %s35, 1
        // Predicated region
        $region13: #{tpu_custom_call.1} parent=11 // pred_check
          %p396 = pneg %p122
        $region14: #{tpu_custom_call.1} parent=11 // pred_check_branch
          %398 = sbr.rel (%p396) target = $region16
        $region15: #{tpu_custom_call.1} parent=11 // pred_region
          %s400 = ssub.s32 16, 16
          %401 = vsyncadd [#allocation9], %s400
          %s403 = sshll.u32 [#allocation10], 4
          %s404 = int_to_ptr.vmem [resolvable:$true] %s403
          %406 = dma.hbm_to_vmem [thread:$0]  %s2, 16, %s404, [#allocation9]
        $region16: #{tpu_custom_call.1} parent=11 // pred_fallthru
          _
        // Predicated region
        $region17: #{tpu_custom_call.1} parent=11 // pred_check
          %p407 = pneg %p143
        $region18: #{tpu_custom_call.1} parent=11 // pred_check_branch
          %409 = sbr.rel (%p407) target = $region20
        $region19: #{tpu_custom_call.1} parent=11 // pred_region
          %s411 = ssub.s32 16, 16
          %412 = vsyncadd [#allocation12], %s411
          %s414 = sshll.u32 [#allocation11], 4
          %s415 = int_to_ptr.vmem [resolvable:$true] %s414
          %417 = dma.hbm_to_vmem [thread:$0]  %s3, 16, %s415, [#allocation12]
        $region20: #{tpu_custom_call.1} parent=11 // pred_fallthru
          _
        // Predicated region
        $region21: #{tpu_custom_call.1} parent=11 // pred_check
          %p418 = pneg %p164
        $region22: #{tpu_custom_call.1} parent=11 // pred_check_branch
          %420 = sbr.rel (%p418) target = $region24
        $region23: #{tpu_custom_call.1} parent=11 // pred_region
          %s422 = ssub.s32 3072, 3072
          %423 = vsyncadd [#allocation12], %s422
          %s424 = sshll.u32 [#allocation13], 4
          %s425 = int_to_ptr.vmem [resolvable:$true] %s424
          %430 = dma.hbm_to_vmem [thread:$0]  %s4, 3072, %s425, [#allocation12], 192, 192, 12
        $region24: #{tpu_custom_call.1} parent=11 // pred_fallthru
          _
        // Predicated region
        $region25: #{tpu_custom_call.1} parent=11 // pred_check
          %p431 = pneg %p185
        $region26: #{tpu_custom_call.1} parent=11 // pred_check_branch
          %433 = sbr.rel (%p431) target = $region28
        $region27: #{tpu_custom_call.1} parent=11 // pred_region
          %s435 = ssub.s32 48, 48
          %436 = vsyncadd [#allocation15], %s435
          %s438 = sshll.u32 [#allocation14], 4
          %s439 = int_to_ptr.vmem [resolvable:$true] %s438
          %441 = dma.hbm_to_vmem [thread:$0]  %s5, 48, %s439, [#allocation15]
        $region28: #{tpu_custom_call.1} parent=11 // pred_fallthru
          _
        // Predicated region
        $region29: #{tpu_custom_call.1} parent=11 // pred_check
          %p442 = pneg %p206
        $region30: #{tpu_custom_call.1} parent=11 // pred_check_branch
          %444 = sbr.rel (%p442) target = $region32
        $region31: #{tpu_custom_call.1} parent=11 // pred_region
          %s446 = ssub.s32 1024, 1024
          %447 = vsyncadd [#allocation15], %s446
          %s448 = sshll.u32 [#allocation16], 4
          %s449 = int_to_ptr.vmem [resolvable:$true] %s448
          %454 = dma.hbm_to_vmem [thread:$0]  %s6, 1024, %s449, [#allocation15], 64, 64, 4
        $region32: #{tpu_custom_call.1} parent=11 // pred_fallthru
          _
        // Predicated region
        $region33: #{tpu_custom_call.1} parent=11 // pred_check
          %p455 = pneg %p227
        $region34: #{tpu_custom_call.1} parent=11 // pred_check_branch
          %457 = sbr.rel (%p455) target = $region36
        $region35: #{tpu_custom_call.1} parent=11 // pred_region
          %s459 = ssub.s32 16, 16
          %460 = vsyncadd [#allocation18], %s459
          %s462 = sshll.u32 [#allocation17], 4
          %s463 = int_to_ptr.vmem [resolvable:$true] %s462
          %465 = dma.hbm_to_vmem [thread:$0]  %s7, 16, %s463, [#allocation18]
        $region36: #{tpu_custom_call.1} parent=11 // pred_fallthru
          _
        // Predicated region
        $region37: #{tpu_custom_call.1} parent=11 // pred_check
          %p466 = pneg %p248
        $region38: #{tpu_custom_call.1} parent=11 // pred_check_branch
          %468 = sbr.rel (%p466) target = $region40
        $region39: #{tpu_custom_call.1} parent=11 // pred_region
          %s470 = ssub.s32 16, 16
          %471 = vsyncadd [#allocation18], %s470
          %s473 = sshll.u32 [#allocation19], 4
          %s474 = int_to_ptr.vmem [resolvable:$true] %s473
          %476 = dma.hbm_to_vmem [thread:$0]  %s8, 16, %s474, [#allocation18]
        $region40: #{tpu_custom_call.1} parent=11 // pred_fallthru
          _
        // Predicated region
        $region41: #{tpu_custom_call.1} parent=11 // pred_check
          %p477 = pneg %p269
        $region42: #{tpu_custom_call.1} parent=11 // pred_check_branch
          %479 = sbr.rel (%p477) target = $region44
        $region43: #{tpu_custom_call.1} parent=11 // pred_region
          %s481 = ssub.s32 16, 16
          %482 = vsyncadd [#allocation21], %s481
          %s484 = sshll.u32 [#allocation20], 4
          %s485 = int_to_ptr.vmem [resolvable:$true] %s484
          %487 = dma.hbm_to_vmem [thread:$0]  %s9, 16, %s485, [#allocation21]
        $region44: #{tpu_custom_call.1} parent=11 // pred_fallthru
          _
        // Predicated region
        $region45: #{tpu_custom_call.1} parent=11 // pred_check
          %p488 = pneg %p290
        $region46: #{tpu_custom_call.1} parent=11 // pred_check_branch
          %490 = sbr.rel (%p488) target = $region48
        $region47: #{tpu_custom_call.1} parent=11 // pred_region
          %s492 = ssub.s32 4096, 4096
          %493 = vsyncadd [#allocation21], %s492
          %s494 = sshll.u32 [#allocation22], 4
          %s495 = int_to_ptr.vmem [resolvable:$true] %s494
          %500 = dma.hbm_to_vmem [thread:$0]  %s10, 4096, %s495, [#allocation21], 256, 256, 16
        $region48: #{tpu_custom_call.1} parent=11 // pred_fallthru
          _
        // Predicated region
        $region49: #{tpu_custom_call.1} parent=11 // pred_check
          %p501 = pneg %p311
        $region50: #{tpu_custom_call.1} parent=11 // pred_check_branch
          %503 = sbr.rel (%p501) target = $region52
        $region51: #{tpu_custom_call.1} parent=11 // pred_region
          %s505 = ssub.s32 64, 64
          %506 = vsyncadd [#allocation24], %s505
          %s508 = sshll.u32 [#allocation23], 4
          %s509 = int_to_ptr.vmem [resolvable:$true] %s508
          %511 = dma.hbm_to_vmem [thread:$0]  %s11, 64, %s509, [#allocation24]
        $region52: #{tpu_custom_call.1} parent=11 // pred_fallthru
          _
        // Predicated region
        $region53: #{tpu_custom_call.1} parent=11 // pred_check
          %p512 = pneg %p332
        $region54: #{tpu_custom_call.1} parent=11 // pred_check_branch
          %514 = sbr.rel (%p512) target = $region56
        $region55: #{tpu_custom_call.1} parent=11 // pred_region
          %s516 = ssub.s32 2048, 2048
          %517 = vsyncadd [#allocation24], %s516
          %s518 = sshll.u32 [#allocation25], 4
          %s519 = int_to_ptr.vmem [resolvable:$true] %s518
          %524 = dma.hbm_to_vmem [thread:$0]  %s12, 2048, %s519, [#allocation24], 64, 64, 4
        $region56: #{tpu_custom_call.1} parent=11 // pred_fallthru
          _
        // Predicated region
        $region57: #{tpu_custom_call.1} parent=11 // pred_check
          %p525 = pneg %p353
        $region58: #{tpu_custom_call.1} parent=11 // pred_check_branch
          %527 = sbr.rel (%p525) target = $region60
        $region59: #{tpu_custom_call.1} parent=11 // pred_region
          %s529 = ssub.s32 16, 16
          %530 = vsyncadd [#allocation27], %s529
          %s532 = sshll.u32 [#allocation26], 4
          %s533 = int_to_ptr.vmem [resolvable:$true] %s532
          %535 = dma.hbm_to_vmem [thread:$0]  %s13, 16, %s533, [#allocation27]
        $region60: #{tpu_custom_call.1} parent=11 // pred_fallthru
          _
      $region12: #{tpu_custom_call.1} parent=5 // pred_fallthru
        _
      %p536 = scmp.lt.s32.totalorder %s35, 4
      // Predicated region
      $region61: #{tpu_custom_call.1} parent=5 // pred_check
        %p537 = pneg %p536
      $region62: #{tpu_custom_call.1} parent=5 // pred_check_branch
        %539 = sbr.rel (%p537) target = $region64
      $region63: #{tpu_custom_call.1} parent=5 // pred_region
        // Predicated region
        $region65: #{tpu_custom_call.1} parent=63 // pred_check
          %p540 = pneg %p67
        $region66: #{tpu_custom_call.1} parent=63 // pred_check_branch
          %542 = sbr.rel (%p540) target = $region68
        $region67: #{tpu_custom_call.1} parent=63 // pred_region
          %s543 = sand.u32 %s57, 1
          %s544 = scalar_lea.sflag [#allocation6], %s543
          %s545 = sand.u32 %s57, 1
          %s546 = smul.addr %s545, 256
          %s547 = scalar_lea.vmem [#allocation5], %s546
          %s549 = ssub.s32 4096, 4096
          %550 = vsyncadd %s544, %s549
          %s551 = smul.addr %s42, 32
          %s552 = smul.addr %s551, 128
          %s553 = scalar_lea.hbm %s0, %s552
          %s554 = sshll.u32 %s547, 4
          %s555 = int_to_ptr.vmem [resolvable:$true] %s554
          %560 = dma.hbm_to_vmem [thread:$0]  %s553, 4096, %s555, %s544, 128, 128, 8
        $region68: #{tpu_custom_call.1} parent=63 // pred_fallthru
          _
        // Predicated region
        $region69: #{tpu_custom_call.1} parent=63 // pred_check
          %p561 = pneg %p95
        $region70: #{tpu_custom_call.1} parent=63 // pred_check_branch
          %563 = sbr.rel (%p561) target = $region72
        $region71: #{tpu_custom_call.1} parent=63 // pred_region
          %s564 = sand.u32 %s35, 1
          %s565 = scalar_lea.sflag [#allocation9], %s564
          %s566 = sand.u32 %s85, 1
          %s567 = smul.addr %s566, 128
          %s568 = scalar_lea.vmem [#allocation8], %s567
          %s569 = smul.u32 16, %s43
          %s571 = ssub.s32 2048, 2048
          %572 = vsyncadd %s565, %s571
          %s573 = smul.addr %s42, 32
          %s574 = sadd.s32 %s569, %s573
          %s575 = smul.addr %s574, 128
          %s576 = scalar_lea.hbm %s1, %s575
          %s577 = sshll.u32 %s568, 4
          %s578 = int_to_ptr.vmem [resolvable:$true] %s577
          %583 = dma.hbm_to_vmem [thread:$0]  %s576, 2048, %s578, %s565, 128, 128, 8
        $region72: #{tpu_custom_call.1} parent=63 // pred_fallthru
          _
      $region64: #{tpu_custom_call.1} parent=5 // pred_fallthru
        _
      %p584 = scmp.le.s32.totalorder 1, %s35
      %p585 = scmp.lt.s32.totalorder %s35, 5
      %p586 = pnand %p584, %p585
      %p587 = pneg %p586
      // Predicated region
      $region73: #{tpu_custom_call.1} parent=5 // pred_check
        _
      $region74: #{tpu_custom_call.1} parent=5 // pred_check_branch
        %589 = sbr.rel (%p586) target = $region76
      $region75: #{tpu_custom_call.1} parent=5 // pred_region
        %s590 = ssub.s32 %s35, 1
        %s591 = sand.u32 %s60, 1
        %s592 = scalar_lea.sflag [#allocation6], %s591
        %s593 = sand.u32 %s60, 1
        %s594 = smul.addr %s593, 256
        %s595 = scalar_lea.vmem [#allocation5], %s594
        // Predicated region
        $region77: #{tpu_custom_call.1} parent=75 // pred_check
          %p596 = pneg %p73
        $region78: #{tpu_custom_call.1} parent=75 // pred_check_branch
          %598 = sbr.rel (%p596) target = $region80
        $region79: #{tpu_custom_call.1} parent=75 // pred_region
          %599 = dma.done %s592, 4096
        $region80: #{tpu_custom_call.1} parent=75 // pred_fallthru
          _
        %s600 = sand.u32 %s40, 1
        %s601 = scalar_lea.sflag [#allocation9], %s600
        %s602 = sand.u32 %s88, 1
        %s603 = smul.addr %s602, 128
        %s604 = scalar_lea.vmem [#allocation8], %s603
        // Predicated region
        $region81: #{tpu_custom_call.1} parent=75 // pred_check
          %p605 = pneg %p101
        $region82: #{tpu_custom_call.1} parent=75 // pred_check_branch
          %607 = sbr.rel (%p605) target = $region84
        $region83: #{tpu_custom_call.1} parent=75 // pred_region
          %608 = dma.done %s601, 2048
        $region84: #{tpu_custom_call.1} parent=75 // pred_fallthru
          _
        // Predicated region
        $region85: #{tpu_custom_call.1} parent=75 // pred_check
          %p609 = pneg %p122
        $region86: #{tpu_custom_call.1} parent=75 // pred_check_branch
          %611 = sbr.rel (%p609) target = $region88
        $region87: #{tpu_custom_call.1} parent=75 // pred_region
          %612 = dma.done [#allocation9], 16
        $region88: #{tpu_custom_call.1} parent=75 // pred_fallthru
          _
        // Predicated region
        $region89: #{tpu_custom_call.1} parent=75 // pred_check
          %p613 = pneg %p143
        $region90: #{tpu_custom_call.1} parent=75 // pred_check_branch
          %615 = sbr.rel (%p613) target = $region92
        $region91: #{tpu_custom_call.1} parent=75 // pred_region
          %616 = dma.done [#allocation12], 16
        $region92: #{tpu_custom_call.1} parent=75 // pred_fallthru
          _
        // Predicated region
        $region93: #{tpu_custom_call.1} parent=75 // pred_check
          %p617 = pneg %p164
        $region94: #{tpu_custom_call.1} parent=75 // pred_check_branch
          %619 = sbr.rel (%p617) target = $region96
        $region95: #{tpu_custom_call.1} parent=75 // pred_region
          %620 = dma.done [#allocation12], 3072
        $region96: #{tpu_custom_call.1} parent=75 // pred_fallthru
          _
        // Predicated region
        $region97: #{tpu_custom_call.1} parent=75 // pred_check
          %p621 = pneg %p185
        $region98: #{tpu_custom_call.1} parent=75 // pred_check_branch
          %623 = sbr.rel (%p621) target = $region100
        $region99: #{tpu_custom_call.1} parent=75 // pred_region
          %624 = dma.done [#allocation15], 48
        $region100: #{tpu_custom_call.1} parent=75 // pred_fallthru
          _
        // Predicated region
        $region101: #{tpu_custom_call.1} parent=75 // pred_check
          %p625 = pneg %p206
        $region102: #{tpu_custom_call.1} parent=75 // pred_check_branch
          %627 = sbr.rel (%p625) target = $region104
        $region103: #{tpu_custom_call.1} parent=75 // pred_region
          %628 = dma.done [#allocation15], 1024
        $region104: #{tpu_custom_call.1} parent=75 // pred_fallthru
          _
        // Predicated region
        $region105: #{tpu_custom_call.1} parent=75 // pred_check
          %p629 = pneg %p227
        $region106: #{tpu_custom_call.1} parent=75 // pred_check_branch
          %631 = sbr.rel (%p629) target = $region108
        $region107: #{tpu_custom_call.1} parent=75 // pred_region
          %632 = dma.done [#allocation18], 16
        $region108: #{tpu_custom_call.1} parent=75 // pred_fallthru
          _
        // Predicated region
        $region109: #{tpu_custom_call.1} parent=75 // pred_check
          %p633 = pneg %p248
        $region110: #{tpu_custom_call.1} parent=75 // pred_check_branch
          %635 = sbr.rel (%p633) target = $region112
        $region111: #{tpu_custom_call.1} parent=75 // pred_region
          %636 = dma.done [#allocation18], 16
        $region112: #{tpu_custom_call.1} parent=75 // pred_fallthru
          _
        // Predicated region
        $region113: #{tpu_custom_call.1} parent=75 // pred_check
          %p637 = pneg %p269
        $region114: #{tpu_custom_call.1} parent=75 // pred_check_branch
          %639 = sbr.rel (%p637) target = $region116
        $region115: #{tpu_custom_call.1} parent=75 // pred_region
          %640 = dma.done [#allocation21], 16
        $region116: #{tpu_custom_call.1} parent=75 // pred_fallthru
          _
        // Predicated region
        $region117: #{tpu_custom_call.1} parent=75 // pred_check
          %p641 = pneg %p290
        $region118: #{tpu_custom_call.1} parent=75 // pred_check_branch
          %643 = sbr.rel (%p641) target = $region120
        $region119: #{tpu_custom_call.1} parent=75 // pred_region
          %644 = dma.done [#allocation21], 4096
        $region120: #{tpu_custom_call.1} parent=75 // pred_fallthru
          _
        // Predicated region
        $region121: #{tpu_custom_call.1} parent=75 // pred_check
          %p645 = pneg %p311
        $region122: #{tpu_custom_call.1} parent=75 // pred_check_branch
          %647 = sbr.rel (%p645) target = $region124
        $region123: #{tpu_custom_call.1} parent=75 // pred_region
          %648 = dma.done [#allocation24], 64
        $region124: #{tpu_custom_call.1} parent=75 // pred_fallthru
          _
        // Predicated region
        $region125: #{tpu_custom_call.1} parent=75 // pred_check
          %p649 = pneg %p332
        $region126: #{tpu_custom_call.1} parent=75 // pred_check_branch
          %651 = sbr.rel (%p649) target = $region128
        $region127: #{tpu_custom_call.1} parent=75 // pred_region
          %652 = dma.done [#allocation24], 2048
        $region128: #{tpu_custom_call.1} parent=75 // pred_fallthru
          _
        // Predicated region
        $region129: #{tpu_custom_call.1} parent=75 // pred_check
          %p653 = pneg %p353
        $region130: #{tpu_custom_call.1} parent=75 // pred_check_branch
          %655 = sbr.rel (%p653) target = $region132
        $region131: #{tpu_custom_call.1} parent=75 // pred_region
          %656 = dma.done [#allocation27], 16
        $region132: #{tpu_custom_call.1} parent=75 // pred_fallthru
          _
        %s657 = sand.u32 %s60, 1
        %s658 = scalar_lea.sflag [#allocation6], %s657
        %s659 = sand.u32 %s60, 1
        %s660 = smul.addr %s659, 256
        %s661 = scalar_lea.vmem [#allocation5], %s660
        %p662 = pneg %p73
        %p663 = pneg %p70
        %s664 = sand.u32 %s40, 1
        %s665 = scalar_lea.sflag [#allocation9], %s664
        %s666 = sand.u32 %s88, 1
        %s667 = smul.addr %s666, 128
        %s668 = scalar_lea.vmem [#allocation8], %s667
        %p669 = pneg %p101
        %p670 = pneg %p98
        %p671 = pneg %p122
        %p672 = pneg %p119
        %p673 = pneg %p143
        %p674 = pneg %p140
        %p675 = pneg %p164
        %p676 = pneg %p161
        %p677 = pneg %p185
        %p678 = pneg %p182
        %p679 = pneg %p206
        %p680 = pneg %p203
        %p681 = pneg %p227
        %p682 = pneg %p224
        %p683 = pneg %p248
        %p684 = pneg %p245
        %p685 = pneg %p269
        %p686 = pneg %p266
        %p687 = pneg %p290
        %p688 = pneg %p287
        %p689 = pneg %p311
        %p690 = pneg %p308
        %p691 = pneg %p332
        %p692 = pneg %p329
        %p693 = pneg %p353
        %p694 = pneg %p350
        %p695 = pneg %p381
        %p696 = pneg %p378
        %s697 = sand.u32 %s368, 1
        %s698 = scalar_lea.sflag [#allocation7], %s697
        %s699 = sand.u32 %s368, 1
        %s700 = smul.addr %s699, 128
        %s701 = scalar_lea.vmem [#allocation28], %s700
        %s702 = smul.u32 16, %s45
        %s703 = smul.u32 16, %s45
        %p705 = scmp.eq.s32.totalorder %s45, 0
        // Predicated region
        $region133: #{tpu_custom_call.1} parent=75 // pred_check
          %p706 = pneg %p705
        $region134: #{tpu_custom_call.1} parent=75 // pred_check_branch
          %708 = sbr.rel (%p706) target = $region136
        $region135: #{tpu_custom_call.1} parent=75 // pred_region
          %v709 = vld [vmem:[%s595] sm:$0xff]
          %v710 = vld [vmem:[%s595 + $0x8] sm:$0xff]
          %v711 = vld [vmem:[%s595 + $0x10] sm:$0xff]
          %v712 = vld [vmem:[%s595 + $0x18] sm:$0xff]
          %v713 = vld [vmem:[%s595 + $0x20] sm:$0xff]
          %v714 = vld [vmem:[%s595 + $0x28] sm:$0xff]
          %v715 = vld [vmem:[%s595 + $0x30] sm:$0xff]
          %v716 = vld [vmem:[%s595 + $0x38] sm:$0xff]
          %v717 = vld [vmem:[%s595 + $0x40] sm:$0xff]
          %v718 = vld [vmem:[%s595 + $0x48] sm:$0xff]
          %v719 = vld [vmem:[%s595 + $0x50] sm:$0xff]
          %v720 = vld [vmem:[%s595 + $0x58] sm:$0xff]
          %v721 = vld [vmem:[%s595 + $0x60] sm:$0xff]
          %v722 = vld [vmem:[%s595 + $0x68] sm:$0xff]
          %v723 = vld [vmem:[%s595 + $0x70] sm:$0xff]
          %v724 = vld [vmem:[%s595 + $0x78] sm:$0xff]
          %v725 = vld [vmem:[%s595 + $0x80] sm:$0xff]
          %v726 = vld [vmem:[%s595 + $0x88] sm:$0xff]
          %v727 = vld [vmem:[%s595 + $0x90] sm:$0xff]
          %v728 = vld [vmem:[%s595 + $0x98] sm:$0xff]
          %v729 = vld [vmem:[%s595 + $0xa0] sm:$0xff]
          %v730 = vld [vmem:[%s595 + $0xa8] sm:$0xff]
          %v731 = vld [vmem:[%s595 + $0xb0] sm:$0xff]
          %v732 = vld [vmem:[%s595 + $0xb8] sm:$0xff]
          %v733 = vld [vmem:[%s595 + $0xc0] sm:$0xff]
          %v734 = vld [vmem:[%s595 + $0xc8] sm:$0xff]
          %v735 = vld [vmem:[%s595 + $0xd0] sm:$0xff]
          %v736 = vld [vmem:[%s595 + $0xd8] sm:$0xff]
          %v737 = vld [vmem:[%s595 + $0xe0] sm:$0xff]
          %v738 = vld [vmem:[%s595 + $0xe8] sm:$0xff]
          %v739 = vld [vmem:[%s595 + $0xf0] sm:$0xff]
          %v740 = vld [vmem:[%s595 + $0xf8] sm:$0xff]
          %v741 = vld [vmem:[#allocation10] sm:$0x1]
          %v742 = vld [vmem:[#allocation11] sm:$0x1]
          %743 = vadd.xlane.f32.xlu0 %v709
          %v744 = vpop.xlane.xlu0 %743
          %745 = vadd.xlane.f32.xlu0 %v710
          %v746 = vpop.xlane.xlu0 %745
          %747 = vadd.xlane.f32.xlu0 %v711
          %v748 = vpop.xlane.xlu0 %747
          %749 = vadd.xlane.f32.xlu0 %v712
          %v750 = vpop.xlane.xlu0 %749
          %751 = vadd.xlane.f32.xlu0 %v713
          %v752 = vpop.xlane.xlu0 %751
          %753 = vadd.xlane.f32.xlu0 %v714
          %v754 = vpop.xlane.xlu0 %753
          %755 = vadd.xlane.f32.xlu0 %v715
          %v756 = vpop.xlane.xlu0 %755
          %757 = vadd.xlane.f32.xlu0 %v716
          %v758 = vpop.xlane.xlu0 %757
          %759 = vadd.xlane.f32.xlu0 %v717
          %v760 = vpop.xlane.xlu0 %759
          %761 = vadd.xlane.f32.xlu0 %v718
          %v762 = vpop.xlane.xlu0 %761
          %763 = vadd.xlane.f32.xlu0 %v719
          %v764 = vpop.xlane.xlu0 %763
          %765 = vadd.xlane.f32.xlu0 %v720
          %v766 = vpop.xlane.xlu0 %765
          %767 = vadd.xlane.f32.xlu0 %v721
          %v768 = vpop.xlane.xlu0 %767
          %769 = vadd.xlane.f32.xlu0 %v722
          %v770 = vpop.xlane.xlu0 %769
          %771 = vadd.xlane.f32.xlu0 %v723
          %v772 = vpop.xlane.xlu0 %771
          %773 = vadd.xlane.f32.xlu0 %v724
          %v774 = vpop.xlane.xlu0 %773
          %775 = vadd.xlane.f32.xlu0 %v725
          %v776 = vpop.xlane.xlu0 %775
          %777 = vadd.xlane.f32.xlu0 %v726
          %v778 = vpop.xlane.xlu0 %777
          %779 = vadd.xlane.f32.xlu0 %v727
          %v780 = vpop.xlane.xlu0 %779
          %781 = vadd.xlane.f32.xlu0 %v728
          %v782 = vpop.xlane.xlu0 %781
          %783 = vadd.xlane.f32.xlu0 %v729
          %v784 = vpop.xlane.xlu0 %783
          %785 = vadd.xlane.f32.xlu0 %v730
          %v786 = vpop.xlane.xlu0 %785
          %787 = vadd.xlane.f32.xlu0 %v731
          %v788 = vpop.xlane.xlu0 %787
          %789 = vadd.xlane.f32.xlu0 %v732
          %v790 = vpop.xlane.xlu0 %789
          %791 = vadd.xlane.f32.xlu0 %v733
          %v792 = vpop.xlane.xlu0 %791
          %793 = vadd.xlane.f32.xlu0 %v734
          %v794 = vpop.xlane.xlu0 %793
          %795 = vadd.xlane.f32.xlu0 %v735
          %v796 = vpop.xlane.xlu0 %795
          %797 = vadd.xlane.f32.xlu0 %v736
          %v798 = vpop.xlane.xlu0 %797
          %799 = vadd.xlane.f32.xlu0 %v737
          %v800 = vpop.xlane.xlu0 %799
          %801 = vadd.xlane.f32.xlu0 %v738
          %v802 = vpop.xlane.xlu0 %801
          %803 = vadd.xlane.f32.xlu0 %v739
          %v804 = vpop.xlane.xlu0 %803
          %805 = vadd.xlane.f32.xlu0 %v740
          %v806 = vpop.xlane.xlu0 %805
          %v807 = vrcp.pop 128.0
          %v808 = vmul.f32 %v744, %v807
          %v809 = vmul.f32 %v746, %v807
          %v810 = vmul.f32 %v748, %v807
          %v811 = vmul.f32 %v750, %v807
          %v812 = vmul.f32 %v752, %v807
          %v813 = vmul.f32 %v754, %v807
          %v814 = vmul.f32 %v756, %v807
          %v815 = vmul.f32 %v758, %v807
          %v816 = vmul.f32 %v760, %v807
          %v817 = vmul.f32 %v762, %v807
          %v818 = vmul.f32 %v764, %v807
          %v819 = vmul.f32 %v766, %v807
          %v820 = vmul.f32 %v768, %v807
          %v821 = vmul.f32 %v770, %v807
          %v822 = vmul.f32 %v772, %v807
          %v823 = vmul.f32 %v774, %v807
          %v824 = vmul.f32 %v776, %v807
          %v825 = vmul.f32 %v778, %v807
          %v826 = vmul.f32 %v780, %v807
          %v827 = vmul.f32 %v782, %v807
          %v828 = vmul.f32 %v784, %v807
          %v829 = vmul.f32 %v786, %v807
          %v830 = vmul.f32 %v788, %v807
          %v831 = vmul.f32 %v790, %v807
          %v832 = vmul.f32 %v792, %v807
          %v833 = vmul.f32 %v794, %v807
          %v834 = vmul.f32 %v796, %v807
          %v835 = vmul.f32 %v798, %v807
          %v836 = vmul.f32 %v800, %v807
          %v837 = vmul.f32 %v802, %v807
          %v838 = vmul.f32 %v804, %v807
          %v839 = vmul.f32 %v806, %v807
          %v840 = vsub.f32 %v709, %v808
          %v841 = vsub.f32 %v710, %v809
          %v842 = vsub.f32 %v711, %v810
          %v843 = vsub.f32 %v712, %v811
          %v844 = vsub.f32 %v713, %v812
          %v845 = vsub.f32 %v714, %v813
          %v846 = vsub.f32 %v715, %v814
          %v847 = vsub.f32 %v716, %v815
          %v848 = vsub.f32 %v717, %v816
          %v849 = vsub.f32 %v718, %v817
          %v850 = vsub.f32 %v719, %v818
          %v851 = vsub.f32 %v720, %v819
          %v852 = vsub.f32 %v721, %v820
          %v853 = vsub.f32 %v722, %v821
          %v854 = vsub.f32 %v723, %v822
          %v855 = vsub.f32 %v724, %v823
          %v856 = vsub.f32 %v725, %v824
          %v857 = vsub.f32 %v726, %v825
          %v858 = vsub.f32 %v727, %v826
          %v859 = vsub.f32 %v728, %v827
          %v860 = vsub.f32 %v729, %v828
          %v861 = vsub.f32 %v730, %v829
          %v862 = vsub.f32 %v731, %v830
          %v863 = vsub.f32 %v732, %v831
          %v864 = vsub.f32 %v733, %v832
          %v865 = vsub.f32 %v734, %v833
          %v866 = vsub.f32 %v735, %v834
          %v867 = vsub.f32 %v736, %v835
          %v868 = vsub.f32 %v737, %v836
          %v869 = vsub.f32 %v738, %v837
          %v870 = vsub.f32 %v739, %v838
          %v871 = vsub.f32 %v740, %v839
          %v872 = vmul.f32 %v840, %v840
          %v873 = vmul.f32 %v841, %v841
          %v874 = vmul.f32 %v842, %v842
          %v875 = vmul.f32 %v843, %v843
          %v876 = vmul.f32 %v844, %v844
          %v877 = vmul.f32 %v845, %v845
          %v878 = vmul.f32 %v846, %v846
          %v879 = vmul.f32 %v847, %v847
          %v880 = vmul.f32 %v848, %v848
          %v881 = vmul.f32 %v849, %v849
          %v882 = vmul.f32 %v850, %v850
          %v883 = vmul.f32 %v851, %v851
          %v884 = vmul.f32 %v852, %v852
          %v885 = vmul.f32 %v853, %v853
          %v886 = vmul.f32 %v854, %v854
          %v887 = vmul.f32 %v855, %v855
          %v888 = vmul.f32 %v856, %v856
          %v889 = vmul.f32 %v857, %v857
          %v890 = vmul.f32 %v858, %v858
          %v891 = vmul.f32 %v859, %v859
          %v892 = vmul.f32 %v860, %v860
          %v893 = vmul.f32 %v861, %v861
          %v894 = vmul.f32 %v862, %v862
          %v895 = vmul.f32 %v863, %v863
          %v896 = vmul.f32 %v864, %v864
          %v897 = vmul.f32 %v865, %v865
          %v898 = vmul.f32 %v866, %v866
          %v899 = vmul.f32 %v867, %v867
          %v900 = vmul.f32 %v868, %v868
          %v901 = vmul.f32 %v869, %v869
          %v902 = vmul.f32 %v870, %v870
          %v903 = vmul.f32 %v871, %v871
          %904 = vadd.xlane.f32.xlu0 %v872
          %v905 = vpop.xlane.xlu0 %904
          %906 = vadd.xlane.f32.xlu0 %v873
          %v907 = vpop.xlane.xlu0 %906
          %908 = vadd.xlane.f32.xlu0 %v874
          %v909 = vpop.xlane.xlu0 %908
          %910 = vadd.xlane.f32.xlu0 %v875
          %v911 = vpop.xlane.xlu0 %910
          %912 = vadd.xlane.f32.xlu0 %v876
          %v913 = vpop.xlane.xlu0 %912
          %914 = vadd.xlane.f32.xlu0 %v877
          %v915 = vpop.xlane.xlu0 %914
          %916 = vadd.xlane.f32.xlu0 %v878
          %v917 = vpop.xlane.xlu0 %916
          %918 = vadd.xlane.f32.xlu0 %v879
          %v919 = vpop.xlane.xlu0 %918
          %920 = vadd.xlane.f32.xlu0 %v880
          %v921 = vpop.xlane.xlu0 %920
          %922 = vadd.xlane.f32.xlu0 %v881
          %v923 = vpop.xlane.xlu0 %922
          %924 = vadd.xlane.f32.xlu0 %v882
          %v925 = vpop.xlane.xlu0 %924
          %926 = vadd.xlane.f32.xlu0 %v883
          %v927 = vpop.xlane.xlu0 %926
          %928 = vadd.xlane.f32.xlu0 %v884
          %v929 = vpop.xlane.xlu0 %928
          %930 = vadd.xlane.f32.xlu0 %v885
          %v931 = vpop.xlane.xlu0 %930
          %932 = vadd.xlane.f32.xlu0 %v886
          %v933 = vpop.xlane.xlu0 %932
          %934 = vadd.xlane.f32.xlu0 %v887
          %v935 = vpop.xlane.xlu0 %934
          %936 = vadd.xlane.f32.xlu0 %v888
          %v937 = vpop.xlane.xlu0 %936
          %938 = vadd.xlane.f32.xlu0 %v889
          %v939 = vpop.xlane.xlu0 %938
          %940 = vadd.xlane.f32.xlu0 %v890
          %v941 = vpop.xlane.xlu0 %940
          %942 = vadd.xlane.f32.xlu0 %v891
          %v943 = vpop.xlane.xlu0 %942
          %944 = vadd.xlane.f32.xlu0 %v892
          %v945 = vpop.xlane.xlu0 %944
          %946 = vadd.xlane.f32.xlu0 %v893
          %v947 = vpop.xlane.xlu0 %946
          %948 = vadd.xlane.f32.xlu0 %v894
          %v949 = vpop.xlane.xlu0 %948
          %950 = vadd.xlane.f32.xlu0 %v895
          %v951 = vpop.xlane.xlu0 %950
          %952 = vadd.xlane.f32.xlu0 %v896
          %v953 = vpop.xlane.xlu0 %952
          %954 = vadd.xlane.f32.xlu0 %v897
          %v955 = vpop.xlane.xlu0 %954
          %956 = vadd.xlane.f32.xlu0 %v898
          %v957 = vpop.xlane.xlu0 %956
          %958 = vadd.xlane.f32.xlu0 %v899
          %v959 = vpop.xlane.xlu0 %958
          %960 = vadd.xlane.f32.xlu0 %v900
          %v961 = vpop.xlane.xlu0 %960
          %962 = vadd.xlane.f32.xlu0 %v901
          %v963 = vpop.xlane.xlu0 %962
          %964 = vadd.xlane.f32.xlu0 %v902
          %v965 = vpop.xlane.xlu0 %964
          %966 = vadd.xlane.f32.xlu0 %v903
          %v967 = vpop.xlane.xlu0 %966
          %v968 = vmul.f32 %v905, %v807
          %v969 = vmul.f32 %v907, %v807
          %v970 = vmul.f32 %v909, %v807
          %v971 = vmul.f32 %v911, %v807
          %v972 = vmul.f32 %v913, %v807
          %v973 = vmul.f32 %v915, %v807
          %v974 = vmul.f32 %v917, %v807
          %v975 = vmul.f32 %v919, %v807
          %v976 = vmul.f32 %v921, %v807
          %v977 = vmul.f32 %v923, %v807
          %v978 = vmul.f32 %v925, %v807
          %v979 = vmul.f32 %v927, %v807
          %v980 = vmul.f32 %v929, %v807
          %v981 = vmul.f32 %v931, %v807
          %v982 = vmul.f32 %v933, %v807
          %v983 = vmul.f32 %v935, %v807
          %v984 = vmul.f32 %v937, %v807
          %v985 = vmul.f32 %v939, %v807
          %v986 = vmul.f32 %v941, %v807
          %v987 = vmul.f32 %v943, %v807
          %v988 = vmul.f32 %v945, %v807
          %v989 = vmul.f32 %v947, %v807
          %v990 = vmul.f32 %v949, %v807
          %v991 = vmul.f32 %v951, %v807
          %v992 = vmul.f32 %v953, %v807
          %v993 = vmul.f32 %v955, %v807
          %v994 = vmul.f32 %v957, %v807
          %v995 = vmul.f32 %v959, %v807
          %v996 = vmul.f32 %v961, %v807
          %v997 = vmul.f32 %v963, %v807
          %v998 = vmul.f32 %v965, %v807
          %v999 = vmul.f32 %v967, %v807
          %v1000 = vadd.f32 %v968, 1e-05
          %v1001 = vadd.f32 %v969, 1e-05
          %v1002 = vadd.f32 %v970, 1e-05
          %v1003 = vadd.f32 %v971, 1e-05
          %v1004 = vadd.f32 %v972, 1e-05
          %v1005 = vadd.f32 %v973, 1e-05
          %v1006 = vadd.f32 %v974, 1e-05
          %v1007 = vadd.f32 %v975, 1e-05
          %v1008 = vadd.f32 %v976, 1e-05
          %v1009 = vadd.f32 %v977, 1e-05
          %v1010 = vadd.f32 %v978, 1e-05
          %v1011 = vadd.f32 %v979, 1e-05
          %v1012 = vadd.f32 %v980, 1e-05
          %v1013 = vadd.f32 %v981, 1e-05
          %v1014 = vadd.f32 %v982, 1e-05
          %v1015 = vadd.f32 %v983, 1e-05
          %v1016 = vadd.f32 %v984, 1e-05
          %v1017 = vadd.f32 %v985, 1e-05
          %v1018 = vadd.f32 %v986, 1e-05
          %v1019 = vadd.f32 %v987, 1e-05
          %v1020 = vadd.f32 %v988, 1e-05
          %v1021 = vadd.f32 %v989, 1e-05
          %v1022 = vadd.f32 %v990, 1e-05
          %v1023 = vadd.f32 %v991, 1e-05
          %v1024 = vadd.f32 %v992, 1e-05
          %v1025 = vadd.f32 %v993, 1e-05
          %v1026 = vadd.f32 %v994, 1e-05
          %v1027 = vadd.f32 %v995, 1e-05
          %v1028 = vadd.f32 %v996, 1e-05
          %v1029 = vadd.f32 %v997, 1e-05
          %v1030 = vadd.f32 %v998, 1e-05
          %v1031 = vadd.f32 %v999, 1e-05
          %v1032 = vrsqrt.pop %v1000
          %v1033 = vrsqrt.pop %v1001
          %v1034 = vrsqrt.pop %v1002
          %v1035 = vrsqrt.pop %v1003
          %v1036 = vrsqrt.pop %v1004
          %v1037 = vrsqrt.pop %v1005
          %v1038 = vrsqrt.pop %v1006
          %v1039 = vrsqrt.pop %v1007
          %v1040 = vrsqrt.pop %v1008
          %v1041 = vrsqrt.pop %v1009
          %v1042 = vrsqrt.pop %v1010
          %v1043 = vrsqrt.pop %v1011
          %v1044 = vrsqrt.pop %v1012
          %v1045 = vrsqrt.pop %v1013
          %v1046 = vrsqrt.pop %v1014
          %v1047 = vrsqrt.pop %v1015
          %v1048 = vrsqrt.pop %v1016
          %v1049 = vrsqrt.pop %v1017
          %v1050 = vrsqrt.pop %v1018
          %v1051 = vrsqrt.pop %v1019
          %v1052 = vrsqrt.pop %v1020
          %v1053 = vrsqrt.pop %v1021
          %v1054 = vrsqrt.pop %v1022
          %v1055 = vrsqrt.pop %v1023
          %v1056 = vrsqrt.pop %v1024
          %v1057 = vrsqrt.pop %v1025
          %v1058 = vrsqrt.pop %v1026
          %v1059 = vrsqrt.pop %v1027
          %v1060 = vrsqrt.pop %v1028
          %v1061 = vrsqrt.pop %v1029
          %v1062 = vrsqrt.pop %v1030
          %v1063 = vrsqrt.pop %v1031
          %v1064 = vmul.f32 %v840, %v1032
          %v1065 = vmul.f32 %v841, %v1033
          %v1066 = vmul.f32 %v842, %v1034
          %v1067 = vmul.f32 %v843, %v1035
          %v1068 = vmul.f32 %v844, %v1036
          %v1069 = vmul.f32 %v845, %v1037
          %v1070 = vmul.f32 %v846, %v1038
          %v1071 = vmul.f32 %v847, %v1039
          %v1072 = vmul.f32 %v848, %v1040
          %v1073 = vmul.f32 %v849, %v1041
          %v1074 = vmul.f32 %v850, %v1042
          %v1075 = vmul.f32 %v851, %v1043
          %v1076 = vmul.f32 %v852, %v1044
          %v1077 = vmul.f32 %v853, %v1045
          %v1078 = vmul.f32 %v854, %v1046
          %v1079 = vmul.f32 %v855, %v1047
          %v1080 = vmul.f32 %v856, %v1048
          %v1081 = vmul.f32 %v857, %v1049
          %v1082 = vmul.f32 %v858, %v1050
          %v1083 = vmul.f32 %v859, %v1051
          %v1084 = vmul.f32 %v860, %v1052
          %v1085 = vmul.f32 %v861, %v1053
          %v1086 = vmul.f32 %v862, %v1054
          %v1087 = vmul.f32 %v863, %v1055
          %v1088 = vmul.f32 %v864, %v1056
          %v1089 = vmul.f32 %v865, %v1057
          %v1090 = vmul.f32 %v866, %v1058
          %v1091 = vmul.f32 %v867, %v1059
          %v1092 = vmul.f32 %v868, %v1060
          %v1093 = vmul.f32 %v869, %v1061
          %v1094 = vmul.f32 %v870, %v1062
          %v1095 = vmul.f32 %v871, %v1063
          %v1097 = vlaneseq
          %v1098 = vshrl.u32 %v1097, 7
          %v1099 = vsub.s32 0, %v1098
          %v1100 = vrot.slane %v741, %v1099
          %v1102 = vmul.f32 %v1064, %v1100
          %v1103 = vmul.f32 %v1065, %v1100
          %v1104 = vmul.f32 %v1066, %v1100
          %v1105 = vmul.f32 %v1067, %v1100
          %v1106 = vmul.f32 %v1068, %v1100
          %v1107 = vmul.f32 %v1069, %v1100
          %v1108 = vmul.f32 %v1070, %v1100
          %v1109 = vmul.f32 %v1071, %v1100
          %v1110 = vmul.f32 %v1072, %v1100
          %v1111 = vmul.f32 %v1073, %v1100
          %v1112 = vmul.f32 %v1074, %v1100
          %v1113 = vmul.f32 %v1075, %v1100
          %v1114 = vmul.f32 %v1076, %v1100
          %v1115 = vmul.f32 %v1077, %v1100
          %v1116 = vmul.f32 %v1078, %v1100
          %v1117 = vmul.f32 %v1079, %v1100
          %v1118 = vmul.f32 %v1080, %v1100
          %v1119 = vmul.f32 %v1081, %v1100
          %v1120 = vmul.f32 %v1082, %v1100
          %v1121 = vmul.f32 %v1083, %v1100
          %v1122 = vmul.f32 %v1084, %v1100
          %v1123 = vmul.f32 %v1085, %v1100
          %v1124 = vmul.f32 %v1086, %v1100
          %v1125 = vmul.f32 %v1087, %v1100
          %v1126 = vmul.f32 %v1088, %v1100
          %v1127 = vmul.f32 %v1089, %v1100
          %v1128 = vmul.f32 %v1090, %v1100
          %v1129 = vmul.f32 %v1091, %v1100
          %v1130 = vmul.f32 %v1092, %v1100
          %v1131 = vmul.f32 %v1093, %v1100
          %v1132 = vmul.f32 %v1094, %v1100
          %v1133 = vmul.f32 %v1095, %v1100
          %v1135 = vlaneseq
          %v1136 = vshrl.u32 %v1135, 7
          %v1137 = vsub.s32 0, %v1136
          %v1138 = vrot.slane %v742, %v1137
          %v1140 = vadd.f32 %v1102, %v1138
          %v1141 = vadd.f32 %v1103, %v1138
          %v1142 = vadd.f32 %v1104, %v1138
          %v1143 = vadd.f32 %v1105, %v1138
          %v1144 = vadd.f32 %v1106, %v1138
          %v1145 = vadd.f32 %v1107, %v1138
          %v1146 = vadd.f32 %v1108, %v1138
          %v1147 = vadd.f32 %v1109, %v1138
          %v1148 = vadd.f32 %v1110, %v1138
          %v1149 = vadd.f32 %v1111, %v1138
          %v1150 = vadd.f32 %v1112, %v1138
          %v1151 = vadd.f32 %v1113, %v1138
          %v1152 = vadd.f32 %v1114, %v1138
          %v1153 = vadd.f32 %v1115, %v1138
          %v1154 = vadd.f32 %v1116, %v1138
          %v1155 = vadd.f32 %v1117, %v1138
          %v1156 = vadd.f32 %v1118, %v1138
          %v1157 = vadd.f32 %v1119, %v1138
          %v1158 = vadd.f32 %v1120, %v1138
          %v1159 = vadd.f32 %v1121, %v1138
          %v1160 = vadd.f32 %v1122, %v1138
          %v1161 = vadd.f32 %v1123, %v1138
          %v1162 = vadd.f32 %v1124, %v1138
          %v1163 = vadd.f32 %v1125, %v1138
          %v1164 = vadd.f32 %v1126, %v1138
          %v1165 = vadd.f32 %v1127, %v1138
          %v1166 = vadd.f32 %v1128, %v1138
          %v1167 = vadd.f32 %v1129, %v1138
          %v1168 = vadd.f32 %v1130, %v1138
          %v1169 = vadd.f32 %v1131, %v1138
          %v1170 = vadd.f32 %v1132, %v1138
          %v1171 = vadd.f32 %v1133, %v1138
          %v1172 = vpack.c.bf16 %v1141, %v1140
          %v1173 = vpack.c.bf16 %v1143, %v1142
          %v1174 = vpack.c.bf16 %v1145, %v1144
          %v1175 = vpack.c.bf16 %v1147, %v1146
          %v1176 = vpack.c.bf16 %v1149, %v1148
          %v1177 = vpack.c.bf16 %v1151, %v1150
          %v1178 = vpack.c.bf16 %v1153, %v1152
          %v1179 = vpack.c.bf16 %v1155, %v1154
          %v1180 = vpack.c.bf16 %v1157, %v1156
          %v1181 = vpack.c.bf16 %v1159, %v1158
          %v1182 = vpack.c.bf16 %v1161, %v1160
          %v1183 = vpack.c.bf16 %v1163, %v1162
          %v1184 = vpack.c.bf16 %v1165, %v1164
          %v1185 = vpack.c.bf16 %v1167, %v1166
          %v1186 = vpack.c.bf16 %v1169, %v1168
          %v1187 = vpack.c.bf16 %v1171, %v1170
          %v1188 = vld [vmem:[#allocation13] sm:$0xff]
          %v1189 = vld [vmem:[#allocation13 + $0x8] sm:$0xf]
          %v1190 = vld [vmem:[#allocation13 + $0xc] sm:$0xff]
          %v1191 = vld [vmem:[#allocation13 + $0x14] sm:$0xf]
          %v1192 = vld [vmem:[#allocation13 + $0x18] sm:$0xff]
          %v1193 = vld [vmem:[#allocation13 + $0x20] sm:$0xf]
          %v1194 = vld [vmem:[#allocation13 + $0x24] sm:$0xff]
          %v1195 = vld [vmem:[#allocation13 + $0x2c] sm:$0xf]
          %v1196 = vld [vmem:[#allocation13 + $0x30] sm:$0xff]
          %v1197 = vld [vmem:[#allocation13 + $0x38] sm:$0xf]
          %v1198 = vld [vmem:[#allocation13 + $0x3c] sm:$0xff]
          %v1199 = vld [vmem:[#allocation13 + $0x44] sm:$0xf]
          %v1200 = vld [vmem:[#allocation13 + $0x48] sm:$0xff]
          %v1201 = vld [vmem:[#allocation13 + $0x50] sm:$0xf]
          %v1202 = vld [vmem:[#allocation13 + $0x54] sm:$0xff]
          %v1203 = vld [vmem:[#allocation13 + $0x5c] sm:$0xf]
          %v1204 = vld [vmem:[#allocation13 + $0x60] sm:$0xff]
          %v1205 = vld [vmem:[#allocation13 + $0x68] sm:$0xf]
          %v1206 = vld [vmem:[#allocation13 + $0x6c] sm:$0xff]
          %v1207 = vld [vmem:[#allocation13 + $0x74] sm:$0xf]
          %v1208 = vld [vmem:[#allocation13 + $0x78] sm:$0xff]
          %v1209 = vld [vmem:[#allocation13 + $0x80] sm:$0xf]
          %v1210 = vld [vmem:[#allocation13 + $0x84] sm:$0xff]
          %v1211 = vld [vmem:[#allocation13 + $0x8c] sm:$0xf]
          %v1212 = vld [vmem:[#allocation13 + $0x90] sm:$0xff]
          %v1213 = vld [vmem:[#allocation13 + $0x98] sm:$0xf]
          %v1214 = vld [vmem:[#allocation13 + $0x9c] sm:$0xff]
          %v1215 = vld [vmem:[#allocation13 + $0xa4] sm:$0xf]
          %v1216 = vld [vmem:[#allocation13 + $0xa8] sm:$0xff]
          %v1217 = vld [vmem:[#allocation13 + $0xb0] sm:$0xf]
          %v1218 = vld [vmem:[#allocation13 + $0xb4] sm:$0xff]
          %v1219 = vld [vmem:[#allocation13 + $0xbc] sm:$0xf]
          %v1220 = vld [vmem:[#allocation14] sm:$0x7]
          %v1222 = vlaneseq
          %v1223 = vshrl.u32 %v1222, 7
          %v1224 = vsub.s32 0, %v1223
          %v1225 = vrot.slane %v1220, %v1224
          %v1226 = vlaneseq
          %v1227 = vshrl.u32 %v1226, 7
          %v1228 = vsub.s32 1, %v1227
          %v1229 = vrot.slane %v1220, %v1228
          %v1230 = vlaneseq
          %v1231 = vshrl.u32 %v1230, 7
          %v1232 = vsub.s32 2, %v1231
          %v1233 = vrot.slane %v1220, %v1232
          %v1269 = vunpack.c.l.b16 %v1188
          %v1270 = vunpack.c.h.b16 %v1188
          %v1271 = vunpack.c.l.b16 %v1189
          %v1272 = vunpack.c.l.b16 %v1190
          %v1273 = vunpack.c.h.b16 %v1190
          %v1274 = vunpack.c.l.b16 %v1191
          %v1275 = vunpack.c.l.b16 %v1192
          %v1276 = vunpack.c.h.b16 %v1192
          %v1277 = vunpack.c.l.b16 %v1193
          %v1278 = vunpack.c.l.b16 %v1194
          %v1279 = vunpack.c.h.b16 %v1194
          %v1280 = vunpack.c.l.b16 %v1195
          %v1281 = vunpack.c.l.b16 %v1196
          %v1282 = vunpack.c.h.b16 %v1196
          %v1283 = vunpack.c.l.b16 %v1197
          %v1284 = vunpack.c.l.b16 %v1198
          %v1285 = vunpack.c.h.b16 %v1198
          %v1286 = vunpack.c.l.b16 %v1199
          %v1287 = vunpack.c.l.b16 %v1200
          %v1288 = vunpack.c.h.b16 %v1200
          %v1289 = vunpack.c.l.b16 %v1201
          %v1290 = vunpack.c.l.b16 %v1202
          %v1291 = vunpack.c.h.b16 %v1202
          %v1292 = vunpack.c.l.b16 %v1203
          %v1293 = vunpack.c.l.b16 %v1204
          %v1294 = vunpack.c.h.b16 %v1204
          %v1295 = vunpack.c.l.b16 %v1205
          %v1296 = vunpack.c.l.b16 %v1206
          %v1297 = vunpack.c.h.b16 %v1206
          %v1298 = vunpack.c.l.b16 %v1207
          %v1299 = vunpack.c.l.b16 %v1208
          %v1300 = vunpack.c.h.b16 %v1208
          %v1301 = vunpack.c.l.b16 %v1209
          %v1302 = vunpack.c.l.b16 %v1210
          %v1303 = vunpack.c.h.b16 %v1210
          %v1304 = vunpack.c.l.b16 %v1211
          %v1305 = vunpack.c.l.b16 %v1212
          %v1306 = vunpack.c.h.b16 %v1212
          %v1307 = vunpack.c.l.b16 %v1213
          %v1308 = vunpack.c.l.b16 %v1214
          %v1309 = vunpack.c.h.b16 %v1214
          %v1310 = vunpack.c.l.b16 %v1215
          %v1311 = vunpack.c.l.b16 %v1216
          %v1312 = vunpack.c.h.b16 %v1216
          %v1313 = vunpack.c.l.b16 %v1217
          %v1314 = vunpack.c.l.b16 %v1218
          %v1315 = vunpack.c.h.b16 %v1218
          %v1316 = vunpack.c.l.b16 %v1219
          %v1317 = vpack.c.b16 %v1272, %v1269
          %v1318 = vpack.c.b16 %v1273, %v1270
          %v1319 = vpack.c.b16 %v1274, %v1271
          %v1320 = vpack.c.b16 %v1278, %v1275
          %v1321 = vpack.c.b16 %v1279, %v1276
          %v1322 = vpack.c.b16 %v1280, %v1277
          %v1323 = vpack.c.b16 %v1284, %v1281
          %v1324 = vpack.c.b16 %v1285, %v1282
          %v1325 = vpack.c.b16 %v1286, %v1283
          %v1326 = vpack.c.b16 %v1290, %v1287
          %v1327 = vpack.c.b16 %v1291, %v1288
          %v1328 = vpack.c.b16 %v1292, %v1289
          %v1329 = vpack.c.b16 %v1296, %v1293
          %v1330 = vpack.c.b16 %v1297, %v1294
          %v1331 = vpack.c.b16 %v1298, %v1295
          %v1332 = vpack.c.b16 %v1302, %v1299
          %v1333 = vpack.c.b16 %v1303, %v1300
          %v1334 = vpack.c.b16 %v1304, %v1301
          %v1335 = vpack.c.b16 %v1308, %v1305
          %v1336 = vpack.c.b16 %v1309, %v1306
          %v1337 = vpack.c.b16 %v1310, %v1307
          %v1338 = vpack.c.b16 %v1314, %v1311
          %v1339 = vpack.c.b16 %v1315, %v1312
          %v1340 = vpack.c.b16 %v1316, %v1313
          %1365 = vmatprep.subr.bf16.mxu0 %v1318
          %1366 = vmatpush1.bf16.msra.mxu0 %v1317
          %1367 = vmatprep.subr.bf16.mxu0 %v1321
          %1368 = vmatpush1.bf16.msra.mxu0 %v1320
          %1369 = vmatprep.subr.bf16.mxu0 %v1324
          %1370 = vmatpush1.bf16.msra.mxu0 %v1323
          %1371 = vmatprep.subr.bf16.mxu0 %v1327
          %1372 = vmatpush1.bf16.msra.mxu0 %v1326
          %1373 = vmatprep.subr.bf16.mxu0 %v1330
          %1374 = vmatpush1.bf16.msra.mxu0 %v1329
          %1375 = vmatprep.subr.bf16.mxu0 %v1333
          %1376 = vmatpush1.bf16.msra.mxu0 %v1332
          %1377 = vmatprep.subr.bf16.mxu0 %v1336
          %1378 = vmatpush1.bf16.msra.mxu0 %v1335
          %1379 = vmatprep.subr.bf16.mxu0 %v1339
          %1380 = vmatpush1.bf16.msra.mxu0 %v1338
          %1381 = vmatprep.subr.bf16.mxu0 0
          %1382 = vmatpush1.bf16.msra.mxu0 0
          %1383 = vmatprep.subr.bf16.mxu0 0
          %1384 = vmatpush1.bf16.msra.mxu0 0
          %1385 = vmatprep.subr.bf16.mxu0 0
          %1386 = vmatpush1.bf16.msra.mxu0 0
          %1387 = vmatprep.subr.bf16.mxu0 0
          %1388 = vmatpush1.bf16.msra.mxu0 0
          %1389 = vmatprep.subr.bf16.mxu0 0
          %1390 = vmatpush1.bf16.msra.mxu0 0
          %1391 = vmatprep.subr.bf16.mxu0 0
          %1392 = vmatpush1.bf16.msra.mxu0 0
          %1393 = vmatprep.subr.bf16.mxu0 0
          %1394 = vmatpush1.bf16.msra.mxu0 0
          %1395 = vmatprep.subr.bf16.mxu0 0
          %1396 = vmatpush1.bf16.msra.mxu0 0
          %1397 = vmatprep.mubr.bf16.mxu0 0
          %1398 = vmatmul.mubr.bf16.gmra.mrb[0].mxu0 %v1172
          %v1399 = vpop.f32.mrb[0].mxu0
          %v1400 = vadd.f32 %v1225, %v1399
          %v1401 = vpop.f32.mrb[0].mxu0
          %v1402 = vadd.f32 %v1229, %v1401
          %v1403 = vpop.f32.mrb[0].mxu0
          %v1404 = vadd.f32 %v1225, %v1403
          %v1405 = vpop.f32.mrb[0].mxu0
          %v1406 = vadd.f32 %v1229, %v1405
          %1407 = vmatprep.mubr.bf16.mxu0 0
          %1408 = vmatmul.mubr.bf16.gmra.mrb[0].mxu0 %v1173
          %v1409 = vpop.f32.mrb[0].mxu0
          %v1410 = vadd.f32 %v1225, %v1409
          %v1411 = vpop.f32.mrb[0].mxu0
          %v1412 = vadd.f32 %v1229, %v1411
          %v1413 = vpop.f32.mrb[0].mxu0
          %v1414 = vadd.f32 %v1225, %v1413
          %v1415 = vpop.f32.mrb[0].mxu0
          %v1416 = vadd.f32 %v1229, %v1415
          %1417 = vmatprep.mubr.bf16.mxu0 0
          %1418 = vmatmul.mubr.bf16.gmra.mrb[0].mxu0 %v1174
          %v1419 = vpop.f32.mrb[0].mxu0
          %v1420 = vadd.f32 %v1225, %v1419
          %v1421 = vpop.f32.mrb[0].mxu0
          %v1422 = vadd.f32 %v1229, %v1421
          %v1423 = vpop.f32.mrb[0].mxu0
          %v1424 = vadd.f32 %v1225, %v1423
          %v1425 = vpop.f32.mrb[0].mxu0
          %v1426 = vadd.f32 %v1229, %v1425
          %1427 = vmatprep.mubr.bf16.mxu0 0
          %1428 = vmatmul.mubr.bf16.gmra.mrb[0].mxu0 %v1175
          %v1429 = vpop.f32.mrb[0].mxu0
          %v1430 = vadd.f32 %v1225, %v1429
          %v1431 = vpop.f32.mrb[0].mxu0
          %v1432 = vadd.f32 %v1229, %v1431
          %v1433 = vpop.f32.mrb[0].mxu0
          %v1434 = vadd.f32 %v1225, %v1433
          %v1435 = vpop.f32.mrb[0].mxu0
          %v1436 = vadd.f32 %v1229, %v1435
          %1437 = vmatprep.mubr.bf16.mxu0 0
          %1438 = vmatmul.mubr.bf16.gmra.mrb[0].mxu0 %v1176
          %v1439 = vpop.f32.mrb[0].mxu0
          %v1440 = vadd.f32 %v1225, %v1439
          %v1441 = vpop.f32.mrb[0].mxu0
          %v1442 = vadd.f32 %v1229, %v1441
          %v1443 = vpop.f32.mrb[0].mxu0
          %v1444 = vadd.f32 %v1225, %v1443
          %v1445 = vpop.f32.mrb[0].mxu0
          %v1446 = vadd.f32 %v1229, %v1445
          %1447 = vmatprep.mubr.bf16.mxu0 0
          %1448 = vmatmul.mubr.bf16.gmra.mrb[0].mxu0 %v1177
          %v1449 = vpop.f32.mrb[0].mxu0
          %v1450 = vadd.f32 %v1225, %v1449
          %v1451 = vpop.f32.mrb[0].mxu0
          %v1452 = vadd.f32 %v1229, %v1451
          %v1453 = vpop.f32.mrb[0].mxu0
          %v1454 = vadd.f32 %v1225, %v1453
          %v1455 = vpop.f32.mrb[0].mxu0
          %v1456 = vadd.f32 %v1229, %v1455
          %1457 = vmatprep.mubr.bf16.mxu0 0
          %1458 = vmatmul.mubr.bf16.gmra.mrb[0].mxu0 %v1178
          %v1459 = vpop.f32.mrb[0].mxu0
          %v1460 = vadd.f32 %v1225, %v1459
          %v1461 = vpop.f32.mrb[0].mxu0
          %v1462 = vadd.f32 %v1229, %v1461
          %v1463 = vpop.f32.mrb[0].mxu0
          %v1464 = vadd.f32 %v1225, %v1463
          %v1465 = vpop.f32.mrb[0].mxu0
          %v1466 = vadd.f32 %v1229, %v1465
          %1467 = vmatprep.mubr.bf16.mxu0 0
          %1468 = vmatmul.mubr.bf16.gmra.mrb[0].mxu0 %v1179
          %v1469 = vpop.f32.mrb[0].mxu0
          %v1470 = vadd.f32 %v1225, %v1469
          %v1471 = vpop.f32.mrb[0].mxu0
          %v1472 = vadd.f32 %v1229, %v1471
          %v1473 = vpop.f32.mrb[0].mxu0
          %v1474 = vadd.f32 %v1225, %v1473
          %v1475 = vpop.f32.mrb[0].mxu0
          %v1476 = vadd.f32 %v1229, %v1475
          %1477 = vmatprep.mubr.bf16.mxu0 0
          %1478 = vmatmul.mubr.bf16.gmra.mrb[0].mxu0 %v1180
          %v1479 = vpop.f32.mrb[0].mxu0
          %v1480 = vadd.f32 %v1225, %v1479
          %v1481 = vpop.f32.mrb[0].mxu0
          %v1482 = vadd.f32 %v1229, %v1481
          %v1483 = vpop.f32.mrb[0].mxu0
          %v1484 = vadd.f32 %v1225, %v1483
          %v1485 = vpop.f32.mrb[0].mxu0
          %v1486 = vadd.f32 %v1229, %v1485
          %1487 = vmatprep.mubr.bf16.mxu0 0
          %1488 = vmatmul.mubr.bf16.gmra.mrb[0].mxu0 %v1181
          %v1489 = vpop.f32.mrb[0].mxu0
          %v1490 = vadd.f32 %v1225, %v1489
          %v1491 = vpop.f32.mrb[0].mxu0
          %v1492 = vadd.f32 %v1229, %v1491
          %v1493 = vpop.f32.mrb[0].mxu0
          %v1494 = vadd.f32 %v1225, %v1493
          %v1495 = vpop.f32.mrb[0].mxu0
          %v1496 = vadd.f32 %v1229, %v1495
          %1497 = vmatprep.mubr.bf16.mxu0 0
          %1498 = vmatmul.mubr.bf16.gmra.mrb[0].mxu0 %v1182
          %v1499 = vpop.f32.mrb[0].mxu0
          %v1500 = vadd.f32 %v1225, %v1499
          %v1501 = vpop.f32.mrb[0].mxu0
          %v1502 = vadd.f32 %v1229, %v1501
          %v1503 = vpop.f32.mrb[0].mxu0
          %v1504 = vadd.f32 %v1225, %v1503
          %v1505 = vpop.f32.mrb[0].mxu0
          %v1506 = vadd.f32 %v1229, %v1505
          %1507 = vmatprep.mubr.bf16.mxu0 0
          %1508 = vmatmul.mubr.bf16.gmra.mrb[0].mxu0 %v1183
          %v1509 = vpop.f32.mrb[0].mxu0
          %v1510 = vadd.f32 %v1225, %v1509
          %v1511 = vpop.f32.mrb[0].mxu0
          %v1512 = vadd.f32 %v1229, %v1511
          %v1513 = vpop.f32.mrb[0].mxu0
          %v1514 = vadd.f32 %v1225, %v1513
          %v1515 = vpop.f32.mrb[0].mxu0
          %v1516 = vadd.f32 %v1229, %v1515
          %1517 = vmatprep.mubr.bf16.mxu0 0
          %1518 = vmatmul.mubr.bf16.gmra.mrb[0].mxu0 %v1184
          %v1519 = vpop.f32.mrb[0].mxu0
          %v1520 = vadd.f32 %v1225, %v1519
          %v1521 = vpop.f32.mrb[0].mxu0
          %v1522 = vadd.f32 %v1229, %v1521
          %v1523 = vpop.f32.mrb[0].mxu0
          %v1524 = vadd.f32 %v1225, %v1523
          %v1525 = vpop.f32.mrb[0].mxu0
          %v1526 = vadd.f32 %v1229, %v1525
          %1527 = vmatprep.mubr.bf16.mxu0 0
          %1528 = vmatmul.mubr.bf16.gmra.mrb[0].mxu0 %v1185
          %v1529 = vpop.f32.mrb[0].mxu0
          %v1530 = vadd.f32 %v1225, %v1529
          %v1531 = vpop.f32.mrb[0].mxu0
          %v1532 = vadd.f32 %v1229, %v1531
          %v1533 = vpop.f32.mrb[0].mxu0
          %v1534 = vadd.f32 %v1225, %v1533
          %v1535 = vpop.f32.mrb[0].mxu0
          %v1536 = vadd.f32 %v1229, %v1535
          %1537 = vmatprep.mubr.bf16.mxu0 0
          %1538 = vmatmul.mubr.bf16.gmra.mrb[0].mxu0 %v1186
          %v1539 = vpop.f32.mrb[0].mxu0
          %v1540 = vadd.f32 %v1225, %v1539
          %v1541 = vpop.f32.mrb[0].mxu0
          %v1542 = vadd.f32 %v1229, %v1541
          %v1543 = vpop.f32.mrb[0].mxu0
          %v1544 = vadd.f32 %v1225, %v1543
          %v1545 = vpop.f32.mrb[0].mxu0
          %v1546 = vadd.f32 %v1229, %v1545
          %1547 = vmatprep.mubr.bf16.mxu0 0
          %1548 = vmatmul.mubr.bf16.gmra.mrb[0].mxu0 %v1187
          %v1549 = vpop.f32.mrb[0].mxu0
          %v1550 = vadd.f32 %v1225, %v1549
          %v1551 = vpop.f32.mrb[0].mxu0
          %v1552 = vadd.f32 %v1229, %v1551
          %v1553 = vpop.f32.mrb[0].mxu0
          %v1554 = vadd.f32 %v1225, %v1553
          %v1555 = vpop.f32.mrb[0].mxu0
          %v1556 = vadd.f32 %v1229, %v1555
          %1557 = vdwg.mxu0
          %1558 = vmatprep.subr.bf16.mxu0 0
          %1559 = vmatpush1.bf16.msra.mxu0 %v1319
          %1560 = vmatprep.subr.bf16.mxu0 0
          %1561 = vmatpush1.bf16.msra.mxu0 %v1322
          %1562 = vmatprep.subr.bf16.mxu0 0
          %1563 = vmatpush1.bf16.msra.mxu0 %v1325
          %1564 = vmatprep.subr.bf16.mxu0 0
          %1565 = vmatpush1.bf16.msra.mxu0 %v1328
          %1566 = vmatprep.subr.bf16.mxu0 0
          %1567 = vmatpush1.bf16.msra.mxu0 %v1331
          %1568 = vmatprep.subr.bf16.mxu0 0
          %1569 = vmatpush1.bf16.msra.mxu0 %v1334
          %1570 = vmatprep.subr.bf16.mxu0 0
          %1571 = vmatpush1.bf16.msra.mxu0 %v1337
          %1572 = vmatprep.subr.bf16.mxu0 0
          %1573 = vmatpush1.bf16.msra.mxu0 %v1340
          %1574 = vmatprep.subr.bf16.mxu0 0
          %1575 = vmatpush1.bf16.msra.mxu0 0
          %1576 = vmatprep.subr.bf16.mxu0 0
          %1577 = vmatpush1.bf16.msra.mxu0 0
          %1578 = vmatprep.subr.bf16.mxu0 0
          %1579 = vmatpush1.bf16.msra.mxu0 0
          %1580 = vmatprep.subr.bf16.mxu0 0
          %1581 = vmatpush1.bf16.msra.mxu0 0
          %1582 = vmatprep.subr.bf16.mxu0 0
          %1583 = vmatpush1.bf16.msra.mxu0 0
          %1584 = vmatprep.subr.bf16.mxu0 0
          %1585 = vmatpush1.bf16.msra.mxu0 0
          %1586 = vmatprep.subr.bf16.mxu0 0
          %1587 = vmatpush1.bf16.msra.mxu0 0
          %1588 = vmatprep.subr.bf16.mxu0 0
          %1589 = vmatpush1.bf16.msra.mxu0 0
          %1590 = vmatprep.mubr.bf16.mxu0 0
          %1591 = vmatmul.mubr.bf16.gmra.mrb[0].mxu0 %v1172
          %v1592 = vpop.f32.mrb[0].mxu0
          %v1593 = vadd.f32 %v1233, %v1592
          %v1594 = vpop.f32.mrb[0].mxu0
          %v1595 = vpop.f32.mrb[0].mxu0
          %v1596 = vadd.f32 %v1233, %v1595
          %v1597 = vpop.f32.mrb[0].mxu0
          %1598 = vmatprep.mubr.bf16.mxu0 0
          %1599 = vmatmul.mubr.bf16.gmra.mrb[0].mxu0 %v1173
          %v1600 = vpop.f32.mrb[0].mxu0
          %v1601 = vadd.f32 %v1233, %v1600
          %v1602 = vpop.f32.mrb[0].mxu0
          %v1603 = vpop.f32.mrb[0].mxu0
          %v1604 = vadd.f32 %v1233, %v1603
          %v1605 = vpop.f32.mrb[0].mxu0
          %1606 = vmatprep.mubr.bf16.mxu0 0
          %1607 = vmatmul.mubr.bf16.gmra.mrb[0].mxu0 %v1174
          %v1608 = vpop.f32.mrb[0].mxu0
          %v1609 = vadd.f32 %v1233, %v1608
          %v1610 = vpop.f32.mrb[0].mxu0
          %v1611 = vpop.f32.mrb[0].mxu0
          %v1612 = vadd.f32 %v1233, %v1611
          %v1613 = vpop.f32.mrb[0].mxu0
          %1614 = vmatprep.mubr.bf16.mxu0 0
          %1615 = vmatmul.mubr.bf16.gmra.mrb[0].mxu0 %v1175
          %v1616 = vpop.f32.mrb[0].mxu0
          %v1617 = vadd.f32 %v1233, %v1616
          %v1618 = vpop.f32.mrb[0].mxu0
          %v1619 = vpop.f32.mrb[0].mxu0
          %v1620 = vadd.f32 %v1233, %v1619
          %v1621 = vpop.f32.mrb[0].mxu0
          %1622 = vmatprep.mubr.bf16.mxu0 0
          %1623 = vmatmul.mubr.bf16.gmra.mrb[0].mxu0 %v1176
          %v1624 = vpop.f32.mrb[0].mxu0
          %v1625 = vadd.f32 %v1233, %v1624
          %v1626 = vpop.f32.mrb[0].mxu0
          %v1627 = vpop.f32.mrb[0].mxu0
          %v1628 = vadd.f32 %v1233, %v1627
          %v1629 = vpop.f32.mrb[0].mxu0
          %1630 = vmatprep.mubr.bf16.mxu0 0
          %1631 = vmatmul.mubr.bf16.gmra.mrb[0].mxu0 %v1177
          %v1632 = vpop.f32.mrb[0].mxu0
          %v1633 = vadd.f32 %v1233, %v1632
          %v1634 = vpop.f32.mrb[0].mxu0
          %v1635 = vpop.f32.mrb[0].mxu0
          %v1636 = vadd.f32 %v1233, %v1635
          %v1637 = vpop.f32.mrb[0].mxu0
          %1638 = vmatprep.mubr.bf16.mxu0 0
          %1639 = vmatmul.mubr.bf16.gmra.mrb[0].mxu0 %v1178
          %v1640 = vpop.f32.mrb[0].mxu0
          %v1641 = vadd.f32 %v1233, %v1640
          %v1642 = vpop.f32.mrb[0].mxu0
          %v1643 = vpop.f32.mrb[0].mxu0
          %v1644 = vadd.f32 %v1233, %v1643
          %v1645 = vpop.f32.mrb[0].mxu0
          %1646 = vmatprep.mubr.bf16.mxu0 0
          %1647 = vmatmul.mubr.bf16.gmra.mrb[0].mxu0 %v1179
          %v1648 = vpop.f32.mrb[0].mxu0
          %v1649 = vadd.f32 %v1233, %v1648
          %v1650 = vpop.f32.mrb[0].mxu0
          %v1651 = vpop.f32.mrb[0].mxu0
          %v1652 = vadd.f32 %v1233, %v1651
          %v1653 = vpop.f32.mrb[0].mxu0
          %1654 = vmatprep.mubr.bf16.mxu0 0
          %1655 = vmatmul.mubr.bf16.gmra.mrb[0].mxu0 %v1180
          %v1656 = vpop.f32.mrb[0].mxu0
          %v1657 = vadd.f32 %v1233, %v1656
          %v1658 = vpop.f32.mrb[0].mxu0
          %v1659 = vpop.f32.mrb[0].mxu0
          %v1660 = vadd.f32 %v1233, %v1659
          %v1661 = vpop.f32.mrb[0].mxu0
          %1662 = vmatprep.mubr.bf16.mxu0 0
          %1663 = vmatmul.mubr.bf16.gmra.mrb[0].mxu0 %v1181
          %v1664 = vpop.f32.mrb[0].mxu0
          %v1665 = vadd.f32 %v1233, %v1664
          %v1666 = vpop.f32.mrb[0].mxu0
          %v1667 = vpop.f32.mrb[0].mxu0
          %v1668 = vadd.f32 %v1233, %v1667
          %v1669 = vpop.f32.mrb[0].mxu0
          %1670 = vmatprep.mubr.bf16.mxu0 0
          %1671 = vmatmul.mubr.bf16.gmra.mrb[0].mxu0 %v1182
          %v1672 = vpop.f32.mrb[0].mxu0
          %v1673 = vadd.f32 %v1233, %v1672
          %v1674 = vpop.f32.mrb[0].mxu0
          %v1675 = vpop.f32.mrb[0].mxu0
          %v1676 = vadd.f32 %v1233, %v1675
          %v1677 = vpop.f32.mrb[0].mxu0
          %1678 = vmatprep.mubr.bf16.mxu0 0
          %1679 = vmatmul.mubr.bf16.gmra.mrb[0].mxu0 %v1183
          %v1680 = vpop.f32.mrb[0].mxu0
          %v1681 = vadd.f32 %v1233, %v1680
          %v1682 = vpop.f32.mrb[0].mxu0
          %v1683 = vpop.f32.mrb[0].mxu0
          %v1684 = vadd.f32 %v1233, %v1683
          %v1685 = vpop.f32.mrb[0].mxu0
          %1686 = vmatprep.mubr.bf16.mxu0 0
          %1687 = vmatmul.mubr.bf16.gmra.mrb[0].mxu0 %v1184
          %v1688 = vpop.f32.mrb[0].mxu0
          %v1689 = vadd.f32 %v1233, %v1688
          %v1690 = vpop.f32.mrb[0].mxu0
          %v1691 = vpop.f32.mrb[0].mxu0
          %v1692 = vadd.f32 %v1233, %v1691
          %v1693 = vpop.f32.mrb[0].mxu0
          %1694 = vmatprep.mubr.bf16.mxu0 0
          %1695 = vmatmul.mubr.bf16.gmra.mrb[0].mxu0 %v1185
          %v1696 = vpop.f32.mrb[0].mxu0
          %v1697 = vadd.f32 %v1233, %v1696
          %v1698 = vpop.f32.mrb[0].mxu0
          %v1699 = vpop.f32.mrb[0].mxu0
          %v1700 = vadd.f32 %v1233, %v1699
          %v1701 = vpop.f32.mrb[0].mxu0
          %1702 = vmatprep.mubr.bf16.mxu0 0
          %1703 = vmatmul.mubr.bf16.gmra.mrb[0].mxu0 %v1186
          %v1704 = vpop.f32.mrb[0].mxu0
          %v1705 = vadd.f32 %v1233, %v1704
          %v1706 = vpop.f32.mrb[0].mxu0
          %v1707 = vpop.f32.mrb[0].mxu0
          %v1708 = vadd.f32 %v1233, %v1707
          %v1709 = vpop.f32.mrb[0].mxu0
          %1710 = vmatprep.mubr.bf16.mxu0 0
          %1711 = vmatmul.mubr.bf16.gmra.mrb[0].mxu0 %v1187
          %v1712 = vpop.f32.mrb[0].mxu0
          %v1713 = vadd.f32 %v1233, %v1712
          %v1714 = vpop.f32.mrb[0].mxu0
          %v1715 = vpop.f32.mrb[0].mxu0
          %v1716 = vadd.f32 %v1233, %v1715
          %v1717 = vpop.f32.mrb[0].mxu0
          %1718 = vdwg.mxu0
          %v1719 = vmul.f32 %v1400, 0.17677669
          %v1720 = vmul.f32 %v1404, 0.17677669
          %v1721 = vmul.f32 %v1410, 0.17677669
          %v1722 = vmul.f32 %v1414, 0.17677669
          %v1723 = vmul.f32 %v1420, 0.17677669
          %v1724 = vmul.f32 %v1424, 0.17677669
          %v1725 = vmul.f32 %v1430, 0.17677669
          %v1726 = vmul.f32 %v1434, 0.17677669
          %v1727 = vmul.f32 %v1440, 0.17677669
          %v1728 = vmul.f32 %v1444, 0.17677669
          %v1729 = vmul.f32 %v1450, 0.17677669
          %v1730 = vmul.f32 %v1454, 0.17677669
          %v1731 = vmul.f32 %v1460, 0.17677669
          %v1732 = vmul.f32 %v1464, 0.17677669
          %v1733 = vmul.f32 %v1470, 0.17677669
          %v1734 = vmul.f32 %v1474, 0.17677669
          %v1735 = vmul.f32 %v1480, 0.17677669
          %v1736 = vmul.f32 %v1484, 0.17677669
          %v1737 = vmul.f32 %v1490, 0.17677669
          %v1738 = vmul.f32 %v1494, 0.17677669
          %v1739 = vmul.f32 %v1500, 0.17677669
          %v1740 = vmul.f32 %v1504, 0.17677669
          %v1741 = vmul.f32 %v1510, 0.17677669
          %v1742 = vmul.f32 %v1514, 0.17677669
          %v1743 = vmul.f32 %v1520, 0.17677669
          %v1744 = vmul.f32 %v1524, 0.17677669
          %v1745 = vmul.f32 %v1530, 0.17677669
          %v1746 = vmul.f32 %v1534, 0.17677669
          %v1747 = vmul.f32 %v1540, 0.17677669
          %v1748 = vmul.f32 %v1544, 0.17677669
          %v1749 = vmul.f32 %v1550, 0.17677669
          %v1750 = vmul.f32 %v1554, 0.17677669
          %v1751 = vpack.c.bf16 %v1720, %v1719
          %v1752 = vpack.c.bf16 %v1722, %v1721
          %v1753 = vpack.c.bf16 %v1724, %v1723
          %v1754 = vpack.c.bf16 %v1726, %v1725
          %v1755 = vpack.c.bf16 %v1728, %v1727
          %v1756 = vpack.c.bf16 %v1730, %v1729
          %v1757 = vpack.c.bf16 %v1732, %v1731
          %v1758 = vpack.c.bf16 %v1734, %v1733
          %v1759 = vpack.c.bf16 %v1736, %v1735
          %v1760 = vpack.c.bf16 %v1738, %v1737
          %v1761 = vpack.c.bf16 %v1740, %v1739
          %v1762 = vpack.c.bf16 %v1742, %v1741
          %v1763 = vpack.c.bf16 %v1744, %v1743
          %v1764 = vpack.c.bf16 %v1746, %v1745
          %v1765 = vpack.c.bf16 %v1748, %v1747
          %v1766 = vpack.c.bf16 %v1750, %v1749
          %1767 = vst [vmem:[#allocation2] sm:$0xff] %v1751
          %1768 = vst [vmem:[#allocation2 + $0x8] sm:$0xff] %v1752
          %1769 = vst [vmem:[#allocation2 + $0x10] sm:$0xff] %v1753
          %1770 = vst [vmem:[#allocation2 + $0x18] sm:$0xff] %v1754
          %1771 = vst [vmem:[#allocation2 + $0x20] sm:$0xff] %v1755
          %1772 = vst [vmem:[#allocation2 + $0x28] sm:$0xff] %v1756
          %1773 = vst [vmem:[#allocation2 + $0x30] sm:$0xff] %v1757
          %1774 = vst [vmem:[#allocation2 + $0x38] sm:$0xff] %v1758
          %1775 = vst [vmem:[#allocation2 + $0x40] sm:$0xff] %v1759
          %1776 = vst [vmem:[#allocation2 + $0x48] sm:$0xff] %v1760
          %1777 = vst [vmem:[#allocation2 + $0x50] sm:$0xff] %v1761
          %1778 = vst [vmem:[#allocation2 + $0x58] sm:$0xff] %v1762
          %1779 = vst [vmem:[#allocation2 + $0x60] sm:$0xff] %v1763
          %1780 = vst [vmem:[#allocation2 + $0x68] sm:$0xff] %v1764
          %1781 = vst [vmem:[#allocation2 + $0x70] sm:$0xff] %v1765
          %1782 = vst [vmem:[#allocation2 + $0x78] sm:$0xff] %v1766
          %v1783 = vpack.c.bf16 %v1406, %v1402
          %v1784 = vpack.c.bf16 %v1416, %v1412
          %v1785 = vpack.c.bf16 %v1426, %v1422
          %v1786 = vpack.c.bf16 %v1436, %v1432
          %v1787 = vpack.c.bf16 %v1446, %v1442
          %v1788 = vpack.c.bf16 %v1456, %v1452
          %v1789 = vpack.c.bf16 %v1466, %v1462
          %v1790 = vpack.c.bf16 %v1476, %v1472
          %v1791 = vpack.c.bf16 %v1486, %v1482
          %v1792 = vpack.c.bf16 %v1496, %v1492
          %v1793 = vpack.c.bf16 %v1506, %v1502
          %v1794 = vpack.c.bf16 %v1516, %v1512
          %v1795 = vpack.c.bf16 %v1526, %v1522
          %v1796 = vpack.c.bf16 %v1536, %v1532
          %v1797 = vpack.c.bf16 %v1546, %v1542
          %v1798 = vpack.c.bf16 %v1556, %v1552
          %vm1799 = vcmask 261120
          %1800 = vst.msk [vmem:[#allocation3] sm:$0xff] %vm1799, %v1783
          %1801 = vst.msk [vmem:[#allocation3 + $0x8] sm:$0xff] %vm1799, %v1784
          %1802 = vst.msk [vmem:[#allocation3 + $0x10] sm:$0xff] %vm1799, %v1785
          %1803 = vst.msk [vmem:[#allocation3 + $0x18] sm:$0xff] %vm1799, %v1786
          %1804 = vst.msk [vmem:[#allocation3 + $0x20] sm:$0xff] %vm1799, %v1787
          %1805 = vst.msk [vmem:[#allocation3 + $0x28] sm:$0xff] %vm1799, %v1788
          %1806 = vst.msk [vmem:[#allocation3 + $0x30] sm:$0xff] %vm1799, %v1789
          %1807 = vst.msk [vmem:[#allocation3 + $0x38] sm:$0xff] %vm1799, %v1790
          %1808 = vst.msk [vmem:[#allocation3 + $0x40] sm:$0xff] %vm1799, %v1791
          %1809 = vst.msk [vmem:[#allocation3 + $0x48] sm:$0xff] %vm1799, %v1792
          %1810 = vst.msk [vmem:[#allocation3 + $0x50] sm:$0xff] %vm1799, %v1793
          %1811 = vst.msk [vmem:[#allocation3 + $0x58] sm:$0xff] %vm1799, %v1794
          %1812 = vst.msk [vmem:[#allocation3 + $0x60] sm:$0xff] %vm1799, %v1795
          %1813 = vst.msk [vmem:[#allocation3 + $0x68] sm:$0xff] %vm1799, %v1796
          %1814 = vst.msk [vmem:[#allocation3 + $0x70] sm:$0xff] %vm1799, %v1797
          %1815 = vst.msk [vmem:[#allocation3 + $0x78] sm:$0xff] %vm1799, %v1798
          %v1816 = vpack.c.bf16 %v1596, %v1593
          %v1817 = vpack.c.bf16 %v1604, %v1601
          %v1818 = vpack.c.bf16 %v1612, %v1609
          %v1819 = vpack.c.bf16 %v1620, %v1617
          %v1820 = vpack.c.bf16 %v1628, %v1625
          %v1821 = vpack.c.bf16 %v1636, %v1633
          %v1822 = vpack.c.bf16 %v1644, %v1641
          %v1823 = vpack.c.bf16 %v1652, %v1649
          %v1824 = vpack.c.bf16 %v1660, %v1657
          %v1825 = vpack.c.bf16 %v1668, %v1665
          %v1826 = vpack.c.bf16 %v1676, %v1673
          %v1827 = vpack.c.bf16 %v1684, %v1681
          %v1828 = vpack.c.bf16 %v1692, %v1689
          %v1829 = vpack.c.bf16 %v1700, %v1697
          %v1830 = vpack.c.bf16 %v1708, %v1705
          %v1831 = vpack.c.bf16 %v1716, %v1713
          %1832 = vst.msk [vmem:[#allocation4] sm:$0xff] %vm1799, %v1816
          %1833 = vst.msk [vmem:[#allocation4 + $0x8] sm:$0xff] %vm1799, %v1817
          %1834 = vst.msk [vmem:[#allocation4 + $0x10] sm:$0xff] %vm1799, %v1818
          %1835 = vst.msk [vmem:[#allocation4 + $0x18] sm:$0xff] %vm1799, %v1819
          %1836 = vst.msk [vmem:[#allocation4 + $0x20] sm:$0xff] %vm1799, %v1820
          %1837 = vst.msk [vmem:[#allocation4 + $0x28] sm:$0xff] %vm1799, %v1821
          %1838 = vst.msk [vmem:[#allocation4 + $0x30] sm:$0xff] %vm1799, %v1822
          %1839 = vst.msk [vmem:[#allocation4 + $0x38] sm:$0xff] %vm1799, %v1823
          %1840 = vst.msk [vmem:[#allocation4 + $0x40] sm:$0xff] %vm1799, %v1824
          %1841 = vst.msk [vmem:[#allocation4 + $0x48] sm:$0xff] %vm1799, %v1825
          %1842 = vst.msk [vmem:[#allocation4 + $0x50] sm:$0xff] %vm1799, %v1826
          %1843 = vst.msk [vmem:[#allocation4 + $0x58] sm:$0xff] %vm1799, %v1827
          %1844 = vst.msk [vmem:[#allocation4 + $0x60] sm:$0xff] %vm1799, %v1828
          %1845 = vst.msk [vmem:[#allocation4 + $0x68] sm:$0xff] %vm1799, %v1829
          %1846 = vst.msk [vmem:[#allocation4 + $0x70] sm:$0xff] %vm1799, %v1830
          %1847 = vst.msk [vmem:[#allocation4 + $0x78] sm:$0xff] %vm1799, %v1831
          %1864 = vrot.lane.b32.xlu0 %v1783, 96
          %v1865 = vpop.permute.xlu0 %1864
          %1866 = vrot.lane.b32.xlu0 %v1784, 96
          %v1867 = vpop.permute.xlu0 %1866
          %1868 = vrot.lane.b32.xlu0 %v1785, 96
          %v1869 = vpop.permute.xlu0 %1868
          %1870 = vrot.lane.b32.xlu0 %v1786, 96
          %v1871 = vpop.permute.xlu0 %1870
          %1872 = vrot.lane.b32.xlu0 %v1787, 96
          %v1873 = vpop.permute.xlu0 %1872
          %1874 = vrot.lane.b32.xlu0 %v1788, 96
          %v1875 = vpop.permute.xlu0 %1874
          %1876 = vrot.lane.b32.xlu0 %v1789, 96
          %v1877 = vpop.permute.xlu0 %1876
          %1878 = vrot.lane.b32.xlu0 %v1790, 96
          %v1879 = vpop.permute.xlu0 %1878
          %1880 = vrot.lane.b32.xlu0 %v1791, 96
          %v1881 = vpop.permute.xlu0 %1880
          %1882 = vrot.lane.b32.xlu0 %v1792, 96
          %v1883 = vpop.permute.xlu0 %1882
          %1884 = vrot.lane.b32.xlu0 %v1793, 96
          %v1885 = vpop.permute.xlu0 %1884
          %1886 = vrot.lane.b32.xlu0 %v1794, 96
          %v1887 = vpop.permute.xlu0 %1886
          %1888 = vrot.lane.b32.xlu0 %v1795, 96
          %v1889 = vpop.permute.xlu0 %1888
          %1890 = vrot.lane.b32.xlu0 %v1796, 96
          %v1891 = vpop.permute.xlu0 %1890
          %1892 = vrot.lane.b32.xlu0 %v1797, 96
          %v1893 = vpop.permute.xlu0 %1892
          %1894 = vrot.lane.b32.xlu0 %v1798, 96
          %v1895 = vpop.permute.xlu0 %1894
          %s1912 = scalar_lea.vmem [#allocation3], 128
          %1913 = vst.msk [vmem:[%s1912] sm:$0xff] %vm1799, %v1865
          %1914 = vst.msk [vmem:[%s1912 + $0x8] sm:$0xff] %vm1799, %v1867
          %1915 = vst.msk [vmem:[%s1912 + $0x10] sm:$0xff] %vm1799, %v1869
          %1916 = vst.msk [vmem:[%s1912 + $0x18] sm:$0xff] %vm1799, %v1871
          %1917 = vst.msk [vmem:[%s1912 + $0x20] sm:$0xff] %vm1799, %v1873
          %1918 = vst.msk [vmem:[%s1912 + $0x28] sm:$0xff] %vm1799, %v1875
          %1919 = vst.msk [vmem:[%s1912 + $0x30] sm:$0xff] %vm1799, %v1877
          %1920 = vst.msk [vmem:[%s1912 + $0x38] sm:$0xff] %vm1799, %v1879
          %1921 = vst.msk [vmem:[%s1912 + $0x40] sm:$0xff] %vm1799, %v1881
          %1922 = vst.msk [vmem:[%s1912 + $0x48] sm:$0xff] %vm1799, %v1883
          %1923 = vst.msk [vmem:[%s1912 + $0x50] sm:$0xff] %vm1799, %v1885
          %1924 = vst.msk [vmem:[%s1912 + $0x58] sm:$0xff] %vm1799, %v1887
          %1925 = vst.msk [vmem:[%s1912 + $0x60] sm:$0xff] %vm1799, %v1889
          %1926 = vst.msk [vmem:[%s1912 + $0x68] sm:$0xff] %vm1799, %v1891
          %1927 = vst.msk [vmem:[%s1912 + $0x70] sm:$0xff] %vm1799, %v1893
          %1928 = vst.msk [vmem:[%s1912 + $0x78] sm:$0xff] %vm1799, %v1895
          %1945 = vrot.lane.b32.xlu0 %v1816, 96
          %v1946 = vpop.permute.xlu0 %1945
          %1947 = vrot.lane.b32.xlu0 %v1817, 96
          %v1948 = vpop.permute.xlu0 %1947
          %1949 = vrot.lane.b32.xlu0 %v1818, 96
          %v1950 = vpop.permute.xlu0 %1949
          %1951 = vrot.lane.b32.xlu0 %v1819, 96
          %v1952 = vpop.permute.xlu0 %1951
          %1953 = vrot.lane.b32.xlu0 %v1820, 96
          %v1954 = vpop.permute.xlu0 %1953
          %1955 = vrot.lane.b32.xlu0 %v1821, 96
          %v1956 = vpop.permute.xlu0 %1955
          %1957 = vrot.lane.b32.xlu0 %v1822, 96
          %v1958 = vpop.permute.xlu0 %1957
          %1959 = vrot.lane.b32.xlu0 %v1823, 96
          %v1960 = vpop.permute.xlu0 %1959
          %1961 = vrot.lane.b32.xlu0 %v1824, 96
          %v1962 = vpop.permute.xlu0 %1961
          %1963 = vrot.lane.b32.xlu0 %v1825, 96
          %v1964 = vpop.permute.xlu0 %1963
          %1965 = vrot.lane.b32.xlu0 %v1826, 96
          %v1966 = vpop.permute.xlu0 %1965
          %1967 = vrot.lane.b32.xlu0 %v1827, 96
          %v1968 = vpop.permute.xlu0 %1967
          %1969 = vrot.lane.b32.xlu0 %v1828, 96
          %v1970 = vpop.permute.xlu0 %1969
          %1971 = vrot.lane.b32.xlu0 %v1829, 96
          %v1972 = vpop.permute.xlu0 %1971
          %1973 = vrot.lane.b32.xlu0 %v1830, 96
          %v1974 = vpop.permute.xlu0 %1973
          %1975 = vrot.lane.b32.xlu0 %v1831, 96
          %v1976 = vpop.permute.xlu0 %1975
          %s1993 = scalar_lea.vmem [#allocation4], 128
          %1994 = vst.msk [vmem:[%s1993] sm:$0xff] %vm1799, %v1946
          %1995 = vst.msk [vmem:[%s1993 + $0x8] sm:$0xff] %vm1799, %v1948
          %1996 = vst.msk [vmem:[%s1993 + $0x10] sm:$0xff] %vm1799, %v1950
          %1997 = vst.msk [vmem:[%s1993 + $0x18] sm:$0xff] %vm1799, %v1952
          %1998 = vst.msk [vmem:[%s1993 + $0x20] sm:$0xff] %vm1799, %v1954
          %1999 = vst.msk [vmem:[%s1993 + $0x28] sm:$0xff] %vm1799, %v1956
          %2000 = vst.msk [vmem:[%s1993 + $0x30] sm:$0xff] %vm1799, %v1958
          %2001 = vst.msk [vmem:[%s1993 + $0x38] sm:$0xff] %vm1799, %v1960
          %2002 = vst.msk [vmem:[%s1993 + $0x40] sm:$0xff] %vm1799, %v1962
          %2003 = vst.msk [vmem:[%s1993 + $0x48] sm:$0xff] %vm1799, %v1964
          %2004 = vst.msk [vmem:[%s1993 + $0x50] sm:$0xff] %vm1799, %v1966
          %2005 = vst.msk [vmem:[%s1993 + $0x58] sm:$0xff] %vm1799, %v1968
          %2006 = vst.msk [vmem:[%s1993 + $0x60] sm:$0xff] %vm1799, %v1970
          %2007 = vst.msk [vmem:[%s1993 + $0x68] sm:$0xff] %vm1799, %v1972
          %2008 = vst.msk [vmem:[%s1993 + $0x70] sm:$0xff] %vm1799, %v1974
          %2009 = vst.msk [vmem:[%s1993 + $0x78] sm:$0xff] %vm1799, %v1976
          %2010 = vrot.lane.b32.xlu0 %v1783, 64
          %v2011 = vpop.permute.xlu0 %2010
          %2012 = vrot.lane.b32.xlu0 %v1784, 64
          %v2013 = vpop.permute.xlu0 %2012
          %2014 = vrot.lane.b32.xlu0 %v1785, 64
          %v2015 = vpop.permute.xlu0 %2014
          %2016 = vrot.lane.b32.xlu0 %v1786, 64
          %v2017 = vpop.permute.xlu0 %2016
          %2018 = vrot.lane.b32.xlu0 %v1787, 64
          %v2019 = vpop.permute.xlu0 %2018
          %2020 = vrot.lane.b32.xlu0 %v1788, 64
          %v2021 = vpop.permute.xlu0 %2020
          %2022 = vrot.lane.b32.xlu0 %v1789, 64
          %v2023 = vpop.permute.xlu0 %2022
          %2024 = vrot.lane.b32.xlu0 %v1790, 64
          %v2025 = vpop.permute.xlu0 %2024
          %2026 = vrot.lane.b32.xlu0 %v1791, 64
          %v2027 = vpop.permute.xlu0 %2026
          %2028 = vrot.lane.b32.xlu0 %v1792, 64
          %v2029 = vpop.permute.xlu0 %2028
          %2030 = vrot.lane.b32.xlu0 %v1793, 64
          %v2031 = vpop.permute.xlu0 %2030
          %2032 = vrot.lane.b32.xlu0 %v1794, 64
          %v2033 = vpop.permute.xlu0 %2032
          %2034 = vrot.lane.b32.xlu0 %v1795, 64
          %v2035 = vpop.permute.xlu0 %2034
          %2036 = vrot.lane.b32.xlu0 %v1796, 64
          %v2037 = vpop.permute.xlu0 %2036
          %2038 = vrot.lane.b32.xlu0 %v1797, 64
          %v2039 = vpop.permute.xlu0 %2038
          %2040 = vrot.lane.b32.xlu0 %v1798, 64
          %v2041 = vpop.permute.xlu0 %2040
          %s2058 = scalar_lea.vmem [#allocation3], 256
          %2059 = vst.msk [vmem:[%s2058] sm:$0xff] %vm1799, %v2011
          %2060 = vst.msk [vmem:[%s2058 + $0x8] sm:$0xff] %vm1799, %v2013
          %2061 = vst.msk [vmem:[%s2058 + $0x10] sm:$0xff] %vm1799, %v2015
          %2062 = vst.msk [vmem:[%s2058 + $0x18] sm:$0xff] %vm1799, %v2017
          %2063 = vst.msk [vmem:[%s2058 + $0x20] sm:$0xff] %vm1799, %v2019
          %2064 = vst.msk [vmem:[%s2058 + $0x28] sm:$0xff] %vm1799, %v2021
          %2065 = vst.msk [vmem:[%s2058 + $0x30] sm:$0xff] %vm1799, %v2023
          %2066 = vst.msk [vmem:[%s2058 + $0x38] sm:$0xff] %vm1799, %v2025
          %2067 = vst.msk [vmem:[%s2058 + $0x40] sm:$0xff] %vm1799, %v2027
          %2068 = vst.msk [vmem:[%s2058 + $0x48] sm:$0xff] %vm1799, %v2029
          %2069 = vst.msk [vmem:[%s2058 + $0x50] sm:$0xff] %vm1799, %v2031
          %2070 = vst.msk [vmem:[%s2058 + $0x58] sm:$0xff] %vm1799, %v2033
          %2071 = vst.msk [vmem:[%s2058 + $0x60] sm:$0xff] %vm1799, %v2035
          %2072 = vst.msk [vmem:[%s2058 + $0x68] sm:$0xff] %vm1799, %v2037
          %2073 = vst.msk [vmem:[%s2058 + $0x70] sm:$0xff] %vm1799, %v2039
          %2074 = vst.msk [vmem:[%s2058 + $0x78] sm:$0xff] %vm1799, %v2041
          %2075 = vrot.lane.b32.xlu0 %v1816, 64
          %v2076 = vpop.permute.xlu0 %2075
          %2077 = vrot.lane.b32.xlu0 %v1817, 64
          %v2078 = vpop.permute.xlu0 %2077
          %2079 = vrot.lane.b32.xlu0 %v1818, 64
          %v2080 = vpop.permute.xlu0 %2079
          %2081 = vrot.lane.b32.xlu0 %v1819, 64
          %v2082 = vpop.permute.xlu0 %2081
          %2083 = vrot.lane.b32.xlu0 %v1820, 64
          %v2084 = vpop.permute.xlu0 %2083
          %2085 = vrot.lane.b32.xlu0 %v1821, 64
          %v2086 = vpop.permute.xlu0 %2085
          %2087 = vrot.lane.b32.xlu0 %v1822, 64
          %v2088 = vpop.permute.xlu0 %2087
          %2089 = vrot.lane.b32.xlu0 %v1823, 64
          %v2090 = vpop.permute.xlu0 %2089
          %2091 = vrot.lane.b32.xlu0 %v1824, 64
          %v2092 = vpop.permute.xlu0 %2091
          %2093 = vrot.lane.b32.xlu0 %v1825, 64
          %v2094 = vpop.permute.xlu0 %2093
          %2095 = vrot.lane.b32.xlu0 %v1826, 64
          %v2096 = vpop.permute.xlu0 %2095
          %2097 = vrot.lane.b32.xlu0 %v1827, 64
          %v2098 = vpop.permute.xlu0 %2097
          %2099 = vrot.lane.b32.xlu0 %v1828, 64
          %v2100 = vpop.permute.xlu0 %2099
          %2101 = vrot.lane.b32.xlu0 %v1829, 64
          %v2102 = vpop.permute.xlu0 %2101
          %2103 = vrot.lane.b32.xlu0 %v1830, 64
          %v2104 = vpop.permute.xlu0 %2103
          %2105 = vrot.lane.b32.xlu0 %v1831, 64
          %v2106 = vpop.permute.xlu0 %2105
          %s2123 = scalar_lea.vmem [#allocation4], 256
          %2124 = vst.msk [vmem:[%s2123] sm:$0xff] %vm1799, %v2076
          %2125 = vst.msk [vmem:[%s2123 + $0x8] sm:$0xff] %vm1799, %v2078
          %2126 = vst.msk [vmem:[%s2123 + $0x10] sm:$0xff] %vm1799, %v2080
          %2127 = vst.msk [vmem:[%s2123 + $0x18] sm:$0xff] %vm1799, %v2082
          %2128 = vst.msk [vmem:[%s2123 + $0x20] sm:$0xff] %vm1799, %v2084
          %2129 = vst.msk [vmem:[%s2123 + $0x28] sm:$0xff] %vm1799, %v2086
          %2130 = vst.msk [vmem:[%s2123 + $0x30] sm:$0xff] %vm1799, %v2088
          %2131 = vst.msk [vmem:[%s2123 + $0x38] sm:$0xff] %vm1799, %v2090
          %2132 = vst.msk [vmem:[%s2123 + $0x40] sm:$0xff] %vm1799, %v2092
          %2133 = vst.msk [vmem:[%s2123 + $0x48] sm:$0xff] %vm1799, %v2094
          %2134 = vst.msk [vmem:[%s2123 + $0x50] sm:$0xff] %vm1799, %v2096
          %2135 = vst.msk [vmem:[%s2123 + $0x58] sm:$0xff] %vm1799, %v2098
          %2136 = vst.msk [vmem:[%s2123 + $0x60] sm:$0xff] %vm1799, %v2100
          %2137 = vst.msk [vmem:[%s2123 + $0x68] sm:$0xff] %vm1799, %v2102
          %2138 = vst.msk [vmem:[%s2123 + $0x70] sm:$0xff] %vm1799, %v2104
          %2139 = vst.msk [vmem:[%s2123 + $0x78] sm:$0xff] %vm1799, %v2106
          %2140 = vrot.lane.b32.xlu0 %v1783, 32
          %v2141 = vpop.permute.xlu0 %2140
          %2142 = vrot.lane.b32.xlu0 %v1784, 32
          %v2143 = vpop.permute.xlu0 %2142
          %2144 = vrot.lane.b32.xlu0 %v1785, 32
          %v2145 = vpop.permute.xlu0 %2144
          %2146 = vrot.lane.b32.xlu0 %v1786, 32
          %v2147 = vpop.permute.xlu0 %2146
          %2148 = vrot.lane.b32.xlu0 %v1787, 32
          %v2149 = vpop.permute.xlu0 %2148
          %2150 = vrot.lane.b32.xlu0 %v1788, 32
          %v2151 = vpop.permute.xlu0 %2150
          %2152 = vrot.lane.b32.xlu0 %v1789, 32
          %v2153 = vpop.permute.xlu0 %2152
          %2154 = vrot.lane.b32.xlu0 %v1790, 32
          %v2155 = vpop.permute.xlu0 %2154
          %2156 = vrot.lane.b32.xlu0 %v1791, 32
          %v2157 = vpop.permute.xlu0 %2156
          %2158 = vrot.lane.b32.xlu0 %v1792, 32
          %v2159 = vpop.permute.xlu0 %2158
          %2160 = vrot.lane.b32.xlu0 %v1793, 32
          %v2161 = vpop.permute.xlu0 %2160
          %2162 = vrot.lane.b32.xlu0 %v1794, 32
          %v2163 = vpop.permute.xlu0 %2162
          %2164 = vrot.lane.b32.xlu0 %v1795, 32
          %v2165 = vpop.permute.xlu0 %2164
          %2166 = vrot.lane.b32.xlu0 %v1796, 32
          %v2167 = vpop.permute.xlu0 %2166
          %2168 = vrot.lane.b32.xlu0 %v1797, 32
          %v2169 = vpop.permute.xlu0 %2168
          %2170 = vrot.lane.b32.xlu0 %v1798, 32
          %v2171 = vpop.permute.xlu0 %2170
          %s2188 = scalar_lea.vmem [#allocation3], 384
          %2189 = vst.msk [vmem:[%s2188] sm:$0xff] %vm1799, %v2141
          %2190 = vst.msk [vmem:[%s2188 + $0x8] sm:$0xff] %vm1799, %v2143
          %2191 = vst.msk [vmem:[%s2188 + $0x10] sm:$0xff] %vm1799, %v2145
          %2192 = vst.msk [vmem:[%s2188 + $0x18] sm:$0xff] %vm1799, %v2147
          %2193 = vst.msk [vmem:[%s2188 + $0x20] sm:$0xff] %vm1799, %v2149
          %2194 = vst.msk [vmem:[%s2188 + $0x28] sm:$0xff] %vm1799, %v2151
          %2195 = vst.msk [vmem:[%s2188 + $0x30] sm:$0xff] %vm1799, %v2153
          %2196 = vst.msk [vmem:[%s2188 + $0x38] sm:$0xff] %vm1799, %v2155
          %2197 = vst.msk [vmem:[%s2188 + $0x40] sm:$0xff] %vm1799, %v2157
          %2198 = vst.msk [vmem:[%s2188 + $0x48] sm:$0xff] %vm1799, %v2159
          %2199 = vst.msk [vmem:[%s2188 + $0x50] sm:$0xff] %vm1799, %v2161
          %2200 = vst.msk [vmem:[%s2188 + $0x58] sm:$0xff] %vm1799, %v2163
          %2201 = vst.msk [vmem:[%s2188 + $0x60] sm:$0xff] %vm1799, %v2165
          %2202 = vst.msk [vmem:[%s2188 + $0x68] sm:$0xff] %vm1799, %v2167
          %2203 = vst.msk [vmem:[%s2188 + $0x70] sm:$0xff] %vm1799, %v2169
          %2204 = vst.msk [vmem:[%s2188 + $0x78] sm:$0xff] %vm1799, %v2171
          %2205 = vrot.lane.b32.xlu0 %v1816, 32
          %v2206 = vpop.permute.xlu0 %2205
          %2207 = vrot.lane.b32.xlu0 %v1817, 32
          %v2208 = vpop.permute.xlu0 %2207
          %2209 = vrot.lane.b32.xlu0 %v1818, 32
          %v2210 = vpop.permute.xlu0 %2209
          %2211 = vrot.lane.b32.xlu0 %v1819, 32
          %v2212 = vpop.permute.xlu0 %2211
          %2213 = vrot.lane.b32.xlu0 %v1820, 32
          %v2214 = vpop.permute.xlu0 %2213
          %2215 = vrot.lane.b32.xlu0 %v1821, 32
          %v2216 = vpop.permute.xlu0 %2215
          %2217 = vrot.lane.b32.xlu0 %v1822, 32
          %v2218 = vpop.permute.xlu0 %2217
          %2219 = vrot.lane.b32.xlu0 %v1823, 32
          %v2220 = vpop.permute.xlu0 %2219
          %2221 = vrot.lane.b32.xlu0 %v1824, 32
          %v2222 = vpop.permute.xlu0 %2221
          %2223 = vrot.lane.b32.xlu0 %v1825, 32
          %v2224 = vpop.permute.xlu0 %2223
          %2225 = vrot.lane.b32.xlu0 %v1826, 32
          %v2226 = vpop.permute.xlu0 %2225
          %2227 = vrot.lane.b32.xlu0 %v1827, 32
          %v2228 = vpop.permute.xlu0 %2227
          %2229 = vrot.lane.b32.xlu0 %v1828, 32
          %v2230 = vpop.permute.xlu0 %2229
          %2231 = vrot.lane.b32.xlu0 %v1829, 32
          %v2232 = vpop.permute.xlu0 %2231
          %2233 = vrot.lane.b32.xlu0 %v1830, 32
          %v2234 = vpop.permute.xlu0 %2233
          %2235 = vrot.lane.b32.xlu0 %v1831, 32
          %v2236 = vpop.permute.xlu0 %2235
          %s2253 = scalar_lea.vmem [#allocation4], 384
          %2254 = vst.msk [vmem:[%s2253] sm:$0xff] %vm1799, %v2206
          %2255 = vst.msk [vmem:[%s2253 + $0x8] sm:$0xff] %vm1799, %v2208
          %2256 = vst.msk [vmem:[%s2253 + $0x10] sm:$0xff] %vm1799, %v2210
          %2257 = vst.msk [vmem:[%s2253 + $0x18] sm:$0xff] %vm1799, %v2212
          %2258 = vst.msk [vmem:[%s2253 + $0x20] sm:$0xff] %vm1799, %v2214
          %2259 = vst.msk [vmem:[%s2253 + $0x28] sm:$0xff] %vm1799, %v2216
          %2260 = vst.msk [vmem:[%s2253 + $0x30] sm:$0xff] %vm1799, %v2218
          %2261 = vst.msk [vmem:[%s2253 + $0x38] sm:$0xff] %vm1799, %v2220
          %2262 = vst.msk [vmem:[%s2253 + $0x40] sm:$0xff] %vm1799, %v2222
          %2263 = vst.msk [vmem:[%s2253 + $0x48] sm:$0xff] %vm1799, %v2224
          %2264 = vst.msk [vmem:[%s2253 + $0x50] sm:$0xff] %vm1799, %v2226
          %2265 = vst.msk [vmem:[%s2253 + $0x58] sm:$0xff] %vm1799, %v2228
          %2266 = vst.msk [vmem:[%s2253 + $0x60] sm:$0xff] %vm1799, %v2230
          %2267 = vst.msk [vmem:[%s2253 + $0x68] sm:$0xff] %vm1799, %v2232
          %2268 = vst.msk [vmem:[%s2253 + $0x70] sm:$0xff] %vm1799, %v2234
          %2269 = vst.msk [vmem:[%s2253 + $0x78] sm:$0xff] %vm1799, %v2236
        $region136: #{tpu_custom_call.1} parent=75 // pred_fallthru
          _
        %s2270 = smul.u32 %s45, 128
        %s2271 = sshra.s32 %s2270, 4
        %s2272 = sand.u32 %s2270, 15
        %s2273 = smul.addr %s2271, 8
        %s2274 = scalar_lea.vmem [#allocation2], %s2273
        %v2275 = vld [vmem:[%s2274] sm:$0xff]
        %v2276 = vld [vmem:[%s2274 + $0x8] sm:$0xff]
        %v2277 = vld [vmem:[%s2274 + $0x10] sm:$0xff]
        %v2278 = vld [vmem:[%s2274 + $0x18] sm:$0xff]
        %v2279 = vld [vmem:[%s2274 + $0x20] sm:$0xff]
        %v2280 = vld [vmem:[%s2274 + $0x28] sm:$0xff]
        %v2281 = vld [vmem:[%s2274 + $0x30] sm:$0xff]
        %v2282 = vld [vmem:[%s2274 + $0x38] sm:$0xff]
        %2291 = vrot.lane.b32.xlu0 %v2275, 96
        %v2292 = vpop.permute.xlu0 %2291
        %2293 = vrot.lane.b32.xlu0 %v2276, 96
        %v2294 = vpop.permute.xlu0 %2293
        %2295 = vrot.lane.b32.xlu0 %v2277, 96
        %v2296 = vpop.permute.xlu0 %2295
        %2297 = vrot.lane.b32.xlu0 %v2278, 96
        %v2298 = vpop.permute.xlu0 %2297
        %2299 = vrot.lane.b32.xlu0 %v2279, 96
        %v2300 = vpop.permute.xlu0 %2299
        %2301 = vrot.lane.b32.xlu0 %v2280, 96
        %v2302 = vpop.permute.xlu0 %2301
        %2303 = vrot.lane.b32.xlu0 %v2281, 96
        %v2304 = vpop.permute.xlu0 %2303
        %2305 = vrot.lane.b32.xlu0 %v2282, 96
        %v2306 = vpop.permute.xlu0 %2305
        %2307 = vrot.lane.b32.xlu0 %v2275, 64
        %v2308 = vpop.permute.xlu0 %2307
        %2309 = vrot.lane.b32.xlu0 %v2276, 64
        %v2310 = vpop.permute.xlu0 %2309
        %2311 = vrot.lane.b32.xlu0 %v2277, 64
        %v2312 = vpop.permute.xlu0 %2311
        %2313 = vrot.lane.b32.xlu0 %v2278, 64
        %v2314 = vpop.permute.xlu0 %2313
        %2315 = vrot.lane.b32.xlu0 %v2279, 64
        %v2316 = vpop.permute.xlu0 %2315
        %2317 = vrot.lane.b32.xlu0 %v2280, 64
        %v2318 = vpop.permute.xlu0 %2317
        %2319 = vrot.lane.b32.xlu0 %v2281, 64
        %v2320 = vpop.permute.xlu0 %2319
        %2321 = vrot.lane.b32.xlu0 %v2282, 64
        %v2322 = vpop.permute.xlu0 %2321
        %2323 = vrot.lane.b32.xlu0 %v2275, 32
        %v2324 = vpop.permute.xlu0 %2323
        %2325 = vrot.lane.b32.xlu0 %v2276, 32
        %v2326 = vpop.permute.xlu0 %2325
        %2327 = vrot.lane.b32.xlu0 %v2277, 32
        %v2328 = vpop.permute.xlu0 %2327
        %2329 = vrot.lane.b32.xlu0 %v2278, 32
        %v2330 = vpop.permute.xlu0 %2329
        %2331 = vrot.lane.b32.xlu0 %v2279, 32
        %v2332 = vpop.permute.xlu0 %2331
        %2333 = vrot.lane.b32.xlu0 %v2280, 32
        %v2334 = vpop.permute.xlu0 %2333
        %2335 = vrot.lane.b32.xlu0 %v2281, 32
        %v2336 = vpop.permute.xlu0 %2335
        %2337 = vrot.lane.b32.xlu0 %v2282, 32
        %v2338 = vpop.permute.xlu0 %2337
        %v2339 = vld [vmem:[#allocation3] sm:$0xff]
        %v2340 = vld [vmem:[#allocation3 + $0x8] sm:$0xff]
        %v2341 = vld [vmem:[#allocation3 + $0x10] sm:$0xff]
        %v2342 = vld [vmem:[#allocation3 + $0x18] sm:$0xff]
        %v2343 = vld [vmem:[#allocation3 + $0x20] sm:$0xff]
        %v2344 = vld [vmem:[#allocation3 + $0x28] sm:$0xff]
        %v2345 = vld [vmem:[#allocation3 + $0x30] sm:$0xff]
        %v2346 = vld [vmem:[#allocation3 + $0x38] sm:$0xff]
        %v2347 = vld [vmem:[#allocation3 + $0x40] sm:$0xff]
        %v2348 = vld [vmem:[#allocation3 + $0x48] sm:$0xff]
        %v2349 = vld [vmem:[#allocation3 + $0x50] sm:$0xff]
        %v2350 = vld [vmem:[#allocation3 + $0x58] sm:$0xff]
        %v2351 = vld [vmem:[#allocation3 + $0x60] sm:$0xff]
        %v2352 = vld [vmem:[#allocation3 + $0x68] sm:$0xff]
        %v2353 = vld [vmem:[#allocation3 + $0x70] sm:$0xff]
        %v2354 = vld [vmem:[#allocation3 + $0x78] sm:$0xff]
        %v2355 = vld [vmem:[#allocation3 + $0x80] sm:$0xff]
        %v2356 = vld [vmem:[#allocation3 + $0x88] sm:$0xff]
        %v2357 = vld [vmem:[#allocation3 + $0x90] sm:$0xff]
        %v2358 = vld [vmem:[#allocation3 + $0x98] sm:$0xff]
        %v2359 = vld [vmem:[#allocation3 + $0xa0] sm:$0xff]
        %v2360 = vld [vmem:[#allocation3 + $0xa8] sm:$0xff]
        %v2361 = vld [vmem:[#allocation3 + $0xb0] sm:$0xff]
        %v2362 = vld [vmem:[#allocation3 + $0xb8] sm:$0xff]
        %v2363 = vld [vmem:[#allocation3 + $0xc0] sm:$0xff]
        %v2364 = vld [vmem:[#allocation3 + $0xc8] sm:$0xff]
        %v2365 = vld [vmem:[#allocation3 + $0xd0] sm:$0xff]
        %v2366 = vld [vmem:[#allocation3 + $0xd8] sm:$0xff]
        %v2367 = vld [vmem:[#allocation3 + $0xe0] sm:$0xff]
        %v2368 = vld [vmem:[#allocation3 + $0xe8] sm:$0xff]
        %v2369 = vld [vmem:[#allocation3 + $0xf0] sm:$0xff]
        %v2370 = vld [vmem:[#allocation3 + $0xf8] sm:$0xff]
        %v2371 = vld [vmem:[#allocation3 + $0x100] sm:$0xff]
        %v2372 = vld [vmem:[#allocation3 + $0x108] sm:$0xff]
        %v2373 = vld [vmem:[#allocation3 + $0x110] sm:$0xff]
        %v2374 = vld [vmem:[#allocation3 + $0x118] sm:$0xff]
        %v2375 = vld [vmem:[#allocation3 + $0x120] sm:$0xff]
        %v2376 = vld [vmem:[#allocation3 + $0x128] sm:$0xff]
        %v2377 = vld [vmem:[#allocation3 + $0x130] sm:$0xff]
        %v2378 = vld [vmem:[#allocation3 + $0x138] sm:$0xff]
        %v2379 = vld [vmem:[#allocation3 + $0x140] sm:$0xff]
        %v2380 = vld [vmem:[#allocation3 + $0x148] sm:$0xff]
        %v2381 = vld [vmem:[#allocation3 + $0x150] sm:$0xff]
        %v2382 = vld [vmem:[#allocation3 + $0x158] sm:$0xff]
        %v2383 = vld [vmem:[#allocation3 + $0x160] sm:$0xff]
        %v2384 = vld [vmem:[#allocation3 + $0x168] sm:$0xff]
        %v2385 = vld [vmem:[#allocation3 + $0x170] sm:$0xff]
        %v2386 = vld [vmem:[#allocation3 + $0x178] sm:$0xff]
        %v2387 = vld [vmem:[#allocation3 + $0x180] sm:$0xff]
        %v2388 = vld [vmem:[#allocation3 + $0x188] sm:$0xff]
        %v2389 = vld [vmem:[#allocation3 + $0x190] sm:$0xff]
        %v2390 = vld [vmem:[#allocation3 + $0x198] sm:$0xff]
        %v2391 = vld [vmem:[#allocation3 + $0x1a0] sm:$0xff]
        %v2392 = vld [vmem:[#allocation3 + $0x1a8] sm:$0xff]
        %v2393 = vld [vmem:[#allocation3 + $0x1b0] sm:$0xff]
        %v2394 = vld [vmem:[#allocation3 + $0x1b8] sm:$0xff]
        %v2395 = vld [vmem:[#allocation3 + $0x1c0] sm:$0xff]
        %v2396 = vld [vmem:[#allocation3 + $0x1c8] sm:$0xff]
        %v2397 = vld [vmem:[#allocation3 + $0x1d0] sm:$0xff]
        %v2398 = vld [vmem:[#allocation3 + $0x1d8] sm:$0xff]
        %v2399 = vld [vmem:[#allocation3 + $0x1e0] sm:$0xff]
        %v2400 = vld [vmem:[#allocation3 + $0x1e8] sm:$0xff]
        %v2401 = vld [vmem:[#allocation3 + $0x1f0] sm:$0xff]
        %v2402 = vld [vmem:[#allocation3 + $0x1f8] sm:$0xff]
        %vm2403 = vcmask 261120
        %v2405 = vsel %vm2403, %v2275, 0
        %v2408 = vsel %vm2403, %v2276, 0
        %v2411 = vsel %vm2403, %v2277, 0
        %v2414 = vsel %vm2403, %v2278, 0
        %v2417 = vsel %vm2403, %v2279, 0
        %v2420 = vsel %vm2403, %v2280, 0
        %v2423 = vsel %vm2403, %v2281, 0
        %v2426 = vsel %vm2403, %v2282, 0
        %v2429 = vsel %vm2403, %v2339, 0
        %v2432 = vsel %vm2403, %v2340, 0
        %v2435 = vsel %vm2403, %v2341, 0
        %v2438 = vsel %vm2403, %v2342, 0
        %v2441 = vsel %vm2403, %v2343, 0
        %v2444 = vsel %vm2403, %v2344, 0
        %v2447 = vsel %vm2403, %v2345, 0
        %v2450 = vsel %vm2403, %v2346, 0
        %v2453 = vsel %vm2403, %v2347, 0
        %v2456 = vsel %vm2403, %v2348, 0
        %v2459 = vsel %vm2403, %v2349, 0
        %v2462 = vsel %vm2403, %v2350, 0
        %v2465 = vsel %vm2403, %v2351, 0
        %v2468 = vsel %vm2403, %v2352, 0
        %v2471 = vsel %vm2403, %v2353, 0
        %v2474 = vsel %vm2403, %v2354, 0
        %2476 = vmatprep.subr.bf16.mxu0 0
        %2477 = vmatpush1.bf16.xpose.msra.mxu0 %v2429
        %2478 = vmatprep.subr.bf16.mxu0 0
        %2479 = vmatpush1.bf16.xpose.msra.mxu0 %v2432
        %2480 = vmatprep.subr.bf16.mxu0 0
        %2481 = vmatpush1.bf16.xpose.msra.mxu0 %v2435
        %2482 = vmatprep.subr.bf16.mxu0 0
        %2483 = vmatpush1.bf16.xpose.msra.mxu0 %v2438
        %2484 = vmatprep.subr.bf16.mxu0 0
        %2485 = vmatpush1.bf16.xpose.msra.mxu0 %v2441
        %2486 = vmatprep.subr.bf16.mxu0 0
        %2487 = vmatpush1.bf16.xpose.msra.mxu0 %v2444
        %2488 = vmatprep.subr.bf16.mxu0 0
        %2489 = vmatpush1.bf16.xpose.msra.mxu0 %v2447
        %2490 = vmatprep.subr.bf16.mxu0 0
        %2491 = vmatpush1.bf16.xpose.msra.mxu0 %v2450
        %2492 = vmatprep.subr.bf16.mxu0 0
        %2493 = vmatpush1.bf16.xpose.msra.mxu0 %v2453
        %2494 = vmatprep.subr.bf16.mxu0 0
        %2495 = vmatpush1.bf16.xpose.msra.mxu0 %v2456
        %2496 = vmatprep.subr.bf16.mxu0 0
        %2497 = vmatpush1.bf16.xpose.msra.mxu0 %v2459
        %2498 = vmatprep.subr.bf16.mxu0 0
        %2499 = vmatpush1.bf16.xpose.msra.mxu0 %v2462
        %2500 = vmatprep.subr.bf16.mxu0 0
        %2501 = vmatpush1.bf16.xpose.msra.mxu0 %v2465
        %2502 = vmatprep.subr.bf16.mxu0 0
        %2503 = vmatpush1.bf16.xpose.msra.mxu0 %v2468
        %2504 = vmatprep.subr.bf16.mxu0 0
        %2505 = vmatpush1.bf16.xpose.msra.mxu0 %v2471
        %2506 = vmatprep.subr.bf16.mxu0 0
        %2507 = vmatpush1.bf16.xpose.msra.mxu0 %v2474
        %2508 = vmatprep.mubr.bf16.mxu0 0
        %2509 = vmatmul.mubr.bf16.gmra.mrb[0].mxu0 %v2405
        %v2510 = vpop.f32.mrb[0].mxu0
        %v2511 = vadd.f32 0.0, %v2510
        %v2512 = vpop.f32.mrb[0].mxu0
        %v2513 = vadd.f32 0.0, %v2512
        %v2514 = vpop.f32.mrb[0].mxu0
        %v2515 = vadd.f32 0.0, %v2514
        %v2516 = vpop.f32.mrb[0].mxu0
        %v2517 = vadd.f32 0.0, %v2516
        %2518 = vmatprep.mubr.bf16.mxu0 0
        %2519 = vmatmul.mubr.bf16.gmra.mrb[0].mxu0 %v2408
        %v2520 = vpop.f32.mrb[0].mxu0
        %v2521 = vadd.f32 0.0, %v2520
        %v2522 = vpop.f32.mrb[0].mxu0
        %v2523 = vadd.f32 0.0, %v2522
        %v2524 = vpop.f32.mrb[0].mxu0
        %v2525 = vadd.f32 0.0, %v2524
        %v2526 = vpop.f32.mrb[0].mxu0
        %v2527 = vadd.f32 0.0, %v2526
        %2528 = vmatprep.mubr.bf16.mxu0 0
        %2529 = vmatmul.mubr.bf16.gmra.mrb[0].mxu0 %v2411
        %v2530 = vpop.f32.mrb[0].mxu0
        %v2531 = vadd.f32 0.0, %v2530
        %v2532 = vpop.f32.mrb[0].mxu0
        %v2533 = vadd.f32 0.0, %v2532
        %v2534 = vpop.f32.mrb[0].mxu0
        %v2535 = vadd.f32 0.0, %v2534
        %v2536 = vpop.f32.mrb[0].mxu0
        %v2537 = vadd.f32 0.0, %v2536
        %2538 = vmatprep.mubr.bf16.mxu0 0
        %2539 = vmatmul.mubr.bf16.gmra.mrb[0].mxu0 %v2414
        %v2540 = vpop.f32.mrb[0].mxu0
        %v2541 = vadd.f32 0.0, %v2540
        %v2542 = vpop.f32.mrb[0].mxu0
        %v2543 = vadd.f32 0.0, %v2542
        %v2544 = vpop.f32.mrb[0].mxu0
        %v2545 = vadd.f32 0.0, %v2544
        %v2546 = vpop.f32.mrb[0].mxu0
        %v2547 = vadd.f32 0.0, %v2546
        %2548 = vmatprep.mubr.bf16.mxu0 0
        %2549 = vmatmul.mubr.bf16.gmra.mrb[0].mxu0 %v2417
        %v2550 = vpop.f32.mrb[0].mxu0
        %v2551 = vadd.f32 0.0, %v2550
        %v2552 = vpop.f32.mrb[0].mxu0
        %v2553 = vadd.f32 0.0, %v2552
        %v2554 = vpop.f32.mrb[0].mxu0
        %v2555 = vadd.f32 0.0, %v2554
        %v2556 = vpop.f32.mrb[0].mxu0
        %v2557 = vadd.f32 0.0, %v2556
        %2558 = vmatprep.mubr.bf16.mxu0 0
        %2559 = vmatmul.mubr.bf16.gmra.mrb[0].mxu0 %v2420
        %v2560 = vpop.f32.mrb[0].mxu0
        %v2561 = vadd.f32 0.0, %v2560
        %v2562 = vpop.f32.mrb[0].mxu0
        %v2563 = vadd.f32 0.0, %v2562
        %v2564 = vpop.f32.mrb[0].mxu0
        %v2565 = vadd.f32 0.0, %v2564
        %v2566 = vpop.f32.mrb[0].mxu0
        %v2567 = vadd.f32 0.0, %v2566
        %2568 = vmatprep.mubr.bf16.mxu0 0
        %2569 = vmatmul.mubr.bf16.gmra.mrb[0].mxu0 %v2423
        %v2570 = vpop.f32.mrb[0].mxu0
        %v2571 = vadd.f32 0.0, %v2570
        %v2572 = vpop.f32.mrb[0].mxu0
        %v2573 = vadd.f32 0.0, %v2572
        %v2574 = vpop.f32.mrb[0].mxu0
        %v2575 = vadd.f32 0.0, %v2574
        %v2576 = vpop.f32.mrb[0].mxu0
        %v2577 = vadd.f32 0.0, %v2576
        %2578 = vmatprep.mubr.bf16.mxu0 0
        %2579 = vmatmul.mubr.bf16.gmra.mrb[0].mxu0 %v2426
        %v2580 = vpop.f32.mrb[0].mxu0
        %v2581 = vadd.f32 0.0, %v2580
        %v2582 = vpop.f32.mrb[0].mxu0
        %v2583 = vadd.f32 0.0, %v2582
        %v2584 = vpop.f32.mrb[0].mxu0
        %v2585 = vadd.f32 0.0, %v2584
        %v2586 = vpop.f32.mrb[0].mxu0
        %v2587 = vadd.f32 0.0, %v2586
        %2588 = vdwg.mxu0
        %v2590 = vsel %vm2403, %v2292, 0
        %v2593 = vsel %vm2403, %v2294, 0
        %v2596 = vsel %vm2403, %v2296, 0
        %v2599 = vsel %vm2403, %v2298, 0
        %v2602 = vsel %vm2403, %v2300, 0
        %v2605 = vsel %vm2403, %v2302, 0
        %v2608 = vsel %vm2403, %v2304, 0
        %v2611 = vsel %vm2403, %v2306, 0
        %v2614 = vsel %vm2403, %v2355, 0
        %v2617 = vsel %vm2403, %v2356, 0
        %v2620 = vsel %vm2403, %v2357, 0
        %v2623 = vsel %vm2403, %v2358, 0
        %v2626 = vsel %vm2403, %v2359, 0
        %v2629 = vsel %vm2403, %v2360, 0
        %v2632 = vsel %vm2403, %v2361, 0
        %v2635 = vsel %vm2403, %v2362, 0
        %v2638 = vsel %vm2403, %v2363, 0
        %v2641 = vsel %vm2403, %v2364, 0
        %v2644 = vsel %vm2403, %v2365, 0
        %v2647 = vsel %vm2403, %v2366, 0
        %v2650 = vsel %vm2403, %v2367, 0
        %v2653 = vsel %vm2403, %v2368, 0
        %v2656 = vsel %vm2403, %v2369, 0
        %v2659 = vsel %vm2403, %v2370, 0
        %2661 = vmatprep.subr.bf16.mxu0 0
        %2662 = vmatpush1.bf16.xpose.msra.mxu0 %v2614
        %2663 = vmatprep.subr.bf16.mxu0 0
        %2664 = vmatpush1.bf16.xpose.msra.mxu0 %v2617
        %2665 = vmatprep.subr.bf16.mxu0 0
        %2666 = vmatpush1.bf16.xpose.msra.mxu0 %v2620
        %2667 = vmatprep.subr.bf16.mxu0 0
        %2668 = vmatpush1.bf16.xpose.msra.mxu0 %v2623
        %2669 = vmatprep.subr.bf16.mxu0 0
        %2670 = vmatpush1.bf16.xpose.msra.mxu0 %v2626
        %2671 = vmatprep.subr.bf16.mxu0 0
        %2672 = vmatpush1.bf16.xpose.msra.mxu0 %v2629
        %2673 = vmatprep.subr.bf16.mxu0 0
        %2674 = vmatpush1.bf16.xpose.msra.mxu0 %v2632
        %2675 = vmatprep.subr.bf16.mxu0 0
        %2676 = vmatpush1.bf16.xpose.msra.mxu0 %v2635
        %2677 = vmatprep.subr.bf16.mxu0 0
        %2678 = vmatpush1.bf16.xpose.msra.mxu0 %v2638
        %2679 = vmatprep.subr.bf16.mxu0 0
        %2680 = vmatpush1.bf16.xpose.msra.mxu0 %v2641
        %2681 = vmatprep.subr.bf16.mxu0 0
        %2682 = vmatpush1.bf16.xpose.msra.mxu0 %v2644
        %2683 = vmatprep.subr.bf16.mxu0 0
        %2684 = vmatpush1.bf16.xpose.msra.mxu0 %v2647
        %2685 = vmatprep.subr.bf16.mxu0 0
        %2686 = vmatpush1.bf16.xpose.msra.mxu0 %v2650
        %2687 = vmatprep.subr.bf16.mxu0 0
        %2688 = vmatpush1.bf16.xpose.msra.mxu0 %v2653
        %2689 = vmatprep.subr.bf16.mxu0 0
        %2690 = vmatpush1.bf16.xpose.msra.mxu0 %v2656
        %2691 = vmatprep.subr.bf16.mxu0 0
        %2692 = vmatpush1.bf16.xpose.msra.mxu0 %v2659
        %2693 = vmatprep.mubr.bf16.mxu0 0
        %2694 = vmatmul.mubr.bf16.gmra.mrb[0].mxu0 %v2590
        %v2695 = vpop.f32.mrb[0].mxu0
        %v2696 = vadd.f32 0.0, %v2695
        %v2697 = vpop.f32.mrb[0].mxu0
        %v2698 = vadd.f32 0.0, %v2697
        %v2699 = vpop.f32.mrb[0].mxu0
        %v2700 = vadd.f32 0.0, %v2699
        %v2701 = vpop.f32.mrb[0].mxu0
        %v2702 = vadd.f32 0.0, %v2701
        %2703 = vmatprep.mubr.bf16.mxu0 0
        %2704 = vmatmul.mubr.bf16.gmra.mrb[0].mxu0 %v2593
        %v2705 = vpop.f32.mrb[0].mxu0
        %v2706 = vadd.f32 0.0, %v2705
        %v2707 = vpop.f32.mrb[0].mxu0
        %v2708 = vadd.f32 0.0, %v2707
        %v2709 = vpop.f32.mrb[0].mxu0
        %v2710 = vadd.f32 0.0, %v2709
        %v2711 = vpop.f32.mrb[0].mxu0
        %v2712 = vadd.f32 0.0, %v2711
        %2713 = vmatprep.mubr.bf16.mxu0 0
        %2714 = vmatmul.mubr.bf16.gmra.mrb[0].mxu0 %v2596
        %v2715 = vpop.f32.mrb[0].mxu0
        %v2716 = vadd.f32 0.0, %v2715
        %v2717 = vpop.f32.mrb[0].mxu0
        %v2718 = vadd.f32 0.0, %v2717
        %v2719 = vpop.f32.mrb[0].mxu0
        %v2720 = vadd.f32 0.0, %v2719
        %v2721 = vpop.f32.mrb[0].mxu0
        %v2722 = vadd.f32 0.0, %v2721
        %2723 = vmatprep.mubr.bf16.mxu0 0
        %2724 = vmatmul.mubr.bf16.gmra.mrb[0].mxu0 %v2599
        %v2725 = vpop.f32.mrb[0].mxu0
        %v2726 = vadd.f32 0.0, %v2725
        %v2727 = vpop.f32.mrb[0].mxu0
        %v2728 = vadd.f32 0.0, %v2727
        %v2729 = vpop.f32.mrb[0].mxu0
        %v2730 = vadd.f32 0.0, %v2729
        %v2731 = vpop.f32.mrb[0].mxu0
        %v2732 = vadd.f32 0.0, %v2731
        %2733 = vmatprep.mubr.bf16.mxu0 0
        %2734 = vmatmul.mubr.bf16.gmra.mrb[0].mxu0 %v2602
        %v2735 = vpop.f32.mrb[0].mxu0
        %v2736 = vadd.f32 0.0, %v2735
        %v2737 = vpop.f32.mrb[0].mxu0
        %v2738 = vadd.f32 0.0, %v2737
        %v2739 = vpop.f32.mrb[0].mxu0
        %v2740 = vadd.f32 0.0, %v2739
        %v2741 = vpop.f32.mrb[0].mxu0
        %v2742 = vadd.f32 0.0, %v2741
        %2743 = vmatprep.mubr.bf16.mxu0 0
        %2744 = vmatmul.mubr.bf16.gmra.mrb[0].mxu0 %v2605
        %v2745 = vpop.f32.mrb[0].mxu0
        %v2746 = vadd.f32 0.0, %v2745
        %v2747 = vpop.f32.mrb[0].mxu0
        %v2748 = vadd.f32 0.0, %v2747
        %v2749 = vpop.f32.mrb[0].mxu0
        %v2750 = vadd.f32 0.0, %v2749
        %v2751 = vpop.f32.mrb[0].mxu0
        %v2752 = vadd.f32 0.0, %v2751
        %2753 = vmatprep.mubr.bf16.mxu0 0
        %2754 = vmatmul.mubr.bf16.gmra.mrb[0].mxu0 %v2608
        %v2755 = vpop.f32.mrb[0].mxu0
        %v2756 = vadd.f32 0.0, %v2755
        %v2757 = vpop.f32.mrb[0].mxu0
        %v2758 = vadd.f32 0.0, %v2757
        %v2759 = vpop.f32.mrb[0].mxu0
        %v2760 = vadd.f32 0.0, %v2759
        %v2761 = vpop.f32.mrb[0].mxu0
        %v2762 = vadd.f32 0.0, %v2761
        %2763 = vmatprep.mubr.bf16.mxu0 0
        %2764 = vmatmul.mubr.bf16.gmra.mrb[0].mxu0 %v2611
        %v2765 = vpop.f32.mrb[0].mxu0
        %v2766 = vadd.f32 0.0, %v2765
        %v2767 = vpop.f32.mrb[0].mxu0
        %v2768 = vadd.f32 0.0, %v2767
        %v2769 = vpop.f32.mrb[0].mxu0
        %v2770 = vadd.f32 0.0, %v2769
        %v2771 = vpop.f32.mrb[0].mxu0
        %v2772 = vadd.f32 0.0, %v2771
        %2773 = vdwg.mxu0
        %v2775 = vsel %vm2403, %v2308, 0
        %v2778 = vsel %vm2403, %v2310, 0
        %v2781 = vsel %vm2403, %v2312, 0
        %v2784 = vsel %vm2403, %v2314, 0
        %v2787 = vsel %vm2403, %v2316, 0
        %v2790 = vsel %vm2403, %v2318, 0
        %v2793 = vsel %vm2403, %v2320, 0
        %v2796 = vsel %vm2403, %v2322, 0
        %v2799 = vsel %vm2403, %v2371, 0
        %v2802 = vsel %vm2403, %v2372, 0
        %v2805 = vsel %vm2403, %v2373, 0
        %v2808 = vsel %vm2403, %v2374, 0
        %v2811 = vsel %vm2403, %v2375, 0
        %v2814 = vsel %vm2403, %v2376, 0
        %v2817 = vsel %vm2403, %v2377, 0
        %v2820 = vsel %vm2403, %v2378, 0
        %v2823 = vsel %vm2403, %v2379, 0
        %v2826 = vsel %vm2403, %v2380, 0
        %v2829 = vsel %vm2403, %v2381, 0
        %v2832 = vsel %vm2403, %v2382, 0
        %v2835 = vsel %vm2403, %v2383, 0
        %v2838 = vsel %vm2403, %v2384, 0
        %v2841 = vsel %vm2403, %v2385, 0
        %v2844 = vsel %vm2403, %v2386, 0
        %2846 = vmatprep.subr.bf16.mxu0 0
        %2847 = vmatpush1.bf16.xpose.msra.mxu0 %v2799
        %2848 = vmatprep.subr.bf16.mxu0 0
        %2849 = vmatpush1.bf16.xpose.msra.mxu0 %v2802
        %2850 = vmatprep.subr.bf16.mxu0 0
        %2851 = vmatpush1.bf16.xpose.msra.mxu0 %v2805
        %2852 = vmatprep.subr.bf16.mxu0 0
        %2853 = vmatpush1.bf16.xpose.msra.mxu0 %v2808
        %2854 = vmatprep.subr.bf16.mxu0 0
        %2855 = vmatpush1.bf16.xpose.msra.mxu0 %v2811
        %2856 = vmatprep.subr.bf16.mxu0 0
        %2857 = vmatpush1.bf16.xpose.msra.mxu0 %v2814
        %2858 = vmatprep.subr.bf16.mxu0 0
        %2859 = vmatpush1.bf16.xpose.msra.mxu0 %v2817
        %2860 = vmatprep.subr.bf16.mxu0 0
        %2861 = vmatpush1.bf16.xpose.msra.mxu0 %v2820
        %2862 = vmatprep.subr.bf16.mxu0 0
        %2863 = vmatpush1.bf16.xpose.msra.mxu0 %v2823
        %2864 = vmatprep.subr.bf16.mxu0 0
        %2865 = vmatpush1.bf16.xpose.msra.mxu0 %v2826
        %2866 = vmatprep.subr.bf16.mxu0 0
        %2867 = vmatpush1.bf16.xpose.msra.mxu0 %v2829
        %2868 = vmatprep.subr.bf16.mxu0 0
        %2869 = vmatpush1.bf16.xpose.msra.mxu0 %v2832
        %2870 = vmatprep.subr.bf16.mxu0 0
        %2871 = vmatpush1.bf16.xpose.msra.mxu0 %v2835
        %2872 = vmatprep.subr.bf16.mxu0 0
        %2873 = vmatpush1.bf16.xpose.msra.mxu0 %v2838
        %2874 = vmatprep.subr.bf16.mxu0 0
        %2875 = vmatpush1.bf16.xpose.msra.mxu0 %v2841
        %2876 = vmatprep.subr.bf16.mxu0 0
        %2877 = vmatpush1.bf16.xpose.msra.mxu0 %v2844
        %2878 = vmatprep.mubr.bf16.mxu0 0
        %2879 = vmatmul.mubr.bf16.gmra.mrb[0].mxu0 %v2775
        %v2880 = vpop.f32.mrb[0].mxu0
        %v2881 = vadd.f32 0.0, %v2880
        %v2882 = vpop.f32.mrb[0].mxu0
        %v2883 = vadd.f32 0.0, %v2882
        %v2884 = vpop.f32.mrb[0].mxu0
        %v2885 = vadd.f32 0.0, %v2884
        %v2886 = vpop.f32.mrb[0].mxu0
        %v2887 = vadd.f32 0.0, %v2886
        %2888 = vmatprep.mubr.bf16.mxu0 0
        %2889 = vmatmul.mubr.bf16.gmra.mrb[0].mxu0 %v2778
        %v2890 = vpop.f32.mrb[0].mxu0
        %v2891 = vadd.f32 0.0, %v2890
        %v2892 = vpop.f32.mrb[0].mxu0
        %v2893 = vadd.f32 0.0, %v2892
        %v2894 = vpop.f32.mrb[0].mxu0
        %v2895 = vadd.f32 0.0, %v2894
        %v2896 = vpop.f32.mrb[0].mxu0
        %v2897 = vadd.f32 0.0, %v2896
        %2898 = vmatprep.mubr.bf16.mxu0 0
        %2899 = vmatmul.mubr.bf16.gmra.mrb[0].mxu0 %v2781
        %v2900 = vpop.f32.mrb[0].mxu0
        %v2901 = vadd.f32 0.0, %v2900
        %v2902 = vpop.f32.mrb[0].mxu0
        %v2903 = vadd.f32 0.0, %v2902
        %v2904 = vpop.f32.mrb[0].mxu0
        %v2905 = vadd.f32 0.0, %v2904
        %v2906 = vpop.f32.mrb[0].mxu0
        %v2907 = vadd.f32 0.0, %v2906
        %2908 = vmatprep.mubr.bf16.mxu0 0
        %2909 = vmatmul.mubr.bf16.gmra.mrb[0].mxu0 %v2784
        %v2910 = vpop.f32.mrb[0].mxu0
        %v2911 = vadd.f32 0.0, %v2910
        %v2912 = vpop.f32.mrb[0].mxu0
        %v2913 = vadd.f32 0.0, %v2912
        %v2914 = vpop.f32.mrb[0].mxu0
        %v2915 = vadd.f32 0.0, %v2914
        %v2916 = vpop.f32.mrb[0].mxu0
        %v2917 = vadd.f32 0.0, %v2916
        %2918 = vmatprep.mubr.bf16.mxu0 0
        %2919 = vmatmul.mubr.bf16.gmra.mrb[0].mxu0 %v2787
        %v2920 = vpop.f32.mrb[0].mxu0
        %v2921 = vadd.f32 0.0, %v2920
        %v2922 = vpop.f32.mrb[0].mxu0
        %v2923 = vadd.f32 0.0, %v2922
        %v2924 = vpop.f32.mrb[0].mxu0
        %v2925 = vadd.f32 0.0, %v2924
        %v2926 = vpop.f32.mrb[0].mxu0
        %v2927 = vadd.f32 0.0, %v2926
        %2928 = vmatprep.mubr.bf16.mxu0 0
        %2929 = vmatmul.mubr.bf16.gmra.mrb[0].mxu0 %v2790
        %v2930 = vpop.f32.mrb[0].mxu0
        %v2931 = vadd.f32 0.0, %v2930
        %v2932 = vpop.f32.mrb[0].mxu0
        %v2933 = vadd.f32 0.0, %v2932
        %v2934 = vpop.f32.mrb[0].mxu0
        %v2935 = vadd.f32 0.0, %v2934
        %v2936 = vpop.f32.mrb[0].mxu0
        %v2937 = vadd.f32 0.0, %v2936
        %2938 = vmatprep.mubr.bf16.mxu0 0
        %2939 = vmatmul.mubr.bf16.gmra.mrb[0].mxu0 %v2793
        %v2940 = vpop.f32.mrb[0].mxu0
        %v2941 = vadd.f32 0.0, %v2940
        %v2942 = vpop.f32.mrb[0].mxu0
        %v2943 = vadd.f32 0.0, %v2942
        %v2944 = vpop.f32.mrb[0].mxu0
        %v2945 = vadd.f32 0.0, %v2944
        %v2946 = vpop.f32.mrb[0].mxu0
        %v2947 = vadd.f32 0.0, %v2946
        %2948 = vmatprep.mubr.bf16.mxu0 0
        %2949 = vmatmul.mubr.bf16.gmra.mrb[0].mxu0 %v2796
        %v2950 = vpop.f32.mrb[0].mxu0
        %v2951 = vadd.f32 0.0, %v2950
        %v2952 = vpop.f32.mrb[0].mxu0
        %v2953 = vadd.f32 0.0, %v2952
        %v2954 = vpop.f32.mrb[0].mxu0
        %v2955 = vadd.f32 0.0, %v2954
        %v2956 = vpop.f32.mrb[0].mxu0
        %v2957 = vadd.f32 0.0, %v2956
        %2958 = vdwg.mxu0
        %v2960 = vsel %vm2403, %v2324, 0
        %v2963 = vsel %vm2403, %v2326, 0
        %v2966 = vsel %vm2403, %v2328, 0
        %v2969 = vsel %vm2403, %v2330, 0
        %v2972 = vsel %vm2403, %v2332, 0
        %v2975 = vsel %vm2403, %v2334, 0
        %v2978 = vsel %vm2403, %v2336, 0
        %v2981 = vsel %vm2403, %v2338, 0
        %v2984 = vsel %vm2403, %v2387, 0
        %v2987 = vsel %vm2403, %v2388, 0
        %v2990 = vsel %vm2403, %v2389, 0
        %v2993 = vsel %vm2403, %v2390, 0
        %v2996 = vsel %vm2403, %v2391, 0
        %v2999 = vsel %vm2403, %v2392, 0
        %v3002 = vsel %vm2403, %v2393, 0
        %v3005 = vsel %vm2403, %v2394, 0
        %v3008 = vsel %vm2403, %v2395, 0
        %v3011 = vsel %vm2403, %v2396, 0
        %v3014 = vsel %vm2403, %v2397, 0
        %v3017 = vsel %vm2403, %v2398, 0
        %v3020 = vsel %vm2403, %v2399, 0
        %v3023 = vsel %vm2403, %v2400, 0
        %v3026 = vsel %vm2403, %v2401, 0
        %v3029 = vsel %vm2403, %v2402, 0
        %3031 = vmatprep.subr.bf16.mxu0 0
        %3032 = vmatpush1.bf16.xpose.msra.mxu0 %v2984
        %3033 = vmatprep.subr.bf16.mxu0 0
        %3034 = vmatpush1.bf16.xpose.msra.mxu0 %v2987
        %3035 = vmatprep.subr.bf16.mxu0 0
        %3036 = vmatpush1.bf16.xpose.msra.mxu0 %v2990
        %3037 = vmatprep.subr.bf16.mxu0 0
        %3038 = vmatpush1.bf16.xpose.msra.mxu0 %v2993
        %3039 = vmatprep.subr.bf16.mxu0 0
        %3040 = vmatpush1.bf16.xpose.msra.mxu0 %v2996
        %3041 = vmatprep.subr.bf16.mxu0 0
        %3042 = vmatpush1.bf16.xpose.msra.mxu0 %v2999
        %3043 = vmatprep.subr.bf16.mxu0 0
        %3044 = vmatpush1.bf16.xpose.msra.mxu0 %v3002
        %3045 = vmatprep.subr.bf16.mxu0 0
        %3046 = vmatpush1.bf16.xpose.msra.mxu0 %v3005
        %3047 = vmatprep.subr.bf16.mxu0 0
        %3048 = vmatpush1.bf16.xpose.msra.mxu0 %v3008
        %3049 = vmatprep.subr.bf16.mxu0 0
        %3050 = vmatpush1.bf16.xpose.msra.mxu0 %v3011
        %3051 = vmatprep.subr.bf16.mxu0 0
        %3052 = vmatpush1.bf16.xpose.msra.mxu0 %v3014
        %3053 = vmatprep.subr.bf16.mxu0 0
        %3054 = vmatpush1.bf16.xpose.msra.mxu0 %v3017
        %3055 = vmatprep.subr.bf16.mxu0 0
        %3056 = vmatpush1.bf16.xpose.msra.mxu0 %v3020
        %3057 = vmatprep.subr.bf16.mxu0 0
        %3058 = vmatpush1.bf16.xpose.msra.mxu0 %v3023
        %3059 = vmatprep.subr.bf16.mxu0 0
        %3060 = vmatpush1.bf16.xpose.msra.mxu0 %v3026
        %3061 = vmatprep.subr.bf16.mxu0 0
        %3062 = vmatpush1.bf16.xpose.msra.mxu0 %v3029
        %3063 = vmatprep.mubr.bf16.mxu0 0
        %3064 = vmatmul.mubr.bf16.gmra.mrb[0].mxu0 %v2960
        %v3065 = vpop.f32.mrb[0].mxu0
        %v3066 = vadd.f32 0.0, %v3065
        %v3067 = vpop.f32.mrb[0].mxu0
        %v3068 = vadd.f32 0.0, %v3067
        %v3069 = vpop.f32.mrb[0].mxu0
        %v3070 = vadd.f32 0.0, %v3069
        %v3071 = vpop.f32.mrb[0].mxu0
        %v3072 = vadd.f32 0.0, %v3071
        %3073 = vmatprep.mubr.bf16.mxu0 0
        %3074 = vmatmul.mubr.bf16.gmra.mrb[0].mxu0 %v2963
        %v3075 = vpop.f32.mrb[0].mxu0
        %v3076 = vadd.f32 0.0, %v3075
        %v3077 = vpop.f32.mrb[0].mxu0
        %v3078 = vadd.f32 0.0, %v3077
        %v3079 = vpop.f32.mrb[0].mxu0
        %v3080 = vadd.f32 0.0, %v3079
        %v3081 = vpop.f32.mrb[0].mxu0
        %v3082 = vadd.f32 0.0, %v3081
        %3083 = vmatprep.mubr.bf16.mxu0 0
        %3084 = vmatmul.mubr.bf16.gmra.mrb[0].mxu0 %v2966
        %v3085 = vpop.f32.mrb[0].mxu0
        %v3086 = vadd.f32 0.0, %v3085
        %v3087 = vpop.f32.mrb[0].mxu0
        %v3088 = vadd.f32 0.0, %v3087
        %v3089 = vpop.f32.mrb[0].mxu0
        %v3090 = vadd.f32 0.0, %v3089
        %v3091 = vpop.f32.mrb[0].mxu0
        %v3092 = vadd.f32 0.0, %v3091
        %3093 = vmatprep.mubr.bf16.mxu0 0
        %3094 = vmatmul.mubr.bf16.gmra.mrb[0].mxu0 %v2969
        %v3095 = vpop.f32.mrb[0].mxu0
        %v3096 = vadd.f32 0.0, %v3095
        %v3097 = vpop.f32.mrb[0].mxu0
        %v3098 = vadd.f32 0.0, %v3097
        %v3099 = vpop.f32.mrb[0].mxu0
        %v3100 = vadd.f32 0.0, %v3099
        %v3101 = vpop.f32.mrb[0].mxu0
        %v3102 = vadd.f32 0.0, %v3101
        %3103 = vmatprep.mubr.bf16.mxu0 0
        %3104 = vmatmul.mubr.bf16.gmra.mrb[0].mxu0 %v2972
        %v3105 = vpop.f32.mrb[0].mxu0
        %v3106 = vadd.f32 0.0, %v3105
        %v3107 = vpop.f32.mrb[0].mxu0
        %v3108 = vadd.f32 0.0, %v3107
        %v3109 = vpop.f32.mrb[0].mxu0
        %v3110 = vadd.f32 0.0, %v3109
        %v3111 = vpop.f32.mrb[0].mxu0
        %v3112 = vadd.f32 0.0, %v3111
        %3113 = vmatprep.mubr.bf16.mxu0 0
        %3114 = vmatmul.mubr.bf16.gmra.mrb[0].mxu0 %v2975
        %v3115 = vpop.f32.mrb[0].mxu0
        %v3116 = vadd.f32 0.0, %v3115
        %v3117 = vpop.f32.mrb[0].mxu0
        %v3118 = vadd.f32 0.0, %v3117
        %v3119 = vpop.f32.mrb[0].mxu0
        %v3120 = vadd.f32 0.0, %v3119
        %v3121 = vpop.f32.mrb[0].mxu0
        %v3122 = vadd.f32 0.0, %v3121
        %3123 = vmatprep.mubr.bf16.mxu0 0
        %3124 = vmatmul.mubr.bf16.gmra.mrb[0].mxu0 %v2978
        %v3125 = vpop.f32.mrb[0].mxu0
        %v3126 = vadd.f32 0.0, %v3125
        %v3127 = vpop.f32.mrb[0].mxu0
        %v3128 = vadd.f32 0.0, %v3127
        %v3129 = vpop.f32.mrb[0].mxu0
        %v3130 = vadd.f32 0.0, %v3129
        %v3131 = vpop.f32.mrb[0].mxu0
        %v3132 = vadd.f32 0.0, %v3131
        %3133 = vmatprep.mubr.bf16.mxu0 0
        %3134 = vmatmul.mubr.bf16.gmra.mrb[0].mxu0 %v2981
        %v3135 = vpop.f32.mrb[0].mxu0
        %v3136 = vadd.f32 0.0, %v3135
        %v3137 = vpop.f32.mrb[0].mxu0
        %v3138 = vadd.f32 0.0, %v3137
        %v3139 = vpop.f32.mrb[0].mxu0
        %v3140 = vadd.f32 0.0, %v3139
        %v3141 = vpop.f32.mrb[0].mxu0
        %v3142 = vadd.f32 0.0, %v3141
        %3143 = vdwg.mxu0
        %v3144 = vmax.f32 %v2511, %v2513
        %3145 = vmax.xlane.f32.xlu0 %v3144
        %v3146 = vpop.xlane.xlu0 %3145
        %v3147 = vmax.f32 %v2515, %v2517
        %3148 = vmax.xlane.f32.xlu0 %v3147
        %v3149 = vpop.xlane.xlu0 %3148
        %v3150 = vmax.f32 %v2521, %v2523
        %3151 = vmax.xlane.f32.xlu0 %v3150
        %v3152 = vpop.xlane.xlu0 %3151
        %v3153 = vmax.f32 %v2525, %v2527
        %3154 = vmax.xlane.f32.xlu0 %v3153
        %v3155 = vpop.xlane.xlu0 %3154
        %v3156 = vmax.f32 %v2531, %v2533
        %3157 = vmax.xlane.f32.xlu0 %v3156
        %v3158 = vpop.xlane.xlu0 %3157
        %v3159 = vmax.f32 %v2535, %v2537
        %3160 = vmax.xlane.f32.xlu0 %v3159
        %v3161 = vpop.xlane.xlu0 %3160
        %v3162 = vmax.f32 %v2541, %v2543
        %3163 = vmax.xlane.f32.xlu0 %v3162
        %v3164 = vpop.xlane.xlu0 %3163
        %v3165 = vmax.f32 %v2545, %v2547
        %3166 = vmax.xlane.f32.xlu0 %v3165
        %v3167 = vpop.xlane.xlu0 %3166
        %v3168 = vmax.f32 %v2551, %v2553
        %3169 = vmax.xlane.f32.xlu0 %v3168
        %v3170 = vpop.xlane.xlu0 %3169
        %v3171 = vmax.f32 %v2555, %v2557
        %3172 = vmax.xlane.f32.xlu0 %v3171
        %v3173 = vpop.xlane.xlu0 %3172
        %v3174 = vmax.f32 %v2561, %v2563
        %3175 = vmax.xlane.f32.xlu0 %v3174
        %v3176 = vpop.xlane.xlu0 %3175
        %v3177 = vmax.f32 %v2565, %v2567
        %3178 = vmax.xlane.f32.xlu0 %v3177
        %v3179 = vpop.xlane.xlu0 %3178
        %v3180 = vmax.f32 %v2571, %v2573
        %3181 = vmax.xlane.f32.xlu0 %v3180
        %v3182 = vpop.xlane.xlu0 %3181
        %v3183 = vmax.f32 %v2575, %v2577
        %3184 = vmax.xlane.f32.xlu0 %v3183
        %v3185 = vpop.xlane.xlu0 %3184
        %v3186 = vmax.f32 %v2581, %v2583
        %3187 = vmax.xlane.f32.xlu0 %v3186
        %v3188 = vpop.xlane.xlu0 %3187
        %v3189 = vmax.f32 %v2585, %v2587
        %3190 = vmax.xlane.f32.xlu0 %v3189
        %v3191 = vpop.xlane.xlu0 %3190
        %v3192 = vmax.f32 %v2696, %v2698
        %3193 = vmax.xlane.f32.xlu0 %v3192
        %v3194 = vpop.xlane.xlu0 %3193
        %v3195 = vmax.f32 %v2700, %v2702
        %3196 = vmax.xlane.f32.xlu0 %v3195
        %v3197 = vpop.xlane.xlu0 %3196
        %v3198 = vmax.f32 %v2706, %v2708
        %3199 = vmax.xlane.f32.xlu0 %v3198
        %v3200 = vpop.xlane.xlu0 %3199
        %v3201 = vmax.f32 %v2710, %v2712
        %3202 = vmax.xlane.f32.xlu0 %v3201
        %v3203 = vpop.xlane.xlu0 %3202
        %v3204 = vmax.f32 %v2716, %v2718
        %3205 = vmax.xlane.f32.xlu0 %v3204
        %v3206 = vpop.xlane.xlu0 %3205
        %v3207 = vmax.f32 %v2720, %v2722
        %3208 = vmax.xlane.f32.xlu0 %v3207
        %v3209 = vpop.xlane.xlu0 %3208
        %v3210 = vmax.f32 %v2726, %v2728
        %3211 = vmax.xlane.f32.xlu0 %v3210
        %v3212 = vpop.xlane.xlu0 %3211
        %v3213 = vmax.f32 %v2730, %v2732
        %3214 = vmax.xlane.f32.xlu0 %v3213
        %v3215 = vpop.xlane.xlu0 %3214
        %v3216 = vmax.f32 %v2736, %v2738
        %3217 = vmax.xlane.f32.xlu0 %v3216
        %v3218 = vpop.xlane.xlu0 %3217
        %v3219 = vmax.f32 %v2740, %v2742
        %3220 = vmax.xlane.f32.xlu0 %v3219
        %v3221 = vpop.xlane.xlu0 %3220
        %v3222 = vmax.f32 %v2746, %v2748
        %3223 = vmax.xlane.f32.xlu0 %v3222
        %v3224 = vpop.xlane.xlu0 %3223
        %v3225 = vmax.f32 %v2750, %v2752
        %3226 = vmax.xlane.f32.xlu0 %v3225
        %v3227 = vpop.xlane.xlu0 %3226
        %v3228 = vmax.f32 %v2756, %v2758
        %3229 = vmax.xlane.f32.xlu0 %v3228
        %v3230 = vpop.xlane.xlu0 %3229
        %v3231 = vmax.f32 %v2760, %v2762
        %3232 = vmax.xlane.f32.xlu0 %v3231
        %v3233 = vpop.xlane.xlu0 %3232
        %v3234 = vmax.f32 %v2766, %v2768
        %3235 = vmax.xlane.f32.xlu0 %v3234
        %v3236 = vpop.xlane.xlu0 %3235
        %v3237 = vmax.f32 %v2770, %v2772
        %3238 = vmax.xlane.f32.xlu0 %v3237
        %v3239 = vpop.xlane.xlu0 %3238
        %v3240 = vmax.f32 %v2881, %v2883
        %3241 = vmax.xlane.f32.xlu0 %v3240
        %v3242 = vpop.xlane.xlu0 %3241
        %v3243 = vmax.f32 %v2885, %v2887
        %3244 = vmax.xlane.f32.xlu0 %v3243
        %v3245 = vpop.xlane.xlu0 %3244
        %v3246 = vmax.f32 %v2891, %v2893
        %3247 = vmax.xlane.f32.xlu0 %v3246
        %v3248 = vpop.xlane.xlu0 %3247
        %v3249 = vmax.f32 %v2895, %v2897
        %3250 = vmax.xlane.f32.xlu0 %v3249
        %v3251 = vpop.xlane.xlu0 %3250
        %v3252 = vmax.f32 %v2901, %v2903
        %3253 = vmax.xlane.f32.xlu0 %v3252
        %v3254 = vpop.xlane.xlu0 %3253
        %v3255 = vmax.f32 %v2905, %v2907
        %3256 = vmax.xlane.f32.xlu0 %v3255
        %v3257 = vpop.xlane.xlu0 %3256
        %v3258 = vmax.f32 %v2911, %v2913
        %3259 = vmax.xlane.f32.xlu0 %v3258
        %v3260 = vpop.xlane.xlu0 %3259
        %v3261 = vmax.f32 %v2915, %v2917
        %3262 = vmax.xlane.f32.xlu0 %v3261
        %v3263 = vpop.xlane.xlu0 %3262
        %v3264 = vmax.f32 %v2921, %v2923
        %3265 = vmax.xlane.f32.xlu0 %v3264
        %v3266 = vpop.xlane.xlu0 %3265
        %v3267 = vmax.f32 %v2925, %v2927
        %3268 = vmax.xlane.f32.xlu0 %v3267
        %v3269 = vpop.xlane.xlu0 %3268
        %v3270 = vmax.f32 %v2931, %v2933
        %3271 = vmax.xlane.f32.xlu0 %v3270
        %v3272 = vpop.xlane.xlu0 %3271
        %v3273 = vmax.f32 %v2935, %v2937
        %3274 = vmax.xlane.f32.xlu0 %v3273
        %v3275 = vpop.xlane.xlu0 %3274
        %v3276 = vmax.f32 %v2941, %v2943
        %3277 = vmax.xlane.f32.xlu0 %v3276
        %v3278 = vpop.xlane.xlu0 %3277
        %v3279 = vmax.f32 %v2945, %v2947
        %3280 = vmax.xlane.f32.xlu0 %v3279
        %v3281 = vpop.xlane.xlu0 %3280
        %v3282 = vmax.f32 %v2951, %v2953
        %3283 = vmax.xlane.f32.xlu0 %v3282
        %v3284 = vpop.xlane.xlu0 %3283
        %v3285 = vmax.f32 %v2955, %v2957
        %3286 = vmax.xlane.f32.xlu0 %v3285
        %v3287 = vpop.xlane.xlu0 %3286
        %v3288 = vmax.f32 %v3066, %v3068
        %3289 = vmax.xlane.f32.xlu0 %v3288
        %v3290 = vpop.xlane.xlu0 %3289
        %v3291 = vmax.f32 %v3070, %v3072
        %3292 = vmax.xlane.f32.xlu0 %v3291
        %v3293 = vpop.xlane.xlu0 %3292
        %v3294 = vmax.f32 %v3076, %v3078
        %3295 = vmax.xlane.f32.xlu0 %v3294
        %v3296 = vpop.xlane.xlu0 %3295
        %v3297 = vmax.f32 %v3080, %v3082
        %3298 = vmax.xlane.f32.xlu0 %v3297
        %v3299 = vpop.xlane.xlu0 %3298
        %v3300 = vmax.f32 %v3086, %v3088
        %3301 = vmax.xlane.f32.xlu0 %v3300
        %v3302 = vpop.xlane.xlu0 %3301
        %v3303 = vmax.f32 %v3090, %v3092
        %3304 = vmax.xlane.f32.xlu0 %v3303
        %v3305 = vpop.xlane.xlu0 %3304
        %v3306 = vmax.f32 %v3096, %v3098
        %3307 = vmax.xlane.f32.xlu0 %v3306
        %v3308 = vpop.xlane.xlu0 %3307
        %v3309 = vmax.f32 %v3100, %v3102
        %3310 = vmax.xlane.f32.xlu0 %v3309
        %v3311 = vpop.xlane.xlu0 %3310
        %v3312 = vmax.f32 %v3106, %v3108
        %3313 = vmax.xlane.f32.xlu0 %v3312
        %v3314 = vpop.xlane.xlu0 %3313
        %v3315 = vmax.f32 %v3110, %v3112
        %3316 = vmax.xlane.f32.xlu0 %v3315
        %v3317 = vpop.xlane.xlu0 %3316
        %v3318 = vmax.f32 %v3116, %v3118
        %3319 = vmax.xlane.f32.xlu0 %v3318
        %v3320 = vpop.xlane.xlu0 %3319
        %v3321 = vmax.f32 %v3120, %v3122
        %3322 = vmax.xlane.f32.xlu0 %v3321
        %v3323 = vpop.xlane.xlu0 %3322
        %v3324 = vmax.f32 %v3126, %v3128
        %3325 = vmax.xlane.f32.xlu0 %v3324
        %v3326 = vpop.xlane.xlu0 %3325
        %v3327 = vmax.f32 %v3130, %v3132
        %3328 = vmax.xlane.f32.xlu0 %v3327
        %v3329 = vpop.xlane.xlu0 %3328
        %v3330 = vmax.f32 %v3136, %v3138
        %3331 = vmax.xlane.f32.xlu0 %v3330
        %v3332 = vpop.xlane.xlu0 %3331
        %v3333 = vmax.f32 %v3140, %v3142
        %3334 = vmax.xlane.f32.xlu0 %v3333
        %v3335 = vpop.xlane.xlu0 %3334
        %v3336 = vsub.f32 %v2511, %v3146
        %v3337 = vsub.f32 %v2513, %v3146
        %v3338 = vsub.f32 %v2515, %v3149
        %v3339 = vsub.f32 %v2517, %v3149
        %v3340 = vsub.f32 %v2521, %v3152
        %v3341 = vsub.f32 %v2523, %v3152
        %v3342 = vsub.f32 %v2525, %v3155
        %v3343 = vsub.f32 %v2527, %v3155
        %v3344 = vsub.f32 %v2531, %v3158
        %v3345 = vsub.f32 %v2533, %v3158
        %v3346 = vsub.f32 %v2535, %v3161
        %v3347 = vsub.f32 %v2537, %v3161
        %v3348 = vsub.f32 %v2541, %v3164
        %v3349 = vsub.f32 %v2543, %v3164
        %v3350 = vsub.f32 %v2545, %v3167
        %v3351 = vsub.f32 %v2547, %v3167
        %v3352 = vsub.f32 %v2551, %v3170
        %v3353 = vsub.f32 %v2553, %v3170
        %v3354 = vsub.f32 %v2555, %v3173
        %v3355 = vsub.f32 %v2557, %v3173
        %v3356 = vsub.f32 %v2561, %v3176
        %v3357 = vsub.f32 %v2563, %v3176
        %v3358 = vsub.f32 %v2565, %v3179
        %v3359 = vsub.f32 %v2567, %v3179
        %v3360 = vsub.f32 %v2571, %v3182
        %v3361 = vsub.f32 %v2573, %v3182
        %v3362 = vsub.f32 %v2575, %v3185
        %v3363 = vsub.f32 %v2577, %v3185
        %v3364 = vsub.f32 %v2581, %v3188
        %v3365 = vsub.f32 %v2583, %v3188
        %v3366 = vsub.f32 %v2585, %v3191
        %v3367 = vsub.f32 %v2587, %v3191
        %v3368 = vsub.f32 %v2696, %v3194
        %v3369 = vsub.f32 %v2698, %v3194
        %v3370 = vsub.f32 %v2700, %v3197
        %v3371 = vsub.f32 %v2702, %v3197
        %v3372 = vsub.f32 %v2706, %v3200
        %v3373 = vsub.f32 %v2708, %v3200
        %v3374 = vsub.f32 %v2710, %v3203
        %v3375 = vsub.f32 %v2712, %v3203
        %v3376 = vsub.f32 %v2716, %v3206
        %v3377 = vsub.f32 %v2718, %v3206
        %v3378 = vsub.f32 %v2720, %v3209
        %v3379 = vsub.f32 %v2722, %v3209
        %v3380 = vsub.f32 %v2726, %v3212
        %v3381 = vsub.f32 %v2728, %v3212
        %v3382 = vsub.f32 %v2730, %v3215
        %v3383 = vsub.f32 %v2732, %v3215
        %v3384 = vsub.f32 %v2736, %v3218
        %v3385 = vsub.f32 %v2738, %v3218
        %v3386 = vsub.f32 %v2740, %v3221
        %v3387 = vsub.f32 %v2742, %v3221
        %v3388 = vsub.f32 %v2746, %v3224
        %v3389 = vsub.f32 %v2748, %v3224
        %v3390 = vsub.f32 %v2750, %v3227
        %v3391 = vsub.f32 %v2752, %v3227
        %v3392 = vsub.f32 %v2756, %v3230
        %v3393 = vsub.f32 %v2758, %v3230
        %v3394 = vsub.f32 %v2760, %v3233
        %v3395 = vsub.f32 %v2762, %v3233
        %v3396 = vsub.f32 %v2766, %v3236
        %v3397 = vsub.f32 %v2768, %v3236
        %v3398 = vsub.f32 %v2770, %v3239
        %v3399 = vsub.f32 %v2772, %v3239
        %v3400 = vsub.f32 %v2881, %v3242
        %v3401 = vsub.f32 %v2883, %v3242
        %v3402 = vsub.f32 %v2885, %v3245
        %v3403 = vsub.f32 %v2887, %v3245
        %v3404 = vsub.f32 %v2891, %v3248
        %v3405 = vsub.f32 %v2893, %v3248
        %v3406 = vsub.f32 %v2895, %v3251
        %v3407 = vsub.f32 %v2897, %v3251
        %v3408 = vsub.f32 %v2901, %v3254
        %v3409 = vsub.f32 %v2903, %v3254
        %v3410 = vsub.f32 %v2905, %v3257
        %v3411 = vsub.f32 %v2907, %v3257
        %v3412 = vsub.f32 %v2911, %v3260
        %v3413 = vsub.f32 %v2913, %v3260
        %v3414 = vsub.f32 %v2915, %v3263
        %v3415 = vsub.f32 %v2917, %v3263
        %v3416 = vsub.f32 %v2921, %v3266
        %v3417 = vsub.f32 %v2923, %v3266
        %v3418 = vsub.f32 %v2925, %v3269
        %v3419 = vsub.f32 %v2927, %v3269
        %v3420 = vsub.f32 %v2931, %v3272
        %v3421 = vsub.f32 %v2933, %v3272
        %v3422 = vsub.f32 %v2935, %v3275
        %v3423 = vsub.f32 %v2937, %v3275
        %v3424 = vsub.f32 %v2941, %v3278
        %v3425 = vsub.f32 %v2943, %v3278
        %v3426 = vsub.f32 %v2945, %v3281
        %v3427 = vsub.f32 %v2947, %v3281
        %v3428 = vsub.f32 %v2951, %v3284
        %v3429 = vsub.f32 %v2953, %v3284
        %v3430 = vsub.f32 %v2955, %v3287
        %v3431 = vsub.f32 %v2957, %v3287
        %v3432 = vsub.f32 %v3066, %v3290
        %v3433 = vsub.f32 %v3068, %v3290
        %v3434 = vsub.f32 %v3070, %v3293
        %v3435 = vsub.f32 %v3072, %v3293
        %v3436 = vsub.f32 %v3076, %v3296
        %v3437 = vsub.f32 %v3078, %v3296
        %v3438 = vsub.f32 %v3080, %v3299
        %v3439 = vsub.f32 %v3082, %v3299
        %v3440 = vsub.f32 %v3086, %v3302
        %v3441 = vsub.f32 %v3088, %v3302
        %v3442 = vsub.f32 %v3090, %v3305
        %v3443 = vsub.f32 %v3092, %v3305
        %v3444 = vsub.f32 %v3096, %v3308
        %v3445 = vsub.f32 %v3098, %v3308
        %v3446 = vsub.f32 %v3100, %v3311
        %v3447 = vsub.f32 %v3102, %v3311
        %v3448 = vsub.f32 %v3106, %v3314
        %v3449 = vsub.f32 %v3108, %v3314
        %v3450 = vsub.f32 %v3110, %v3317
        %v3451 = vsub.f32 %v3112, %v3317
        %v3452 = vsub.f32 %v3116, %v3320
        %v3453 = vsub.f32 %v3118, %v3320
        %v3454 = vsub.f32 %v3120, %v3323
        %v3455 = vsub.f32 %v3122, %v3323
        %v3456 = vsub.f32 %v3126, %v3326
        %v3457 = vsub.f32 %v3128, %v3326
        %v3458 = vsub.f32 %v3130, %v3329
        %v3459 = vsub.f32 %v3132, %v3329
        %v3460 = vsub.f32 %v3136, %v3332
        %v3461 = vsub.f32 %v3138, %v3332
        %v3462 = vsub.f32 %v3140, %v3335
        %v3463 = vsub.f32 %v3142, %v3335
        %v3464 = vmul.f32 %v3336, 1.442695
        %v3465 = vpow.pop %v3464
        %v3466 = vmul.f32 %v3337, 1.442695
        %v3467 = vpow.pop %v3466
        %v3468 = vmul.f32 %v3338, 1.442695
        %v3469 = vpow.pop %v3468
        %v3470 = vmul.f32 %v3339, 1.442695
        %v3471 = vpow.pop %v3470
        %v3472 = vmul.f32 %v3340, 1.442695
        %v3473 = vpow.pop %v3472
        %v3474 = vmul.f32 %v3341, 1.442695
        %v3475 = vpow.pop %v3474
        %v3476 = vmul.f32 %v3342, 1.442695
        %v3477 = vpow.pop %v3476
        %v3478 = vmul.f32 %v3343, 1.442695
        %v3479 = vpow.pop %v3478
        %v3480 = vmul.f32 %v3344, 1.442695
        %v3481 = vpow.pop %v3480
        %v3482 = vmul.f32 %v3345, 1.442695
        %v3483 = vpow.pop %v3482
        %v3484 = vmul.f32 %v3346, 1.442695
        %v3485 = vpow.pop %v3484
        %v3486 = vmul.f32 %v3347, 1.442695
        %v3487 = vpow.pop %v3486
        %v3488 = vmul.f32 %v3348, 1.442695
        %v3489 = vpow.pop %v3488
        %v3490 = vmul.f32 %v3349, 1.442695
        %v3491 = vpow.pop %v3490
        %v3492 = vmul.f32 %v3350, 1.442695
        %v3493 = vpow.pop %v3492
        %v3494 = vmul.f32 %v3351, 1.442695
        %v3495 = vpow.pop %v3494
        %v3496 = vmul.f32 %v3352, 1.442695
        %v3497 = vpow.pop %v3496
        %v3498 = vmul.f32 %v3353, 1.442695
        %v3499 = vpow.pop %v3498
        %v3500 = vmul.f32 %v3354, 1.442695
        %v3501 = vpow.pop %v3500
        %v3502 = vmul.f32 %v3355, 1.442695
        %v3503 = vpow.pop %v3502
        %v3504 = vmul.f32 %v3356, 1.442695
        %v3505 = vpow.pop %v3504
        %v3506 = vmul.f32 %v3357, 1.442695
        %v3507 = vpow.pop %v3506
        %v3508 = vmul.f32 %v3358, 1.442695
        %v3509 = vpow.pop %v3508
        %v3510 = vmul.f32 %v3359, 1.442695
        %v3511 = vpow.pop %v3510
        %v3512 = vmul.f32 %v3360, 1.442695
        %v3513 = vpow.pop %v3512
        %v3514 = vmul.f32 %v3361, 1.442695
        %v3515 = vpow.pop %v3514
        %v3516 = vmul.f32 %v3362, 1.442695
        %v3517 = vpow.pop %v3516
        %v3518 = vmul.f32 %v3363, 1.442695
        %v3519 = vpow.pop %v3518
        %v3520 = vmul.f32 %v3364, 1.442695
        %v3521 = vpow.pop %v3520
        %v3522 = vmul.f32 %v3365, 1.442695
        %v3523 = vpow.pop %v3522
        %v3524 = vmul.f32 %v3366, 1.442695
        %v3525 = vpow.pop %v3524
        %v3526 = vmul.f32 %v3367, 1.442695
        %v3527 = vpow.pop %v3526
        %v3528 = vmul.f32 %v3368, 1.442695
        %v3529 = vpow.pop %v3528
        %v3530 = vmul.f32 %v3369, 1.442695
        %v3531 = vpow.pop %v3530
        %v3532 = vmul.f32 %v3370, 1.442695
        %v3533 = vpow.pop %v3532
        %v3534 = vmul.f32 %v3371, 1.442695
        %v3535 = vpow.pop %v3534
        %v3536 = vmul.f32 %v3372, 1.442695
        %v3537 = vpow.pop %v3536
        %v3538 = vmul.f32 %v3373, 1.442695
        %v3539 = vpow.pop %v3538
        %v3540 = vmul.f32 %v3374, 1.442695
        %v3541 = vpow.pop %v3540
        %v3542 = vmul.f32 %v3375, 1.442695
        %v3543 = vpow.pop %v3542
        %v3544 = vmul.f32 %v3376, 1.442695
        %v3545 = vpow.pop %v3544
        %v3546 = vmul.f32 %v3377, 1.442695
        %v3547 = vpow.pop %v3546
        %v3548 = vmul.f32 %v3378, 1.442695
        %v3549 = vpow.pop %v3548
        %v3550 = vmul.f32 %v3379, 1.442695
        %v3551 = vpow.pop %v3550
        %v3552 = vmul.f32 %v3380, 1.442695
        %v3553 = vpow.pop %v3552
        %v3554 = vmul.f32 %v3381, 1.442695
        %v3555 = vpow.pop %v3554
        %v3556 = vmul.f32 %v3382, 1.442695
        %v3557 = vpow.pop %v3556
        %v3558 = vmul.f32 %v3383, 1.442695
        %v3559 = vpow.pop %v3558
        %v3560 = vmul.f32 %v3384, 1.442695
        %v3561 = vpow.pop %v3560
        %v3562 = vmul.f32 %v3385, 1.442695
        %v3563 = vpow.pop %v3562
        %v3564 = vmul.f32 %v3386, 1.442695
        %v3565 = vpow.pop %v3564
        %v3566 = vmul.f32 %v3387, 1.442695
        %v3567 = vpow.pop %v3566
        %v3568 = vmul.f32 %v3388, 1.442695
        %v3569 = vpow.pop %v3568
        %v3570 = vmul.f32 %v3389, 1.442695
        %v3571 = vpow.pop %v3570
        %v3572 = vmul.f32 %v3390, 1.442695
        %v3573 = vpow.pop %v3572
        %v3574 = vmul.f32 %v3391, 1.442695
        %v3575 = vpow.pop %v3574
        %v3576 = vmul.f32 %v3392, 1.442695
        %v3577 = vpow.pop %v3576
        %v3578 = vmul.f32 %v3393, 1.442695
        %v3579 = vpow.pop %v3578
        %v3580 = vmul.f32 %v3394, 1.442695
        %v3581 = vpow.pop %v3580
        %v3582 = vmul.f32 %v3395, 1.442695
        %v3583 = vpow.pop %v3582
        %v3584 = vmul.f32 %v3396, 1.442695
        %v3585 = vpow.pop %v3584
        %v3586 = vmul.f32 %v3397, 1.442695
        %v3587 = vpow.pop %v3586
        %v3588 = vmul.f32 %v3398, 1.442695
        %v3589 = vpow.pop %v3588
        %v3590 = vmul.f32 %v3399, 1.442695
        %v3591 = vpow.pop %v3590
        %v3592 = vmul.f32 %v3400, 1.442695
        %v3593 = vpow.pop %v3592
        %v3594 = vmul.f32 %v3401, 1.442695
        %v3595 = vpow.pop %v3594
        %v3596 = vmul.f32 %v3402, 1.442695
        %v3597 = vpow.pop %v3596
        %v3598 = vmul.f32 %v3403, 1.442695
        %v3599 = vpow.pop %v3598
        %v3600 = vmul.f32 %v3404, 1.442695
        %v3601 = vpow.pop %v3600
        %v3602 = vmul.f32 %v3405, 1.442695
        %v3603 = vpow.pop %v3602
        %v3604 = vmul.f32 %v3406, 1.442695
        %v3605 = vpow.pop %v3604
        %v3606 = vmul.f32 %v3407, 1.442695
        %v3607 = vpow.pop %v3606
        %v3608 = vmul.f32 %v3408, 1.442695
        %v3609 = vpow.pop %v3608
        %v3610 = vmul.f32 %v3409, 1.442695
        %v3611 = vpow.pop %v3610
        %v3612 = vmul.f32 %v3410, 1.442695
        %v3613 = vpow.pop %v3612
        %v3614 = vmul.f32 %v3411, 1.442695
        %v3615 = vpow.pop %v3614
        %v3616 = vmul.f32 %v3412, 1.442695
        %v3617 = vpow.pop %v3616
        %v3618 = vmul.f32 %v3413, 1.442695
        %v3619 = vpow.pop %v3618
        %v3620 = vmul.f32 %v3414, 1.442695
        %v3621 = vpow.pop %v3620
        %v3622 = vmul.f32 %v3415, 1.442695
        %v3623 = vpow.pop %v3622
        %v3624 = vmul.f32 %v3416, 1.442695
        %v3625 = vpow.pop %v3624
        %v3626 = vmul.f32 %v3417, 1.442695
        %v3627 = vpow.pop %v3626
        %v3628 = vmul.f32 %v3418, 1.442695
        %v3629 = vpow.pop %v3628
        %v3630 = vmul.f32 %v3419, 1.442695
        %v3631 = vpow.pop %v3630
        %v3632 = vmul.f32 %v3420, 1.442695
        %v3633 = vpow.pop %v3632
        %v3634 = vmul.f32 %v3421, 1.442695
        %v3635 = vpow.pop %v3634
        %v3636 = vmul.f32 %v3422, 1.442695
        %v3637 = vpow.pop %v3636
        %v3638 = vmul.f32 %v3423, 1.442695
        %v3639 = vpow.pop %v3638
        %v3640 = vmul.f32 %v3424, 1.442695
        %v3641 = vpow.pop %v3640
        %v3642 = vmul.f32 %v3425, 1.442695
        %v3643 = vpow.pop %v3642
        %v3644 = vmul.f32 %v3426, 1.442695
        %v3645 = vpow.pop %v3644
        %v3646 = vmul.f32 %v3427, 1.442695
        %v3647 = vpow.pop %v3646
        %v3648 = vmul.f32 %v3428, 1.442695
        %v3649 = vpow.pop %v3648
        %v3650 = vmul.f32 %v3429, 1.442695
        %v3651 = vpow.pop %v3650
        %v3652 = vmul.f32 %v3430, 1.442695
        %v3653 = vpow.pop %v3652
        %v3654 = vmul.f32 %v3431, 1.442695
        %v3655 = vpow.pop %v3654
        %v3656 = vmul.f32 %v3432, 1.442695
        %v3657 = vpow.pop %v3656
        %v3658 = vmul.f32 %v3433, 1.442695
        %v3659 = vpow.pop %v3658
        %v3660 = vmul.f32 %v3434, 1.442695
        %v3661 = vpow.pop %v3660
        %v3662 = vmul.f32 %v3435, 1.442695
        %v3663 = vpow.pop %v3662
        %v3664 = vmul.f32 %v3436, 1.442695
        %v3665 = vpow.pop %v3664
        %v3666 = vmul.f32 %v3437, 1.442695
        %v3667 = vpow.pop %v3666
        %v3668 = vmul.f32 %v3438, 1.442695
        %v3669 = vpow.pop %v3668
        %v3670 = vmul.f32 %v3439, 1.442695
        %v3671 = vpow.pop %v3670
        %v3672 = vmul.f32 %v3440, 1.442695
        %v3673 = vpow.pop %v3672
        %v3674 = vmul.f32 %v3441, 1.442695
        %v3675 = vpow.pop %v3674
        %v3676 = vmul.f32 %v3442, 1.442695
        %v3677 = vpow.pop %v3676
        %v3678 = vmul.f32 %v3443, 1.442695
        %v3679 = vpow.pop %v3678
        %v3680 = vmul.f32 %v3444, 1.442695
        %v3681 = vpow.pop %v3680
        %v3682 = vmul.f32 %v3445, 1.442695
        %v3683 = vpow.pop %v3682
        %v3684 = vmul.f32 %v3446, 1.442695
        %v3685 = vpow.pop %v3684
        %v3686 = vmul.f32 %v3447, 1.442695
        %v3687 = vpow.pop %v3686
        %v3688 = vmul.f32 %v3448, 1.442695
        %v3689 = vpow.pop %v3688
        %v3690 = vmul.f32 %v3449, 1.442695
        %v3691 = vpow.pop %v3690
        %v3692 = vmul.f32 %v3450, 1.442695
        %v3693 = vpow.pop %v3692
        %v3694 = vmul.f32 %v3451, 1.442695
        %v3695 = vpow.pop %v3694
        %v3696 = vmul.f32 %v3452, 1.442695
        %v3697 = vpow.pop %v3696
        %v3698 = vmul.f32 %v3453, 1.442695
        %v3699 = vpow.pop %v3698
        %v3700 = vmul.f32 %v3454, 1.442695
        %v3701 = vpow.pop %v3700
        %v3702 = vmul.f32 %v3455, 1.442695
        %v3703 = vpow.pop %v3702
        %v3704 = vmul.f32 %v3456, 1.442695
        %v3705 = vpow.pop %v3704
        %v3706 = vmul.f32 %v3457, 1.442695
        %v3707 = vpow.pop %v3706
        %v3708 = vmul.f32 %v3458, 1.442695
        %v3709 = vpow.pop %v3708
        %v3710 = vmul.f32 %v3459, 1.442695
        %v3711 = vpow.pop %v3710
        %v3712 = vmul.f32 %v3460, 1.442695
        %v3713 = vpow.pop %v3712
        %v3714 = vmul.f32 %v3461, 1.442695
        %v3715 = vpow.pop %v3714
        %v3716 = vmul.f32 %v3462, 1.442695
        %v3717 = vpow.pop %v3716
        %v3718 = vmul.f32 %v3463, 1.442695
        %v3719 = vpow.pop %v3718
        %v3720 = vadd.f32 %v3465, %v3467
        %3721 = vadd.xlane.f32.xlu0 %v3720
        %v3722 = vpop.xlane.xlu0 %3721
        %v3723 = vadd.f32 %v3469, %v3471
        %3724 = vadd.xlane.f32.xlu0 %v3723
        %v3725 = vpop.xlane.xlu0 %3724
        %v3726 = vadd.f32 %v3473, %v3475
        %3727 = vadd.xlane.f32.xlu0 %v3726
        %v3728 = vpop.xlane.xlu0 %3727
        %v3729 = vadd.f32 %v3477, %v3479
        %3730 = vadd.xlane.f32.xlu0 %v3729
        %v3731 = vpop.xlane.xlu0 %3730
        %v3732 = vadd.f32 %v3481, %v3483
        %3733 = vadd.xlane.f32.xlu0 %v3732
        %v3734 = vpop.xlane.xlu0 %3733
        %v3735 = vadd.f32 %v3485, %v3487
        %3736 = vadd.xlane.f32.xlu0 %v3735
        %v3737 = vpop.xlane.xlu0 %3736
        %v3738 = vadd.f32 %v3489, %v3491
        %3739 = vadd.xlane.f32.xlu0 %v3738
        %v3740 = vpop.xlane.xlu0 %3739
        %v3741 = vadd.f32 %v3493, %v3495
        %3742 = vadd.xlane.f32.xlu0 %v3741
        %v3743 = vpop.xlane.xlu0 %3742
        %v3744 = vadd.f32 %v3497, %v3499
        %3745 = vadd.xlane.f32.xlu0 %v3744
        %v3746 = vpop.xlane.xlu0 %3745
        %v3747 = vadd.f32 %v3501, %v3503
        %3748 = vadd.xlane.f32.xlu0 %v3747
        %v3749 = vpop.xlane.xlu0 %3748
        %v3750 = vadd.f32 %v3505, %v3507
        %3751 = vadd.xlane.f32.xlu0 %v3750
        %v3752 = vpop.xlane.xlu0 %3751
        %v3753 = vadd.f32 %v3509, %v3511
        %3754 = vadd.xlane.f32.xlu0 %v3753
        %v3755 = vpop.xlane.xlu0 %3754
        %v3756 = vadd.f32 %v3513, %v3515
        %3757 = vadd.xlane.f32.xlu0 %v3756
        %v3758 = vpop.xlane.xlu0 %3757
        %v3759 = vadd.f32 %v3517, %v3519
        %3760 = vadd.xlane.f32.xlu0 %v3759
        %v3761 = vpop.xlane.xlu0 %3760
        %v3762 = vadd.f32 %v3521, %v3523
        %3763 = vadd.xlane.f32.xlu0 %v3762
        %v3764 = vpop.xlane.xlu0 %3763
        %v3765 = vadd.f32 %v3525, %v3527
        %3766 = vadd.xlane.f32.xlu0 %v3765
        %v3767 = vpop.xlane.xlu0 %3766
        %v3768 = vadd.f32 %v3529, %v3531
        %3769 = vadd.xlane.f32.xlu0 %v3768
        %v3770 = vpop.xlane.xlu0 %3769
        %v3771 = vadd.f32 %v3533, %v3535
        %3772 = vadd.xlane.f32.xlu0 %v3771
        %v3773 = vpop.xlane.xlu0 %3772
        %v3774 = vadd.f32 %v3537, %v3539
        %3775 = vadd.xlane.f32.xlu0 %v3774
        %v3776 = vpop.xlane.xlu0 %3775
        %v3777 = vadd.f32 %v3541, %v3543
        %3778 = vadd.xlane.f32.xlu0 %v3777
        %v3779 = vpop.xlane.xlu0 %3778
        %v3780 = vadd.f32 %v3545, %v3547
        %3781 = vadd.xlane.f32.xlu0 %v3780
        %v3782 = vpop.xlane.xlu0 %3781
        %v3783 = vadd.f32 %v3549, %v3551
        %3784 = vadd.xlane.f32.xlu0 %v3783
        %v3785 = vpop.xlane.xlu0 %3784
        %v3786 = vadd.f32 %v3553, %v3555
        %3787 = vadd.xlane.f32.xlu0 %v3786
        %v3788 = vpop.xlane.xlu0 %3787
        %v3789 = vadd.f32 %v3557, %v3559
        %3790 = vadd.xlane.f32.xlu0 %v3789
        %v3791 = vpop.xlane.xlu0 %3790
        %v3792 = vadd.f32 %v3561, %v3563
        %3793 = vadd.xlane.f32.xlu0 %v3792
        %v3794 = vpop.xlane.xlu0 %3793
        %v3795 = vadd.f32 %v3565, %v3567
        %3796 = vadd.xlane.f32.xlu0 %v3795
        %v3797 = vpop.xlane.xlu0 %3796
        %v3798 = vadd.f32 %v3569, %v3571
        %3799 = vadd.xlane.f32.xlu0 %v3798
        %v3800 = vpop.xlane.xlu0 %3799
        %v3801 = vadd.f32 %v3573, %v3575
        %3802 = vadd.xlane.f32.xlu0 %v3801
        %v3803 = vpop.xlane.xlu0 %3802
        %v3804 = vadd.f32 %v3577, %v3579
        %3805 = vadd.xlane.f32.xlu0 %v3804
        %v3806 = vpop.xlane.xlu0 %3805
        %v3807 = vadd.f32 %v3581, %v3583
        %3808 = vadd.xlane.f32.xlu0 %v3807
        %v3809 = vpop.xlane.xlu0 %3808
        %v3810 = vadd.f32 %v3585, %v3587
        %3811 = vadd.xlane.f32.xlu0 %v3810
        %v3812 = vpop.xlane.xlu0 %3811
        %v3813 = vadd.f32 %v3589, %v3591
        %3814 = vadd.xlane.f32.xlu0 %v3813
        %v3815 = vpop.xlane.xlu0 %3814
        %v3816 = vadd.f32 %v3593, %v3595
        %3817 = vadd.xlane.f32.xlu0 %v3816
        %v3818 = vpop.xlane.xlu0 %3817
        %v3819 = vadd.f32 %v3597, %v3599
        %3820 = vadd.xlane.f32.xlu0 %v3819
        %v3821 = vpop.xlane.xlu0 %3820
        %v3822 = vadd.f32 %v3601, %v3603
        %3823 = vadd.xlane.f32.xlu0 %v3822
        %v3824 = vpop.xlane.xlu0 %3823
        %v3825 = vadd.f32 %v3605, %v3607
        %3826 = vadd.xlane.f32.xlu0 %v3825
        %v3827 = vpop.xlane.xlu0 %3826
        %v3828 = vadd.f32 %v3609, %v3611
        %3829 = vadd.xlane.f32.xlu0 %v3828
        %v3830 = vpop.xlane.xlu0 %3829
        %v3831 = vadd.f32 %v3613, %v3615
        %3832 = vadd.xlane.f32.xlu0 %v3831
        %v3833 = vpop.xlane.xlu0 %3832
        %v3834 = vadd.f32 %v3617, %v3619
        %3835 = vadd.xlane.f32.xlu0 %v3834
        %v3836 = vpop.xlane.xlu0 %3835
        %v3837 = vadd.f32 %v3621, %v3623
        %3838 = vadd.xlane.f32.xlu0 %v3837
        %v3839 = vpop.xlane.xlu0 %3838
        %v3840 = vadd.f32 %v3625, %v3627
        %3841 = vadd.xlane.f32.xlu0 %v3840
        %v3842 = vpop.xlane.xlu0 %3841
        %v3843 = vadd.f32 %v3629, %v3631
        %3844 = vadd.xlane.f32.xlu0 %v3843
        %v3845 = vpop.xlane.xlu0 %3844
        %v3846 = vadd.f32 %v3633, %v3635
        %3847 = vadd.xlane.f32.xlu0 %v3846
        %v3848 = vpop.xlane.xlu0 %3847
        %v3849 = vadd.f32 %v3637, %v3639
        %3850 = vadd.xlane.f32.xlu0 %v3849
        %v3851 = vpop.xlane.xlu0 %3850
        %v3852 = vadd.f32 %v3641, %v3643
        %3853 = vadd.xlane.f32.xlu0 %v3852
        %v3854 = vpop.xlane.xlu0 %3853
        %v3855 = vadd.f32 %v3645, %v3647
        %3856 = vadd.xlane.f32.xlu0 %v3855
        %v3857 = vpop.xlane.xlu0 %3856
        %v3858 = vadd.f32 %v3649, %v3651
        %3859 = vadd.xlane.f32.xlu0 %v3858
        %v3860 = vpop.xlane.xlu0 %3859
        %v3861 = vadd.f32 %v3653, %v3655
        %3862 = vadd.xlane.f32.xlu0 %v3861
        %v3863 = vpop.xlane.xlu0 %3862
        %v3864 = vadd.f32 %v3657, %v3659
        %3865 = vadd.xlane.f32.xlu0 %v3864
        %v3866 = vpop.xlane.xlu0 %3865
        %v3867 = vadd.f32 %v3661, %v3663
        %3868 = vadd.xlane.f32.xlu0 %v3867
        %v3869 = vpop.xlane.xlu0 %3868
        %v3870 = vadd.f32 %v3665, %v3667
        %3871 = vadd.xlane.f32.xlu0 %v3870
        %v3872 = vpop.xlane.xlu0 %3871
        %v3873 = vadd.f32 %v3669, %v3671
        %3874 = vadd.xlane.f32.xlu0 %v3873
        %v3875 = vpop.xlane.xlu0 %3874
        %v3876 = vadd.f32 %v3673, %v3675
        %3877 = vadd.xlane.f32.xlu0 %v3876
        %v3878 = vpop.xlane.xlu0 %3877
        %v3879 = vadd.f32 %v3677, %v3679
        %3880 = vadd.xlane.f32.xlu0 %v3879
        %v3881 = vpop.xlane.xlu0 %3880
        %v3882 = vadd.f32 %v3681, %v3683
        %3883 = vadd.xlane.f32.xlu0 %v3882
        %v3884 = vpop.xlane.xlu0 %3883
        %v3885 = vadd.f32 %v3685, %v3687
        %3886 = vadd.xlane.f32.xlu0 %v3885
        %v3887 = vpop.xlane.xlu0 %3886
        %v3888 = vadd.f32 %v3689, %v3691
        %3889 = vadd.xlane.f32.xlu0 %v3888
        %v3890 = vpop.xlane.xlu0 %3889
        %v3891 = vadd.f32 %v3693, %v3695
        %3892 = vadd.xlane.f32.xlu0 %v3891
        %v3893 = vpop.xlane.xlu0 %3892
        %v3894 = vadd.f32 %v3697, %v3699
        %3895 = vadd.xlane.f32.xlu0 %v3894
        %v3896 = vpop.xlane.xlu0 %3895
        %v3897 = vadd.f32 %v3701, %v3703
        %3898 = vadd.xlane.f32.xlu0 %v3897
        %v3899 = vpop.xlane.xlu0 %3898
        %v3900 = vadd.f32 %v3705, %v3707
        %3901 = vadd.xlane.f32.xlu0 %v3900
        %v3902 = vpop.xlane.xlu0 %3901
        %v3903 = vadd.f32 %v3709, %v3711
        %3904 = vadd.xlane.f32.xlu0 %v3903
        %v3905 = vpop.xlane.xlu0 %3904
        %v3906 = vadd.f32 %v3713, %v3715
        %3907 = vadd.xlane.f32.xlu0 %v3906
        %v3908 = vpop.xlane.xlu0 %3907
        %v3909 = vadd.f32 %v3717, %v3719
        %3910 = vadd.xlane.f32.xlu0 %v3909
        %v3911 = vpop.xlane.xlu0 %3910
        %v3912 = vrcp.pop %v3722
        %v3913 = vrcp.pop %v3725
        %v3914 = vrcp.pop %v3728
        %v3915 = vrcp.pop %v3731
        %v3916 = vrcp.pop %v3734
        %v3917 = vrcp.pop %v3737
        %v3918 = vrcp.pop %v3740
        %v3919 = vrcp.pop %v3743
        %v3920 = vrcp.pop %v3746
        %v3921 = vrcp.pop %v3749
        %v3922 = vrcp.pop %v3752
        %v3923 = vrcp.pop %v3755
        %v3924 = vrcp.pop %v3758
        %v3925 = vrcp.pop %v3761
        %v3926 = vrcp.pop %v3764
        %v3927 = vrcp.pop %v3767
        %v3928 = vrcp.pop %v3770
        %v3929 = vrcp.pop %v3773
        %v3930 = vrcp.pop %v3776
        %v3931 = vrcp.pop %v3779
        %v3932 = vrcp.pop %v3782
        %v3933 = vrcp.pop %v3785
        %v3934 = vrcp.pop %v3788
        %v3935 = vrcp.pop %v3791
        %v3936 = vrcp.pop %v3794
        %v3937 = vrcp.pop %v3797
        %v3938 = vrcp.pop %v3800
        %v3939 = vrcp.pop %v3803
        %v3940 = vrcp.pop %v3806
        %v3941 = vrcp.pop %v3809
        %v3942 = vrcp.pop %v3812
        %v3943 = vrcp.pop %v3815
        %v3944 = vrcp.pop %v3818
        %v3945 = vrcp.pop %v3821
        %v3946 = vrcp.pop %v3824
        %v3947 = vrcp.pop %v3827
        %v3948 = vrcp.pop %v3830
        %v3949 = vrcp.pop %v3833
        %v3950 = vrcp.pop %v3836
        %v3951 = vrcp.pop %v3839
        %v3952 = vrcp.pop %v3842
        %v3953 = vrcp.pop %v3845
        %v3954 = vrcp.pop %v3848
        %v3955 = vrcp.pop %v3851
        %v3956 = vrcp.pop %v3854
        %v3957 = vrcp.pop %v3857
        %v3958 = vrcp.pop %v3860
        %v3959 = vrcp.pop %v3863
        %v3960 = vrcp.pop %v3866
        %v3961 = vrcp.pop %v3869
        %v3962 = vrcp.pop %v3872
        %v3963 = vrcp.pop %v3875
        %v3964 = vrcp.pop %v3878
        %v3965 = vrcp.pop %v3881
        %v3966 = vrcp.pop %v3884
        %v3967 = vrcp.pop %v3887
        %v3968 = vrcp.pop %v3890
        %v3969 = vrcp.pop %v3893
        %v3970 = vrcp.pop %v3896
        %v3971 = vrcp.pop %v3899
        %v3972 = vrcp.pop %v3902
        %v3973 = vrcp.pop %v3905
        %v3974 = vrcp.pop %v3908
        %v3975 = vrcp.pop %v3911
        %v3976 = vmul.f32 %v3465, %v3912
        %v3977 = vmul.f32 %v3467, %v3912
        %v3978 = vmul.f32 %v3469, %v3913
        %v3979 = vmul.f32 %v3471, %v3913
        %v3980 = vmul.f32 %v3473, %v3914
        %v3981 = vmul.f32 %v3475, %v3914
        %v3982 = vmul.f32 %v3477, %v3915
        %v3983 = vmul.f32 %v3479, %v3915
        %v3984 = vmul.f32 %v3481, %v3916
        %v3985 = vmul.f32 %v3483, %v3916
        %v3986 = vmul.f32 %v3485, %v3917
        %v3987 = vmul.f32 %v3487, %v3917
        %v3988 = vmul.f32 %v3489, %v3918
        %v3989 = vmul.f32 %v3491, %v3918
        %v3990 = vmul.f32 %v3493, %v3919
        %v3991 = vmul.f32 %v3495, %v3919
        %v3992 = vmul.f32 %v3497, %v3920
        %v3993 = vmul.f32 %v3499, %v3920
        %v3994 = vmul.f32 %v3501, %v3921
        %v3995 = vmul.f32 %v3503, %v3921
        %v3996 = vmul.f32 %v3505, %v3922
        %v3997 = vmul.f32 %v3507, %v3922
        %v3998 = vmul.f32 %v3509, %v3923
        %v3999 = vmul.f32 %v3511, %v3923
        %v4000 = vmul.f32 %v3513, %v3924
        %v4001 = vmul.f32 %v3515, %v3924
        %v4002 = vmul.f32 %v3517, %v3925
        %v4003 = vmul.f32 %v3519, %v3925
        %v4004 = vmul.f32 %v3521, %v3926
        %v4005 = vmul.f32 %v3523, %v3926
        %v4006 = vmul.f32 %v3525, %v3927
        %v4007 = vmul.f32 %v3527, %v3927
        %v4008 = vmul.f32 %v3529, %v3928
        %v4009 = vmul.f32 %v3531, %v3928
        %v4010 = vmul.f32 %v3533, %v3929
        %v4011 = vmul.f32 %v3535, %v3929
        %v4012 = vmul.f32 %v3537, %v3930
        %v4013 = vmul.f32 %v3539, %v3930
        %v4014 = vmul.f32 %v3541, %v3931
        %v4015 = vmul.f32 %v3543, %v3931
        %v4016 = vmul.f32 %v3545, %v3932
        %v4017 = vmul.f32 %v3547, %v3932
        %v4018 = vmul.f32 %v3549, %v3933
        %v4019 = vmul.f32 %v3551, %v3933
        %v4020 = vmul.f32 %v3553, %v3934
        %v4021 = vmul.f32 %v3555, %v3934
        %v4022 = vmul.f32 %v3557, %v3935
        %v4023 = vmul.f32 %v3559, %v3935
        %v4024 = vmul.f32 %v3561, %v3936
        %v4025 = vmul.f32 %v3563, %v3936
        %v4026 = vmul.f32 %v3565, %v3937
        %v4027 = vmul.f32 %v3567, %v3937
        %v4028 = vmul.f32 %v3569, %v3938
        %v4029 = vmul.f32 %v3571, %v3938
        %v4030 = vmul.f32 %v3573, %v3939
        %v4031 = vmul.f32 %v3575, %v3939
        %v4032 = vmul.f32 %v3577, %v3940
        %v4033 = vmul.f32 %v3579, %v3940
        %v4034 = vmul.f32 %v3581, %v3941
        %v4035 = vmul.f32 %v3583, %v3941
        %v4036 = vmul.f32 %v3585, %v3942
        %v4037 = vmul.f32 %v3587, %v3942
        %v4038 = vmul.f32 %v3589, %v3943
        %v4039 = vmul.f32 %v3591, %v3943
        %v4040 = vmul.f32 %v3593, %v3944
        %v4041 = vmul.f32 %v3595, %v3944
        %v4042 = vmul.f32 %v3597, %v3945
        %v4043 = vmul.f32 %v3599, %v3945
        %v4044 = vmul.f32 %v3601, %v3946
        %v4045 = vmul.f32 %v3603, %v3946
        %v4046 = vmul.f32 %v3605, %v3947
        %v4047 = vmul.f32 %v3607, %v3947
        %v4048 = vmul.f32 %v3609, %v3948
        %v4049 = vmul.f32 %v3611, %v3948
        %v4050 = vmul.f32 %v3613, %v3949
        %v4051 = vmul.f32 %v3615, %v3949
        %v4052 = vmul.f32 %v3617, %v3950
        %v4053 = vmul.f32 %v3619, %v3950
        %v4054 = vmul.f32 %v3621, %v3951
        %v4055 = vmul.f32 %v3623, %v3951
        %v4056 = vmul.f32 %v3625, %v3952
        %v4057 = vmul.f32 %v3627, %v3952
        %v4058 = vmul.f32 %v3629, %v3953
        %v4059 = vmul.f32 %v3631, %v3953
        %v4060 = vmul.f32 %v3633, %v3954
        %v4061 = vmul.f32 %v3635, %v3954
        %v4062 = vmul.f32 %v3637, %v3955
        %v4063 = vmul.f32 %v3639, %v3955
        %v4064 = vmul.f32 %v3641, %v3956
        %v4065 = vmul.f32 %v3643, %v3956
        %v4066 = vmul.f32 %v3645, %v3957
        %v4067 = vmul.f32 %v3647, %v3957
        %v4068 = vmul.f32 %v3649, %v3958
        %v4069 = vmul.f32 %v3651, %v3958
        %v4070 = vmul.f32 %v3653, %v3959
        %v4071 = vmul.f32 %v3655, %v3959
        %v4072 = vmul.f32 %v3657, %v3960
        %v4073 = vmul.f32 %v3659, %v3960
        %v4074 = vmul.f32 %v3661, %v3961
        %v4075 = vmul.f32 %v3663, %v3961
        %v4076 = vmul.f32 %v3665, %v3962
        %v4077 = vmul.f32 %v3667, %v3962
        %v4078 = vmul.f32 %v3669, %v3963
        %v4079 = vmul.f32 %v3671, %v3963
        %v4080 = vmul.f32 %v3673, %v3964
        %v4081 = vmul.f32 %v3675, %v3964
        %v4082 = vmul.f32 %v3677, %v3965
        %v4083 = vmul.f32 %v3679, %v3965
        %v4084 = vmul.f32 %v3681, %v3966
        %v4085 = vmul.f32 %v3683, %v3966
        %v4086 = vmul.f32 %v3685, %v3967
        %v4087 = vmul.f32 %v3687, %v3967
        %v4088 = vmul.f32 %v3689, %v3968
        %v4089 = vmul.f32 %v3691, %v3968
        %v4090 = vmul.f32 %v3693, %v3969
        %v4091 = vmul.f32 %v3695, %v3969
        %v4092 = vmul.f32 %v3697, %v3970
        %v4093 = vmul.f32 %v3699, %v3970
        %v4094 = vmul.f32 %v3701, %v3971
        %v4095 = vmul.f32 %v3703, %v3971
        %v4096 = vmul.f32 %v3705, %v3972
        %v4097 = vmul.f32 %v3707, %v3972
        %v4098 = vmul.f32 %v3709, %v3973
        %v4099 = vmul.f32 %v3711, %v3973
        %v4100 = vmul.f32 %v3713, %v3974
        %v4101 = vmul.f32 %v3715, %v3974
        %v4102 = vmul.f32 %v3717, %v3975
        %v4103 = vmul.f32 %v3719, %v3975
        %v4104 = vpack.c.bf16 %v3978, %v3976
        %v4105 = vpack.c.bf16 %v3979, %v3977
        %v4106 = vpack.c.bf16 %v3982, %v3980
        %v4107 = vpack.c.bf16 %v3983, %v3981
        %v4108 = vpack.c.bf16 %v3986, %v3984
        %v4109 = vpack.c.bf16 %v3987, %v3985
        %v4110 = vpack.c.bf16 %v3990, %v3988
        %v4111 = vpack.c.bf16 %v3991, %v3989
        %v4112 = vpack.c.bf16 %v3994, %v3992
        %v4113 = vpack.c.bf16 %v3995, %v3993
        %v4114 = vpack.c.bf16 %v3998, %v3996
        %v4115 = vpack.c.bf16 %v3999, %v3997
        %v4116 = vpack.c.bf16 %v4002, %v4000
        %v4117 = vpack.c.bf16 %v4003, %v4001
        %v4118 = vpack.c.bf16 %v4006, %v4004
        %v4119 = vpack.c.bf16 %v4007, %v4005
        %v4120 = vpack.c.bf16 %v4010, %v4008
        %v4121 = vpack.c.bf16 %v4011, %v4009
        %v4122 = vpack.c.bf16 %v4014, %v4012
        %v4123 = vpack.c.bf16 %v4015, %v4013
        %v4124 = vpack.c.bf16 %v4018, %v4016
        %v4125 = vpack.c.bf16 %v4019, %v4017
        %v4126 = vpack.c.bf16 %v4022, %v4020
        %v4127 = vpack.c.bf16 %v4023, %v4021
        %v4128 = vpack.c.bf16 %v4026, %v4024
        %v4129 = vpack.c.bf16 %v4027, %v4025
        %v4130 = vpack.c.bf16 %v4030, %v4028
        %v4131 = vpack.c.bf16 %v4031, %v4029
        %v4132 = vpack.c.bf16 %v4034, %v4032
        %v4133 = vpack.c.bf16 %v4035, %v4033
        %v4134 = vpack.c.bf16 %v4038, %v4036
        %v4135 = vpack.c.bf16 %v4039, %v4037
        %v4136 = vpack.c.bf16 %v4042, %v4040
        %v4137 = vpack.c.bf16 %v4043, %v4041
        %v4138 = vpack.c.bf16 %v4046, %v4044
        %v4139 = vpack.c.bf16 %v4047, %v4045
        %v4140 = vpack.c.bf16 %v4050, %v4048
        %v4141 = vpack.c.bf16 %v4051, %v4049
        %v4142 = vpack.c.bf16 %v4054, %v4052
        %v4143 = vpack.c.bf16 %v4055, %v4053
        %v4144 = vpack.c.bf16 %v4058, %v4056
        %v4145 = vpack.c.bf16 %v4059, %v4057
        %v4146 = vpack.c.bf16 %v4062, %v4060
        %v4147 = vpack.c.bf16 %v4063, %v4061
        %v4148 = vpack.c.bf16 %v4066, %v4064
        %v4149 = vpack.c.bf16 %v4067, %v4065
        %v4150 = vpack.c.bf16 %v4070, %v4068
        %v4151 = vpack.c.bf16 %v4071, %v4069
        %v4152 = vpack.c.bf16 %v4074, %v4072
        %v4153 = vpack.c.bf16 %v4075, %v4073
        %v4154 = vpack.c.bf16 %v4078, %v4076
        %v4155 = vpack.c.bf16 %v4079, %v4077
        %v4156 = vpack.c.bf16 %v4082, %v4080
        %v4157 = vpack.c.bf16 %v4083, %v4081
        %v4158 = vpack.c.bf16 %v4086, %v4084
        %v4159 = vpack.c.bf16 %v4087, %v4085
        %v4160 = vpack.c.bf16 %v4090, %v4088
        %v4161 = vpack.c.bf16 %v4091, %v4089
        %v4162 = vpack.c.bf16 %v4094, %v4092
        %v4163 = vpack.c.bf16 %v4095, %v4093
        %v4164 = vpack.c.bf16 %v4098, %v4096
        %v4165 = vpack.c.bf16 %v4099, %v4097
        %v4166 = vpack.c.bf16 %v4102, %v4100
        %v4167 = vpack.c.bf16 %v4103, %v4101
        %v4168 = vld [vmem:[#allocation4] sm:$0xff]
        %v4169 = vld [vmem:[#allocation4 + $0x8] sm:$0xff]
        %v4170 = vld [vmem:[#allocation4 + $0x10] sm:$0xff]
        %v4171 = vld [vmem:[#allocation4 + $0x18] sm:$0xff]
        %v4172 = vld [vmem:[#allocation4 + $0x20] sm:$0xff]
        %v4173 = vld [vmem:[#allocation4 + $0x28] sm:$0xff]
        %v4174 = vld [vmem:[#allocation4 + $0x30] sm:$0xff]
        %v4175 = vld [vmem:[#allocation4 + $0x38] sm:$0xff]
        %v4176 = vld [vmem:[#allocation4 + $0x40] sm:$0xff]
        %v4177 = vld [vmem:[#allocation4 + $0x48] sm:$0xff]
        %v4178 = vld [vmem:[#allocation4 + $0x50] sm:$0xff]
        %v4179 = vld [vmem:[#allocation4 + $0x58] sm:$0xff]
        %v4180 = vld [vmem:[#allocation4 + $0x60] sm:$0xff]
        %v4181 = vld [vmem:[#allocation4 + $0x68] sm:$0xff]
        %v4182 = vld [vmem:[#allocation4 + $0x70] sm:$0xff]
        %v4183 = vld [vmem:[#allocation4 + $0x78] sm:$0xff]
        %v4184 = vld [vmem:[#allocation4 + $0x80] sm:$0xff]
        %v4185 = vld [vmem:[#allocation4 + $0x88] sm:$0xff]
        %v4186 = vld [vmem:[#allocation4 + $0x90] sm:$0xff]
        %v4187 = vld [vmem:[#allocation4 + $0x98] sm:$0xff]
        %v4188 = vld [vmem:[#allocation4 + $0xa0] sm:$0xff]
        %v4189 = vld [vmem:[#allocation4 + $0xa8] sm:$0xff]
        %v4190 = vld [vmem:[#allocation4 + $0xb0] sm:$0xff]
        %v4191 = vld [vmem:[#allocation4 + $0xb8] sm:$0xff]
        %v4192 = vld [vmem:[#allocation4 + $0xc0] sm:$0xff]
        %v4193 = vld [vmem:[#allocation4 + $0xc8] sm:$0xff]
        %v4194 = vld [vmem:[#allocation4 + $0xd0] sm:$0xff]
        %v4195 = vld [vmem:[#allocation4 + $0xd8] sm:$0xff]
        %v4196 = vld [vmem:[#allocation4 + $0xe0] sm:$0xff]
        %v4197 = vld [vmem:[#allocation4 + $0xe8] sm:$0xff]
        %v4198 = vld [vmem:[#allocation4 + $0xf0] sm:$0xff]
        %v4199 = vld [vmem:[#allocation4 + $0xf8] sm:$0xff]
        %v4200 = vld [vmem:[#allocation4 + $0x100] sm:$0xff]
        %v4201 = vld [vmem:[#allocation4 + $0x108] sm:$0xff]
        %v4202 = vld [vmem:[#allocation4 + $0x110] sm:$0xff]
        %v4203 = vld [vmem:[#allocation4 + $0x118] sm:$0xff]
        %v4204 = vld [vmem:[#allocation4 + $0x120] sm:$0xff]
        %v4205 = vld [vmem:[#allocation4 + $0x128] sm:$0xff]
        %v4206 = vld [vmem:[#allocation4 + $0x130] sm:$0xff]
        %v4207 = vld [vmem:[#allocation4 + $0x138] sm:$0xff]
        %v4208 = vld [vmem:[#allocation4 + $0x140] sm:$0xff]
        %v4209 = vld [vmem:[#allocation4 + $0x148] sm:$0xff]
        %v4210 = vld [vmem:[#allocation4 + $0x150] sm:$0xff]
        %v4211 = vld [vmem:[#allocation4 + $0x158] sm:$0xff]
        %v4212 = vld [vmem:[#allocation4 + $0x160] sm:$0xff]
        %v4213 = vld [vmem:[#allocation4 + $0x168] sm:$0xff]
        %v4214 = vld [vmem:[#allocation4 + $0x170] sm:$0xff]
        %v4215 = vld [vmem:[#allocation4 + $0x178] sm:$0xff]
        %v4216 = vld [vmem:[#allocation4 + $0x180] sm:$0xff]
        %v4217 = vld [vmem:[#allocation4 + $0x188] sm:$0xff]
        %v4218 = vld [vmem:[#allocation4 + $0x190] sm:$0xff]
        %v4219 = vld [vmem:[#allocation4 + $0x198] sm:$0xff]
        %v4220 = vld [vmem:[#allocation4 + $0x1a0] sm:$0xff]
        %v4221 = vld [vmem:[#allocation4 + $0x1a8] sm:$0xff]
        %v4222 = vld [vmem:[#allocation4 + $0x1b0] sm:$0xff]
        %v4223 = vld [vmem:[#allocation4 + $0x1b8] sm:$0xff]
        %v4224 = vld [vmem:[#allocation4 + $0x1c0] sm:$0xff]
        %v4225 = vld [vmem:[#allocation4 + $0x1c8] sm:$0xff]
        %v4226 = vld [vmem:[#allocation4 + $0x1d0] sm:$0xff]
        %v4227 = vld [vmem:[#allocation4 + $0x1d8] sm:$0xff]
        %v4228 = vld [vmem:[#allocation4 + $0x1e0] sm:$0xff]
        %v4229 = vld [vmem:[#allocation4 + $0x1e8] sm:$0xff]
        %v4230 = vld [vmem:[#allocation4 + $0x1f0] sm:$0xff]
        %v4231 = vld [vmem:[#allocation4 + $0x1f8] sm:$0xff]
        %4232 = vmatprep.subr.bf16.mxu0 0
        %4233 = vmatpush1.bf16.msra.mxu0 %v4168
        %4234 = vmatprep.subr.bf16.mxu0 0
        %4235 = vmatpush1.bf16.msra.mxu0 %v4169
        %4236 = vmatprep.subr.bf16.mxu0 0
        %4237 = vmatpush1.bf16.msra.mxu0 %v4170
        %4238 = vmatprep.subr.bf16.mxu0 0
        %4239 = vmatpush1.bf16.msra.mxu0 %v4171
        %4240 = vmatprep.subr.bf16.mxu0 0
        %4241 = vmatpush1.bf16.msra.mxu0 %v4172
        %4242 = vmatprep.subr.bf16.mxu0 0
        %4243 = vmatpush1.bf16.msra.mxu0 %v4173
        %4244 = vmatprep.subr.bf16.mxu0 0
        %4245 = vmatpush1.bf16.msra.mxu0 %v4174
        %4246 = vmatprep.subr.bf16.mxu0 0
        %4247 = vmatpush1.bf16.msra.mxu0 %v4175
        %4248 = vmatprep.subr.bf16.mxu0 0
        %4249 = vmatpush1.bf16.msra.mxu0 %v4176
        %4250 = vmatprep.subr.bf16.mxu0 0
        %4251 = vmatpush1.bf16.msra.mxu0 %v4177
        %4252 = vmatprep.subr.bf16.mxu0 0
        %4253 = vmatpush1.bf16.msra.mxu0 %v4178
        %4254 = vmatprep.subr.bf16.mxu0 0
        %4255 = vmatpush1.bf16.msra.mxu0 %v4179
        %4256 = vmatprep.subr.bf16.mxu0 0
        %4257 = vmatpush1.bf16.msra.mxu0 %v4180
        %4258 = vmatprep.subr.bf16.mxu0 0
        %4259 = vmatpush1.bf16.msra.mxu0 %v4181
        %4260 = vmatprep.subr.bf16.mxu0 0
        %4261 = vmatpush1.bf16.msra.mxu0 %v4182
        %4262 = vmatprep.subr.bf16.mxu0 0
        %4263 = vmatpush1.bf16.msra.mxu0 %v4183
        %4264 = vmatprep.mubr.bf16.mxu0 %v4105
        %4265 = vmatmul.mubr.bf16.gmra.mrb[0].mxu0 %v4104
        %v4266 = vpop.f32.mrb[0].mxu0
        %v4267 = vadd.f32 0.0, %v4266
        %v4268 = vpop.f32.mrb[0].mxu0
        %v4269 = vpop.f32.mrb[0].mxu0
        %v4270 = vadd.f32 0.0, %v4269
        %v4271 = vpop.f32.mrb[0].mxu0
        %4272 = vmatprep.mubr.bf16.mxu0 %v4107
        %4273 = vmatmul.mubr.bf16.gmra.mrb[0].mxu0 %v4106
        %v4274 = vpop.f32.mrb[0].mxu0
        %v4275 = vadd.f32 0.0, %v4274
        %v4276 = vpop.f32.mrb[0].mxu0
        %v4277 = vpop.f32.mrb[0].mxu0
        %v4278 = vadd.f32 0.0, %v4277
        %v4279 = vpop.f32.mrb[0].mxu0
        %4280 = vmatprep.mubr.bf16.mxu0 %v4109
        %4281 = vmatmul.mubr.bf16.gmra.mrb[0].mxu0 %v4108
        %v4282 = vpop.f32.mrb[0].mxu0
        %v4283 = vadd.f32 0.0, %v4282
        %v4284 = vpop.f32.mrb[0].mxu0
        %v4285 = vpop.f32.mrb[0].mxu0
        %v4286 = vadd.f32 0.0, %v4285
        %v4287 = vpop.f32.mrb[0].mxu0
        %4288 = vmatprep.mubr.bf16.mxu0 %v4111
        %4289 = vmatmul.mubr.bf16.gmra.mrb[0].mxu0 %v4110
        %v4290 = vpop.f32.mrb[0].mxu0
        %v4291 = vadd.f32 0.0, %v4290
        %v4292 = vpop.f32.mrb[0].mxu0
        %v4293 = vpop.f32.mrb[0].mxu0
        %v4294 = vadd.f32 0.0, %v4293
        %v4295 = vpop.f32.mrb[0].mxu0
        %4296 = vmatprep.mubr.bf16.mxu0 %v4113
        %4297 = vmatmul.mubr.bf16.gmra.mrb[0].mxu0 %v4112
        %v4298 = vpop.f32.mrb[0].mxu0
        %v4299 = vadd.f32 0.0, %v4298
        %v4300 = vpop.f32.mrb[0].mxu0
        %v4301 = vpop.f32.mrb[0].mxu0
        %v4302 = vadd.f32 0.0, %v4301
        %v4303 = vpop.f32.mrb[0].mxu0
        %4304 = vmatprep.mubr.bf16.mxu0 %v4115
        %4305 = vmatmul.mubr.bf16.gmra.mrb[0].mxu0 %v4114
        %v4306 = vpop.f32.mrb[0].mxu0
        %v4307 = vadd.f32 0.0, %v4306
        %v4308 = vpop.f32.mrb[0].mxu0
        %v4309 = vpop.f32.mrb[0].mxu0
        %v4310 = vadd.f32 0.0, %v4309
        %v4311 = vpop.f32.mrb[0].mxu0
        %4312 = vmatprep.mubr.bf16.mxu0 %v4117
        %4313 = vmatmul.mubr.bf16.gmra.mrb[0].mxu0 %v4116
        %v4314 = vpop.f32.mrb[0].mxu0
        %v4315 = vadd.f32 0.0, %v4314
        %v4316 = vpop.f32.mrb[0].mxu0
        %v4317 = vpop.f32.mrb[0].mxu0
        %v4318 = vadd.f32 0.0, %v4317
        %v4319 = vpop.f32.mrb[0].mxu0
        %4320 = vmatprep.mubr.bf16.mxu0 %v4119
        %4321 = vmatmul.mubr.bf16.gmra.mrb[0].mxu0 %v4118
        %v4322 = vpop.f32.mrb[0].mxu0
        %v4323 = vadd.f32 0.0, %v4322
        %v4324 = vpop.f32.mrb[0].mxu0
        %v4325 = vpop.f32.mrb[0].mxu0
        %v4326 = vadd.f32 0.0, %v4325
        %v4327 = vpop.f32.mrb[0].mxu0
        %4328 = vdwg.mxu0
        %4329 = vmatprep.subr.bf16.mxu0 0
        %4330 = vmatpush1.bf16.msra.mxu0 %v4184
        %4331 = vmatprep.subr.bf16.mxu0 0
        %4332 = vmatpush1.bf16.msra.mxu0 %v4185
        %4333 = vmatprep.subr.bf16.mxu0 0
        %4334 = vmatpush1.bf16.msra.mxu0 %v4186
        %4335 = vmatprep.subr.bf16.mxu0 0
        %4336 = vmatpush1.bf16.msra.mxu0 %v4187
        %4337 = vmatprep.subr.bf16.mxu0 0
        %4338 = vmatpush1.bf16.msra.mxu0 %v4188
        %4339 = vmatprep.subr.bf16.mxu0 0
        %4340 = vmatpush1.bf16.msra.mxu0 %v4189
        %4341 = vmatprep.subr.bf16.mxu0 0
        %4342 = vmatpush1.bf16.msra.mxu0 %v4190
        %4343 = vmatprep.subr.bf16.mxu0 0
        %4344 = vmatpush1.bf16.msra.mxu0 %v4191
        %4345 = vmatprep.subr.bf16.mxu0 0
        %4346 = vmatpush1.bf16.msra.mxu0 %v4192
        %4347 = vmatprep.subr.bf16.mxu0 0
        %4348 = vmatpush1.bf16.msra.mxu0 %v4193
        %4349 = vmatprep.subr.bf16.mxu0 0
        %4350 = vmatpush1.bf16.msra.mxu0 %v4194
        %4351 = vmatprep.subr.bf16.mxu0 0
        %4352 = vmatpush1.bf16.msra.mxu0 %v4195
        %4353 = vmatprep.subr.bf16.mxu0 0
        %4354 = vmatpush1.bf16.msra.mxu0 %v4196
        %4355 = vmatprep.subr.bf16.mxu0 0
        %4356 = vmatpush1.bf16.msra.mxu0 %v4197
        %4357 = vmatprep.subr.bf16.mxu0 0
        %4358 = vmatpush1.bf16.msra.mxu0 %v4198
        %4359 = vmatprep.subr.bf16.mxu0 0
        %4360 = vmatpush1.bf16.msra.mxu0 %v4199
        %4361 = vmatprep.mubr.bf16.mxu0 %v4121
        %4362 = vmatmul.mubr.bf16.gmra.mrb[0].mxu0 %v4120
        %v4363 = vpop.f32.mrb[0].mxu0
        %v4364 = vadd.f32 0.0, %v4363
        %v4365 = vpop.f32.mrb[0].mxu0
        %v4366 = vpop.f32.mrb[0].mxu0
        %v4367 = vadd.f32 0.0, %v4366
        %v4368 = vpop.f32.mrb[0].mxu0
        %4369 = vmatprep.mubr.bf16.mxu0 %v4123
        %4370 = vmatmul.mubr.bf16.gmra.mrb[0].mxu0 %v4122
        %v4371 = vpop.f32.mrb[0].mxu0
        %v4372 = vadd.f32 0.0, %v4371
        %v4373 = vpop.f32.mrb[0].mxu0
        %v4374 = vpop.f32.mrb[0].mxu0
        %v4375 = vadd.f32 0.0, %v4374
        %v4376 = vpop.f32.mrb[0].mxu0
        %4377 = vmatprep.mubr.bf16.mxu0 %v4125
        %4378 = vmatmul.mubr.bf16.gmra.mrb[0].mxu0 %v4124
        %v4379 = vpop.f32.mrb[0].mxu0
        %v4380 = vadd.f32 0.0, %v4379
        %v4381 = vpop.f32.mrb[0].mxu0
        %v4382 = vpop.f32.mrb[0].mxu0
        %v4383 = vadd.f32 0.0, %v4382
        %v4384 = vpop.f32.mrb[0].mxu0
        %4385 = vmatprep.mubr.bf16.mxu0 %v4127
        %4386 = vmatmul.mubr.bf16.gmra.mrb[0].mxu0 %v4126
        %v4387 = vpop.f32.mrb[0].mxu0
        %v4388 = vadd.f32 0.0, %v4387
        %v4389 = vpop.f32.mrb[0].mxu0
        %v4390 = vpop.f32.mrb[0].mxu0
        %v4391 = vadd.f32 0.0, %v4390
        %v4392 = vpop.f32.mrb[0].mxu0
        %4393 = vmatprep.mubr.bf16.mxu0 %v4129
        %4394 = vmatmul.mubr.bf16.gmra.mrb[0].mxu0 %v4128
        %v4395 = vpop.f32.mrb[0].mxu0
        %v4396 = vadd.f32 0.0, %v4395
        %v4397 = vpop.f32.mrb[0].mxu0
        %v4398 = vpop.f32.mrb[0].mxu0
        %v4399 = vadd.f32 0.0, %v4398
        %v4400 = vpop.f32.mrb[0].mxu0
        %4401 = vmatprep.mubr.bf16.mxu0 %v4131
        %4402 = vmatmul.mubr.bf16.gmra.mrb[0].mxu0 %v4130
        %v4403 = vpop.f32.mrb[0].mxu0
        %v4404 = vadd.f32 0.0, %v4403
        %v4405 = vpop.f32.mrb[0].mxu0
        %v4406 = vpop.f32.mrb[0].mxu0
        %v4407 = vadd.f32 0.0, %v4406
        %v4408 = vpop.f32.mrb[0].mxu0
        %4409 = vmatprep.mubr.bf16.mxu0 %v4133
        %4410 = vmatmul.mubr.bf16.gmra.mrb[0].mxu0 %v4132
        %v4411 = vpop.f32.mrb[0].mxu0
        %v4412 = vadd.f32 0.0, %v4411
        %v4413 = vpop.f32.mrb[0].mxu0
        %v4414 = vpop.f32.mrb[0].mxu0
        %v4415 = vadd.f32 0.0, %v4414
        %v4416 = vpop.f32.mrb[0].mxu0
        %4417 = vmatprep.mubr.bf16.mxu0 %v4135
        %4418 = vmatmul.mubr.bf16.gmra.mrb[0].mxu0 %v4134
        %v4419 = vpop.f32.mrb[0].mxu0
        %v4420 = vadd.f32 0.0, %v4419
        %v4421 = vpop.f32.mrb[0].mxu0
        %v4422 = vpop.f32.mrb[0].mxu0
        %v4423 = vadd.f32 0.0, %v4422
        %v4424 = vpop.f32.mrb[0].mxu0
        %4425 = vdwg.mxu0
        %4426 = vmatprep.subr.bf16.mxu0 0
        %4427 = vmatpush1.bf16.msra.mxu0 %v4200
        %4428 = vmatprep.subr.bf16.mxu0 0
        %4429 = vmatpush1.bf16.msra.mxu0 %v4201
        %4430 = vmatprep.subr.bf16.mxu0 0
        %4431 = vmatpush1.bf16.msra.mxu0 %v4202
        %4432 = vmatprep.subr.bf16.mxu0 0
        %4433 = vmatpush1.bf16.msra.mxu0 %v4203
        %4434 = vmatprep.subr.bf16.mxu0 0
        %4435 = vmatpush1.bf16.msra.mxu0 %v4204
        %4436 = vmatprep.subr.bf16.mxu0 0
        %4437 = vmatpush1.bf16.msra.mxu0 %v4205
        %4438 = vmatprep.subr.bf16.mxu0 0
        %4439 = vmatpush1.bf16.msra.mxu0 %v4206
        %4440 = vmatprep.subr.bf16.mxu0 0
        %4441 = vmatpush1.bf16.msra.mxu0 %v4207
        %4442 = vmatprep.subr.bf16.mxu0 0
        %4443 = vmatpush1.bf16.msra.mxu0 %v4208
        %4444 = vmatprep.subr.bf16.mxu0 0
        %4445 = vmatpush1.bf16.msra.mxu0 %v4209
        %4446 = vmatprep.subr.bf16.mxu0 0
        %4447 = vmatpush1.bf16.msra.mxu0 %v4210
        %4448 = vmatprep.subr.bf16.mxu0 0
        %4449 = vmatpush1.bf16.msra.mxu0 %v4211
        %4450 = vmatprep.subr.bf16.mxu0 0
        %4451 = vmatpush1.bf16.msra.mxu0 %v4212
        %4452 = vmatprep.subr.bf16.mxu0 0
        %4453 = vmatpush1.bf16.msra.mxu0 %v4213
        %4454 = vmatprep.subr.bf16.mxu0 0
        %4455 = vmatpush1.bf16.msra.mxu0 %v4214
        %4456 = vmatprep.subr.bf16.mxu0 0
        %4457 = vmatpush1.bf16.msra.mxu0 %v4215
        %4458 = vmatprep.mubr.bf16.mxu0 %v4137
        %4459 = vmatmul.mubr.bf16.gmra.mrb[0].mxu0 %v4136
        %v4460 = vpop.f32.mrb[0].mxu0
        %v4461 = vadd.f32 0.0, %v4460
        %v4462 = vpop.f32.mrb[0].mxu0
        %v4463 = vpop.f32.mrb[0].mxu0
        %v4464 = vadd.f32 0.0, %v4463
        %v4465 = vpop.f32.mrb[0].mxu0
        %4466 = vmatprep.mubr.bf16.mxu0 %v4139
        %4467 = vmatmul.mubr.bf16.gmra.mrb[0].mxu0 %v4138
        %v4468 = vpop.f32.mrb[0].mxu0
        %v4469 = vadd.f32 0.0, %v4468
        %v4470 = vpop.f32.mrb[0].mxu0
        %v4471 = vpop.f32.mrb[0].mxu0
        %v4472 = vadd.f32 0.0, %v4471
        %v4473 = vpop.f32.mrb[0].mxu0
        %4474 = vmatprep.mubr.bf16.mxu0 %v4141
        %4475 = vmatmul.mubr.bf16.gmra.mrb[0].mxu0 %v4140
        %v4476 = vpop.f32.mrb[0].mxu0
        %v4477 = vadd.f32 0.0, %v4476
        %v4478 = vpop.f32.mrb[0].mxu0
        %v4479 = vpop.f32.mrb[0].mxu0
        %v4480 = vadd.f32 0.0, %v4479
        %v4481 = vpop.f32.mrb[0].mxu0
        %4482 = vmatprep.mubr.bf16.mxu0 %v4143
        %4483 = vmatmul.mubr.bf16.gmra.mrb[0].mxu0 %v4142
        %v4484 = vpop.f32.mrb[0].mxu0
        %v4485 = vadd.f32 0.0, %v4484
        %v4486 = vpop.f32.mrb[0].mxu0
        %v4487 = vpop.f32.mrb[0].mxu0
        %v4488 = vadd.f32 0.0, %v4487
        %v4489 = vpop.f32.mrb[0].mxu0
        %4490 = vmatprep.mubr.bf16.mxu0 %v4145
        %4491 = vmatmul.mubr.bf16.gmra.mrb[0].mxu0 %v4144
        %v4492 = vpop.f32.mrb[0].mxu0
        %v4493 = vadd.f32 0.0, %v4492
        %v4494 = vpop.f32.mrb[0].mxu0
        %v4495 = vpop.f32.mrb[0].mxu0
        %v4496 = vadd.f32 0.0, %v4495
        %v4497 = vpop.f32.mrb[0].mxu0
        %4498 = vmatprep.mubr.bf16.mxu0 %v4147
        %4499 = vmatmul.mubr.bf16.gmra.mrb[0].mxu0 %v4146
        %v4500 = vpop.f32.mrb[0].mxu0
        %v4501 = vadd.f32 0.0, %v4500
        %v4502 = vpop.f32.mrb[0].mxu0
        %v4503 = vpop.f32.mrb[0].mxu0
        %v4504 = vadd.f32 0.0, %v4503
        %v4505 = vpop.f32.mrb[0].mxu0
        %4506 = vmatprep.mubr.bf16.mxu0 %v4149
        %4507 = vmatmul.mubr.bf16.gmra.mrb[0].mxu0 %v4148
        %v4508 = vpop.f32.mrb[0].mxu0
        %v4509 = vadd.f32 0.0, %v4508
        %v4510 = vpop.f32.mrb[0].mxu0
        %v4511 = vpop.f32.mrb[0].mxu0
        %v4512 = vadd.f32 0.0, %v4511
        %v4513 = vpop.f32.mrb[0].mxu0
        %4514 = vmatprep.mubr.bf16.mxu0 %v4151
        %4515 = vmatmul.mubr.bf16.gmra.mrb[0].mxu0 %v4150
        %v4516 = vpop.f32.mrb[0].mxu0
        %v4517 = vadd.f32 0.0, %v4516
        %v4518 = vpop.f32.mrb[0].mxu0
        %v4519 = vpop.f32.mrb[0].mxu0
        %v4520 = vadd.f32 0.0, %v4519
        %v4521 = vpop.f32.mrb[0].mxu0
        %4522 = vdwg.mxu0
        %4523 = vmatprep.subr.bf16.mxu0 0
        %4524 = vmatpush1.bf16.msra.mxu0 %v4216
        %4525 = vmatprep.subr.bf16.mxu0 0
        %4526 = vmatpush1.bf16.msra.mxu0 %v4217
        %4527 = vmatprep.subr.bf16.mxu0 0
        %4528 = vmatpush1.bf16.msra.mxu0 %v4218
        %4529 = vmatprep.subr.bf16.mxu0 0
        %4530 = vmatpush1.bf16.msra.mxu0 %v4219
        %4531 = vmatprep.subr.bf16.mxu0 0
        %4532 = vmatpush1.bf16.msra.mxu0 %v4220
        %4533 = vmatprep.subr.bf16.mxu0 0
        %4534 = vmatpush1.bf16.msra.mxu0 %v4221
        %4535 = vmatprep.subr.bf16.mxu0 0
        %4536 = vmatpush1.bf16.msra.mxu0 %v4222
        %4537 = vmatprep.subr.bf16.mxu0 0
        %4538 = vmatpush1.bf16.msra.mxu0 %v4223
        %4539 = vmatprep.subr.bf16.mxu0 0
        %4540 = vmatpush1.bf16.msra.mxu0 %v4224
        %4541 = vmatprep.subr.bf16.mxu0 0
        %4542 = vmatpush1.bf16.msra.mxu0 %v4225
        %4543 = vmatprep.subr.bf16.mxu0 0
        %4544 = vmatpush1.bf16.msra.mxu0 %v4226
        %4545 = vmatprep.subr.bf16.mxu0 0
        %4546 = vmatpush1.bf16.msra.mxu0 %v4227
        %4547 = vmatprep.subr.bf16.mxu0 0
        %4548 = vmatpush1.bf16.msra.mxu0 %v4228
        %4549 = vmatprep.subr.bf16.mxu0 0
        %4550 = vmatpush1.bf16.msra.mxu0 %v4229
        %4551 = vmatprep.subr.bf16.mxu0 0
        %4552 = vmatpush1.bf16.msra.mxu0 %v4230
        %4553 = vmatprep.subr.bf16.mxu0 0
        %4554 = vmatpush1.bf16.msra.mxu0 %v4231
        %4555 = vmatprep.mubr.bf16.mxu0 %v4153
        %4556 = vmatmul.mubr.bf16.gmra.mrb[0].mxu0 %v4152
        %v4557 = vpop.f32.mrb[0].mxu0
        %v4558 = vadd.f32 0.0, %v4557
        %v4559 = vpop.f32.mrb[0].mxu0
        %v4560 = vpop.f32.mrb[0].mxu0
        %v4561 = vadd.f32 0.0, %v4560
        %v4562 = vpop.f32.mrb[0].mxu0
        %4563 = vmatprep.mubr.bf16.mxu0 %v4155
        %4564 = vmatmul.mubr.bf16.gmra.mrb[0].mxu0 %v4154
        %v4565 = vpop.f32.mrb[0].mxu0
        %v4566 = vadd.f32 0.0, %v4565
        %v4567 = vpop.f32.mrb[0].mxu0
        %v4568 = vpop.f32.mrb[0].mxu0
        %v4569 = vadd.f32 0.0, %v4568
        %v4570 = vpop.f32.mrb[0].mxu0
        %4571 = vmatprep.mubr.bf16.mxu0 %v4157
        %4572 = vmatmul.mubr.bf16.gmra.mrb[0].mxu0 %v4156
        %v4573 = vpop.f32.mrb[0].mxu0
        %v4574 = vadd.f32 0.0, %v4573
        %v4575 = vpop.f32.mrb[0].mxu0
        %v4576 = vpop.f32.mrb[0].mxu0
        %v4577 = vadd.f32 0.0, %v4576
        %v4578 = vpop.f32.mrb[0].mxu0
        %4579 = vmatprep.mubr.bf16.mxu0 %v4159
        %4580 = vmatmul.mubr.bf16.gmra.mrb[0].mxu0 %v4158
        %v4581 = vpop.f32.mrb[0].mxu0
        %v4582 = vadd.f32 0.0, %v4581
        %v4583 = vpop.f32.mrb[0].mxu0
        %v4584 = vpop.f32.mrb[0].mxu0
        %v4585 = vadd.f32 0.0, %v4584
        %v4586 = vpop.f32.mrb[0].mxu0
        %4587 = vmatprep.mubr.bf16.mxu0 %v4161
        %4588 = vmatmul.mubr.bf16.gmra.mrb[0].mxu0 %v4160
        %v4589 = vpop.f32.mrb[0].mxu0
        %v4590 = vadd.f32 0.0, %v4589
        %v4591 = vpop.f32.mrb[0].mxu0
        %v4592 = vpop.f32.mrb[0].mxu0
        %v4593 = vadd.f32 0.0, %v4592
        %v4594 = vpop.f32.mrb[0].mxu0
        %4595 = vmatprep.mubr.bf16.mxu0 %v4163
        %4596 = vmatmul.mubr.bf16.gmra.mrb[0].mxu0 %v4162
        %v4597 = vpop.f32.mrb[0].mxu0
        %v4598 = vadd.f32 0.0, %v4597
        %v4599 = vpop.f32.mrb[0].mxu0
        %v4600 = vpop.f32.mrb[0].mxu0
        %v4601 = vadd.f32 0.0, %v4600
        %v4602 = vpop.f32.mrb[0].mxu0
        %4603 = vmatprep.mubr.bf16.mxu0 %v4165
        %4604 = vmatmul.mubr.bf16.gmra.mrb[0].mxu0 %v4164
        %v4605 = vpop.f32.mrb[0].mxu0
        %v4606 = vadd.f32 0.0, %v4605
        %v4607 = vpop.f32.mrb[0].mxu0
        %v4608 = vpop.f32.mrb[0].mxu0
        %v4609 = vadd.f32 0.0, %v4608
        %v4610 = vpop.f32.mrb[0].mxu0
        %4611 = vmatprep.mubr.bf16.mxu0 %v4167
        %4612 = vmatmul.mubr.bf16.gmra.mrb[0].mxu0 %v4166
        %v4613 = vpop.f32.mrb[0].mxu0
        %v4614 = vadd.f32 0.0, %v4613
        %v4615 = vpop.f32.mrb[0].mxu0
        %v4616 = vpop.f32.mrb[0].mxu0
        %v4617 = vadd.f32 0.0, %v4616
        %v4618 = vpop.f32.mrb[0].mxu0
        %4619 = vdwg.mxu0
        %4636 = vrot.lane.b32.xlu0 %v4364, 32
        %v4637 = vpop.permute.xlu0 %4636
        %4638 = vrot.lane.b32.xlu0 %v4367, 32
        %v4639 = vpop.permute.xlu0 %4638
        %4640 = vrot.lane.b32.xlu0 %v4372, 32
        %v4641 = vpop.permute.xlu0 %4640
        %4642 = vrot.lane.b32.xlu0 %v4375, 32
        %v4643 = vpop.permute.xlu0 %4642
        %4644 = vrot.lane.b32.xlu0 %v4380, 32
        %v4645 = vpop.permute.xlu0 %4644
        %4646 = vrot.lane.b32.xlu0 %v4383, 32
        %v4647 = vpop.permute.xlu0 %4646
        %4648 = vrot.lane.b32.xlu0 %v4388, 32
        %v4649 = vpop.permute.xlu0 %4648
        %4650 = vrot.lane.b32.xlu0 %v4391, 32
        %v4651 = vpop.permute.xlu0 %4650
        %4652 = vrot.lane.b32.xlu0 %v4396, 32
        %v4653 = vpop.permute.xlu0 %4652
        %4654 = vrot.lane.b32.xlu0 %v4399, 32
        %v4655 = vpop.permute.xlu0 %4654
        %4656 = vrot.lane.b32.xlu0 %v4404, 32
        %v4657 = vpop.permute.xlu0 %4656
        %4658 = vrot.lane.b32.xlu0 %v4407, 32
        %v4659 = vpop.permute.xlu0 %4658
        %4660 = vrot.lane.b32.xlu0 %v4412, 32
        %v4661 = vpop.permute.xlu0 %4660
        %4662 = vrot.lane.b32.xlu0 %v4415, 32
        %v4663 = vpop.permute.xlu0 %4662
        %4664 = vrot.lane.b32.xlu0 %v4420, 32
        %v4665 = vpop.permute.xlu0 %4664
        %4666 = vrot.lane.b32.xlu0 %v4423, 32
        %v4667 = vpop.permute.xlu0 %4666
        %4700 = vrot.lane.b32.xlu0 %v4461, 64
        %v4701 = vpop.permute.xlu0 %4700
        %4702 = vrot.lane.b32.xlu0 %v4464, 64
        %v4703 = vpop.permute.xlu0 %4702
        %4704 = vrot.lane.b32.xlu0 %v4469, 64
        %v4705 = vpop.permute.xlu0 %4704
        %4706 = vrot.lane.b32.xlu0 %v4472, 64
        %v4707 = vpop.permute.xlu0 %4706
        %4708 = vrot.lane.b32.xlu0 %v4477, 64
        %v4709 = vpop.permute.xlu0 %4708
        %4710 = vrot.lane.b32.xlu0 %v4480, 64
        %v4711 = vpop.permute.xlu0 %4710
        %4712 = vrot.lane.b32.xlu0 %v4485, 64
        %v4713 = vpop.permute.xlu0 %4712
        %4714 = vrot.lane.b32.xlu0 %v4488, 64
        %v4715 = vpop.permute.xlu0 %4714
        %4716 = vrot.lane.b32.xlu0 %v4493, 64
        %v4717 = vpop.permute.xlu0 %4716
        %4718 = vrot.lane.b32.xlu0 %v4496, 64
        %v4719 = vpop.permute.xlu0 %4718
        %4720 = vrot.lane.b32.xlu0 %v4501, 64
        %v4721 = vpop.permute.xlu0 %4720
        %4722 = vrot.lane.b32.xlu0 %v4504, 64
        %v4723 = vpop.permute.xlu0 %4722
        %4724 = vrot.lane.b32.xlu0 %v4509, 64
        %v4725 = vpop.permute.xlu0 %4724
        %4726 = vrot.lane.b32.xlu0 %v4512, 64
        %v4727 = vpop.permute.xlu0 %4726
        %4728 = vrot.lane.b32.xlu0 %v4517, 64
        %v4729 = vpop.permute.xlu0 %4728
        %4730 = vrot.lane.b32.xlu0 %v4520, 64
        %v4731 = vpop.permute.xlu0 %4730
        %4764 = vrot.lane.b32.xlu0 %v4558, 96
        %v4765 = vpop.permute.xlu0 %4764
        %4766 = vrot.lane.b32.xlu0 %v4561, 96
        %v4767 = vpop.permute.xlu0 %4766
        %4768 = vrot.lane.b32.xlu0 %v4566, 96
        %v4769 = vpop.permute.xlu0 %4768
        %4770 = vrot.lane.b32.xlu0 %v4569, 96
        %v4771 = vpop.permute.xlu0 %4770
        %4772 = vrot.lane.b32.xlu0 %v4574, 96
        %v4773 = vpop.permute.xlu0 %4772
        %4774 = vrot.lane.b32.xlu0 %v4577, 96
        %v4775 = vpop.permute.xlu0 %4774
        %4776 = vrot.lane.b32.xlu0 %v4582, 96
        %v4777 = vpop.permute.xlu0 %4776
        %4778 = vrot.lane.b32.xlu0 %v4585, 96
        %v4779 = vpop.permute.xlu0 %4778
        %4780 = vrot.lane.b32.xlu0 %v4590, 96
        %v4781 = vpop.permute.xlu0 %4780
        %4782 = vrot.lane.b32.xlu0 %v4593, 96
        %v4783 = vpop.permute.xlu0 %4782
        %4784 = vrot.lane.b32.xlu0 %v4598, 96
        %v4785 = vpop.permute.xlu0 %4784
        %4786 = vrot.lane.b32.xlu0 %v4601, 96
        %v4787 = vpop.permute.xlu0 %4786
        %4788 = vrot.lane.b32.xlu0 %v4606, 96
        %v4789 = vpop.permute.xlu0 %4788
        %4790 = vrot.lane.b32.xlu0 %v4609, 96
        %v4791 = vpop.permute.xlu0 %4790
        %4792 = vrot.lane.b32.xlu0 %v4614, 96
        %v4793 = vpop.permute.xlu0 %4792
        %4794 = vrot.lane.b32.xlu0 %v4617, 96
        %v4795 = vpop.permute.xlu0 %4794
        %v4812 = vsel %vm2403, %v4267, %v4637
        %v4813 = vsel %vm2403, %v4270, %v4639
        %v4814 = vsel %vm2403, %v4275, %v4641
        %v4815 = vsel %vm2403, %v4278, %v4643
        %v4816 = vsel %vm2403, %v4283, %v4645
        %v4817 = vsel %vm2403, %v4286, %v4647
        %v4818 = vsel %vm2403, %v4291, %v4649
        %v4819 = vsel %vm2403, %v4294, %v4651
        %v4820 = vsel %vm2403, %v4299, %v4653
        %v4821 = vsel %vm2403, %v4302, %v4655
        %v4822 = vsel %vm2403, %v4307, %v4657
        %v4823 = vsel %vm2403, %v4310, %v4659
        %v4824 = vsel %vm2403, %v4315, %v4661
        %v4825 = vsel %vm2403, %v4318, %v4663
        %v4826 = vsel %vm2403, %v4323, %v4665
        %v4827 = vsel %vm2403, %v4326, %v4667
        %vm4828 = vcmask 523264
        %v4829 = vsel %vm4828, %v4812, %v4701
        %v4830 = vsel %vm4828, %v4813, %v4703
        %v4831 = vsel %vm4828, %v4814, %v4705
        %v4832 = vsel %vm4828, %v4815, %v4707
        %v4833 = vsel %vm4828, %v4816, %v4709
        %v4834 = vsel %vm4828, %v4817, %v4711
        %v4835 = vsel %vm4828, %v4818, %v4713
        %v4836 = vsel %vm4828, %v4819, %v4715
        %v4837 = vsel %vm4828, %v4820, %v4717
        %v4838 = vsel %vm4828, %v4821, %v4719
        %v4839 = vsel %vm4828, %v4822, %v4721
        %v4840 = vsel %vm4828, %v4823, %v4723
        %v4841 = vsel %vm4828, %v4824, %v4725
        %v4842 = vsel %vm4828, %v4825, %v4727
        %v4843 = vsel %vm4828, %v4826, %v4729
        %v4844 = vsel %vm4828, %v4827, %v4731
        %vm4845 = vcmask 785408
        %v4846 = vsel %vm4845, %v4829, %v4765
        %v4847 = vsel %vm4845, %v4830, %v4767
        %v4848 = vsel %vm4845, %v4831, %v4769
        %v4849 = vsel %vm4845, %v4832, %v4771
        %v4850 = vsel %vm4845, %v4833, %v4773
        %v4851 = vsel %vm4845, %v4834, %v4775
        %v4852 = vsel %vm4845, %v4835, %v4777
        %v4853 = vsel %vm4845, %v4836, %v4779
        %v4854 = vsel %vm4845, %v4837, %v4781
        %v4855 = vsel %vm4845, %v4838, %v4783
        %v4856 = vsel %vm4845, %v4839, %v4785
        %v4857 = vsel %vm4845, %v4840, %v4787
        %v4858 = vsel %vm4845, %v4841, %v4789
        %v4859 = vsel %vm4845, %v4842, %v4791
        %v4860 = vsel %vm4845, %v4843, %v4793
        %v4861 = vsel %vm4845, %v4844, %v4795
        %v4862 = vpack.c.bf16 %v4847, %v4846
        %v4863 = vpack.c.bf16 %v4849, %v4848
        %v4864 = vpack.c.bf16 %v4851, %v4850
        %v4865 = vpack.c.bf16 %v4853, %v4852
        %v4866 = vpack.c.bf16 %v4855, %v4854
        %v4867 = vpack.c.bf16 %v4857, %v4856
        %v4868 = vpack.c.bf16 %v4859, %v4858
        %v4869 = vpack.c.bf16 %v4861, %v4860
        %v4870 = vld [vmem:[#allocation16] sm:$0xf]
        %v4871 = vld [vmem:[#allocation16 + $0x4] sm:$0xf]
        %v4872 = vld [vmem:[#allocation16 + $0x8] sm:$0xf]
        %v4873 = vld [vmem:[#allocation16 + $0xc] sm:$0xf]
        %v4874 = vld [vmem:[#allocation16 + $0x10] sm:$0xf]
        %v4875 = vld [vmem:[#allocation16 + $0x14] sm:$0xf]
        %v4876 = vld [vmem:[#allocation16 + $0x18] sm:$0xf]
        %v4877 = vld [vmem:[#allocation16 + $0x1c] sm:$0xf]
        %v4878 = vld [vmem:[#allocation16 + $0x20] sm:$0xf]
        %v4879 = vld [vmem:[#allocation16 + $0x24] sm:$0xf]
        %v4880 = vld [vmem:[#allocation16 + $0x28] sm:$0xf]
        %v4881 = vld [vmem:[#allocation16 + $0x2c] sm:$0xf]
        %v4882 = vld [vmem:[#allocation16 + $0x30] sm:$0xf]
        %v4883 = vld [vmem:[#allocation16 + $0x34] sm:$0xf]
        %v4884 = vld [vmem:[#allocation16 + $0x38] sm:$0xf]
        %v4885 = vld [vmem:[#allocation16 + $0x3c] sm:$0xf]
        %v4886 = vld [vmem:[#allocation17] sm:$0x1]
        %v4888 = vlaneseq
        %v4889 = vshrl.u32 %v4888, 7
        %v4890 = vsub.s32 0, %v4889
        %v4891 = vrot.slane %v4886, %v4890
        %v4909 = vunpack.c.l.b16 %v4870
        %v4910 = vunpack.c.l.b16 %v4871
        %v4911 = vunpack.c.l.b16 %v4872
        %v4912 = vunpack.c.l.b16 %v4873
        %v4913 = vunpack.c.l.b16 %v4874
        %v4914 = vunpack.c.l.b16 %v4875
        %v4915 = vunpack.c.l.b16 %v4876
        %v4916 = vunpack.c.l.b16 %v4877
        %v4917 = vunpack.c.l.b16 %v4878
        %v4918 = vunpack.c.l.b16 %v4879
        %v4919 = vunpack.c.l.b16 %v4880
        %v4920 = vunpack.c.l.b16 %v4881
        %v4921 = vunpack.c.l.b16 %v4882
        %v4922 = vunpack.c.l.b16 %v4883
        %v4923 = vunpack.c.l.b16 %v4884
        %v4924 = vunpack.c.l.b16 %v4885
        %v4925 = vpack.c.b16 %v4910, %v4909
        %v4926 = vpack.c.b16 %v4912, %v4911
        %v4927 = vpack.c.b16 %v4914, %v4913
        %v4928 = vpack.c.b16 %v4916, %v4915
        %v4929 = vpack.c.b16 %v4918, %v4917
        %v4930 = vpack.c.b16 %v4920, %v4919
        %v4931 = vpack.c.b16 %v4922, %v4921
        %v4932 = vpack.c.b16 %v4924, %v4923
        %4941 = vmatprep.subr.bf16.mxu0 0
        %4942 = vmatpush1.bf16.msra.mxu0 %v4925
        %4943 = vmatprep.subr.bf16.mxu0 0
        %4944 = vmatpush1.bf16.msra.mxu0 %v4926
        %4945 = vmatprep.subr.bf16.mxu0 0
        %4946 = vmatpush1.bf16.msra.mxu0 %v4927
        %4947 = vmatprep.subr.bf16.mxu0 0
        %4948 = vmatpush1.bf16.msra.mxu0 %v4928
        %4949 = vmatprep.subr.bf16.mxu0 0
        %4950 = vmatpush1.bf16.msra.mxu0 %v4929
        %4951 = vmatprep.subr.bf16.mxu0 0
        %4952 = vmatpush1.bf16.msra.mxu0 %v4930
        %4953 = vmatprep.subr.bf16.mxu0 0
        %4954 = vmatpush1.bf16.msra.mxu0 %v4931
        %4955 = vmatprep.subr.bf16.mxu0 0
        %4956 = vmatpush1.bf16.msra.mxu0 %v4932
        %4957 = vmatprep.subr.bf16.mxu0 0
        %4958 = vmatpush1.bf16.msra.mxu0 0
        %4959 = vmatprep.subr.bf16.mxu0 0
        %4960 = vmatpush1.bf16.msra.mxu0 0
        %4961 = vmatprep.subr.bf16.mxu0 0
        %4962 = vmatpush1.bf16.msra.mxu0 0
        %4963 = vmatprep.subr.bf16.mxu0 0
        %4964 = vmatpush1.bf16.msra.mxu0 0
        %4965 = vmatprep.subr.bf16.mxu0 0
        %4966 = vmatpush1.bf16.msra.mxu0 0
        %4967 = vmatprep.subr.bf16.mxu0 0
        %4968 = vmatpush1.bf16.msra.mxu0 0
        %4969 = vmatprep.subr.bf16.mxu0 0
        %4970 = vmatpush1.bf16.msra.mxu0 0
        %4971 = vmatprep.subr.bf16.mxu0 0
        %4972 = vmatpush1.bf16.msra.mxu0 0
        %4973 = vmatprep.mubr.bf16.mxu0 0
        %4974 = vmatmul.mubr.bf16.gmra.mrb[0].mxu0 %v4862
        %v4975 = vpop.f32.mrb[0].mxu0
        %v4976 = vadd.f32 %v4891, %v4975
        %v4977 = vpop.f32.mrb[0].mxu0
        %v4978 = vpop.f32.mrb[0].mxu0
        %v4979 = vadd.f32 %v4891, %v4978
        %v4980 = vpop.f32.mrb[0].mxu0
        %4981 = vmatprep.mubr.bf16.mxu0 0
        %4982 = vmatmul.mubr.bf16.gmra.mrb[0].mxu0 %v4863
        %v4983 = vpop.f32.mrb[0].mxu0
        %v4984 = vadd.f32 %v4891, %v4983
        %v4985 = vpop.f32.mrb[0].mxu0
        %v4986 = vpop.f32.mrb[0].mxu0
        %v4987 = vadd.f32 %v4891, %v4986
        %v4988 = vpop.f32.mrb[0].mxu0
        %4989 = vmatprep.mubr.bf16.mxu0 0
        %4990 = vmatmul.mubr.bf16.gmra.mrb[0].mxu0 %v4864
        %v4991 = vpop.f32.mrb[0].mxu0
        %v4992 = vadd.f32 %v4891, %v4991
        %v4993 = vpop.f32.mrb[0].mxu0
        %v4994 = vpop.f32.mrb[0].mxu0
        %v4995 = vadd.f32 %v4891, %v4994
        %v4996 = vpop.f32.mrb[0].mxu0
        %4997 = vmatprep.mubr.bf16.mxu0 0
        %4998 = vmatmul.mubr.bf16.gmra.mrb[0].mxu0 %v4865
        %v4999 = vpop.f32.mrb[0].mxu0
        %v5000 = vadd.f32 %v4891, %v4999
        %v5001 = vpop.f32.mrb[0].mxu0
        %v5002 = vpop.f32.mrb[0].mxu0
        %v5003 = vadd.f32 %v4891, %v5002
        %v5004 = vpop.f32.mrb[0].mxu0
        %5005 = vmatprep.mubr.bf16.mxu0 0
        %5006 = vmatmul.mubr.bf16.gmra.mrb[0].mxu0 %v4866
        %v5007 = vpop.f32.mrb[0].mxu0
        %v5008 = vadd.f32 %v4891, %v5007
        %v5009 = vpop.f32.mrb[0].mxu0
        %v5010 = vpop.f32.mrb[0].mxu0
        %v5011 = vadd.f32 %v4891, %v5010
        %v5012 = vpop.f32.mrb[0].mxu0
        %5013 = vmatprep.mubr.bf16.mxu0 0
        %5014 = vmatmul.mubr.bf16.gmra.mrb[0].mxu0 %v4867
        %v5015 = vpop.f32.mrb[0].mxu0
        %v5016 = vadd.f32 %v4891, %v5015
        %v5017 = vpop.f32.mrb[0].mxu0
        %v5018 = vpop.f32.mrb[0].mxu0
        %v5019 = vadd.f32 %v4891, %v5018
        %v5020 = vpop.f32.mrb[0].mxu0
        %5021 = vmatprep.mubr.bf16.mxu0 0
        %5022 = vmatmul.mubr.bf16.gmra.mrb[0].mxu0 %v4868
        %v5023 = vpop.f32.mrb[0].mxu0
        %v5024 = vadd.f32 %v4891, %v5023
        %v5025 = vpop.f32.mrb[0].mxu0
        %v5026 = vpop.f32.mrb[0].mxu0
        %v5027 = vadd.f32 %v4891, %v5026
        %v5028 = vpop.f32.mrb[0].mxu0
        %5029 = vmatprep.mubr.bf16.mxu0 0
        %5030 = vmatmul.mubr.bf16.gmra.mrb[0].mxu0 %v4869
        %v5031 = vpop.f32.mrb[0].mxu0
        %v5032 = vadd.f32 %v4891, %v5031
        %v5033 = vpop.f32.mrb[0].mxu0
        %v5034 = vpop.f32.mrb[0].mxu0
        %v5035 = vadd.f32 %v4891, %v5034
        %v5036 = vpop.f32.mrb[0].mxu0
        %5037 = vdwg.mxu0
        %v5038 = vld [vmem:[%s604] sm:$0xff]
        %v5039 = vld [vmem:[%s604 + $0x8] sm:$0xff]
        %v5040 = vld [vmem:[%s604 + $0x10] sm:$0xff]
        %v5041 = vld [vmem:[%s604 + $0x18] sm:$0xff]
        %v5042 = vld [vmem:[%s604 + $0x20] sm:$0xff]
        %v5043 = vld [vmem:[%s604 + $0x28] sm:$0xff]
        %v5044 = vld [vmem:[%s604 + $0x30] sm:$0xff]
        %v5045 = vld [vmem:[%s604 + $0x38] sm:$0xff]
        %v5046 = vld [vmem:[%s604 + $0x40] sm:$0xff]
        %v5047 = vld [vmem:[%s604 + $0x48] sm:$0xff]
        %v5048 = vld [vmem:[%s604 + $0x50] sm:$0xff]
        %v5049 = vld [vmem:[%s604 + $0x58] sm:$0xff]
        %v5050 = vld [vmem:[%s604 + $0x60] sm:$0xff]
        %v5051 = vld [vmem:[%s604 + $0x68] sm:$0xff]
        %v5052 = vld [vmem:[%s604 + $0x70] sm:$0xff]
        %v5053 = vld [vmem:[%s604 + $0x78] sm:$0xff]
        %v5054 = vadd.f32 %v4976, %v5038
        %v5055 = vadd.f32 %v4979, %v5039
        %v5056 = vadd.f32 %v4984, %v5040
        %v5057 = vadd.f32 %v4987, %v5041
        %v5058 = vadd.f32 %v4992, %v5042
        %v5059 = vadd.f32 %v4995, %v5043
        %v5060 = vadd.f32 %v5000, %v5044
        %v5061 = vadd.f32 %v5003, %v5045
        %v5062 = vadd.f32 %v5008, %v5046
        %v5063 = vadd.f32 %v5011, %v5047
        %v5064 = vadd.f32 %v5016, %v5048
        %v5065 = vadd.f32 %v5019, %v5049
        %v5066 = vadd.f32 %v5024, %v5050
        %v5067 = vadd.f32 %v5027, %v5051
        %v5068 = vadd.f32 %v5032, %v5052
        %v5069 = vadd.f32 %v5035, %v5053
        %v5070 = vld [vmem:[#allocation19] sm:$0x1]
        %v5071 = vld [vmem:[#allocation20] sm:$0x1]
        %5072 = vadd.xlane.f32.xlu0 %v5054
        %v5073 = vpop.xlane.xlu0 %5072
        %5074 = vadd.xlane.f32.xlu0 %v5055
        %v5075 = vpop.xlane.xlu0 %5074
        %5076 = vadd.xlane.f32.xlu0 %v5056
        %v5077 = vpop.xlane.xlu0 %5076
        %5078 = vadd.xlane.f32.xlu0 %v5057
        %v5079 = vpop.xlane.xlu0 %5078
        %5080 = vadd.xlane.f32.xlu0 %v5058
        %v5081 = vpop.xlane.xlu0 %5080
        %5082 = vadd.xlane.f32.xlu0 %v5059
        %v5083 = vpop.xlane.xlu0 %5082
        %5084 = vadd.xlane.f32.xlu0 %v5060
        %v5085 = vpop.xlane.xlu0 %5084
        %5086 = vadd.xlane.f32.xlu0 %v5061
        %v5087 = vpop.xlane.xlu0 %5086
        %5088 = vadd.xlane.f32.xlu0 %v5062
        %v5089 = vpop.xlane.xlu0 %5088
        %5090 = vadd.xlane.f32.xlu0 %v5063
        %v5091 = vpop.xlane.xlu0 %5090
        %5092 = vadd.xlane.f32.xlu0 %v5064
        %v5093 = vpop.xlane.xlu0 %5092
        %5094 = vadd.xlane.f32.xlu0 %v5065
        %v5095 = vpop.xlane.xlu0 %5094
        %5096 = vadd.xlane.f32.xlu0 %v5066
        %v5097 = vpop.xlane.xlu0 %5096
        %5098 = vadd.xlane.f32.xlu0 %v5067
        %v5099 = vpop.xlane.xlu0 %5098
        %5100 = vadd.xlane.f32.xlu0 %v5068
        %v5101 = vpop.xlane.xlu0 %5100
        %5102 = vadd.xlane.f32.xlu0 %v5069
        %v5103 = vpop.xlane.xlu0 %5102
        %v5104 = vrcp.pop 128.0
        %v5105 = vmul.f32 %v5073, %v5104
        %v5106 = vmul.f32 %v5075, %v5104
        %v5107 = vmul.f32 %v5077, %v5104
        %v5108 = vmul.f32 %v5079, %v5104
        %v5109 = vmul.f32 %v5081, %v5104
        %v5110 = vmul.f32 %v5083, %v5104
        %v5111 = vmul.f32 %v5085, %v5104
        %v5112 = vmul.f32 %v5087, %v5104
        %v5113 = vmul.f32 %v5089, %v5104
        %v5114 = vmul.f32 %v5091, %v5104
        %v5115 = vmul.f32 %v5093, %v5104
        %v5116 = vmul.f32 %v5095, %v5104
        %v5117 = vmul.f32 %v5097, %v5104
        %v5118 = vmul.f32 %v5099, %v5104
        %v5119 = vmul.f32 %v5101, %v5104
        %v5120 = vmul.f32 %v5103, %v5104
        %v5121 = vsub.f32 %v5054, %v5105
        %v5122 = vsub.f32 %v5055, %v5106
        %v5123 = vsub.f32 %v5056, %v5107
        %v5124 = vsub.f32 %v5057, %v5108
        %v5125 = vsub.f32 %v5058, %v5109
        %v5126 = vsub.f32 %v5059, %v5110
        %v5127 = vsub.f32 %v5060, %v5111
        %v5128 = vsub.f32 %v5061, %v5112
        %v5129 = vsub.f32 %v5062, %v5113
        %v5130 = vsub.f32 %v5063, %v5114
        %v5131 = vsub.f32 %v5064, %v5115
        %v5132 = vsub.f32 %v5065, %v5116
        %v5133 = vsub.f32 %v5066, %v5117
        %v5134 = vsub.f32 %v5067, %v5118
        %v5135 = vsub.f32 %v5068, %v5119
        %v5136 = vsub.f32 %v5069, %v5120
        %v5137 = vmul.f32 %v5121, %v5121
        %v5138 = vmul.f32 %v5122, %v5122
        %v5139 = vmul.f32 %v5123, %v5123
        %v5140 = vmul.f32 %v5124, %v5124
        %v5141 = vmul.f32 %v5125, %v5125
        %v5142 = vmul.f32 %v5126, %v5126
        %v5143 = vmul.f32 %v5127, %v5127
        %v5144 = vmul.f32 %v5128, %v5128
        %v5145 = vmul.f32 %v5129, %v5129
        %v5146 = vmul.f32 %v5130, %v5130
        %v5147 = vmul.f32 %v5131, %v5131
        %v5148 = vmul.f32 %v5132, %v5132
        %v5149 = vmul.f32 %v5133, %v5133
        %v5150 = vmul.f32 %v5134, %v5134
        %v5151 = vmul.f32 %v5135, %v5135
        %v5152 = vmul.f32 %v5136, %v5136
        %5153 = vadd.xlane.f32.xlu0 %v5137
        %v5154 = vpop.xlane.xlu0 %5153
        %5155 = vadd.xlane.f32.xlu0 %v5138
        %v5156 = vpop.xlane.xlu0 %5155
        %5157 = vadd.xlane.f32.xlu0 %v5139
        %v5158 = vpop.xlane.xlu0 %5157
        %5159 = vadd.xlane.f32.xlu0 %v5140
        %v5160 = vpop.xlane.xlu0 %5159
        %5161 = vadd.xlane.f32.xlu0 %v5141
        %v5162 = vpop.xlane.xlu0 %5161
        %5163 = vadd.xlane.f32.xlu0 %v5142
        %v5164 = vpop.xlane.xlu0 %5163
        %5165 = vadd.xlane.f32.xlu0 %v5143
        %v5166 = vpop.xlane.xlu0 %5165
        %5167 = vadd.xlane.f32.xlu0 %v5144
        %v5168 = vpop.xlane.xlu0 %5167
        %5169 = vadd.xlane.f32.xlu0 %v5145
        %v5170 = vpop.xlane.xlu0 %5169
        %5171 = vadd.xlane.f32.xlu0 %v5146
        %v5172 = vpop.xlane.xlu0 %5171
        %5173 = vadd.xlane.f32.xlu0 %v5147
        %v5174 = vpop.xlane.xlu0 %5173
        %5175 = vadd.xlane.f32.xlu0 %v5148
        %v5176 = vpop.xlane.xlu0 %5175
        %5177 = vadd.xlane.f32.xlu0 %v5149
        %v5178 = vpop.xlane.xlu0 %5177
        %5179 = vadd.xlane.f32.xlu0 %v5150
        %v5180 = vpop.xlane.xlu0 %5179
        %5181 = vadd.xlane.f32.xlu0 %v5151
        %v5182 = vpop.xlane.xlu0 %5181
        %5183 = vadd.xlane.f32.xlu0 %v5152
        %v5184 = vpop.xlane.xlu0 %5183
        %v5185 = vmul.f32 %v5154, %v5104
        %v5186 = vmul.f32 %v5156, %v5104
        %v5187 = vmul.f32 %v5158, %v5104
        %v5188 = vmul.f32 %v5160, %v5104
        %v5189 = vmul.f32 %v5162, %v5104
        %v5190 = vmul.f32 %v5164, %v5104
        %v5191 = vmul.f32 %v5166, %v5104
        %v5192 = vmul.f32 %v5168, %v5104
        %v5193 = vmul.f32 %v5170, %v5104
        %v5194 = vmul.f32 %v5172, %v5104
        %v5195 = vmul.f32 %v5174, %v5104
        %v5196 = vmul.f32 %v5176, %v5104
        %v5197 = vmul.f32 %v5178, %v5104
        %v5198 = vmul.f32 %v5180, %v5104
        %v5199 = vmul.f32 %v5182, %v5104
        %v5200 = vmul.f32 %v5184, %v5104
        %v5201 = vadd.f32 %v5185, 1e-05
        %v5202 = vadd.f32 %v5186, 1e-05
        %v5203 = vadd.f32 %v5187, 1e-05
        %v5204 = vadd.f32 %v5188, 1e-05
        %v5205 = vadd.f32 %v5189, 1e-05
        %v5206 = vadd.f32 %v5190, 1e-05
        %v5207 = vadd.f32 %v5191, 1e-05
        %v5208 = vadd.f32 %v5192, 1e-05
        %v5209 = vadd.f32 %v5193, 1e-05
        %v5210 = vadd.f32 %v5194, 1e-05
        %v5211 = vadd.f32 %v5195, 1e-05
        %v5212 = vadd.f32 %v5196, 1e-05
        %v5213 = vadd.f32 %v5197, 1e-05
        %v5214 = vadd.f32 %v5198, 1e-05
        %v5215 = vadd.f32 %v5199, 1e-05
        %v5216 = vadd.f32 %v5200, 1e-05
        %v5217 = vrsqrt.pop %v5201
        %v5218 = vrsqrt.pop %v5202
        %v5219 = vrsqrt.pop %v5203
        %v5220 = vrsqrt.pop %v5204
        %v5221 = vrsqrt.pop %v5205
        %v5222 = vrsqrt.pop %v5206
        %v5223 = vrsqrt.pop %v5207
        %v5224 = vrsqrt.pop %v5208
        %v5225 = vrsqrt.pop %v5209
        %v5226 = vrsqrt.pop %v5210
        %v5227 = vrsqrt.pop %v5211
        %v5228 = vrsqrt.pop %v5212
        %v5229 = vrsqrt.pop %v5213
        %v5230 = vrsqrt.pop %v5214
        %v5231 = vrsqrt.pop %v5215
        %v5232 = vrsqrt.pop %v5216
        %v5233 = vmul.f32 %v5121, %v5217
        %v5234 = vmul.f32 %v5122, %v5218
        %v5235 = vmul.f32 %v5123, %v5219
        %v5236 = vmul.f32 %v5124, %v5220
        %v5237 = vmul.f32 %v5125, %v5221
        %v5238 = vmul.f32 %v5126, %v5222
        %v5239 = vmul.f32 %v5127, %v5223
        %v5240 = vmul.f32 %v5128, %v5224
        %v5241 = vmul.f32 %v5129, %v5225
        %v5242 = vmul.f32 %v5130, %v5226
        %v5243 = vmul.f32 %v5131, %v5227
        %v5244 = vmul.f32 %v5132, %v5228
        %v5245 = vmul.f32 %v5133, %v5229
        %v5246 = vmul.f32 %v5134, %v5230
        %v5247 = vmul.f32 %v5135, %v5231
        %v5248 = vmul.f32 %v5136, %v5232
        %v5250 = vlaneseq
        %v5251 = vshrl.u32 %v5250, 7
        %v5252 = vsub.s32 0, %v5251
        %v5253 = vrot.slane %v5070, %v5252
        %v5255 = vmul.f32 %v5233, %v5253
        %v5256 = vmul.f32 %v5234, %v5253
        %v5257 = vmul.f32 %v5235, %v5253
        %v5258 = vmul.f32 %v5236, %v5253
        %v5259 = vmul.f32 %v5237, %v5253
        %v5260 = vmul.f32 %v5238, %v5253
        %v5261 = vmul.f32 %v5239, %v5253
        %v5262 = vmul.f32 %v5240, %v5253
        %v5263 = vmul.f32 %v5241, %v5253
        %v5264 = vmul.f32 %v5242, %v5253
        %v5265 = vmul.f32 %v5243, %v5253
        %v5266 = vmul.f32 %v5244, %v5253
        %v5267 = vmul.f32 %v5245, %v5253
        %v5268 = vmul.f32 %v5246, %v5253
        %v5269 = vmul.f32 %v5247, %v5253
        %v5270 = vmul.f32 %v5248, %v5253
        %v5272 = vlaneseq
        %v5273 = vshrl.u32 %v5272, 7
        %v5274 = vsub.s32 0, %v5273
        %v5275 = vrot.slane %v5071, %v5274
        %v5277 = vadd.f32 %v5255, %v5275
        %v5278 = vadd.f32 %v5256, %v5275
        %v5279 = vadd.f32 %v5257, %v5275
        %v5280 = vadd.f32 %v5258, %v5275
        %v5281 = vadd.f32 %v5259, %v5275
        %v5282 = vadd.f32 %v5260, %v5275
        %v5283 = vadd.f32 %v5261, %v5275
        %v5284 = vadd.f32 %v5262, %v5275
        %v5285 = vadd.f32 %v5263, %v5275
        %v5286 = vadd.f32 %v5264, %v5275
        %v5287 = vadd.f32 %v5265, %v5275
        %v5288 = vadd.f32 %v5266, %v5275
        %v5289 = vadd.f32 %v5267, %v5275
        %v5290 = vadd.f32 %v5268, %v5275
        %v5291 = vadd.f32 %v5269, %v5275
        %v5292 = vadd.f32 %v5270, %v5275
        %v5293 = vpack.c.bf16 %v5278, %v5277
        %v5294 = vpack.c.bf16 %v5280, %v5279
        %v5295 = vpack.c.bf16 %v5282, %v5281
        %v5296 = vpack.c.bf16 %v5284, %v5283
        %v5297 = vpack.c.bf16 %v5286, %v5285
        %v5298 = vpack.c.bf16 %v5288, %v5287
        %v5299 = vpack.c.bf16 %v5290, %v5289
        %v5300 = vpack.c.bf16 %v5292, %v5291
        %v5301 = vld [vmem:[#allocation22] sm:$0xff]
        %v5302 = vld [vmem:[#allocation22 + $0x8] sm:$0xff]
        %v5303 = vld [vmem:[#allocation22 + $0x10] sm:$0xff]
        %v5304 = vld [vmem:[#allocation22 + $0x18] sm:$0xff]
        %v5305 = vld [vmem:[#allocation22 + $0x20] sm:$0xff]
        %v5306 = vld [vmem:[#allocation22 + $0x28] sm:$0xff]
        %v5307 = vld [vmem:[#allocation22 + $0x30] sm:$0xff]
        %v5308 = vld [vmem:[#allocation22 + $0x38] sm:$0xff]
        %v5309 = vld [vmem:[#allocation22 + $0x40] sm:$0xff]
        %v5310 = vld [vmem:[#allocation22 + $0x48] sm:$0xff]
        %v5311 = vld [vmem:[#allocation22 + $0x50] sm:$0xff]
        %v5312 = vld [vmem:[#allocation22 + $0x58] sm:$0xff]
        %v5313 = vld [vmem:[#allocation22 + $0x60] sm:$0xff]
        %v5314 = vld [vmem:[#allocation22 + $0x68] sm:$0xff]
        %v5315 = vld [vmem:[#allocation22 + $0x70] sm:$0xff]
        %v5316 = vld [vmem:[#allocation22 + $0x78] sm:$0xff]
        %v5317 = vld [vmem:[#allocation22 + $0x80] sm:$0xff]
        %v5318 = vld [vmem:[#allocation22 + $0x88] sm:$0xff]
        %v5319 = vld [vmem:[#allocation22 + $0x90] sm:$0xff]
        %v5320 = vld [vmem:[#allocation22 + $0x98] sm:$0xff]
        %v5321 = vld [vmem:[#allocation22 + $0xa0] sm:$0xff]
        %v5322 = vld [vmem:[#allocation22 + $0xa8] sm:$0xff]
        %v5323 = vld [vmem:[#allocation22 + $0xb0] sm:$0xff]
        %v5324 = vld [vmem:[#allocation22 + $0xb8] sm:$0xff]
        %v5325 = vld [vmem:[#allocation22 + $0xc0] sm:$0xff]
        %v5326 = vld [vmem:[#allocation22 + $0xc8] sm:$0xff]
        %v5327 = vld [vmem:[#allocation22 + $0xd0] sm:$0xff]
        %v5328 = vld [vmem:[#allocation22 + $0xd8] sm:$0xff]
        %v5329 = vld [vmem:[#allocation22 + $0xe0] sm:$0xff]
        %v5330 = vld [vmem:[#allocation22 + $0xe8] sm:$0xff]
        %v5331 = vld [vmem:[#allocation22 + $0xf0] sm:$0xff]
        %v5332 = vld [vmem:[#allocation22 + $0xf8] sm:$0xff]
        %v5333 = vld [vmem:[#allocation23] sm:$0xf]
        %v5335 = vlaneseq
        %v5336 = vshrl.u32 %v5335, 7
        %v5337 = vsub.s32 0, %v5336
        %v5338 = vrot.slane %v5333, %v5337
        %v5339 = vlaneseq
        %v5340 = vshrl.u32 %v5339, 7
        %v5341 = vsub.s32 1, %v5340
        %v5342 = vrot.slane %v5333, %v5341
        %v5343 = vlaneseq
        %v5344 = vshrl.u32 %v5343, 7
        %v5345 = vsub.s32 2, %v5344
        %v5346 = vrot.slane %v5333, %v5345
        %v5347 = vlaneseq
        %v5348 = vshrl.u32 %v5347, 7
        %v5349 = vsub.s32 3, %v5348
        %v5350 = vrot.slane %v5333, %v5349
        %v5387 = vunpack.c.l.b16 %v5301
        %v5388 = vunpack.c.h.b16 %v5301
        %v5389 = vunpack.c.l.b16 %v5302
        %v5390 = vunpack.c.h.b16 %v5302
        %v5391 = vunpack.c.l.b16 %v5303
        %v5392 = vunpack.c.h.b16 %v5303
        %v5393 = vunpack.c.l.b16 %v5304
        %v5394 = vunpack.c.h.b16 %v5304
        %v5395 = vunpack.c.l.b16 %v5305
        %v5396 = vunpack.c.h.b16 %v5305
        %v5397 = vunpack.c.l.b16 %v5306
        %v5398 = vunpack.c.h.b16 %v5306
        %v5399 = vunpack.c.l.b16 %v5307
        %v5400 = vunpack.c.h.b16 %v5307
        %v5401 = vunpack.c.l.b16 %v5308
        %v5402 = vunpack.c.h.b16 %v5308
        %v5403 = vunpack.c.l.b16 %v5309
        %v5404 = vunpack.c.h.b16 %v5309
        %v5405 = vunpack.c.l.b16 %v5310
        %v5406 = vunpack.c.h.b16 %v5310
        %v5407 = vunpack.c.l.b16 %v5311
        %v5408 = vunpack.c.h.b16 %v5311
        %v5409 = vunpack.c.l.b16 %v5312
        %v5410 = vunpack.c.h.b16 %v5312
        %v5411 = vunpack.c.l.b16 %v5313
        %v5412 = vunpack.c.h.b16 %v5313
        %v5413 = vunpack.c.l.b16 %v5314
        %v5414 = vunpack.c.h.b16 %v5314
        %v5415 = vunpack.c.l.b16 %v5315
        %v5416 = vunpack.c.h.b16 %v5315
        %v5417 = vunpack.c.l.b16 %v5316
        %v5418 = vunpack.c.h.b16 %v5316
        %v5419 = vunpack.c.l.b16 %v5317
        %v5420 = vunpack.c.h.b16 %v5317
        %v5421 = vunpack.c.l.b16 %v5318
        %v5422 = vunpack.c.h.b16 %v5318
        %v5423 = vunpack.c.l.b16 %v5319
        %v5424 = vunpack.c.h.b16 %v5319
        %v5425 = vunpack.c.l.b16 %v5320
        %v5426 = vunpack.c.h.b16 %v5320
        %v5427 = vunpack.c.l.b16 %v5321
        %v5428 = vunpack.c.h.b16 %v5321
        %v5429 = vunpack.c.l.b16 %v5322
        %v5430 = vunpack.c.h.b16 %v5322
        %v5431 = vunpack.c.l.b16 %v5323
        %v5432 = vunpack.c.h.b16 %v5323
        %v5433 = vunpack.c.l.b16 %v5324
        %v5434 = vunpack.c.h.b16 %v5324
        %v5435 = vunpack.c.l.b16 %v5325
        %v5436 = vunpack.c.h.b16 %v5325
        %v5437 = vunpack.c.l.b16 %v5326
        %v5438 = vunpack.c.h.b16 %v5326
        %v5439 = vunpack.c.l.b16 %v5327
        %v5440 = vunpack.c.h.b16 %v5327
        %v5441 = vunpack.c.l.b16 %v5328
        %v5442 = vunpack.c.h.b16 %v5328
        %v5443 = vunpack.c.l.b16 %v5329
        %v5444 = vunpack.c.h.b16 %v5329
        %v5445 = vunpack.c.l.b16 %v5330
        %v5446 = vunpack.c.h.b16 %v5330
        %v5447 = vunpack.c.l.b16 %v5331
        %v5448 = vunpack.c.h.b16 %v5331
        %v5449 = vunpack.c.l.b16 %v5332
        %v5450 = vunpack.c.h.b16 %v5332
        %v5451 = vpack.c.b16 %v5391, %v5387
        %v5452 = vpack.c.b16 %v5392, %v5388
        %v5453 = vpack.c.b16 %v5393, %v5389
        %v5454 = vpack.c.b16 %v5394, %v5390
        %v5455 = vpack.c.b16 %v5399, %v5395
        %v5456 = vpack.c.b16 %v5400, %v5396
        %v5457 = vpack.c.b16 %v5401, %v5397
        %v5458 = vpack.c.b16 %v5402, %v5398
        %v5459 = vpack.c.b16 %v5407, %v5403
        %v5460 = vpack.c.b16 %v5408, %v5404
        %v5461 = vpack.c.b16 %v5409, %v5405
        %v5462 = vpack.c.b16 %v5410, %v5406
        %v5463 = vpack.c.b16 %v5415, %v5411
        %v5464 = vpack.c.b16 %v5416, %v5412
        %v5465 = vpack.c.b16 %v5417, %v5413
        %v5466 = vpack.c.b16 %v5418, %v5414
        %v5467 = vpack.c.b16 %v5423, %v5419
        %v5468 = vpack.c.b16 %v5424, %v5420
        %v5469 = vpack.c.b16 %v5425, %v5421
        %v5470 = vpack.c.b16 %v5426, %v5422
        %v5471 = vpack.c.b16 %v5431, %v5427
        %v5472 = vpack.c.b16 %v5432, %v5428
        %v5473 = vpack.c.b16 %v5433, %v5429
        %v5474 = vpack.c.b16 %v5434, %v5430
        %v5475 = vpack.c.b16 %v5439, %v5435
        %v5476 = vpack.c.b16 %v5440, %v5436
        %v5477 = vpack.c.b16 %v5441, %v5437
        %v5478 = vpack.c.b16 %v5442, %v5438
        %v5479 = vpack.c.b16 %v5447, %v5443
        %v5480 = vpack.c.b16 %v5448, %v5444
        %v5481 = vpack.c.b16 %v5449, %v5445
        %v5482 = vpack.c.b16 %v5450, %v5446
        %5515 = vmatprep.subr.bf16.mxu0 %v5452
        %5516 = vmatpush1.bf16.msra.mxu0 %v5451
        %5517 = vmatprep.subr.bf16.mxu0 %v5456
        %5518 = vmatpush1.bf16.msra.mxu0 %v5455
        %5519 = vmatprep.subr.bf16.mxu0 %v5460
        %5520 = vmatpush1.bf16.msra.mxu0 %v5459
        %5521 = vmatprep.subr.bf16.mxu0 %v5464
        %5522 = vmatpush1.bf16.msra.mxu0 %v5463
        %5523 = vmatprep.subr.bf16.mxu0 %v5468
        %5524 = vmatpush1.bf16.msra.mxu0 %v5467
        %5525 = vmatprep.subr.bf16.mxu0 %v5472
        %5526 = vmatpush1.bf16.msra.mxu0 %v5471
        %5527 = vmatprep.subr.bf16.mxu0 %v5476
        %5528 = vmatpush1.bf16.msra.mxu0 %v5475
        %5529 = vmatprep.subr.bf16.mxu0 %v5480
        %5530 = vmatpush1.bf16.msra.mxu0 %v5479
        %5531 = vmatprep.subr.bf16.mxu0 0
        %5532 = vmatpush1.bf16.msra.mxu0 0
        %5533 = vmatprep.subr.bf16.mxu0 0
        %5534 = vmatpush1.bf16.msra.mxu0 0
        %5535 = vmatprep.subr.bf16.mxu0 0
        %5536 = vmatpush1.bf16.msra.mxu0 0
        %5537 = vmatprep.subr.bf16.mxu0 0
        %5538 = vmatpush1.bf16.msra.mxu0 0
        %5539 = vmatprep.subr.bf16.mxu0 0
        %5540 = vmatpush1.bf16.msra.mxu0 0
        %5541 = vmatprep.subr.bf16.mxu0 0
        %5542 = vmatpush1.bf16.msra.mxu0 0
        %5543 = vmatprep.subr.bf16.mxu0 0
        %5544 = vmatpush1.bf16.msra.mxu0 0
        %5545 = vmatprep.subr.bf16.mxu0 0
        %5546 = vmatpush1.bf16.msra.mxu0 0
        %5547 = vmatprep.mubr.bf16.mxu0 0
        %5548 = vmatmul.mubr.bf16.gmra.mrb[0].mxu0 %v5293
        %v5549 = vpop.f32.mrb[0].mxu0
        %v5550 = vadd.f32 %v5338, %v5549
        %v5551 = vpop.f32.mrb[0].mxu0
        %v5552 = vadd.f32 %v5342, %v5551
        %v5553 = vpop.f32.mrb[0].mxu0
        %v5554 = vadd.f32 %v5338, %v5553
        %v5555 = vpop.f32.mrb[0].mxu0
        %v5556 = vadd.f32 %v5342, %v5555
        %5557 = vmatprep.mubr.bf16.mxu0 0
        %5558 = vmatmul.mubr.bf16.gmra.mrb[0].mxu0 %v5294
        %v5559 = vpop.f32.mrb[0].mxu0
        %v5560 = vadd.f32 %v5338, %v5559
        %v5561 = vpop.f32.mrb[0].mxu0
        %v5562 = vadd.f32 %v5342, %v5561
        %v5563 = vpop.f32.mrb[0].mxu0
        %v5564 = vadd.f32 %v5338, %v5563
        %v5565 = vpop.f32.mrb[0].mxu0
        %v5566 = vadd.f32 %v5342, %v5565
        %5567 = vmatprep.mubr.bf16.mxu0 0
        %5568 = vmatmul.mubr.bf16.gmra.mrb[0].mxu0 %v5295
        %v5569 = vpop.f32.mrb[0].mxu0
        %v5570 = vadd.f32 %v5338, %v5569
        %v5571 = vpop.f32.mrb[0].mxu0
        %v5572 = vadd.f32 %v5342, %v5571
        %v5573 = vpop.f32.mrb[0].mxu0
        %v5574 = vadd.f32 %v5338, %v5573
        %v5575 = vpop.f32.mrb[0].mxu0
        %v5576 = vadd.f32 %v5342, %v5575
        %5577 = vmatprep.mubr.bf16.mxu0 0
        %5578 = vmatmul.mubr.bf16.gmra.mrb[0].mxu0 %v5296
        %v5579 = vpop.f32.mrb[0].mxu0
        %v5580 = vadd.f32 %v5338, %v5579
        %v5581 = vpop.f32.mrb[0].mxu0
        %v5582 = vadd.f32 %v5342, %v5581
        %v5583 = vpop.f32.mrb[0].mxu0
        %v5584 = vadd.f32 %v5338, %v5583
        %v5585 = vpop.f32.mrb[0].mxu0
        %v5586 = vadd.f32 %v5342, %v5585
        %5587 = vmatprep.mubr.bf16.mxu0 0
        %5588 = vmatmul.mubr.bf16.gmra.mrb[0].mxu0 %v5297
        %v5589 = vpop.f32.mrb[0].mxu0
        %v5590 = vadd.f32 %v5338, %v5589
        %v5591 = vpop.f32.mrb[0].mxu0
        %v5592 = vadd.f32 %v5342, %v5591
        %v5593 = vpop.f32.mrb[0].mxu0
        %v5594 = vadd.f32 %v5338, %v5593
        %v5595 = vpop.f32.mrb[0].mxu0
        %v5596 = vadd.f32 %v5342, %v5595
        %5597 = vmatprep.mubr.bf16.mxu0 0
        %5598 = vmatmul.mubr.bf16.gmra.mrb[0].mxu0 %v5298
        %v5599 = vpop.f32.mrb[0].mxu0
        %v5600 = vadd.f32 %v5338, %v5599
        %v5601 = vpop.f32.mrb[0].mxu0
        %v5602 = vadd.f32 %v5342, %v5601
        %v5603 = vpop.f32.mrb[0].mxu0
        %v5604 = vadd.f32 %v5338, %v5603
        %v5605 = vpop.f32.mrb[0].mxu0
        %v5606 = vadd.f32 %v5342, %v5605
        %5607 = vmatprep.mubr.bf16.mxu0 0
        %5608 = vmatmul.mubr.bf16.gmra.mrb[0].mxu0 %v5299
        %v5609 = vpop.f32.mrb[0].mxu0
        %v5610 = vadd.f32 %v5338, %v5609
        %v5611 = vpop.f32.mrb[0].mxu0
        %v5612 = vadd.f32 %v5342, %v5611
        %v5613 = vpop.f32.mrb[0].mxu0
        %v5614 = vadd.f32 %v5338, %v5613
        %v5615 = vpop.f32.mrb[0].mxu0
        %v5616 = vadd.f32 %v5342, %v5615
        %5617 = vmatprep.mubr.bf16.mxu0 0
        %5618 = vmatmul.mubr.bf16.gmra.mrb[0].mxu0 %v5300
        %v5619 = vpop.f32.mrb[0].mxu0
        %v5620 = vadd.f32 %v5338, %v5619
        %v5621 = vpop.f32.mrb[0].mxu0
        %v5622 = vadd.f32 %v5342, %v5621
        %v5623 = vpop.f32.mrb[0].mxu0
        %v5624 = vadd.f32 %v5338, %v5623
        %v5625 = vpop.f32.mrb[0].mxu0
        %v5626 = vadd.f32 %v5342, %v5625
        %5627 = vdwg.mxu0
        %5628 = vmatprep.subr.bf16.mxu0 %v5454
        %5629 = vmatpush1.bf16.msra.mxu0 %v5453
        %5630 = vmatprep.subr.bf16.mxu0 %v5458
        %5631 = vmatpush1.bf16.msra.mxu0 %v5457
        %5632 = vmatprep.subr.bf16.mxu0 %v5462
        %5633 = vmatpush1.bf16.msra.mxu0 %v5461
        %5634 = vmatprep.subr.bf16.mxu0 %v5466
        %5635 = vmatpush1.bf16.msra.mxu0 %v5465
        %5636 = vmatprep.subr.bf16.mxu0 %v5470
        %5637 = vmatpush1.bf16.msra.mxu0 %v5469
        %5638 = vmatprep.subr.bf16.mxu0 %v5474
        %5639 = vmatpush1.bf16.msra.mxu0 %v5473
        %5640 = vmatprep.subr.bf16.mxu0 %v5478
        %5641 = vmatpush1.bf16.msra.mxu0 %v5477
        %5642 = vmatprep.subr.bf16.mxu0 %v5482
        %5643 = vmatpush1.bf16.msra.mxu0 %v5481
        %5644 = vmatprep.subr.bf16.mxu0 0
        %5645 = vmatpush1.bf16.msra.mxu0 0
        %5646 = vmatprep.subr.bf16.mxu0 0
        %5647 = vmatpush1.bf16.msra.mxu0 0
        %5648 = vmatprep.subr.bf16.mxu0 0
        %5649 = vmatpush1.bf16.msra.mxu0 0
        %5650 = vmatprep.subr.bf16.mxu0 0
        %5651 = vmatpush1.bf16.msra.mxu0 0
        %5652 = vmatprep.subr.bf16.mxu0 0
        %5653 = vmatpush1.bf16.msra.mxu0 0
        %5654 = vmatprep.subr.bf16.mxu0 0
        %5655 = vmatpush1.bf16.msra.mxu0 0
        %5656 = vmatprep.subr.bf16.mxu0 0
        %5657 = vmatpush1.bf16.msra.mxu0 0
        %5658 = vmatprep.subr.bf16.mxu0 0
        %5659 = vmatpush1.bf16.msra.mxu0 0
        %5660 = vmatprep.mubr.bf16.mxu0 0
        %5661 = vmatmul.mubr.bf16.gmra.mrb[0].mxu0 %v5293
        %v5662 = vpop.f32.mrb[0].mxu0
        %v5663 = vadd.f32 %v5346, %v5662
        %v5664 = vpop.f32.mrb[0].mxu0
        %v5665 = vadd.f32 %v5350, %v5664
        %v5666 = vpop.f32.mrb[0].mxu0
        %v5667 = vadd.f32 %v5346, %v5666
        %v5668 = vpop.f32.mrb[0].mxu0
        %v5669 = vadd.f32 %v5350, %v5668
        %5670 = vmatprep.mubr.bf16.mxu0 0
        %5671 = vmatmul.mubr.bf16.gmra.mrb[0].mxu0 %v5294
        %v5672 = vpop.f32.mrb[0].mxu0
        %v5673 = vadd.f32 %v5346, %v5672
        %v5674 = vpop.f32.mrb[0].mxu0
        %v5675 = vadd.f32 %v5350, %v5674
        %v5676 = vpop.f32.mrb[0].mxu0
        %v5677 = vadd.f32 %v5346, %v5676
        %v5678 = vpop.f32.mrb[0].mxu0
        %v5679 = vadd.f32 %v5350, %v5678
        %5680 = vmatprep.mubr.bf16.mxu0 0
        %5681 = vmatmul.mubr.bf16.gmra.mrb[0].mxu0 %v5295
        %v5682 = vpop.f32.mrb[0].mxu0
        %v5683 = vadd.f32 %v5346, %v5682
        %v5684 = vpop.f32.mrb[0].mxu0
        %v5685 = vadd.f32 %v5350, %v5684
        %v5686 = vpop.f32.mrb[0].mxu0
        %v5687 = vadd.f32 %v5346, %v5686
        %v5688 = vpop.f32.mrb[0].mxu0
        %v5689 = vadd.f32 %v5350, %v5688
        %5690 = vmatprep.mubr.bf16.mxu0 0
        %5691 = vmatmul.mubr.bf16.gmra.mrb[0].mxu0 %v5296
        %v5692 = vpop.f32.mrb[0].mxu0
        %v5693 = vadd.f32 %v5346, %v5692
        %v5694 = vpop.f32.mrb[0].mxu0
        %v5695 = vadd.f32 %v5350, %v5694
        %v5696 = vpop.f32.mrb[0].mxu0
        %v5697 = vadd.f32 %v5346, %v5696
        %v5698 = vpop.f32.mrb[0].mxu0
        %v5699 = vadd.f32 %v5350, %v5698
        %5700 = vmatprep.mubr.bf16.mxu0 0
        %5701 = vmatmul.mubr.bf16.gmra.mrb[0].mxu0 %v5297
        %v5702 = vpop.f32.mrb[0].mxu0
        %v5703 = vadd.f32 %v5346, %v5702
        %v5704 = vpop.f32.mrb[0].mxu0
        %v5705 = vadd.f32 %v5350, %v5704
        %v5706 = vpop.f32.mrb[0].mxu0
        %v5707 = vadd.f32 %v5346, %v5706
        %v5708 = vpop.f32.mrb[0].mxu0
        %v5709 = vadd.f32 %v5350, %v5708
        %5710 = vmatprep.mubr.bf16.mxu0 0
        %5711 = vmatmul.mubr.bf16.gmra.mrb[0].mxu0 %v5298
        %v5712 = vpop.f32.mrb[0].mxu0
        %v5713 = vadd.f32 %v5346, %v5712
        %v5714 = vpop.f32.mrb[0].mxu0
        %v5715 = vadd.f32 %v5350, %v5714
        %v5716 = vpop.f32.mrb[0].mxu0
        %v5717 = vadd.f32 %v5346, %v5716
        %v5718 = vpop.f32.mrb[0].mxu0
        %v5719 = vadd.f32 %v5350, %v5718
        %5720 = vmatprep.mubr.bf16.mxu0 0
        %5721 = vmatmul.mubr.bf16.gmra.mrb[0].mxu0 %v5299
        %v5722 = vpop.f32.mrb[0].mxu0
        %v5723 = vadd.f32 %v5346, %v5722
        %v5724 = vpop.f32.mrb[0].mxu0
        %v5725 = vadd.f32 %v5350, %v5724
        %v5726 = vpop.f32.mrb[0].mxu0
        %v5727 = vadd.f32 %v5346, %v5726
        %v5728 = vpop.f32.mrb[0].mxu0
        %v5729 = vadd.f32 %v5350, %v5728
        %5730 = vmatprep.mubr.bf16.mxu0 0
        %5731 = vmatmul.mubr.bf16.gmra.mrb[0].mxu0 %v5300
        %v5732 = vpop.f32.mrb[0].mxu0
        %v5733 = vadd.f32 %v5346, %v5732
        %v5734 = vpop.f32.mrb[0].mxu0
        %v5735 = vadd.f32 %v5350, %v5734
        %v5736 = vpop.f32.mrb[0].mxu0
        %v5737 = vadd.f32 %v5346, %v5736
        %v5738 = vpop.f32.mrb[0].mxu0
        %v5739 = vadd.f32 %v5350, %v5738
        %5740 = vdwg.mxu0
        %v5741 = vxor.u32 %v5550, 2147483648
        %v5742 = vxor.u32 %v5552, 2147483648
        %v5743 = vxor.u32 %v5554, 2147483648
        %v5744 = vxor.u32 %v5556, 2147483648
        %v5745 = vxor.u32 %v5560, 2147483648
        %v5746 = vxor.u32 %v5562, 2147483648
        %v5747 = vxor.u32 %v5564, 2147483648
        %v5748 = vxor.u32 %v5566, 2147483648
        %v5749 = vxor.u32 %v5570, 2147483648
        %v5750 = vxor.u32 %v5572, 2147483648
        %v5751 = vxor.u32 %v5574, 2147483648
        %v5752 = vxor.u32 %v5576, 2147483648
        %v5753 = vxor.u32 %v5580, 2147483648
        %v5754 = vxor.u32 %v5582, 2147483648
        %v5755 = vxor.u32 %v5584, 2147483648
        %v5756 = vxor.u32 %v5586, 2147483648
        %v5757 = vxor.u32 %v5590, 2147483648
        %v5758 = vxor.u32 %v5592, 2147483648
        %v5759 = vxor.u32 %v5594, 2147483648
        %v5760 = vxor.u32 %v5596, 2147483648
        %v5761 = vxor.u32 %v5600, 2147483648
        %v5762 = vxor.u32 %v5602, 2147483648
        %v5763 = vxor.u32 %v5604, 2147483648
        %v5764 = vxor.u32 %v5606, 2147483648
        %v5765 = vxor.u32 %v5610, 2147483648
        %v5766 = vxor.u32 %v5612, 2147483648
        %v5767 = vxor.u32 %v5614, 2147483648
        %v5768 = vxor.u32 %v5616, 2147483648
        %v5769 = vxor.u32 %v5620, 2147483648
        %v5770 = vxor.u32 %v5622, 2147483648
        %v5771 = vxor.u32 %v5624, 2147483648
        %v5772 = vxor.u32 %v5626, 2147483648
        %v5773 = vmul.f32 %v5741, 1.442695
        %v5774 = vpow.pop %v5773
        %v5775 = vmul.f32 %v5742, 1.442695
        %v5776 = vpow.pop %v5775
        %v5777 = vmul.f32 %v5743, 1.442695
        %v5778 = vpow.pop %v5777
        %v5779 = vmul.f32 %v5744, 1.442695
        %v5780 = vpow.pop %v5779
        %v5781 = vmul.f32 %v5745, 1.442695
        %v5782 = vpow.pop %v5781
        %v5783 = vmul.f32 %v5746, 1.442695
        %v5784 = vpow.pop %v5783
        %v5785 = vmul.f32 %v5747, 1.442695
        %v5786 = vpow.pop %v5785
        %v5787 = vmul.f32 %v5748, 1.442695
        %v5788 = vpow.pop %v5787
        %v5789 = vmul.f32 %v5749, 1.442695
        %v5790 = vpow.pop %v5789
        %v5791 = vmul.f32 %v5750, 1.442695
        %v5792 = vpow.pop %v5791
        %v5793 = vmul.f32 %v5751, 1.442695
        %v5794 = vpow.pop %v5793
        %v5795 = vmul.f32 %v5752, 1.442695
        %v5796 = vpow.pop %v5795
        %v5797 = vmul.f32 %v5753, 1.442695
        %v5798 = vpow.pop %v5797
        %v5799 = vmul.f32 %v5754, 1.442695
        %v5800 = vpow.pop %v5799
        %v5801 = vmul.f32 %v5755, 1.442695
        %v5802 = vpow.pop %v5801
        %v5803 = vmul.f32 %v5756, 1.442695
        %v5804 = vpow.pop %v5803
        %v5805 = vmul.f32 %v5757, 1.442695
        %v5806 = vpow.pop %v5805
        %v5807 = vmul.f32 %v5758, 1.442695
        %v5808 = vpow.pop %v5807
        %v5809 = vmul.f32 %v5759, 1.442695
        %v5810 = vpow.pop %v5809
        %v5811 = vmul.f32 %v5760, 1.442695
        %v5812 = vpow.pop %v5811
        %v5813 = vmul.f32 %v5761, 1.442695
        %v5814 = vpow.pop %v5813
        %v5815 = vmul.f32 %v5762, 1.442695
        %v5816 = vpow.pop %v5815
        %v5817 = vmul.f32 %v5763, 1.442695
        %v5818 = vpow.pop %v5817
        %v5819 = vmul.f32 %v5764, 1.442695
        %v5820 = vpow.pop %v5819
        %v5821 = vmul.f32 %v5765, 1.442695
        %v5822 = vpow.pop %v5821
        %v5823 = vmul.f32 %v5766, 1.442695
        %v5824 = vpow.pop %v5823
        %v5825 = vmul.f32 %v5767, 1.442695
        %v5826 = vpow.pop %v5825
        %v5827 = vmul.f32 %v5768, 1.442695
        %v5828 = vpow.pop %v5827
        %v5829 = vmul.f32 %v5769, 1.442695
        %v5830 = vpow.pop %v5829
        %v5831 = vmul.f32 %v5770, 1.442695
        %v5832 = vpow.pop %v5831
        %v5833 = vmul.f32 %v5771, 1.442695
        %v5834 = vpow.pop %v5833
        %v5835 = vmul.f32 %v5772, 1.442695
        %v5836 = vpow.pop %v5835
        %v5837 = vadd.f32 %v5774, 1.0
        %v5838 = vadd.f32 %v5776, 1.0
        %v5839 = vadd.f32 %v5778, 1.0
        %v5840 = vadd.f32 %v5780, 1.0
        %v5841 = vadd.f32 %v5782, 1.0
        %v5842 = vadd.f32 %v5784, 1.0
        %v5843 = vadd.f32 %v5786, 1.0
        %v5844 = vadd.f32 %v5788, 1.0
        %v5845 = vadd.f32 %v5790, 1.0
        %v5846 = vadd.f32 %v5792, 1.0
        %v5847 = vadd.f32 %v5794, 1.0
        %v5848 = vadd.f32 %v5796, 1.0
        %v5849 = vadd.f32 %v5798, 1.0
        %v5850 = vadd.f32 %v5800, 1.0
        %v5851 = vadd.f32 %v5802, 1.0
        %v5852 = vadd.f32 %v5804, 1.0
        %v5853 = vadd.f32 %v5806, 1.0
        %v5854 = vadd.f32 %v5808, 1.0
        %v5855 = vadd.f32 %v5810, 1.0
        %v5856 = vadd.f32 %v5812, 1.0
        %v5857 = vadd.f32 %v5814, 1.0
        %v5858 = vadd.f32 %v5816, 1.0
        %v5859 = vadd.f32 %v5818, 1.0
        %v5860 = vadd.f32 %v5820, 1.0
        %v5861 = vadd.f32 %v5822, 1.0
        %v5862 = vadd.f32 %v5824, 1.0
        %v5863 = vadd.f32 %v5826, 1.0
        %v5864 = vadd.f32 %v5828, 1.0
        %v5865 = vadd.f32 %v5830, 1.0
        %v5866 = vadd.f32 %v5832, 1.0
        %v5867 = vadd.f32 %v5834, 1.0
        %v5868 = vadd.f32 %v5836, 1.0
        %v5869 = vrcp.pop %v5837
        %v5870 = vmul.f32 1.0, %v5869
        %v5871 = vrcp.pop %v5838
        %v5872 = vmul.f32 1.0, %v5871
        %v5873 = vrcp.pop %v5839
        %v5874 = vmul.f32 1.0, %v5873
        %v5875 = vrcp.pop %v5840
        %v5876 = vmul.f32 1.0, %v5875
        %v5877 = vrcp.pop %v5841
        %v5878 = vmul.f32 1.0, %v5877
        %v5879 = vrcp.pop %v5842
        %v5880 = vmul.f32 1.0, %v5879
        %v5881 = vrcp.pop %v5843
        %v5882 = vmul.f32 1.0, %v5881
        %v5883 = vrcp.pop %v5844
        %v5884 = vmul.f32 1.0, %v5883
        %v5885 = vrcp.pop %v5845
        %v5886 = vmul.f32 1.0, %v5885
        %v5887 = vrcp.pop %v5846
        %v5888 = vmul.f32 1.0, %v5887
        %v5889 = vrcp.pop %v5847
        %v5890 = vmul.f32 1.0, %v5889
        %v5891 = vrcp.pop %v5848
        %v5892 = vmul.f32 1.0, %v5891
        %v5893 = vrcp.pop %v5849
        %v5894 = vmul.f32 1.0, %v5893
        %v5895 = vrcp.pop %v5850
        %v5896 = vmul.f32 1.0, %v5895
        %v5897 = vrcp.pop %v5851
        %v5898 = vmul.f32 1.0, %v5897
        %v5899 = vrcp.pop %v5852
        %v5900 = vmul.f32 1.0, %v5899
        %v5901 = vrcp.pop %v5853
        %v5902 = vmul.f32 1.0, %v5901
        %v5903 = vrcp.pop %v5854
        %v5904 = vmul.f32 1.0, %v5903
        %v5905 = vrcp.pop %v5855
        %v5906 = vmul.f32 1.0, %v5905
        %v5907 = vrcp.pop %v5856
        %v5908 = vmul.f32 1.0, %v5907
        %v5909 = vrcp.pop %v5857
        %v5910 = vmul.f32 1.0, %v5909
        %v5911 = vrcp.pop %v5858
        %v5912 = vmul.f32 1.0, %v5911
        %v5913 = vrcp.pop %v5859
        %v5914 = vmul.f32 1.0, %v5913
        %v5915 = vrcp.pop %v5860
        %v5916 = vmul.f32 1.0, %v5915
        %v5917 = vrcp.pop %v5861
        %v5918 = vmul.f32 1.0, %v5917
        %v5919 = vrcp.pop %v5862
        %v5920 = vmul.f32 1.0, %v5919
        %v5921 = vrcp.pop %v5863
        %v5922 = vmul.f32 1.0, %v5921
        %v5923 = vrcp.pop %v5864
        %v5924 = vmul.f32 1.0, %v5923
        %v5925 = vrcp.pop %v5865
        %v5926 = vmul.f32 1.0, %v5925
        %v5927 = vrcp.pop %v5866
        %v5928 = vmul.f32 1.0, %v5927
        %v5929 = vrcp.pop %v5867
        %v5930 = vmul.f32 1.0, %v5929
        %v5931 = vrcp.pop %v5868
        %v5932 = vmul.f32 1.0, %v5931
        %v5933 = vmul.f32 %v5550, %v5870
        %v5934 = vmul.f32 %v5552, %v5872
        %v5935 = vmul.f32 %v5554, %v5874
        %v5936 = vmul.f32 %v5556, %v5876
        %v5937 = vmul.f32 %v5560, %v5878
        %v5938 = vmul.f32 %v5562, %v5880
        %v5939 = vmul.f32 %v5564, %v5882
        %v5940 = vmul.f32 %v5566, %v5884
        %v5941 = vmul.f32 %v5570, %v5886
        %v5942 = vmul.f32 %v5572, %v5888
        %v5943 = vmul.f32 %v5574, %v5890
        %v5944 = vmul.f32 %v5576, %v5892
        %v5945 = vmul.f32 %v5580, %v5894
        %v5946 = vmul.f32 %v5582, %v5896
        %v5947 = vmul.f32 %v5584, %v5898
        %v5948 = vmul.f32 %v5586, %v5900
        %v5949 = vmul.f32 %v5590, %v5902
        %v5950 = vmul.f32 %v5592, %v5904
        %v5951 = vmul.f32 %v5594, %v5906
        %v5952 = vmul.f32 %v5596, %v5908
        %v5953 = vmul.f32 %v5600, %v5910
        %v5954 = vmul.f32 %v5602, %v5912
        %v5955 = vmul.f32 %v5604, %v5914
        %v5956 = vmul.f32 %v5606, %v5916
        %v5957 = vmul.f32 %v5610, %v5918
        %v5958 = vmul.f32 %v5612, %v5920
        %v5959 = vmul.f32 %v5614, %v5922
        %v5960 = vmul.f32 %v5616, %v5924
        %v5961 = vmul.f32 %v5620, %v5926
        %v5962 = vmul.f32 %v5622, %v5928
        %v5963 = vmul.f32 %v5624, %v5930
        %v5964 = vmul.f32 %v5626, %v5932
        %v5965 = vmul.f32 %v5933, %v5663
        %v5966 = vmul.f32 %v5934, %v5665
        %v5967 = vmul.f32 %v5935, %v5667
        %v5968 = vmul.f32 %v5936, %v5669
        %v5969 = vmul.f32 %v5937, %v5673
        %v5970 = vmul.f32 %v5938, %v5675
        %v5971 = vmul.f32 %v5939, %v5677
        %v5972 = vmul.f32 %v5940, %v5679
        %v5973 = vmul.f32 %v5941, %v5683
        %v5974 = vmul.f32 %v5942, %v5685
        %v5975 = vmul.f32 %v5943, %v5687
        %v5976 = vmul.f32 %v5944, %v5689
        %v5977 = vmul.f32 %v5945, %v5693
        %v5978 = vmul.f32 %v5946, %v5695
        %v5979 = vmul.f32 %v5947, %v5697
        %v5980 = vmul.f32 %v5948, %v5699
        %v5981 = vmul.f32 %v5949, %v5703
        %v5982 = vmul.f32 %v5950, %v5705
        %v5983 = vmul.f32 %v5951, %v5707
        %v5984 = vmul.f32 %v5952, %v5709
        %v5985 = vmul.f32 %v5953, %v5713
        %v5986 = vmul.f32 %v5954, %v5715
        %v5987 = vmul.f32 %v5955, %v5717
        %v5988 = vmul.f32 %v5956, %v5719
        %v5989 = vmul.f32 %v5957, %v5723
        %v5990 = vmul.f32 %v5958, %v5725
        %v5991 = vmul.f32 %v5959, %v5727
        %v5992 = vmul.f32 %v5960, %v5729
        %v5993 = vmul.f32 %v5961, %v5733
        %v5994 = vmul.f32 %v5962, %v5735
        %v5995 = vmul.f32 %v5963, %v5737
        %v5996 = vmul.f32 %v5964, %v5739
        %v5997 = vpack.c.bf16 %v5967, %v5965
        %v5998 = vpack.c.bf16 %v5968, %v5966
        %v5999 = vpack.c.bf16 %v5971, %v5969
        %v6000 = vpack.c.bf16 %v5972, %v5970
        %v6001 = vpack.c.bf16 %v5975, %v5973
        %v6002 = vpack.c.bf16 %v5976, %v5974
        %v6003 = vpack.c.bf16 %v5979, %v5977
        %v6004 = vpack.c.bf16 %v5980, %v5978
        %v6005 = vpack.c.bf16 %v5983, %v5981
        %v6006 = vpack.c.bf16 %v5984, %v5982
        %v6007 = vpack.c.bf16 %v5987, %v5985
        %v6008 = vpack.c.bf16 %v5988, %v5986
        %v6009 = vpack.c.bf16 %v5991, %v5989
        %v6010 = vpack.c.bf16 %v5992, %v5990
        %v6011 = vpack.c.bf16 %v5995, %v5993
        %v6012 = vpack.c.bf16 %v5996, %v5994
        %v6013 = vld [vmem:[#allocation25] sm:$0xf]
        %v6014 = vld [vmem:[#allocation25 + $0x4] sm:$0xf]
        %v6015 = vld [vmem:[#allocation25 + $0x8] sm:$0xf]
        %v6016 = vld [vmem:[#allocation25 + $0xc] sm:$0xf]
        %v6017 = vld [vmem:[#allocation25 + $0x10] sm:$0xf]
        %v6018 = vld [vmem:[#allocation25 + $0x14] sm:$0xf]
        %v6019 = vld [vmem:[#allocation25 + $0x18] sm:$0xf]
        %v6020 = vld [vmem:[#allocation25 + $0x1c] sm:$0xf]
        %v6021 = vld [vmem:[#allocation25 + $0x20] sm:$0xf]
        %v6022 = vld [vmem:[#allocation25 + $0x24] sm:$0xf]
        %v6023 = vld [vmem:[#allocation25 + $0x28] sm:$0xf]
        %v6024 = vld [vmem:[#allocation25 + $0x2c] sm:$0xf]
        %v6025 = vld [vmem:[#allocation25 + $0x30] sm:$0xf]
        %v6026 = vld [vmem:[#allocation25 + $0x34] sm:$0xf]
        %v6027 = vld [vmem:[#allocation25 + $0x38] sm:$0xf]
        %v6028 = vld [vmem:[#allocation25 + $0x3c] sm:$0xf]
        %v6029 = vld [vmem:[#allocation25 + $0x40] sm:$0xf]
        %v6030 = vld [vmem:[#allocation25 + $0x44] sm:$0xf]
        %v6031 = vld [vmem:[#allocation25 + $0x48] sm:$0xf]
        %v6032 = vld [vmem:[#allocation25 + $0x4c] sm:$0xf]
        %v6033 = vld [vmem:[#allocation25 + $0x50] sm:$0xf]
        %v6034 = vld [vmem:[#allocation25 + $0x54] sm:$0xf]
        %v6035 = vld [vmem:[#allocation25 + $0x58] sm:$0xf]
        %v6036 = vld [vmem:[#allocation25 + $0x5c] sm:$0xf]
        %v6037 = vld [vmem:[#allocation25 + $0x60] sm:$0xf]
        %v6038 = vld [vmem:[#allocation25 + $0x64] sm:$0xf]
        %v6039 = vld [vmem:[#allocation25 + $0x68] sm:$0xf]
        %v6040 = vld [vmem:[#allocation25 + $0x6c] sm:$0xf]
        %v6041 = vld [vmem:[#allocation25 + $0x70] sm:$0xf]
        %v6042 = vld [vmem:[#allocation25 + $0x74] sm:$0xf]
        %v6043 = vld [vmem:[#allocation25 + $0x78] sm:$0xf]
        %v6044 = vld [vmem:[#allocation25 + $0x7c] sm:$0xf]
        %v6045 = vld [vmem:[#allocation26] sm:$0x1]
        %v6047 = vlaneseq
        %v6048 = vshrl.u32 %v6047, 7
        %v6049 = vsub.s32 0, %v6048
        %v6050 = vrot.slane %v6045, %v6049
        %v6084 = vunpack.c.l.b16 %v6013
        %v6085 = vunpack.c.l.b16 %v6014
        %v6086 = vunpack.c.l.b16 %v6015
        %v6087 = vunpack.c.l.b16 %v6016
        %v6088 = vunpack.c.l.b16 %v6017
        %v6089 = vunpack.c.l.b16 %v6018
        %v6090 = vunpack.c.l.b16 %v6019
        %v6091 = vunpack.c.l.b16 %v6020
        %v6092 = vunpack.c.l.b16 %v6021
        %v6093 = vunpack.c.l.b16 %v6022
        %v6094 = vunpack.c.l.b16 %v6023
        %v6095 = vunpack.c.l.b16 %v6024
        %v6096 = vunpack.c.l.b16 %v6025
        %v6097 = vunpack.c.l.b16 %v6026
        %v6098 = vunpack.c.l.b16 %v6027
        %v6099 = vunpack.c.l.b16 %v6028
        %v6100 = vunpack.c.l.b16 %v6029
        %v6101 = vunpack.c.l.b16 %v6030
        %v6102 = vunpack.c.l.b16 %v6031
        %v6103 = vunpack.c.l.b16 %v6032
        %v6104 = vunpack.c.l.b16 %v6033
        %v6105 = vunpack.c.l.b16 %v6034
        %v6106 = vunpack.c.l.b16 %v6035
        %v6107 = vunpack.c.l.b16 %v6036
        %v6108 = vunpack.c.l.b16 %v6037
        %v6109 = vunpack.c.l.b16 %v6038
        %v6110 = vunpack.c.l.b16 %v6039
        %v6111 = vunpack.c.l.b16 %v6040
        %v6112 = vunpack.c.l.b16 %v6041
        %v6113 = vunpack.c.l.b16 %v6042
        %v6114 = vunpack.c.l.b16 %v6043
        %v6115 = vunpack.c.l.b16 %v6044
        %v6116 = vpack.c.b16 %v6085, %v6084
        %v6117 = vpack.c.b16 %v6087, %v6086
        %v6118 = vpack.c.b16 %v6089, %v6088
        %v6119 = vpack.c.b16 %v6091, %v6090
        %v6120 = vpack.c.b16 %v6093, %v6092
        %v6121 = vpack.c.b16 %v6095, %v6094
        %v6122 = vpack.c.b16 %v6097, %v6096
        %v6123 = vpack.c.b16 %v6099, %v6098
        %v6124 = vpack.c.b16 %v6101, %v6100
        %v6125 = vpack.c.b16 %v6103, %v6102
        %v6126 = vpack.c.b16 %v6105, %v6104
        %v6127 = vpack.c.b16 %v6107, %v6106
        %v6128 = vpack.c.b16 %v6109, %v6108
        %v6129 = vpack.c.b16 %v6111, %v6110
        %v6130 = vpack.c.b16 %v6113, %v6112
        %v6131 = vpack.c.b16 %v6115, %v6114
        %6148 = vmatprep.subr.bf16.mxu0 0
        %6149 = vmatpush1.bf16.msra.mxu0 %v6116
        %6150 = vmatprep.subr.bf16.mxu0 0
        %6151 = vmatpush1.bf16.msra.mxu0 %v6117
        %6152 = vmatprep.subr.bf16.mxu0 0
        %6153 = vmatpush1.bf16.msra.mxu0 %v6118
        %6154 = vmatprep.subr.bf16.mxu0 0
        %6155 = vmatpush1.bf16.msra.mxu0 %v6119
        %6156 = vmatprep.subr.bf16.mxu0 0
        %6157 = vmatpush1.bf16.msra.mxu0 %v6120
        %6158 = vmatprep.subr.bf16.mxu0 0
        %6159 = vmatpush1.bf16.msra.mxu0 %v6121
        %6160 = vmatprep.subr.bf16.mxu0 0
        %6161 = vmatpush1.bf16.msra.mxu0 %v6122
        %6162 = vmatprep.subr.bf16.mxu0 0
        %6163 = vmatpush1.bf16.msra.mxu0 %v6123
        %6164 = vmatprep.subr.bf16.mxu0 0
        %6165 = vmatpush1.bf16.msra.mxu0 %v6124
        %6166 = vmatprep.subr.bf16.mxu0 0
        %6167 = vmatpush1.bf16.msra.mxu0 %v6125
        %6168 = vmatprep.subr.bf16.mxu0 0
        %6169 = vmatpush1.bf16.msra.mxu0 %v6126
        %6170 = vmatprep.subr.bf16.mxu0 0
        %6171 = vmatpush1.bf16.msra.mxu0 %v6127
        %6172 = vmatprep.subr.bf16.mxu0 0
        %6173 = vmatpush1.bf16.msra.mxu0 %v6128
        %6174 = vmatprep.subr.bf16.mxu0 0
        %6175 = vmatpush1.bf16.msra.mxu0 %v6129
        %6176 = vmatprep.subr.bf16.mxu0 0
        %6177 = vmatpush1.bf16.msra.mxu0 %v6130
        %6178 = vmatprep.subr.bf16.mxu0 0
        %6179 = vmatpush1.bf16.msra.mxu0 %v6131
        %6180 = vmatprep.mubr.bf16.mxu0 %v5998
        %6181 = vmatmul.mubr.bf16.gmra.mrb[0].mxu0 %v5997
        %v6182 = vpop.f32.mrb[0].mxu0
        %v6183 = vadd.f32 %v6050, %v6182
        %v6184 = vpop.f32.mrb[0].mxu0
        %v6185 = vpop.f32.mrb[0].mxu0
        %v6186 = vadd.f32 %v6050, %v6185
        %v6187 = vpop.f32.mrb[0].mxu0
        %6188 = vmatprep.mubr.bf16.mxu0 %v6000
        %6189 = vmatmul.mubr.bf16.gmra.mrb[0].mxu0 %v5999
        %v6190 = vpop.f32.mrb[0].mxu0
        %v6191 = vadd.f32 %v6050, %v6190
        %v6192 = vpop.f32.mrb[0].mxu0
        %v6193 = vpop.f32.mrb[0].mxu0
        %v6194 = vadd.f32 %v6050, %v6193
        %v6195 = vpop.f32.mrb[0].mxu0
        %6196 = vmatprep.mubr.bf16.mxu0 %v6002
        %6197 = vmatmul.mubr.bf16.gmra.mrb[0].mxu0 %v6001
        %v6198 = vpop.f32.mrb[0].mxu0
        %v6199 = vadd.f32 %v6050, %v6198
        %v6200 = vpop.f32.mrb[0].mxu0
        %v6201 = vpop.f32.mrb[0].mxu0
        %v6202 = vadd.f32 %v6050, %v6201
        %v6203 = vpop.f32.mrb[0].mxu0
        %6204 = vmatprep.mubr.bf16.mxu0 %v6004
        %6205 = vmatmul.mubr.bf16.gmra.mrb[0].mxu0 %v6003
        %v6206 = vpop.f32.mrb[0].mxu0
        %v6207 = vadd.f32 %v6050, %v6206
        %v6208 = vpop.f32.mrb[0].mxu0
        %v6209 = vpop.f32.mrb[0].mxu0
        %v6210 = vadd.f32 %v6050, %v6209
        %v6211 = vpop.f32.mrb[0].mxu0
        %6212 = vmatprep.mubr.bf16.mxu0 %v6006
        %6213 = vmatmul.mubr.bf16.gmra.mrb[0].mxu0 %v6005
        %v6214 = vpop.f32.mrb[0].mxu0
        %v6215 = vadd.f32 %v6050, %v6214
        %v6216 = vpop.f32.mrb[0].mxu0
        %v6217 = vpop.f32.mrb[0].mxu0
        %v6218 = vadd.f32 %v6050, %v6217
        %v6219 = vpop.f32.mrb[0].mxu0
        %6220 = vmatprep.mubr.bf16.mxu0 %v6008
        %6221 = vmatmul.mubr.bf16.gmra.mrb[0].mxu0 %v6007
        %v6222 = vpop.f32.mrb[0].mxu0
        %v6223 = vadd.f32 %v6050, %v6222
        %v6224 = vpop.f32.mrb[0].mxu0
        %v6225 = vpop.f32.mrb[0].mxu0
        %v6226 = vadd.f32 %v6050, %v6225
        %v6227 = vpop.f32.mrb[0].mxu0
        %6228 = vmatprep.mubr.bf16.mxu0 %v6010
        %6229 = vmatmul.mubr.bf16.gmra.mrb[0].mxu0 %v6009
        %v6230 = vpop.f32.mrb[0].mxu0
        %v6231 = vadd.f32 %v6050, %v6230
        %v6232 = vpop.f32.mrb[0].mxu0
        %v6233 = vpop.f32.mrb[0].mxu0
        %v6234 = vadd.f32 %v6050, %v6233
        %v6235 = vpop.f32.mrb[0].mxu0
        %6236 = vmatprep.mubr.bf16.mxu0 %v6012
        %6237 = vmatmul.mubr.bf16.gmra.mrb[0].mxu0 %v6011
        %v6238 = vpop.f32.mrb[0].mxu0
        %v6239 = vadd.f32 %v6050, %v6238
        %v6240 = vpop.f32.mrb[0].mxu0
        %v6241 = vpop.f32.mrb[0].mxu0
        %v6242 = vadd.f32 %v6050, %v6241
        %v6243 = vpop.f32.mrb[0].mxu0
        %6244 = vdwg.mxu0
        %v6245 = vadd.f32 %v6183, %v5054
        %v6246 = vadd.f32 %v6186, %v5055
        %v6247 = vadd.f32 %v6191, %v5056
        %v6248 = vadd.f32 %v6194, %v5057
        %v6249 = vadd.f32 %v6199, %v5058
        %v6250 = vadd.f32 %v6202, %v5059
        %v6251 = vadd.f32 %v6207, %v5060
        %v6252 = vadd.f32 %v6210, %v5061
        %v6253 = vadd.f32 %v6215, %v5062
        %v6254 = vadd.f32 %v6218, %v5063
        %v6255 = vadd.f32 %v6223, %v5064
        %v6256 = vadd.f32 %v6226, %v5065
        %v6257 = vadd.f32 %v6231, %v5066
        %v6258 = vadd.f32 %v6234, %v5067
        %v6259 = vadd.f32 %v6239, %v5068
        %v6260 = vadd.f32 %v6242, %v5069
        %6261 = vst [vmem:[%s701] sm:$0xff] %v6245
        %6262 = vst [vmem:[%s701 + $0x8] sm:$0xff] %v6246
        %6263 = vst [vmem:[%s701 + $0x10] sm:$0xff] %v6247
        %6264 = vst [vmem:[%s701 + $0x18] sm:$0xff] %v6248
        %6265 = vst [vmem:[%s701 + $0x20] sm:$0xff] %v6249
        %6266 = vst [vmem:[%s701 + $0x28] sm:$0xff] %v6250
        %6267 = vst [vmem:[%s701 + $0x30] sm:$0xff] %v6251
        %6268 = vst [vmem:[%s701 + $0x38] sm:$0xff] %v6252
        %6269 = vst [vmem:[%s701 + $0x40] sm:$0xff] %v6253
        %6270 = vst [vmem:[%s701 + $0x48] sm:$0xff] %v6254
        %6271 = vst [vmem:[%s701 + $0x50] sm:$0xff] %v6255
        %6272 = vst [vmem:[%s701 + $0x58] sm:$0xff] %v6256
        %6273 = vst [vmem:[%s701 + $0x60] sm:$0xff] %v6257
        %6274 = vst [vmem:[%s701 + $0x68] sm:$0xff] %v6258
        %6275 = vst [vmem:[%s701 + $0x70] sm:$0xff] %v6259
        %6276 = vst [vmem:[%s701 + $0x78] sm:$0xff] %v6260
        %s6277 = sand.u32 %s368, 1
        %s6278 = scalar_lea.sflag [#allocation7], %s6277
        %s6279 = sand.u32 %s368, 1
        %s6280 = smul.addr %s6279, 128
        %s6281 = scalar_lea.vmem [#allocation28], %s6280
        // Predicated region
        $region137: #{tpu_custom_call.1} parent=75 // pred_check
          %p6282 = pneg %p378
        $region138: #{tpu_custom_call.1} parent=75 // pred_check_branch
          %6284 = sbr.rel (%p6282) target = $region140
        $region139: #{tpu_custom_call.1} parent=75 // pred_region
          %s6285 = smul.u32 16, %s45
          %s6287 = ssub.s32 2048, 2048
          %6288 = vsyncadd %s6278, %s6287
          %s6289 = smul.addr %s44, 32
          %s6290 = sadd.s32 %s6285, %s6289
          %s6291 = smul.addr %s6290, 128
          %s6292 = scalar_lea.hbm %s14, %s6291
          %s6293 = sshll.u32 %s6281, 4
          %s6294 = int_to_ptr.vmem [resolvable:$true] %s6293
          %6299 = dma.vmem_to_hbm [thread:$0]  %s6294, 2048, %s6292, %s6278, 128, 128, 8
        $region140: #{tpu_custom_call.1} parent=75 // pred_fallthru
          _
      $region76: #{tpu_custom_call.1} parent=5 // pred_fallthru
        _
      %p6300 = scmp.le.s32.totalorder 2, %s35
      // Predicated region
      $region141: #{tpu_custom_call.1} parent=5 // pred_check
        %p6301 = pneg %p6300
      $region142: #{tpu_custom_call.1} parent=5 // pred_check_branch
        %6303 = sbr.rel (%p6301) target = $region144
      $region143: #{tpu_custom_call.1} parent=5 // pred_region
        %s6304 = ssub.s32 %s35, 2
        // Predicated region
        $region145: #{tpu_custom_call.1} parent=143 // pred_check
          %p6305 = pneg %p384
        $region146: #{tpu_custom_call.1} parent=143 // pred_check_branch
          %6307 = sbr.rel (%p6305) target = $region148
        $region147: #{tpu_custom_call.1} parent=143 // pred_region
          %s6308 = sand.u32 %s369, 1
          %s6309 = scalar_lea.sflag [#allocation7], %s6308
          %s6310 = sand.u32 %s369, 1
          %s6311 = smul.addr %s6310, 128
          %s6312 = scalar_lea.vmem [#allocation28], %s6311
          %6313 = dma.done %s6309, 2048
        $region148: #{tpu_custom_call.1} parent=143 // pred_fallthru
          _
      $region144: #{tpu_custom_call.1} parent=5 // pred_fallthru
        _
    $region6: #{tpu_custom_call.1} parent=1 // loop_footer
      %s39 = sadd.s32 1, %s35
    $region7: #{tpu_custom_call.1} parent=1 // loop_footer_branch
      %34 = sbr.rel target = $region3
    $region8: #{tpu_custom_call.1} parent=1 // loop_exit
      _
    %6314 = vsyncpa [#allocation6], 1
    %s6315 = scalar_lea.sflag [#allocation6], 1
    %6316 = vsyncpa %s6315, 1
    %6317 = vsyncpa [#allocation9], 1
    %s6318 = scalar_lea.sflag [#allocation9], 1
    %6319 = vsyncpa %s6318, 1
    %6320 = vsyncpa [#allocation12], 1
    %6321 = vsyncpa [#allocation15], 1
    %6322 = vsyncpa [#allocation18], 1
    %6323 = vsyncpa [#allocation21], 1
    %6324 = vsyncpa [#allocation24], 1
    %6325 = vsyncpa [#allocation27], 1
    %6326 = vsyncpa [#allocation7], 1
    %s6327 = scalar_lea.sflag [#allocation7], 1
    %6328 = vsyncpa %s6327, 1

</llo_original>
